<compile_context>
chip_gen: v6e
topology: v6e:2x2x1
jax: 0.10.0
libtpu: 0.0.40
codegen_flags: <defaults>
</compile_context>

<pallas_src>
import math

import jax
import jax.numpy as jnp
from jax.experimental import pallas as pl
from jax.experimental.pallas import tpu as pltpu

# ----- Config constants (mirroring Config in the PyTorch source) -----
DIM_X = 20
DIM_U = 20
DIM_W = 20
DIM_L = 1
MC_SAMPLE_SIZE = 10
TIME_STEPS = 8                 # reduced from 200 for a small, fast example
TERMINAL_TIME = 1.0
DELTA_T = TERMINAL_TIME / TIME_STEPS
JUMP_INTENSITY = 5.0
JUMP_SIZE_MEAN = -0.02
LAMBDA = 0.05
RHO = 0.05                     # config.rho(t)
MU = 0.1                       # config.mu(t)
BN_EPS = 1e-6

# Per-net kernel-visible parameter fields (input BN + t column already folded
# into the first dense layer: w1x = diag(g0x) @ w1[x-rows], bias1 = folded bias).
_NET_FIELDS = ["w1x", "bias1", "g1", "b1", "w2", "g2", "b2",
               "w3", "g3", "b3", "w4", "bias4", "g4", "b4"]


def _net_names(prefix):
    return [f"{prefix}_{f}" for f in _NET_FIELDS]


# Ordering of the kernel input refs (shared by wrapper and kernel).
ARG_NAMES = (["dW", "mask", "p_init", "z_jump", "E_jump", "R_jump",
              "E_mc", "R_mc", "TILE_W", "GSUM", "r_h1zj", "r_h1zm"]
             + _net_names("u") + _net_names("q") + _net_names("r"))


# ---------------------------------------------------------------------------
# The single fused kernel: the whole time loop runs in one invocation.
# ---------------------------------------------------------------------------
def _whole_net_kernel(*refs):
    n_in = len(ARG_NAMES)
    R = dict(zip(ARG_NAMES, refs[:n_in]))
    x_out, p_out, ih_out = refs[n_in:]

    f32 = jnp.float32
    T = R["dW"].shape[0]
    B = R["dW"].shape[1]
    dim_w = R["dW"].shape[2]
    BC = R["E_jump"].shape[0]
    BM = R["E_mc"].shape[0]
    dim_x = x_out.shape[1]
    dim_u = ih_out.shape[1]
    dim_xw = R["GSUM"].shape[0]

    # Loop-invariant constants: ones vectors so ALL reductions become tiny
    # MXU matmuls instead of XLU cross-sublane / cross-lane reductions.
    ones_rows = {B: jnp.ones((1, B), f32),
                 BC: jnp.ones((1, BC), f32),
                 BM: jnp.ones((1, BM), f32)}
    inv_rows = {B: 1.0 / B, BC: 1.0 / BC, BM: 1.0 / BM}
    col1_x = jnp.ones((dim_x, 1), f32)       # lane sum over dim_X
    col1_w = jnp.ones((dim_w, 1), f32)       # lane sum over dim_W
    col1_xw = jnp.ones((dim_xw, 1), f32)     # lane sum over dim_X*dim_W

    z_jump = R["z_jump"][...]
    Ej = R["E_jump"][...]
    Rj = R["R_jump"][...]
    Em = R["E_mc"][...]
    Rm = R["R_mc"][...]
    TILE_W = R["TILE_W"][...]
    GSUM = R["GSUM"][...]
    r_h1zj = R["r_h1zj"][...]
    r_h1zm = R["r_h1zm"][...]

    def bn(h, gname, bname):
        # BatchNorm1d, training mode: batch mean, biased variance, eps=1e-6.
        # Both reductions run as (1, rows) @ (rows, F) matmuls on the MXU.
        rows = h.shape[0]
        ones_r = ones_rows[rows]
        inv = inv_rows[rows]
        mean = jnp.dot(ones_r, h, preferred_element_type=f32) * inv
        d = h - mean
        var = jnp.dot(ones_r, d * d, preferred_element_type=f32) * inv
        return d * jax.lax.rsqrt(var + BN_EPS) * R[gname][...] + R[bname][...]

    def mlp_rest(p_, h1):
        # h1 is the output of the (folded) first dense layer.
        h = jnp.maximum(bn(h1, f"{p_}_g1", f"{p_}_b1"), 0.0)
        h = jnp.maximum(bn(jnp.dot(h, R[f"{p_}_w2"][...],
                                   preferred_element_type=f32),
                           f"{p_}_g2", f"{p_}_b2"), 0.0)
        h = jnp.maximum(bn(jnp.dot(h, R[f"{p_}_w3"][...],
                                   preferred_element_type=f32),
                           f"{p_}_g3", f"{p_}_b3"), 0.0)
        h = jnp.dot(h, R[f"{p_}_w4"][...],
                    preferred_element_type=f32) + R[f"{p_}_bias4"][...]
        return bn(h, f"{p_}_g4", f"{p_}_b4")

    def step(i, carry):
        X, p, ih = carry                  # (B,X), (B,X), (B,U)
        dW_i = R["dW"][i]                 # (B, W)    this step's Brownian increment
        mask_i = R["mask"][i]             # (B*C, 1)  this step's jump mask, row (b,c)

        # --- shared first-layer x normalization (one set of stats per step) ---
        xm = jnp.dot(ones_rows[B], X, preferred_element_type=f32) * inv_rows[B]
        xd = X - xm
        xv = jnp.dot(ones_rows[B], xd * xd, preferred_element_type=f32) * inv_rows[B]
        x_hat = xd * jax.lax.rsqrt(xv + BN_EPS)                     # (B, X)

        # --- folded first dense layers (gamma/beta folded into w1x / bias1) ---
        u_h1 = jnp.dot(x_hat, R["u_w1x"][...],
                       preferred_element_type=f32) + R["u_bias1"][...]
        q_h1 = jnp.dot(x_hat, R["q_w1x"][...],
                       preferred_element_type=f32) + R["q_bias1"][...]
        r_h1x = jnp.dot(x_hat, R["r_w1x"][...],
                        preferred_element_type=f32)                 # (B, H1r)
        # broadcast the (B, H1r) x-contribution to jump / MC rows via 0/1 matmuls
        r_h1j = jnp.dot(Ej, r_h1x, preferred_element_type=f32) \
            + R["r_bias1"][...] + r_h1zj                            # (B*C, H1r)
        r_h1m = jnp.dot(Em, r_h1x, preferred_element_type=f32) \
            + R["r_bias1"][...] + r_h1zm                            # (B*M, H1r)

        # --- the four network evaluations (separate BN batch stats, as ref) ---
        u = mlp_rest("u", u_h1)           # (B, dim_u)
        q_flat = mlp_rest("q", q_h1)      # (B, dim_X*dim_W)
        r_jump = mlp_rest("r", r_h1j)     # (B*C, dim_X)
        r_mc = mlp_rest("r", r_h1m)       # (B*M, dim_X)

        # --- row sums as matmuls (kept off the XLU) ---
        s_p = jnp.dot(p, col1_x, preferred_element_type=f32)        # (B,1)
        s_q = jnp.dot(q_flat, col1_xw, preferred_element_type=f32)  # (B,1)
        s_dW = jnp.dot(dW_i, col1_w, preferred_element_type=f32)    # (B,1)

        mz = mask_i * z_jump              # (B*C, X)
        mr = mask_i * r_jump              # (B*C, X)

        # --- Hamiltonian control derivative (constant einsums in closed form) ---
        Hu = (MU - RHO) * s_p + 0.2 * s_q + JUMP_INTENSITY * jnp.dot(
            Rj, mz * r_jump, preferred_element_type=f32)            # (B, dim_u)
        ih_new = ih + Hu * Hu

        # --- adjoint p update ---
        dW_tiled = jnp.dot(dW_i, TILE_W, preferred_element_type=f32)   # (B, X*W)
        p_diff = jnp.dot(q_flat * dW_tiled, GSUM,                      # einsum('bxw,bw->bx')
                         preferred_element_type=f32)
        p_new = (p - RHO * s_p + p_diff
                 + jnp.dot(Rj, mr, preferred_element_type=f32)
                 - (JUMP_INTENSITY * DELTA_T / MC_SAMPLE_SIZE)
                 * jnp.dot(Rm, r_mc, preferred_element_type=f32))

        # --- state X update ---
        X_new = (X + (RHO * X + (MU - RHO) * u) * DELTA_T
                 + X * (0.2 * u * s_dW)
                 + u * jnp.dot(Rj, mz, preferred_element_type=f32)
                 - (JUMP_INTENSITY * JUMP_SIZE_MEAN * DELTA_T) * u)

        return X_new, p_new, ih_new

    X0 = jnp.ones((B, dim_x), f32)                                   # X_init
    p0 = jnp.broadcast_to(R["p_init"][...], (B, dim_x))
    ih0 = jnp.zeros((B, dim_u), f32)

    X_f, p_f, ih_f = jax.lax.fori_loop(0, T, step, (X0, p0, ih0))

    x_out[...] = X_f
    p_out[...] = p_f
    ih_out[...] = ih_f


# ---------------------------------------------------------------------------
# Wrapper: parameter folding, time-independent precompute, pallas_call.
# ---------------------------------------------------------------------------
def _bn_train(h, g, b):
    m = jnp.mean(h, axis=0, keepdims=True)
    v = jnp.mean((h - m) ** 2, axis=0, keepdims=True)
    return (h - m) * jax.lax.rsqrt(v + BN_EPS) * g + b


def _fold_tx_net(p):
    """Nets with input [t, x] (u_net / q_net): fold input-BN gamma/beta and the
    constant-t column (whose BN output is exactly beta) into the first dense."""
    g0, b0, w1 = p["g0"], p["b0"], p["w1"]
    out = {
        "w1x": w1[1:, :] * g0[:, 1:].T,
        "bias1": b0[:, 0:1] * w1[0:1, :] + b0[:, 1:] @ w1[1:, :],
    }
    for f in _NET_FIELDS[2:]:
        out[f] = p[f]
    return out


def _fold_r_net(p):
    """r_net input is [t, x, z]: fold t + x parts; z part handled separately."""
    g0, b0, w1 = p["g0"], p["b0"], p["w1"]
    gx = g0[:, 1:1 + DIM_X]
    bx = b0[:, 1:1 + DIM_X]
    wx = w1[1:1 + DIM_X, :]
    out = {
        "w1x": wx * gx.T,
        "bias1": b0[:, 0:1] * w1[0:1, :] + bx @ wx,
    }
    for f in _NET_FIELDS[2:]:
        out[f] = p[f]
    z_part = {"g0z": g0[:, 1 + DIM_X:], "b0z": b0[:, 1 + DIM_X:],
              "w1z": w1[1 + DIM_X:, :]}
    return out, z_part


def whole_net_forward(params, delta_W_TBW, jump_mask_TBLC, jump_sizes_BLCX,
                      mc_points_LMX):
    T, B, _ = delta_W_TBW.shape
    C = jump_mask_TBLC.shape[3]
    M = MC_SAMPLE_SIZE
    f32 = jnp.float32

    # Constant 0/1 matrices: all structural rearrangements become 2-D matmuls.
    eyeB = jnp.eye(B, dtype=f32)
    E_jump = jnp.repeat(eyeB, C, axis=0)                          # (B*C, B)
    R_jump = E_jump.T                                             # (B, B*C)
    E_mc = jnp.repeat(eyeB, M, axis=0)                            # (B*M, B)
    R_mc = E_mc.T                                                 # (B, B*M)
    TILE_W = jnp.tile(jnp.eye(DIM_W, dtype=f32), (1, DIM_X))      # (W, X*W)
    GSUM = jnp.repeat(jnp.eye(DIM_X, dtype=f32), DIM_W, axis=0)   # (X*W, X)

    u_p = _fold_tx_net(params["u_net"])
    q_p = _fold_tx_net(params["q_net"])
    r_p, r_z = _fold_r_net(params["r_nets"][0])
    # TODO(synk): DIM_L is assumed to be 1 (the reference Config warns otherwise);
    # only r_nets[0] / the l=0 slices are used.

    # Time-independent pieces of the r_net input: z never changes, so its BN
    # output and first-layer contribution are computed once, outside the loop.
    z_jump = jump_sizes_BLCX[:, 0].reshape(B * C, DIM_X).astype(f32)
    z_mc = jnp.tile(mc_points_LMX[0], (B, 1)).astype(f32)                    # (B*M, X)
    r_h1zj = _bn_train(z_jump, r_z["g0z"], r_z["b0z"]) @ r_z["w1z"]          # (B*C, H1)
    r_h1zm = _bn_train(z_mc, r_z["g0z"], r_z["b0z"]) @ r_z["w1z"]            # (B*M, H1)

    mask_rows = jump_mask_TBLC[:, :, 0, :].reshape(T, B * C, 1).astype(f32)

    args = {
        "dW": delta_W_TBW.astype(f32),
        "mask": mask_rows,
        "p_init": params["p_init"].astype(f32),
        "z_jump": z_jump, "E_jump": E_jump, "R_jump": R_jump,
        "E_mc": E_mc, "R_mc": R_mc, "TILE_W": TILE_W, "GSUM": GSUM,
        "r_h1zj": r_h1zj, "r_h1zm": r_h1zm,
    }
    for pre, d in (("u", u_p), ("q", q_p), ("r", r_p)):
        for f in _NET_FIELDS:
            args[f"{pre}_{f}"] = d[f].astype(f32)

    ordered = [args[n] for n in ARG_NAMES]

    vmem_spec = pl.BlockSpec(memory_space=pltpu.MemorySpace.VMEM)
    out_shapes = (jax.ShapeDtypeStruct((B, DIM_X), f32),
                  jax.ShapeDtypeStruct((B, DIM_X), f32),
                  jax.ShapeDtypeStruct((B, DIM_U), f32))

    X_fin, p_fin, int_Hu = pl.pallas_call(
        _whole_net_kernel,
        out_shape=out_shapes,
        in_specs=[vmem_spec] * len(ordered),
        out_specs=(vmem_spec, vmem_spec, vmem_spec),
    )(*ordered)

    # Final (tiny) scalar reductions in plain JAX, exactly as in the reference.
    terminal_value_loss = p_fin - (-X_fin + 1.1)                    # p - g_x(X)
    sq = jnp.sum(terminal_value_loss ** 2, axis=1, keepdims=True)   # (B, 1)
    loss = jnp.mean(sq + LAMBDA * int_Hu)                           # (B,1)+(B,U) broadcast
    ratio = jnp.mean(sq) / jnp.mean(int_Hu)
    performance = jnp.mean(-0.5 * jnp.sum((X_fin - 1.1) ** 2, axis=1, keepdims=True))
    return loss, performance, ratio


# ---------------------------------------------------------------------------
# Deterministic parameter initialization (shapes from the module's __init__)
# ---------------------------------------------------------------------------
def init_bn(key, dim):
    k1, k2 = jax.random.split(key)
    gamma = (0.3 + 0.2 * jax.random.normal(k1, (1, dim))).astype(jnp.float32)
    beta = (0.1 * jax.random.normal(k2, (1, dim))).astype(jnp.float32)
    return gamma, beta


def init_linear(key, d_in, d_out, bias):
    bound = 1.0 / math.sqrt(d_in)
    kw, kb = jax.random.split(key)
    w = jax.random.uniform(kw, (d_in, d_out), minval=-bound, maxval=bound,
                           dtype=jnp.float32)
    if bias:
        b = jax.random.uniform(kb, (1, d_out), minval=-bound, maxval=bound,
                               dtype=jnp.float32)
        return w, b
    return w, None


def init_mlp(key, d_in, hiddens, d_out):
    ks = jax.random.split(key, 9)
    p = {}
    p["g0"], p["b0"] = init_bn(ks[0], d_in)
    dims = [d_in] + list(hiddens)
    for i in range(3):
        p[f"w{i+1}"] = init_linear(ks[1 + i], dims[i], dims[i + 1], bias=False)[0]
        p[f"g{i+1}"], p[f"b{i+1}"] = init_bn(ks[4 + i], dims[i + 1])
    p["w4"], p["bias4"] = init_linear(ks[7], hiddens[-1], d_out, bias=True)
    p["g4"], p["b4"] = init_bn(ks[8], d_out)
    return p


if __name__ == "__main__":
    key = jax.random.PRNGKey(0)
    k_params, k_data = jax.random.split(key)
    kp = jax.random.split(k_params, 4)

    params = {
        "p_init": jax.random.normal(kp[0], (1, DIM_X), dtype=jnp.float32),
        # FNNetU: hiddens [dim_X+10]*3, out dim_u
        "u_net": init_mlp(kp[1], 1 + DIM_X, [DIM_X + 10] * 3, DIM_U),
        # FNNetQ: hiddens [dim_X+10, 2*dim_X+10, dim_X*dim_W+10], out dim_X*dim_W
        "q_net": init_mlp(kp[2], 1 + DIM_X,
                          [DIM_X + 10, DIM_X * 2 + 10, DIM_X * DIM_W + 10],
                          DIM_X * DIM_W),
        # FNNetR: hiddens [2*dim_X+10, 4*dim_X+10, 2*dim_X+10], out dim_X
        "r_nets": [init_mlp(kp[3], 1 + 2 * DIM_X,
                            [DIM_X * 2 + 10, DIM_X * 4 + 10, DIM_X * 2 + 10],
                            DIM_X)],
    }

    B = 8          # sample_size
    C = 4          # max jump count per path
    kd = jax.random.split(k_data, 4)
    delta_W_TBW = (jax.random.normal(kd[0], (TIME_STEPS, B, DIM_W))
                   * math.sqrt(DELTA_T)).astype(jnp.float32)
    jump_mask_TBLC = (jax.random.uniform(kd[1], (TIME_STEPS, B, DIM_L, C)) < 0.3
                      ).astype(jnp.float32)
    jump_sizes_BLCX = (JUMP_SIZE_MEAN
                       + 0.05 * jax.random.normal(kd[2], (B, DIM_L, C, DIM_X))
                       ).astype(jnp.float32)
    mc_points_LMX = (JUMP_SIZE_MEAN
                     + 0.05 * jax.random.normal(kd[3], (DIM_L, MC_SAMPLE_SIZE, DIM_X))
                     ).astype(jnp.float32)

    fwd = jax.jit(whole_net_forward)
    loss, performance, ratio = fwd(params, delta_W_TBW, jump_mask_TBLC,
                                   jump_sizes_BLCX, mc_points_LMX)
    jax.block_until_ready((loss, performance, ratio))
    if not (bool(jnp.isfinite(loss)) and bool(jnp.isfinite(performance))
            and bool(jnp.isfinite(ratio))):
        raise RuntimeError("non-finite outputs")
    print("KERNEL_OK")
</pallas_src>

<mosaic_0001>
module attributes {stable_mosaic.version = 11 : i64} {
  func.func @_whole_net_kernel(%arg0: memref<8x8x20xf32, #tpu.memory_space<vmem>>, %arg1: memref<8x32x1xf32, #tpu.memory_space<vmem>>, %arg2: memref<1x20xf32, #tpu.memory_space<vmem>>, %arg3: memref<32x20xf32, #tpu.memory_space<vmem>>, %arg4: memref<32x8xf32, #tpu.memory_space<vmem>>, %arg5: memref<8x32xf32, #tpu.memory_space<vmem>>, %arg6: memref<80x8xf32, #tpu.memory_space<vmem>>, %arg7: memref<8x80xf32, #tpu.memory_space<vmem>>, %arg8: memref<20x400xf32, #tpu.memory_space<vmem>>, %arg9: memref<400x20xf32, #tpu.memory_space<vmem>>, %arg10: memref<32x50xf32, #tpu.memory_space<vmem>>, %arg11: memref<80x50xf32, #tpu.memory_space<vmem>>, %arg12: memref<20x30xf32, #tpu.memory_space<vmem>>, %arg13: memref<1x30xf32, #tpu.memory_space<vmem>>, %arg14: memref<1x30xf32, #tpu.memory_space<vmem>>, %arg15: memref<1x30xf32, #tpu.memory_space<vmem>>, %arg16: memref<30x30xf32, #tpu.memory_space<vmem>>, %arg17: memref<1x30xf32, #tpu.memory_space<vmem>>, %arg18: memref<1x30xf32, #tpu.memory_space<vmem>>, %arg19: memref<30x30xf32, #tpu.memory_space<vmem>>, %arg20: memref<1x30xf32, #tpu.memory_space<vmem>>, %arg21: memref<1x30xf32, #tpu.memory_space<vmem>>, %arg22: memref<30x20xf32, #tpu.memory_space<vmem>>, %arg23: memref<1x20xf32, #tpu.memory_space<vmem>>, %arg24: memref<1x20xf32, #tpu.memory_space<vmem>>, %arg25: memref<1x20xf32, #tpu.memory_space<vmem>>, %arg26: memref<20x30xf32, #tpu.memory_space<vmem>>, %arg27: memref<1x30xf32, #tpu.memory_space<vmem>>, %arg28: memref<1x30xf32, #tpu.memory_space<vmem>>, %arg29: memref<1x30xf32, #tpu.memory_space<vmem>>, %arg30: memref<30x50xf32, #tpu.memory_space<vmem>>, %arg31: memref<1x50xf32, #tpu.memory_space<vmem>>, %arg32: memref<1x50xf32, #tpu.memory_space<vmem>>, %arg33: memref<50x410xf32, #tpu.memory_space<vmem>>, %arg34: memref<1x410xf32, #tpu.memory_space<vmem>>, %arg35: memref<1x410xf32, #tpu.memory_space<vmem>>, %arg36: memref<410x400xf32, #tpu.memory_space<vmem>>, %arg37: memref<1x400xf32, #tpu.memory_space<vmem>>, %arg38: memref<1x400xf32, #tpu.memory_space<vmem>>, %arg39: memref<1x400xf32, #tpu.memory_space<vmem>>, %arg40: memref<20x50xf32, #tpu.memory_space<vmem>>, %arg41: memref<1x50xf32, #tpu.memory_space<vmem>>, %arg42: memref<1x50xf32, #tpu.memory_space<vmem>>, %arg43: memref<1x50xf32, #tpu.memory_space<vmem>>, %arg44: memref<50x90xf32, #tpu.memory_space<vmem>>, %arg45: memref<1x90xf32, #tpu.memory_space<vmem>>, %arg46: memref<1x90xf32, #tpu.memory_space<vmem>>, %arg47: memref<90x50xf32, #tpu.memory_space<vmem>>, %arg48: memref<1x50xf32, #tpu.memory_space<vmem>>, %arg49: memref<1x50xf32, #tpu.memory_space<vmem>>, %arg50: memref<50x20xf32, #tpu.memory_space<vmem>>, %arg51: memref<1x20xf32, #tpu.memory_space<vmem>>, %arg52: memref<1x20xf32, #tpu.memory_space<vmem>>, %arg53: memref<1x20xf32, #tpu.memory_space<vmem>>, %arg54: memref<8x20xf32, #tpu.memory_space<vmem>>, %arg55: memref<8x20xf32, #tpu.memory_space<vmem>>, %arg56: memref<8x20xf32, #tpu.memory_space<vmem>>) attributes {dimension_semantics = [], scalar_prefetch = 0 : i64, scratch_operands = 0 : i64, tpu.core_type = #tpu.core_type<tc>} {
    %cst = arith.constant 1.000000e+00 : f32
    %0 = vector.broadcast %cst : f32 to vector<1x8xf32>
    %cst_0 = arith.constant 1.000000e+00 : f32
    %1 = vector.broadcast %cst_0 : f32 to vector<1x32xf32>
    %cst_1 = arith.constant 1.000000e+00 : f32
    %2 = vector.broadcast %cst_1 : f32 to vector<1x80xf32>
    %cst_2 = arith.constant 1.000000e+00 : f32
    %3 = vector.broadcast %cst_2 : f32 to vector<20x1xf32>
    %cst_3 = arith.constant 1.000000e+00 : f32
    %4 = vector.broadcast %cst_3 : f32 to vector<20x1xf32>
    %cst_4 = arith.constant 1.000000e+00 : f32
    %5 = vector.broadcast %cst_4 : f32 to vector<400x1xf32>
    %c0 = arith.constant 0 : index
    %c0_5 = arith.constant 0 : index
    %6 = vector.load %arg3[%c0, %c0_5] : memref<32x20xf32, #tpu.memory_space<vmem>>, vector<32x20xf32>
    %c0_6 = arith.constant 0 : index
    %c0_7 = arith.constant 0 : index
    %7 = vector.load %arg4[%c0_6, %c0_7] : memref<32x8xf32, #tpu.memory_space<vmem>>, vector<32x8xf32>
    %c0_8 = arith.constant 0 : index
    %c0_9 = arith.constant 0 : index
    %8 = vector.load %arg5[%c0_8, %c0_9] : memref<8x32xf32, #tpu.memory_space<vmem>>, vector<8x32xf32>
    %c0_10 = arith.constant 0 : index
    %c0_11 = arith.constant 0 : index
    %9 = vector.load %arg6[%c0_10, %c0_11] : memref<80x8xf32, #tpu.memory_space<vmem>>, vector<80x8xf32>
    %c0_12 = arith.constant 0 : index
    %c0_13 = arith.constant 0 : index
    %10 = vector.load %arg7[%c0_12, %c0_13] : memref<8x80xf32, #tpu.memory_space<vmem>>, vector<8x80xf32>
    %c0_14 = arith.constant 0 : index
    %c0_15 = arith.constant 0 : index
    %11 = vector.load %arg8[%c0_14, %c0_15] : memref<20x400xf32, #tpu.memory_space<vmem>>, vector<20x400xf32>
    %c0_16 = arith.constant 0 : index
    %c0_17 = arith.constant 0 : index
    %12 = vector.load %arg9[%c0_16, %c0_17] : memref<400x20xf32, #tpu.memory_space<vmem>>, vector<400x20xf32>
    %c0_18 = arith.constant 0 : index
    %c0_19 = arith.constant 0 : index
    %13 = vector.load %arg10[%c0_18, %c0_19] : memref<32x50xf32, #tpu.memory_space<vmem>>, vector<32x50xf32>
    %c0_20 = arith.constant 0 : index
    %c0_21 = arith.constant 0 : index
    %14 = vector.load %arg11[%c0_20, %c0_21] : memref<80x50xf32, #tpu.memory_space<vmem>>, vector<80x50xf32>
    %cst_22 = arith.constant 1.000000e+00 : f32
    %15 = vector.broadcast %cst_22 : f32 to vector<8x20xf32>
    %c0_23 = arith.constant 0 : index
    %c0_24 = arith.constant 0 : index
    %16 = vector.load %arg2[%c0_23, %c0_24] : memref<1x20xf32, #tpu.memory_space<vmem>>, vector<1x20xf32>
    %17 = vector.shape_cast %16 : vector<1x20xf32> to vector<1x20xf32>
    %18 = vector.broadcast %17 : vector<1x20xf32> to vector<8x20xf32>
    %cst_25 = arith.constant 0.000000e+00 : f32
    %19 = vector.broadcast %cst_25 : f32 to vector<8x20xf32>
    %c0_i32 = arith.constant 0 : i32
    %c8_i32 = arith.constant 8 : i32
    %20 = arith.addi %c0_i32, %c8_i32 : i32
    %c1_i32 = arith.constant 1 : i32
    %21:3 = scf.for %arg57 = %c0_i32 to %20 step %c1_i32 iter_args(%arg58 = %15, %arg59 = %18, %arg60 = %19) -> (vector<8x20xf32>, vector<8x20xf32>, vector<8x20xf32>)  : i32 {
      %25 = arith.index_cast %arg57 : i32 to index
      %c0_33 = arith.constant 0 : index
      %c0_34 = arith.constant 0 : index
      %26 = vector.load %arg0[%25, %c0_33, %c0_34] : memref<8x8x20xf32, #tpu.memory_space<vmem>>, vector<1x8x20xf32>
      %27 = vector.shape_cast %26 : vector<1x8x20xf32> to vector<8x20xf32>
      %28 = arith.index_cast %arg57 : i32 to index
      %c0_35 = arith.constant 0 : index
      %c0_36 = arith.constant 0 : index
      %29 = vector.load %arg1[%28, %c0_35, %c0_36] : memref<8x32x1xf32, #tpu.memory_space<vmem>>, vector<1x32x1xf32>
      %30 = vector.shape_cast %29 : vector<1x32x1xf32> to vector<32x1xf32>
      %cst_37 = arith.constant dense<0.000000e+00> : vector<1x20xf32>
      %31 = tpu.matmul %0, %arg58, %cst_37 {dimension_numbers = #tpu.dot_dimension_numbers<[1], [0], [0], [1], [0, 0, 1, 1], [], []>} : vector<1x8xf32>, vector<8x20xf32>, vector<1x20xf32> -> vector<1x20xf32>
      %cst_38 = arith.constant 1.250000e-01 : f32
      %32 = vector.broadcast %cst_38 : f32 to vector<1x20xf32>
      %33 = arith.mulf %31, %32 : vector<1x20xf32>
      %34 = vector.broadcast %33 : vector<1x20xf32> to vector<8x20xf32>
      %35 = arith.subf %arg58, %34 : vector<8x20xf32>
      %36 = arith.mulf %35, %35 : vector<8x20xf32>
      %cst_39 = arith.constant dense<0.000000e+00> : vector<1x20xf32>
      %37 = tpu.matmul %0, %36, %cst_39 {dimension_numbers = #tpu.dot_dimension_numbers<[1], [0], [0], [1], [0, 0, 1, 1], [], []>} : vector<1x8xf32>, vector<8x20xf32>, vector<1x20xf32> -> vector<1x20xf32>
      %cst_40 = arith.constant 1.250000e-01 : f32
      %38 = vector.broadcast %cst_40 : f32 to vector<1x20xf32>
      %39 = arith.mulf %37, %38 : vector<1x20xf32>
      %cst_41 = arith.constant 9.99999997E-7 : f32
      %40 = vector.broadcast %cst_41 : f32 to vector<1x20xf32>
      %41 = arith.addf %39, %40 : vector<1x20xf32>
      %42 = math.rsqrt %41 : vector<1x20xf32>
      %43 = vector.broadcast %42 : vector<1x20xf32> to vector<8x20xf32>
      %44 = arith.mulf %35, %43 : vector<8x20xf32>
      %c0_42 = arith.constant 0 : index
      %c0_43 = arith.constant 0 : index
      %45 = vector.load %arg12[%c0_42, %c0_43] : memref<20x30xf32, #tpu.memory_space<vmem>>, vector<20x30xf32>
      %cst_44 = arith.constant dense<0.000000e+00> : vector<8x30xf32>
      %46 = tpu.matmul %44, %45, %cst_44 {dimension_numbers = #tpu.dot_dimension_numbers<[1], [0], [0], [1], [0, 0, 1, 1], [], []>} : vector<8x20xf32>, vector<20x30xf32>, vector<8x30xf32> -> vector<8x30xf32>
      %c0_45 = arith.constant 0 : index
      %c0_46 = arith.constant 0 : index
      %47 = vector.load %arg13[%c0_45, %c0_46] : memref<1x30xf32, #tpu.memory_space<vmem>>, vector<1x30xf32>
      %48 = vector.broadcast %47 : vector<1x30xf32> to vector<8x30xf32>
      %49 = arith.addf %46, %48 : vector<8x30xf32>
      %c0_47 = arith.constant 0 : index
      %c0_48 = arith.constant 0 : index
      %50 = vector.load %arg26[%c0_47, %c0_48] : memref<20x30xf32, #tpu.memory_space<vmem>>, vector<20x30xf32>
      %cst_49 = arith.constant dense<0.000000e+00> : vector<8x30xf32>
      %51 = tpu.matmul %44, %50, %cst_49 {dimension_numbers = #tpu.dot_dimension_numbers<[1], [0], [0], [1], [0, 0, 1, 1], [], []>} : vector<8x20xf32>, vector<20x30xf32>, vector<8x30xf32> -> vector<8x30xf32>
      %c0_50 = arith.constant 0 : index
      %c0_51 = arith.constant 0 : index
      %52 = vector.load %arg27[%c0_50, %c0_51] : memref<1x30xf32, #tpu.memory_space<vmem>>, vector<1x30xf32>
      %53 = vector.broadcast %52 : vector<1x30xf32> to vector<8x30xf32>
      %54 = arith.addf %51, %53 : vector<8x30xf32>
      %c0_52 = arith.constant 0 : index
      %c0_53 = arith.constant 0 : index
      %55 = vector.load %arg40[%c0_52, %c0_53] : memref<20x50xf32, #tpu.memory_space<vmem>>, vector<20x50xf32>
      %cst_54 = arith.constant dense<0.000000e+00> : vector<8x50xf32>
      %56 = tpu.matmul %44, %55, %cst_54 {dimension_numbers = #tpu.dot_dimension_numbers<[1], [0], [0], [1], [0, 0, 1, 1], [], []>} : vector<8x20xf32>, vector<20x50xf32>, vector<8x50xf32> -> vector<8x50xf32>
      %cst_55 = arith.constant dense<0.000000e+00> : vector<32x50xf32>
      %57 = tpu.matmul %7, %56, %cst_55 {dimension_numbers = #tpu.dot_dimension_numbers<[1], [0], [0], [1], [0, 0, 1, 1], [], []>} : vector<32x8xf32>, vector<8x50xf32>, vector<32x50xf32> -> vector<32x50xf32>
      %c0_56 = arith.constant 0 : index
      %c0_57 = arith.constant 0 : index
      %58 = vector.load %arg41[%c0_56, %c0_57] : memref<1x50xf32, #tpu.memory_space<vmem>>, vector<1x50xf32>
      %59 = vector.broadcast %58 : vector<1x50xf32> to vector<32x50xf32>
      %60 = arith.addf %57, %59 : vector<32x50xf32>
      %61 = arith.addf %60, %13 : vector<32x50xf32>
      %cst_58 = arith.constant dense<0.000000e+00> : vector<80x50xf32>
      %62 = tpu.matmul %9, %56, %cst_58 {dimension_numbers = #tpu.dot_dimension_numbers<[1], [0], [0], [1], [0, 0, 1, 1], [], []>} : vector<80x8xf32>, vector<8x50xf32>, vector<80x50xf32> -> vector<80x50xf32>
      %c0_59 = arith.constant 0 : index
      %c0_60 = arith.constant 0 : index
      %63 = vector.load %arg41[%c0_59, %c0_60] : memref<1x50xf32, #tpu.memory_space<vmem>>, vector<1x50xf32>
      %64 = vector.broadcast %63 : vector<1x50xf32> to vector<80x50xf32>
      %65 = arith.addf %62, %64 : vector<80x50xf32>
      %66 = arith.addf %65, %14 : vector<80x50xf32>
      %cst_61 = arith.constant dense<0.000000e+00> : vector<1x30xf32>
      %67 = tpu.matmul %0, %49, %cst_61 {dimension_numbers = #tpu.dot_dimension_numbers<[1], [0], [0], [1], [0, 0, 1, 1], [], []>} : vector<1x8xf32>, vector<8x30xf32>, vector<1x30xf32> -> vector<1x30xf32>
      %cst_62 = arith.constant 1.250000e-01 : f32
      %68 = vector.broadcast %cst_62 : f32 to vector<1x30xf32>
      %69 = arith.mulf %67, %68 : vector<1x30xf32>
      %70 = vector.broadcast %69 : vector<1x30xf32> to vector<8x30xf32>
      %71 = arith.subf %49, %70 : vector<8x30xf32>
      %72 = arith.mulf %71, %71 : vector<8x30xf32>
      %cst_63 = arith.constant dense<0.000000e+00> : vector<1x30xf32>
      %73 = tpu.matmul %0, %72, %cst_63 {dimension_numbers = #tpu.dot_dimension_numbers<[1], [0], [0], [1], [0, 0, 1, 1], [], []>} : vector<1x8xf32>, vector<8x30xf32>, vector<1x30xf32> -> vector<1x30xf32>
      %cst_64 = arith.constant 1.250000e-01 : f32
      %74 = vector.broadcast %cst_64 : f32 to vector<1x30xf32>
      %75 = arith.mulf %73, %74 : vector<1x30xf32>
      %cst_65 = arith.constant 9.99999997E-7 : f32
      %76 = vector.broadcast %cst_65 : f32 to vector<1x30xf32>
      %77 = arith.addf %75, %76 : vector<1x30xf32>
      %78 = math.rsqrt %77 : vector<1x30xf32>
      %79 = vector.broadcast %78 : vector<1x30xf32> to vector<8x30xf32>
      %80 = arith.mulf %71, %79 : vector<8x30xf32>
      %c0_66 = arith.constant 0 : index
      %c0_67 = arith.constant 0 : index
      %81 = vector.load %arg14[%c0_66, %c0_67] : memref<1x30xf32, #tpu.memory_space<vmem>>, vector<1x30xf32>
      %82 = vector.broadcast %81 : vector<1x30xf32> to vector<8x30xf32>
      %83 = arith.mulf %80, %82 : vector<8x30xf32>
      %c0_68 = arith.constant 0 : index
      %c0_69 = arith.constant 0 : index
      %84 = vector.load %arg15[%c0_68, %c0_69] : memref<1x30xf32, #tpu.memory_space<vmem>>, vector<1x30xf32>
      %85 = vector.broadcast %84 : vector<1x30xf32> to vector<8x30xf32>
      %86 = arith.addf %83, %85 : vector<8x30xf32>
      %cst_70 = arith.constant 0.000000e+00 : f32
      %87 = vector.broadcast %cst_70 : f32 to vector<8x30xf32>
      %88 = arith.maximumf %86, %87 : vector<8x30xf32>
      %c0_71 = arith.constant 0 : index
      %c0_72 = arith.constant 0 : index
      %89 = vector.load %arg16[%c0_71, %c0_72] : memref<30x30xf32, #tpu.memory_space<vmem>>, vector<30x30xf32>
      %cst_73 = arith.constant dense<0.000000e+00> : vector<8x30xf32>
      %90 = tpu.matmul %88, %89, %cst_73 {dimension_numbers = #tpu.dot_dimension_numbers<[1], [0], [0], [1], [0, 0, 1, 1], [], []>} : vector<8x30xf32>, vector<30x30xf32>, vector<8x30xf32> -> vector<8x30xf32>
      %cst_74 = arith.constant dense<0.000000e+00> : vector<1x30xf32>
      %91 = tpu.matmul %0, %90, %cst_74 {dimension_numbers = #tpu.dot_dimension_numbers<[1], [0], [0], [1], [0, 0, 1, 1], [], []>} : vector<1x8xf32>, vector<8x30xf32>, vector<1x30xf32> -> vector<1x30xf32>
      %cst_75 = arith.constant 1.250000e-01 : f32
      %92 = vector.broadcast %cst_75 : f32 to vector<1x30xf32>
      %93 = arith.mulf %91, %92 : vector<1x30xf32>
      %94 = vector.broadcast %93 : vector<1x30xf32> to vector<8x30xf32>
      %95 = arith.subf %90, %94 : vector<8x30xf32>
      %96 = arith.mulf %95, %95 : vector<8x30xf32>
      %cst_76 = arith.constant dense<0.000000e+00> : vector<1x30xf32>
      %97 = tpu.matmul %0, %96, %cst_76 {dimension_numbers = #tpu.dot_dimension_numbers<[1], [0], [0], [1], [0, 0, 1, 1], [], []>} : vector<1x8xf32>, vector<8x30xf32>, vector<1x30xf32> -> vector<1x30xf32>
      %cst_77 = arith.constant 1.250000e-01 : f32
      %98 = vector.broadcast %cst_77 : f32 to vector<1x30xf32>
      %99 = arith.mulf %97, %98 : vector<1x30xf32>
      %cst_78 = arith.constant 9.99999997E-7 : f32
      %100 = vector.broadcast %cst_78 : f32 to vector<1x30xf32>
      %101 = arith.addf %99, %100 : vector<1x30xf32>
      %102 = math.rsqrt %101 : vector<1x30xf32>
      %103 = vector.broadcast %102 : vector<1x30xf32> to vector<8x30xf32>
      %104 = arith.mulf %95, %103 : vector<8x30xf32>
      %c0_79 = arith.constant 0 : index
      %c0_80 = arith.constant 0 : index
      %105 = vector.load %arg17[%c0_79, %c0_80] : memref<1x30xf32, #tpu.memory_space<vmem>>, vector<1x30xf32>
      %106 = vector.broadcast %105 : vector<1x30xf32> to vector<8x30xf32>
      %107 = arith.mulf %104, %106 : vector<8x30xf32>
      %c0_81 = arith.constant 0 : index
      %c0_82 = arith.constant 0 : index
      %108 = vector.load %arg18[%c0_81, %c0_82] : memref<1x30xf32, #tpu.memory_space<vmem>>, vector<1x30xf32>
      %109 = vector.broadcast %108 : vector<1x30xf32> to vector<8x30xf32>
      %110 = arith.addf %107, %109 : vector<8x30xf32>
      %cst_83 = arith.constant 0.000000e+00 : f32
      %111 = vector.broadcast %cst_83 : f32 to vector<8x30xf32>
      %112 = arith.maximumf %110, %111 : vector<8x30xf32>
      %c0_84 = arith.constant 0 : index
      %c0_85 = arith.constant 0 : index
      %113 = vector.load %arg19[%c0_84, %c0_85] : memref<30x30xf32, #tpu.memory_space<vmem>>, vector<30x30xf32>
      %cst_86 = arith.constant dense<0.000000e+00> : vector<8x30xf32>
      %114 = tpu.matmul %112, %113, %cst_86 {dimension_numbers = #tpu.dot_dimension_numbers<[1], [0], [0], [1], [0, 0, 1, 1], [], []>} : vector<8x30xf32>, vector<30x30xf32>, vector<8x30xf32> -> vector<8x30xf32>
      %cst_87 = arith.constant dense<0.000000e+00> : vector<1x30xf32>
      %115 = tpu.matmul %0, %114, %cst_87 {dimension_numbers = #tpu.dot_dimension_numbers<[1], [0], [0], [1], [0, 0, 1, 1], [], []>} : vector<1x8xf32>, vector<8x30xf32>, vector<1x30xf32> -> vector<1x30xf32>
      %cst_88 = arith.constant 1.250000e-01 : f32
      %116 = vector.broadcast %cst_88 : f32 to vector<1x30xf32>
      %117 = arith.mulf %115, %116 : vector<1x30xf32>
      %118 = vector.broadcast %117 : vector<1x30xf32> to vector<8x30xf32>
      %119 = arith.subf %114, %118 : vector<8x30xf32>
      %120 = arith.mulf %119, %119 : vector<8x30xf32>
      %cst_89 = arith.constant dense<0.000000e+00> : vector<1x30xf32>
      %121 = tpu.matmul %0, %120, %cst_89 {dimension_numbers = #tpu.dot_dimension_numbers<[1], [0], [0], [1], [0, 0, 1, 1], [], []>} : vector<1x8xf32>, vector<8x30xf32>, vector<1x30xf32> -> vector<1x30xf32>
      %cst_90 = arith.constant 1.250000e-01 : f32
      %122 = vector.broadcast %cst_90 : f32 to vector<1x30xf32>
      %123 = arith.mulf %121, %122 : vector<1x30xf32>
      %cst_91 = arith.constant 9.99999997E-7 : f32
      %124 = vector.broadcast %cst_91 : f32 to vector<1x30xf32>
      %125 = arith.addf %123, %124 : vector<1x30xf32>
      %126 = math.rsqrt %125 : vector<1x30xf32>
      %127 = vector.broadcast %126 : vector<1x30xf32> to vector<8x30xf32>
      %128 = arith.mulf %119, %127 : vector<8x30xf32>
      %c0_92 = arith.constant 0 : index
      %c0_93 = arith.constant 0 : index
      %129 = vector.load %arg20[%c0_92, %c0_93] : memref<1x30xf32, #tpu.memory_space<vmem>>, vector<1x30xf32>
      %130 = vector.broadcast %129 : vector<1x30xf32> to vector<8x30xf32>
      %131 = arith.mulf %128, %130 : vector<8x30xf32>
      %c0_94 = arith.constant 0 : index
      %c0_95 = arith.constant 0 : index
      %132 = vector.load %arg21[%c0_94, %c0_95] : memref<1x30xf32, #tpu.memory_space<vmem>>, vector<1x30xf32>
      %133 = vector.broadcast %132 : vector<1x30xf32> to vector<8x30xf32>
      %134 = arith.addf %131, %133 : vector<8x30xf32>
      %cst_96 = arith.constant 0.000000e+00 : f32
      %135 = vector.broadcast %cst_96 : f32 to vector<8x30xf32>
      %136 = arith.maximumf %134, %135 : vector<8x30xf32>
      %c0_97 = arith.constant 0 : index
      %c0_98 = arith.constant 0 : index
      %137 = vector.load %arg22[%c0_97, %c0_98] : memref<30x20xf32, #tpu.memory_space<vmem>>, vector<30x20xf32>
      %cst_99 = arith.constant dense<0.000000e+00> : vector<8x20xf32>
      %138 = tpu.matmul %136, %137, %cst_99 {dimension_numbers = #tpu.dot_dimension_numbers<[1], [0], [0], [1], [0, 0, 1, 1], [], []>} : vector<8x30xf32>, vector<30x20xf32>, vector<8x20xf32> -> vector<8x20xf32>
      %c0_100 = arith.constant 0 : index
      %c0_101 = arith.constant 0 : index
      %139 = vector.load %arg23[%c0_100, %c0_101] : memref<1x20xf32, #tpu.memory_space<vmem>>, vector<1x20xf32>
      %140 = vector.broadcast %139 : vector<1x20xf32> to vector<8x20xf32>
      %141 = arith.addf %138, %140 : vector<8x20xf32>
      %cst_102 = arith.constant dense<0.000000e+00> : vector<1x20xf32>
      %142 = tpu.matmul %0, %141, %cst_102 {dimension_numbers = #tpu.dot_dimension_numbers<[1], [0], [0], [1], [0, 0, 1, 1], [], []>} : vector<1x8xf32>, vector<8x20xf32>, vector<1x20xf32> -> vector<1x20xf32>
      %cst_103 = arith.constant 1.250000e-01 : f32
      %143 = vector.broadcast %cst_103 : f32 to vector<1x20xf32>
      %144 = arith.mulf %142, %143 : vector<1x20xf32>
      %145 = vector.broadcast %144 : vector<1x20xf32> to vector<8x20xf32>
      %146 = arith.subf %141, %145 : vector<8x20xf32>
      %147 = arith.mulf %146, %146 : vector<8x20xf32>
      %cst_104 = arith.constant dense<0.000000e+00> : vector<1x20xf32>
      %148 = tpu.matmul %0, %147, %cst_104 {dimension_numbers = #tpu.dot_dimension_numbers<[1], [0], [0], [1], [0, 0, 1, 1], [], []>} : vector<1x8xf32>, vector<8x20xf32>, vector<1x20xf32> -> vector<1x20xf32>
      %cst_105 = arith.constant 1.250000e-01 : f32
      %149 = vector.broadcast %cst_105 : f32 to vector<1x20xf32>
      %150 = arith.mulf %148, %149 : vector<1x20xf32>
      %cst_106 = arith.constant 9.99999997E-7 : f32
      %151 = vector.broadcast %cst_106 : f32 to vector<1x20xf32>
      %152 = arith.addf %150, %151 : vector<1x20xf32>
      %153 = math.rsqrt %152 : vector<1x20xf32>
      %154 = vector.broadcast %153 : vector<1x20xf32> to vector<8x20xf32>
      %155 = arith.mulf %146, %154 : vector<8x20xf32>
      %c0_107 = arith.constant 0 : index
      %c0_108 = arith.constant 0 : index
      %156 = vector.load %arg24[%c0_107, %c0_108] : memref<1x20xf32, #tpu.memory_space<vmem>>, vector<1x20xf32>
      %157 = vector.broadcast %156 : vector<1x20xf32> to vector<8x20xf32>
      %158 = arith.mulf %155, %157 : vector<8x20xf32>
      %c0_109 = arith.constant 0 : index
      %c0_110 = arith.constant 0 : index
      %159 = vector.load %arg25[%c0_109, %c0_110] : memref<1x20xf32, #tpu.memory_space<vmem>>, vector<1x20xf32>
      %160 = vector.broadcast %159 : vector<1x20xf32> to vector<8x20xf32>
      %161 = arith.addf %158, %160 : vector<8x20xf32>
      %cst_111 = arith.constant dense<0.000000e+00> : vector<1x30xf32>
      %162 = tpu.matmul %0, %54, %cst_111 {dimension_numbers = #tpu.dot_dimension_numbers<[1], [0], [0], [1], [0, 0, 1, 1], [], []>} : vector<1x8xf32>, vector<8x30xf32>, vector<1x30xf32> -> vector<1x30xf32>
      %cst_112 = arith.constant 1.250000e-01 : f32
      %163 = vector.broadcast %cst_112 : f32 to vector<1x30xf32>
      %164 = arith.mulf %162, %163 : vector<1x30xf32>
      %165 = vector.broadcast %164 : vector<1x30xf32> to vector<8x30xf32>
      %166 = arith.subf %54, %165 : vector<8x30xf32>
      %167 = arith.mulf %166, %166 : vector<8x30xf32>
      %cst_113 = arith.constant dense<0.000000e+00> : vector<1x30xf32>
      %168 = tpu.matmul %0, %167, %cst_113 {dimension_numbers = #tpu.dot_dimension_numbers<[1], [0], [0], [1], [0, 0, 1, 1], [], []>} : vector<1x8xf32>, vector<8x30xf32>, vector<1x30xf32> -> vector<1x30xf32>
      %cst_114 = arith.constant 1.250000e-01 : f32
      %169 = vector.broadcast %cst_114 : f32 to vector<1x30xf32>
      %170 = arith.mulf %168, %169 : vector<1x30xf32>
      %cst_115 = arith.constant 9.99999997E-7 : f32
      %171 = vector.broadcast %cst_115 : f32 to vector<1x30xf32>
      %172 = arith.addf %170, %171 : vector<1x30xf32>
      %173 = math.rsqrt %172 : vector<1x30xf32>
      %174 = vector.broadcast %173 : vector<1x30xf32> to vector<8x30xf32>
      %175 = arith.mulf %166, %174 : vector<8x30xf32>
      %c0_116 = arith.constant 0 : index
      %c0_117 = arith.constant 0 : index
      %176 = vector.load %arg28[%c0_116, %c0_117] : memref<1x30xf32, #tpu.memory_space<vmem>>, vector<1x30xf32>
      %177 = vector.broadcast %176 : vector<1x30xf32> to vector<8x30xf32>
      %178 = arith.mulf %175, %177 : vector<8x30xf32>
      %c0_118 = arith.constant 0 : index
      %c0_119 = arith.constant 0 : index
      %179 = vector.load %arg29[%c0_118, %c0_119] : memref<1x30xf32, #tpu.memory_space<vmem>>, vector<1x30xf32>
      %180 = vector.broadcast %179 : vector<1x30xf32> to vector<8x30xf32>
      %181 = arith.addf %178, %180 : vector<8x30xf32>
      %cst_120 = arith.constant 0.000000e+00 : f32
      %182 = vector.broadcast %cst_120 : f32 to vector<8x30xf32>
      %183 = arith.maximumf %181, %182 : vector<8x30xf32>
      %c0_121 = arith.constant 0 : index
      %c0_122 = arith.constant 0 : index
      %184 = vector.load %arg30[%c0_121, %c0_122] : memref<30x50xf32, #tpu.memory_space<vmem>>, vector<30x50xf32>
      %cst_123 = arith.constant dense<0.000000e+00> : vector<8x50xf32>
      %185 = tpu.matmul %183, %184, %cst_123 {dimension_numbers = #tpu.dot_dimension_numbers<[1], [0], [0], [1], [0, 0, 1, 1], [], []>} : vector<8x30xf32>, vector<30x50xf32>, vector<8x50xf32> -> vector<8x50xf32>
      %cst_124 = arith.constant dense<0.000000e+00> : vector<1x50xf32>
      %186 = tpu.matmul %0, %185, %cst_124 {dimension_numbers = #tpu.dot_dimension_numbers<[1], [0], [0], [1], [0, 0, 1, 1], [], []>} : vector<1x8xf32>, vector<8x50xf32>, vector<1x50xf32> -> vector<1x50xf32>
      %cst_125 = arith.constant 1.250000e-01 : f32
      %187 = vector.broadcast %cst_125 : f32 to vector<1x50xf32>
      %188 = arith.mulf %186, %187 : vector<1x50xf32>
      %189 = vector.broadcast %188 : vector<1x50xf32> to vector<8x50xf32>
      %190 = arith.subf %185, %189 : vector<8x50xf32>
      %191 = arith.mulf %190, %190 : vector<8x50xf32>
      %cst_126 = arith.constant dense<0.000000e+00> : vector<1x50xf32>
      %192 = tpu.matmul %0, %191, %cst_126 {dimension_numbers = #tpu.dot_dimension_numbers<[1], [0], [0], [1], [0, 0, 1, 1], [], []>} : vector<1x8xf32>, vector<8x50xf32>, vector<1x50xf32> -> vector<1x50xf32>
      %cst_127 = arith.constant 1.250000e-01 : f32
      %193 = vector.broadcast %cst_127 : f32 to vector<1x50xf32>
      %194 = arith.mulf %192, %193 : vector<1x50xf32>
      %cst_128 = arith.constant 9.99999997E-7 : f32
      %195 = vector.broadcast %cst_128 : f32 to vector<1x50xf32>
      %196 = arith.addf %194, %195 : vector<1x50xf32>
      %197 = math.rsqrt %196 : vector<1x50xf32>
      %198 = vector.broadcast %197 : vector<1x50xf32> to vector<8x50xf32>
      %199 = arith.mulf %190, %198 : vector<8x50xf32>
      %c0_129 = arith.constant 0 : index
      %c0_130 = arith.constant 0 : index
      %200 = vector.load %arg31[%c0_129, %c0_130] : memref<1x50xf32, #tpu.memory_space<vmem>>, vector<1x50xf32>
      %201 = vector.broadcast %200 : vector<1x50xf32> to vector<8x50xf32>
      %202 = arith.mulf %199, %201 : vector<8x50xf32>
      %c0_131 = arith.constant 0 : index
      %c0_132 = arith.constant 0 : index
      %203 = vector.load %arg32[%c0_131, %c0_132] : memref<1x50xf32, #tpu.memory_space<vmem>>, vector<1x50xf32>
      %204 = vector.broadcast %203 : vector<1x50xf32> to vector<8x50xf32>
      %205 = arith.addf %202, %204 : vector<8x50xf32>
      %cst_133 = arith.constant 0.000000e+00 : f32
      %206 = vector.broadcast %cst_133 : f32 to vector<8x50xf32>
      %207 = arith.maximumf %205, %206 : vector<8x50xf32>
      %c0_134 = arith.constant 0 : index
      %c0_135 = arith.constant 0 : index
      %208 = vector.load %arg33[%c0_134, %c0_135] : memref<50x410xf32, #tpu.memory_space<vmem>>, vector<50x410xf32>
      %cst_136 = arith.constant dense<0.000000e+00> : vector<8x410xf32>
      %209 = tpu.matmul %207, %208, %cst_136 {dimension_numbers = #tpu.dot_dimension_numbers<[1], [0], [0], [1], [0, 0, 1, 1], [], []>} : vector<8x50xf32>, vector<50x410xf32>, vector<8x410xf32> -> vector<8x410xf32>
      %cst_137 = arith.constant dense<0.000000e+00> : vector<1x410xf32>
      %210 = tpu.matmul %0, %209, %cst_137 {dimension_numbers = #tpu.dot_dimension_numbers<[1], [0], [0], [1], [0, 0, 1, 1], [], []>} : vector<1x8xf32>, vector<8x410xf32>, vector<1x410xf32> -> vector<1x410xf32>
      %cst_138 = arith.constant 1.250000e-01 : f32
      %211 = vector.broadcast %cst_138 : f32 to vector<1x410xf32>
      %212 = arith.mulf %210, %211 : vector<1x410xf32>
      %213 = vector.broadcast %212 : vector<1x410xf32> to vector<8x410xf32>
      %214 = arith.subf %209, %213 : vector<8x410xf32>
      %215 = arith.mulf %214, %214 : vector<8x410xf32>
      %cst_139 = arith.constant dense<0.000000e+00> : vector<1x410xf32>
      %216 = tpu.matmul %0, %215, %cst_139 {dimension_numbers = #tpu.dot_dimension_numbers<[1], [0], [0], [1], [0, 0, 1, 1], [], []>} : vector<1x8xf32>, vector<8x410xf32>, vector<1x410xf32> -> vector<1x410xf32>
      %cst_140 = arith.constant 1.250000e-01 : f32
      %217 = vector.broadcast %cst_140 : f32 to vector<1x410xf32>
      %218 = arith.mulf %216, %217 : vector<1x410xf32>
      %cst_141 = arith.constant 9.99999997E-7 : f32
      %219 = vector.broadcast %cst_141 : f32 to vector<1x410xf32>
      %220 = arith.addf %218, %219 : vector<1x410xf32>
      %221 = math.rsqrt %220 : vector<1x410xf32>
      %222 = vector.broadcast %221 : vector<1x410xf32> to vector<8x410xf32>
      %223 = arith.mulf %214, %222 : vector<8x410xf32>
      %c0_142 = arith.constant 0 : index
      %c0_143 = arith.constant 0 : index
      %224 = vector.load %arg34[%c0_142, %c0_143] : memref<1x410xf32, #tpu.memory_space<vmem>>, vector<1x410xf32>
      %225 = vector.broadcast %224 : vector<1x410xf32> to vector<8x410xf32>
      %226 = arith.mulf %223, %225 : vector<8x410xf32>
      %c0_144 = arith.constant 0 : index
      %c0_145 = arith.constant 0 : index
      %227 = vector.load %arg35[%c0_144, %c0_145] : memref<1x410xf32, #tpu.memory_space<vmem>>, vector<1x410xf32>
      %228 = vector.broadcast %227 : vector<1x410xf32> to vector<8x410xf32>
      %229 = arith.addf %226, %228 : vector<8x410xf32>
      %cst_146 = arith.constant 0.000000e+00 : f32
      %230 = vector.broadcast %cst_146 : f32 to vector<8x410xf32>
      %231 = arith.maximumf %229, %230 : vector<8x410xf32>
      %c0_147 = arith.constant 0 : index
      %c0_148 = arith.constant 0 : index
      %232 = vector.load %arg36[%c0_147, %c0_148] : memref<410x400xf32, #tpu.memory_space<vmem>>, vector<410x400xf32>
      %cst_149 = arith.constant dense<0.000000e+00> : vector<8x400xf32>
      %233 = tpu.matmul %231, %232, %cst_149 {dimension_numbers = #tpu.dot_dimension_numbers<[1], [0], [0], [1], [0, 0, 1, 1], [], []>} : vector<8x410xf32>, vector<410x400xf32>, vector<8x400xf32> -> vector<8x400xf32>
      %c0_150 = arith.constant 0 : index
      %c0_151 = arith.constant 0 : index
      %234 = vector.load %arg37[%c0_150, %c0_151] : memref<1x400xf32, #tpu.memory_space<vmem>>, vector<1x400xf32>
      %235 = vector.broadcast %234 : vector<1x400xf32> to vector<8x400xf32>
      %236 = arith.addf %233, %235 : vector<8x400xf32>
      %cst_152 = arith.constant dense<0.000000e+00> : vector<1x400xf32>
      %237 = tpu.matmul %0, %236, %cst_152 {dimension_numbers = #tpu.dot_dimension_numbers<[1], [0], [0], [1], [0, 0, 1, 1], [], []>} : vector<1x8xf32>, vector<8x400xf32>, vector<1x400xf32> -> vector<1x400xf32>
      %cst_153 = arith.constant 1.250000e-01 : f32
      %238 = vector.broadcast %cst_153 : f32 to vector<1x400xf32>
      %239 = arith.mulf %237, %238 : vector<1x400xf32>
      %240 = vector.broadcast %239 : vector<1x400xf32> to vector<8x400xf32>
      %241 = arith.subf %236, %240 : vector<8x400xf32>
      %242 = arith.mulf %241, %241 : vector<8x400xf32>
      %cst_154 = arith.constant dense<0.000000e+00> : vector<1x400xf32>
      %243 = tpu.matmul %0, %242, %cst_154 {dimension_numbers = #tpu.dot_dimension_numbers<[1], [0], [0], [1], [0, 0, 1, 1], [], []>} : vector<1x8xf32>, vector<8x400xf32>, vector<1x400xf32> -> vector<1x400xf32>
      %cst_155 = arith.constant 1.250000e-01 : f32
      %244 = vector.broadcast %cst_155 : f32 to vector<1x400xf32>
      %245 = arith.mulf %243, %244 : vector<1x400xf32>
      %cst_156 = arith.constant 9.99999997E-7 : f32
      %246 = vector.broadcast %cst_156 : f32 to vector<1x400xf32>
      %247 = arith.addf %245, %246 : vector<1x400xf32>
      %248 = math.rsqrt %247 : vector<1x400xf32>
      %249 = vector.broadcast %248 : vector<1x400xf32> to vector<8x400xf32>
      %250 = arith.mulf %241, %249 : vector<8x400xf32>
      %c0_157 = arith.constant 0 : index
      %c0_158 = arith.constant 0 : index
      %251 = vector.load %arg38[%c0_157, %c0_158] : memref<1x400xf32, #tpu.memory_space<vmem>>, vector<1x400xf32>
      %252 = vector.broadcast %251 : vector<1x400xf32> to vector<8x400xf32>
      %253 = arith.mulf %250, %252 : vector<8x400xf32>
      %c0_159 = arith.constant 0 : index
      %c0_160 = arith.constant 0 : index
      %254 = vector.load %arg39[%c0_159, %c0_160] : memref<1x400xf32, #tpu.memory_space<vmem>>, vector<1x400xf32>
      %255 = vector.broadcast %254 : vector<1x400xf32> to vector<8x400xf32>
      %256 = arith.addf %253, %255 : vector<8x400xf32>
      %cst_161 = arith.constant dense<0.000000e+00> : vector<1x50xf32>
      %257 = tpu.matmul %1, %61, %cst_161 {dimension_numbers = #tpu.dot_dimension_numbers<[1], [0], [0], [1], [0, 0, 1, 1], [], []>} : vector<1x32xf32>, vector<32x50xf32>, vector<1x50xf32> -> vector<1x50xf32>
      %cst_162 = arith.constant 3.125000e-02 : f32
      %258 = vector.broadcast %cst_162 : f32 to vector<1x50xf32>
      %259 = arith.mulf %257, %258 : vector<1x50xf32>
      %260 = vector.broadcast %259 : vector<1x50xf32> to vector<32x50xf32>
      %261 = arith.subf %61, %260 : vector<32x50xf32>
      %262 = arith.mulf %261, %261 : vector<32x50xf32>
      %cst_163 = arith.constant dense<0.000000e+00> : vector<1x50xf32>
      %263 = tpu.matmul %1, %262, %cst_163 {dimension_numbers = #tpu.dot_dimension_numbers<[1], [0], [0], [1], [0, 0, 1, 1], [], []>} : vector<1x32xf32>, vector<32x50xf32>, vector<1x50xf32> -> vector<1x50xf32>
      %cst_164 = arith.constant 3.125000e-02 : f32
      %264 = vector.broadcast %cst_164 : f32 to vector<1x50xf32>
      %265 = arith.mulf %263, %264 : vector<1x50xf32>
      %cst_165 = arith.constant 9.99999997E-7 : f32
      %266 = vector.broadcast %cst_165 : f32 to vector<1x50xf32>
      %267 = arith.addf %265, %266 : vector<1x50xf32>
      %268 = math.rsqrt %267 : vector<1x50xf32>
      %269 = vector.broadcast %268 : vector<1x50xf32> to vector<32x50xf32>
      %270 = arith.mulf %261, %269 : vector<32x50xf32>
      %c0_166 = arith.constant 0 : index
      %c0_167 = arith.constant 0 : index
      %271 = vector.load %arg42[%c0_166, %c0_167] : memref<1x50xf32, #tpu.memory_space<vmem>>, vector<1x50xf32>
      %272 = vector.broadcast %271 : vector<1x50xf32> to vector<32x50xf32>
      %273 = arith.mulf %270, %272 : vector<32x50xf32>
      %c0_168 = arith.constant 0 : index
      %c0_169 = arith.constant 0 : index
      %274 = vector.load %arg43[%c0_168, %c0_169] : memref<1x50xf32, #tpu.memory_space<vmem>>, vector<1x50xf32>
      %275 = vector.broadcast %274 : vector<1x50xf32> to vector<32x50xf32>
      %276 = arith.addf %273, %275 : vector<32x50xf32>
      %cst_170 = arith.constant 0.000000e+00 : f32
      %277 = vector.broadcast %cst_170 : f32 to vector<32x50xf32>
      %278 = arith.maximumf %276, %277 : vector<32x50xf32>
      %c0_171 = arith.constant 0 : index
      %c0_172 = arith.constant 0 : index
      %279 = vector.load %arg44[%c0_171, %c0_172] : memref<50x90xf32, #tpu.memory_space<vmem>>, vector<50x90xf32>
      %cst_173 = arith.constant dense<0.000000e+00> : vector<32x90xf32>
      %280 = tpu.matmul %278, %279, %cst_173 {dimension_numbers = #tpu.dot_dimension_numbers<[1], [0], [0], [1], [0, 0, 1, 1], [], []>} : vector<32x50xf32>, vector<50x90xf32>, vector<32x90xf32> -> vector<32x90xf32>
      %cst_174 = arith.constant dense<0.000000e+00> : vector<1x90xf32>
      %281 = tpu.matmul %1, %280, %cst_174 {dimension_numbers = #tpu.dot_dimension_numbers<[1], [0], [0], [1], [0, 0, 1, 1], [], []>} : vector<1x32xf32>, vector<32x90xf32>, vector<1x90xf32> -> vector<1x90xf32>
      %cst_175 = arith.constant 3.125000e-02 : f32
      %282 = vector.broadcast %cst_175 : f32 to vector<1x90xf32>
      %283 = arith.mulf %281, %282 : vector<1x90xf32>
      %284 = vector.broadcast %283 : vector<1x90xf32> to vector<32x90xf32>
      %285 = arith.subf %280, %284 : vector<32x90xf32>
      %286 = arith.mulf %285, %285 : vector<32x90xf32>
      %cst_176 = arith.constant dense<0.000000e+00> : vector<1x90xf32>
      %287 = tpu.matmul %1, %286, %cst_176 {dimension_numbers = #tpu.dot_dimension_numbers<[1], [0], [0], [1], [0, 0, 1, 1], [], []>} : vector<1x32xf32>, vector<32x90xf32>, vector<1x90xf32> -> vector<1x90xf32>
      %cst_177 = arith.constant 3.125000e-02 : f32
      %288 = vector.broadcast %cst_177 : f32 to vector<1x90xf32>
      %289 = arith.mulf %287, %288 : vector<1x90xf32>
      %cst_178 = arith.constant 9.99999997E-7 : f32
      %290 = vector.broadcast %cst_178 : f32 to vector<1x90xf32>
      %291 = arith.addf %289, %290 : vector<1x90xf32>
      %292 = math.rsqrt %291 : vector<1x90xf32>
      %293 = vector.broadcast %292 : vector<1x90xf32> to vector<32x90xf32>
      %294 = arith.mulf %285, %293 : vector<32x90xf32>
      %c0_179 = arith.constant 0 : index
      %c0_180 = arith.constant 0 : index
      %295 = vector.load %arg45[%c0_179, %c0_180] : memref<1x90xf32, #tpu.memory_space<vmem>>, vector<1x90xf32>
      %296 = vector.broadcast %295 : vector<1x90xf32> to vector<32x90xf32>
      %297 = arith.mulf %294, %296 : vector<32x90xf32>
      %c0_181 = arith.constant 0 : index
      %c0_182 = arith.constant 0 : index
      %298 = vector.load %arg46[%c0_181, %c0_182] : memref<1x90xf32, #tpu.memory_space<vmem>>, vector<1x90xf32>
      %299 = vector.broadcast %298 : vector<1x90xf32> to vector<32x90xf32>
      %300 = arith.addf %297, %299 : vector<32x90xf32>
      %cst_183 = arith.constant 0.000000e+00 : f32
      %301 = vector.broadcast %cst_183 : f32 to vector<32x90xf32>
      %302 = arith.maximumf %300, %301 : vector<32x90xf32>
      %c0_184 = arith.constant 0 : index
      %c0_185 = arith.constant 0 : index
      %303 = vector.load %arg47[%c0_184, %c0_185] : memref<90x50xf32, #tpu.memory_space<vmem>>, vector<90x50xf32>
      %cst_186 = arith.constant dense<0.000000e+00> : vector<32x50xf32>
      %304 = tpu.matmul %302, %303, %cst_186 {dimension_numbers = #tpu.dot_dimension_numbers<[1], [0], [0], [1], [0, 0, 1, 1], [], []>} : vector<32x90xf32>, vector<90x50xf32>, vector<32x50xf32> -> vector<32x50xf32>
      %cst_187 = arith.constant dense<0.000000e+00> : vector<1x50xf32>
      %305 = tpu.matmul %1, %304, %cst_187 {dimension_numbers = #tpu.dot_dimension_numbers<[1], [0], [0], [1], [0, 0, 1, 1], [], []>} : vector<1x32xf32>, vector<32x50xf32>, vector<1x50xf32> -> vector<1x50xf32>
      %cst_188 = arith.constant 3.125000e-02 : f32
      %306 = vector.broadcast %cst_188 : f32 to vector<1x50xf32>
      %307 = arith.mulf %305, %306 : vector<1x50xf32>
      %308 = vector.broadcast %307 : vector<1x50xf32> to vector<32x50xf32>
      %309 = arith.subf %304, %308 : vector<32x50xf32>
      %310 = arith.mulf %309, %309 : vector<32x50xf32>
      %cst_189 = arith.constant dense<0.000000e+00> : vector<1x50xf32>
      %311 = tpu.matmul %1, %310, %cst_189 {dimension_numbers = #tpu.dot_dimension_numbers<[1], [0], [0], [1], [0, 0, 1, 1], [], []>} : vector<1x32xf32>, vector<32x50xf32>, vector<1x50xf32> -> vector<1x50xf32>
      %cst_190 = arith.constant 3.125000e-02 : f32
      %312 = vector.broadcast %cst_190 : f32 to vector<1x50xf32>
      %313 = arith.mulf %311, %312 : vector<1x50xf32>
      %cst_191 = arith.constant 9.99999997E-7 : f32
      %314 = vector.broadcast %cst_191 : f32 to vector<1x50xf32>
      %315 = arith.addf %313, %314 : vector<1x50xf32>
      %316 = math.rsqrt %315 : vector<1x50xf32>
      %317 = vector.broadcast %316 : vector<1x50xf32> to vector<32x50xf32>
      %318 = arith.mulf %309, %317 : vector<32x50xf32>
      %c0_192 = arith.constant 0 : index
      %c0_193 = arith.constant 0 : index
      %319 = vector.load %arg48[%c0_192, %c0_193] : memref<1x50xf32, #tpu.memory_space<vmem>>, vector<1x50xf32>
      %320 = vector.broadcast %319 : vector<1x50xf32> to vector<32x50xf32>
      %321 = arith.mulf %318, %320 : vector<32x50xf32>
      %c0_194 = arith.constant 0 : index
      %c0_195 = arith.constant 0 : index
      %322 = vector.load %arg49[%c0_194, %c0_195] : memref<1x50xf32, #tpu.memory_space<vmem>>, vector<1x50xf32>
      %323 = vector.broadcast %322 : vector<1x50xf32> to vector<32x50xf32>
      %324 = arith.addf %321, %323 : vector<32x50xf32>
      %cst_196 = arith.constant 0.000000e+00 : f32
      %325 = vector.broadcast %cst_196 : f32 to vector<32x50xf32>
      %326 = arith.maximumf %324, %325 : vector<32x50xf32>
      %c0_197 = arith.constant 0 : index
      %c0_198 = arith.constant 0 : index
      %327 = vector.load %arg50[%c0_197, %c0_198] : memref<50x20xf32, #tpu.memory_space<vmem>>, vector<50x20xf32>
      %cst_199 = arith.constant dense<0.000000e+00> : vector<32x20xf32>
      %328 = tpu.matmul %326, %327, %cst_199 {dimension_numbers = #tpu.dot_dimension_numbers<[1], [0], [0], [1], [0, 0, 1, 1], [], []>} : vector<32x50xf32>, vector<50x20xf32>, vector<32x20xf32> -> vector<32x20xf32>
      %c0_200 = arith.constant 0 : index
      %c0_201 = arith.constant 0 : index
      %329 = vector.load %arg51[%c0_200, %c0_201] : memref<1x20xf32, #tpu.memory_space<vmem>>, vector<1x20xf32>
      %330 = vector.broadcast %329 : vector<1x20xf32> to vector<32x20xf32>
      %331 = arith.addf %328, %330 : vector<32x20xf32>
      %cst_202 = arith.constant dense<0.000000e+00> : vector<1x20xf32>
      %332 = tpu.matmul %1, %331, %cst_202 {dimension_numbers = #tpu.dot_dimension_numbers<[1], [0], [0], [1], [0, 0, 1, 1], [], []>} : vector<1x32xf32>, vector<32x20xf32>, vector<1x20xf32> -> vector<1x20xf32>
      %cst_203 = arith.constant 3.125000e-02 : f32
      %333 = vector.broadcast %cst_203 : f32 to vector<1x20xf32>
      %334 = arith.mulf %332, %333 : vector<1x20xf32>
      %335 = vector.broadcast %334 : vector<1x20xf32> to vector<32x20xf32>
      %336 = arith.subf %331, %335 : vector<32x20xf32>
      %337 = arith.mulf %336, %336 : vector<32x20xf32>
      %cst_204 = arith.constant dense<0.000000e+00> : vector<1x20xf32>
      %338 = tpu.matmul %1, %337, %cst_204 {dimension_numbers = #tpu.dot_dimension_numbers<[1], [0], [0], [1], [0, 0, 1, 1], [], []>} : vector<1x32xf32>, vector<32x20xf32>, vector<1x20xf32> -> vector<1x20xf32>
      %cst_205 = arith.constant 3.125000e-02 : f32
      %339 = vector.broadcast %cst_205 : f32 to vector<1x20xf32>
      %340 = arith.mulf %338, %339 : vector<1x20xf32>
      %cst_206 = arith.constant 9.99999997E-7 : f32
      %341 = vector.broadcast %cst_206 : f32 to vector<1x20xf32>
      %342 = arith.addf %340, %341 : vector<1x20xf32>
      %343 = math.rsqrt %342 : vector<1x20xf32>
      %344 = vector.broadcast %343 : vector<1x20xf32> to vector<32x20xf32>
      %345 = arith.mulf %336, %344 : vector<32x20xf32>
      %c0_207 = arith.constant 0 : index
      %c0_208 = arith.constant 0 : index
      %346 = vector.load %arg52[%c0_207, %c0_208] : memref<1x20xf32, #tpu.memory_space<vmem>>, vector<1x20xf32>
      %347 = vector.broadcast %346 : vector<1x20xf32> to vector<32x20xf32>
      %348 = arith.mulf %345, %347 : vector<32x20xf32>
      %c0_209 = arith.constant 0 : index
      %c0_210 = arith.constant 0 : index
      %349 = vector.load %arg53[%c0_209, %c0_210] : memref<1x20xf32, #tpu.memory_space<vmem>>, vector<1x20xf32>
      %350 = vector.broadcast %349 : vector<1x20xf32> to vector<32x20xf32>
      %351 = arith.addf %348, %350 : vector<32x20xf32>
      %cst_211 = arith.constant dense<0.000000e+00> : vector<1x50xf32>
      %352 = tpu.matmul %2, %66, %cst_211 {dimension_numbers = #tpu.dot_dimension_numbers<[1], [0], [0], [1], [0, 0, 1, 1], [], []>} : vector<1x80xf32>, vector<80x50xf32>, vector<1x50xf32> -> vector<1x50xf32>
      %cst_212 = arith.constant 1.250000e-02 : f32
      %353 = vector.broadcast %cst_212 : f32 to vector<1x50xf32>
      %354 = arith.mulf %352, %353 : vector<1x50xf32>
      %355 = vector.broadcast %354 : vector<1x50xf32> to vector<80x50xf32>
      %356 = arith.subf %66, %355 : vector<80x50xf32>
      %357 = arith.mulf %356, %356 : vector<80x50xf32>
      %cst_213 = arith.constant dense<0.000000e+00> : vector<1x50xf32>
      %358 = tpu.matmul %2, %357, %cst_213 {dimension_numbers = #tpu.dot_dimension_numbers<[1], [0], [0], [1], [0, 0, 1, 1], [], []>} : vector<1x80xf32>, vector<80x50xf32>, vector<1x50xf32> -> vector<1x50xf32>
      %cst_214 = arith.constant 1.250000e-02 : f32
      %359 = vector.broadcast %cst_214 : f32 to vector<1x50xf32>
      %360 = arith.mulf %358, %359 : vector<1x50xf32>
      %cst_215 = arith.constant 9.99999997E-7 : f32
      %361 = vector.broadcast %cst_215 : f32 to vector<1x50xf32>
      %362 = arith.addf %360, %361 : vector<1x50xf32>
      %363 = math.rsqrt %362 : vector<1x50xf32>
      %364 = vector.broadcast %363 : vector<1x50xf32> to vector<80x50xf32>
      %365 = arith.mulf %356, %364 : vector<80x50xf32>
      %c0_216 = arith.constant 0 : index
      %c0_217 = arith.constant 0 : index
      %366 = vector.load %arg42[%c0_216, %c0_217] : memref<1x50xf32, #tpu.memory_space<vmem>>, vector<1x50xf32>
      %367 = vector.broadcast %366 : vector<1x50xf32> to vector<80x50xf32>
      %368 = arith.mulf %365, %367 : vector<80x50xf32>
      %c0_218 = arith.constant 0 : index
      %c0_219 = arith.constant 0 : index
      %369 = vector.load %arg43[%c0_218, %c0_219] : memref<1x50xf32, #tpu.memory_space<vmem>>, vector<1x50xf32>
      %370 = vector.broadcast %369 : vector<1x50xf32> to vector<80x50xf32>
      %371 = arith.addf %368, %370 : vector<80x50xf32>
      %cst_220 = arith.constant 0.000000e+00 : f32
      %372 = vector.broadcast %cst_220 : f32 to vector<80x50xf32>
      %373 = arith.maximumf %371, %372 : vector<80x50xf32>
      %c0_221 = arith.constant 0 : index
      %c0_222 = arith.constant 0 : index
      %374 = vector.load %arg44[%c0_221, %c0_222] : memref<50x90xf32, #tpu.memory_space<vmem>>, vector<50x90xf32>
      %cst_223 = arith.constant dense<0.000000e+00> : vector<80x90xf32>
      %375 = tpu.matmul %373, %374, %cst_223 {dimension_numbers = #tpu.dot_dimension_numbers<[1], [0], [0], [1], [0, 0, 1, 1], [], []>} : vector<80x50xf32>, vector<50x90xf32>, vector<80x90xf32> -> vector<80x90xf32>
      %cst_224 = arith.constant dense<0.000000e+00> : vector<1x90xf32>
      %376 = tpu.matmul %2, %375, %cst_224 {dimension_numbers = #tpu.dot_dimension_numbers<[1], [0], [0], [1], [0, 0, 1, 1], [], []>} : vector<1x80xf32>, vector<80x90xf32>, vector<1x90xf32> -> vector<1x90xf32>
      %cst_225 = arith.constant 1.250000e-02 : f32
      %377 = vector.broadcast %cst_225 : f32 to vector<1x90xf32>
      %378 = arith.mulf %376, %377 : vector<1x90xf32>
      %379 = vector.broadcast %378 : vector<1x90xf32> to vector<80x90xf32>
      %380 = arith.subf %375, %379 : vector<80x90xf32>
      %381 = arith.mulf %380, %380 : vector<80x90xf32>
      %cst_226 = arith.constant dense<0.000000e+00> : vector<1x90xf32>
      %382 = tpu.matmul %2, %381, %cst_226 {dimension_numbers = #tpu.dot_dimension_numbers<[1], [0], [0], [1], [0, 0, 1, 1], [], []>} : vector<1x80xf32>, vector<80x90xf32>, vector<1x90xf32> -> vector<1x90xf32>
      %cst_227 = arith.constant 1.250000e-02 : f32
      %383 = vector.broadcast %cst_227 : f32 to vector<1x90xf32>
      %384 = arith.mulf %382, %383 : vector<1x90xf32>
      %cst_228 = arith.constant 9.99999997E-7 : f32
      %385 = vector.broadcast %cst_228 : f32 to vector<1x90xf32>
      %386 = arith.addf %384, %385 : vector<1x90xf32>
      %387 = math.rsqrt %386 : vector<1x90xf32>
      %388 = vector.broadcast %387 : vector<1x90xf32> to vector<80x90xf32>
      %389 = arith.mulf %380, %388 : vector<80x90xf32>
      %c0_229 = arith.constant 0 : index
      %c0_230 = arith.constant 0 : index
      %390 = vector.load %arg45[%c0_229, %c0_230] : memref<1x90xf32, #tpu.memory_space<vmem>>, vector<1x90xf32>
      %391 = vector.broadcast %390 : vector<1x90xf32> to vector<80x90xf32>
      %392 = arith.mulf %389, %391 : vector<80x90xf32>
      %c0_231 = arith.constant 0 : index
      %c0_232 = arith.constant 0 : index
      %393 = vector.load %arg46[%c0_231, %c0_232] : memref<1x90xf32, #tpu.memory_space<vmem>>, vector<1x90xf32>
      %394 = vector.broadcast %393 : vector<1x90xf32> to vector<80x90xf32>
      %395 = arith.addf %392, %394 : vector<80x90xf32>
      %cst_233 = arith.constant 0.000000e+00 : f32
      %396 = vector.broadcast %cst_233 : f32 to vector<80x90xf32>
      %397 = arith.maximumf %395, %396 : vector<80x90xf32>
      %c0_234 = arith.constant 0 : index
      %c0_235 = arith.constant 0 : index
      %398 = vector.load %arg47[%c0_234, %c0_235] : memref<90x50xf32, #tpu.memory_space<vmem>>, vector<90x50xf32>
      %cst_236 = arith.constant dense<0.000000e+00> : vector<80x50xf32>
      %399 = tpu.matmul %397, %398, %cst_236 {dimension_numbers = #tpu.dot_dimension_numbers<[1], [0], [0], [1], [0, 0, 1, 1], [], []>} : vector<80x90xf32>, vector<90x50xf32>, vector<80x50xf32> -> vector<80x50xf32>
      %cst_237 = arith.constant dense<0.000000e+00> : vector<1x50xf32>
      %400 = tpu.matmul %2, %399, %cst_237 {dimension_numbers = #tpu.dot_dimension_numbers<[1], [0], [0], [1], [0, 0, 1, 1], [], []>} : vector<1x80xf32>, vector<80x50xf32>, vector<1x50xf32> -> vector<1x50xf32>
      %cst_238 = arith.constant 1.250000e-02 : f32
      %401 = vector.broadcast %cst_238 : f32 to vector<1x50xf32>
      %402 = arith.mulf %400, %401 : vector<1x50xf32>
      %403 = vector.broadcast %402 : vector<1x50xf32> to vector<80x50xf32>
      %404 = arith.subf %399, %403 : vector<80x50xf32>
      %405 = arith.mulf %404, %404 : vector<80x50xf32>
      %cst_239 = arith.constant dense<0.000000e+00> : vector<1x50xf32>
      %406 = tpu.matmul %2, %405, %cst_239 {dimension_numbers = #tpu.dot_dimension_numbers<[1], [0], [0], [1], [0, 0, 1, 1], [], []>} : vector<1x80xf32>, vector<80x50xf32>, vector<1x50xf32> -> vector<1x50xf32>
      %cst_240 = arith.constant 1.250000e-02 : f32
      %407 = vector.broadcast %cst_240 : f32 to vector<1x50xf32>
      %408 = arith.mulf %406, %407 : vector<1x50xf32>
      %cst_241 = arith.constant 9.99999997E-7 : f32
      %409 = vector.broadcast %cst_241 : f32 to vector<1x50xf32>
      %410 = arith.addf %408, %409 : vector<1x50xf32>
      %411 = math.rsqrt %410 : vector<1x50xf32>
      %412 = vector.broadcast %411 : vector<1x50xf32> to vector<80x50xf32>
      %413 = arith.mulf %404, %412 : vector<80x50xf32>
      %c0_242 = arith.constant 0 : index
      %c0_243 = arith.constant 0 : index
      %414 = vector.load %arg48[%c0_242, %c0_243] : memref<1x50xf32, #tpu.memory_space<vmem>>, vector<1x50xf32>
      %415 = vector.broadcast %414 : vector<1x50xf32> to vector<80x50xf32>
      %416 = arith.mulf %413, %415 : vector<80x50xf32>
      %c0_244 = arith.constant 0 : index
      %c0_245 = arith.constant 0 : index
      %417 = vector.load %arg49[%c0_244, %c0_245] : memref<1x50xf32, #tpu.memory_space<vmem>>, vector<1x50xf32>
      %418 = vector.broadcast %417 : vector<1x50xf32> to vector<80x50xf32>
      %419 = arith.addf %416, %418 : vector<80x50xf32>
      %cst_246 = arith.constant 0.000000e+00 : f32
      %420 = vector.broadcast %cst_246 : f32 to vector<80x50xf32>
      %421 = arith.maximumf %419, %420 : vector<80x50xf32>
      %c0_247 = arith.constant 0 : index
      %c0_248 = arith.constant 0 : index
      %422 = vector.load %arg50[%c0_247, %c0_248] : memref<50x20xf32, #tpu.memory_space<vmem>>, vector<50x20xf32>
      %cst_249 = arith.constant dense<0.000000e+00> : vector<80x20xf32>
      %423 = tpu.matmul %421, %422, %cst_249 {dimension_numbers = #tpu.dot_dimension_numbers<[1], [0], [0], [1], [0, 0, 1, 1], [], []>} : vector<80x50xf32>, vector<50x20xf32>, vector<80x20xf32> -> vector<80x20xf32>
      %c0_250 = arith.constant 0 : index
      %c0_251 = arith.constant 0 : index
      %424 = vector.load %arg51[%c0_250, %c0_251] : memref<1x20xf32, #tpu.memory_space<vmem>>, vector<1x20xf32>
      %425 = vector.broadcast %424 : vector<1x20xf32> to vector<80x20xf32>
      %426 = arith.addf %423, %425 : vector<80x20xf32>
      %cst_252 = arith.constant dense<0.000000e+00> : vector<1x20xf32>
      %427 = tpu.matmul %2, %426, %cst_252 {dimension_numbers = #tpu.dot_dimension_numbers<[1], [0], [0], [1], [0, 0, 1, 1], [], []>} : vector<1x80xf32>, vector<80x20xf32>, vector<1x20xf32> -> vector<1x20xf32>
      %cst_253 = arith.constant 1.250000e-02 : f32
      %428 = vector.broadcast %cst_253 : f32 to vector<1x20xf32>
      %429 = arith.mulf %427, %428 : vector<1x20xf32>
      %430 = vector.broadcast %429 : vector<1x20xf32> to vector<80x20xf32>
      %431 = arith.subf %426, %430 : vector<80x20xf32>
      %432 = arith.mulf %431, %431 : vector<80x20xf32>
      %cst_254 = arith.constant dense<0.000000e+00> : vector<1x20xf32>
      %433 = tpu.matmul %2, %432, %cst_254 {dimension_numbers = #tpu.dot_dimension_numbers<[1], [0], [0], [1], [0, 0, 1, 1], [], []>} : vector<1x80xf32>, vector<80x20xf32>, vector<1x20xf32> -> vector<1x20xf32>
      %cst_255 = arith.constant 1.250000e-02 : f32
      %434 = vector.broadcast %cst_255 : f32 to vector<1x20xf32>
      %435 = arith.mulf %433, %434 : vector<1x20xf32>
      %cst_256 = arith.constant 9.99999997E-7 : f32
      %436 = vector.broadcast %cst_256 : f32 to vector<1x20xf32>
      %437 = arith.addf %435, %436 : vector<1x20xf32>
      %438 = math.rsqrt %437 : vector<1x20xf32>
      %439 = vector.broadcast %438 : vector<1x20xf32> to vector<80x20xf32>
      %440 = arith.mulf %431, %439 : vector<80x20xf32>
      %c0_257 = arith.constant 0 : index
      %c0_258 = arith.constant 0 : index
      %441 = vector.load %arg52[%c0_257, %c0_258] : memref<1x20xf32, #tpu.memory_space<vmem>>, vector<1x20xf32>
      %442 = vector.broadcast %441 : vector<1x20xf32> to vector<80x20xf32>
      %443 = arith.mulf %440, %442 : vector<80x20xf32>
      %c0_259 = arith.constant 0 : index
      %c0_260 = arith.constant 0 : index
      %444 = vector.load %arg53[%c0_259, %c0_260] : memref<1x20xf32, #tpu.memory_space<vmem>>, vector<1x20xf32>
      %445 = vector.broadcast %444 : vector<1x20xf32> to vector<80x20xf32>
      %446 = arith.addf %443, %445 : vector<80x20xf32>
      %cst_261 = arith.constant dense<0.000000e+00> : vector<8x1xf32>
      %447 = tpu.matmul %arg59, %3, %cst_261 {dimension_numbers = #tpu.dot_dimension_numbers<[1], [0], [0], [1], [0, 0, 1, 1], [], []>} : vector<8x20xf32>, vector<20x1xf32>, vector<8x1xf32> -> vector<8x1xf32>
      %cst_262 = arith.constant dense<0.000000e+00> : vector<8x1xf32>
      %448 = tpu.matmul %256, %5, %cst_262 {dimension_numbers = #tpu.dot_dimension_numbers<[1], [0], [0], [1], [0, 0, 1, 1], [], []>} : vector<8x400xf32>, vector<400x1xf32>, vector<8x1xf32> -> vector<8x1xf32>
      %cst_263 = arith.constant dense<0.000000e+00> : vector<8x1xf32>
      %449 = tpu.matmul %27, %4, %cst_263 {dimension_numbers = #tpu.dot_dimension_numbers<[1], [0], [0], [1], [0, 0, 1, 1], [], []>} : vector<8x20xf32>, vector<20x1xf32>, vector<8x1xf32> -> vector<8x1xf32>
      %450 = vector.broadcast %30 : vector<32x1xf32> to vector<32x20xf32>
      %451 = arith.mulf %450, %6 : vector<32x20xf32>
      %452 = vector.broadcast %30 : vector<32x1xf32> to vector<32x20xf32>
      %453 = arith.mulf %452, %351 : vector<32x20xf32>
      %cst_264 = arith.constant 5.000000e-02 : f32
      %454 = vector.broadcast %cst_264 : f32 to vector<8x1xf32>
      %455 = arith.mulf %454, %447 : vector<8x1xf32>
      %cst_265 = arith.constant 2.000000e-01 : f32
      %456 = vector.broadcast %cst_265 : f32 to vector<8x1xf32>
      %457 = arith.mulf %456, %448 : vector<8x1xf32>
      %458 = arith.addf %455, %457 : vector<8x1xf32>
      %459 = arith.mulf %451, %351 : vector<32x20xf32>
      %cst_266 = arith.constant dense<0.000000e+00> : vector<8x20xf32>
      %460 = tpu.matmul %8, %459, %cst_266 {dimension_numbers = #tpu.dot_dimension_numbers<[1], [0], [0], [1], [0, 0, 1, 1], [], []>} : vector<8x32xf32>, vector<32x20xf32>, vector<8x20xf32> -> vector<8x20xf32>
      %cst_267 = arith.constant 5.000000e+00 : f32
      %461 = vector.broadcast %cst_267 : f32 to vector<8x20xf32>
      %462 = arith.mulf %461, %460 : vector<8x20xf32>
      %463 = vector.broadcast %458 : vector<8x1xf32> to vector<8x20xf32>
      %464 = arith.addf %463, %462 : vector<8x20xf32>
      %465 = arith.mulf %464, %464 : vector<8x20xf32>
      %466 = arith.addf %arg60, %465 : vector<8x20xf32>
      %cst_268 = arith.constant dense<0.000000e+00> : vector<8x400xf32>
      %467 = tpu.matmul %27, %11, %cst_268 {dimension_numbers = #tpu.dot_dimension_numbers<[1], [0], [0], [1], [0, 0, 1, 1], [], []>} : vector<8x20xf32>, vector<20x400xf32>, vector<8x400xf32> -> vector<8x400xf32>
      %468 = arith.mulf %256, %467 : vector<8x400xf32>
      %cst_269 = arith.constant dense<0.000000e+00> : vector<8x20xf32>
      %469 = tpu.matmul %468, %12, %cst_269 {dimension_numbers = #tpu.dot_dimension_numbers<[1], [0], [0], [1], [0, 0, 1, 1], [], []>} : vector<8x400xf32>, vector<400x20xf32>, vector<8x20xf32> -> vector<8x20xf32>
      %cst_270 = arith.constant 5.000000e-02 : f32
      %470 = vector.broadcast %cst_270 : f32 to vector<8x1xf32>
      %471 = arith.mulf %470, %447 : vector<8x1xf32>
      %472 = vector.broadcast %471 : vector<8x1xf32> to vector<8x20xf32>
      %473 = arith.subf %arg59, %472 : vector<8x20xf32>
      %474 = arith.addf %473, %469 : vector<8x20xf32>
      %cst_271 = arith.constant dense<0.000000e+00> : vector<8x20xf32>
      %475 = tpu.matmul %8, %453, %cst_271 {dimension_numbers = #tpu.dot_dimension_numbers<[1], [0], [0], [1], [0, 0, 1, 1], [], []>} : vector<8x32xf32>, vector<32x20xf32>, vector<8x20xf32> -> vector<8x20xf32>
      %476 = arith.addf %474, %475 : vector<8x20xf32>
      %cst_272 = arith.constant dense<0.000000e+00> : vector<8x20xf32>
      %477 = tpu.matmul %10, %446, %cst_272 {dimension_numbers = #tpu.dot_dimension_numbers<[1], [0], [0], [1], [0, 0, 1, 1], [], []>} : vector<8x80xf32>, vector<80x20xf32>, vector<8x20xf32> -> vector<8x20xf32>
      %cst_273 = arith.constant 6.250000e-02 : f32
      %478 = vector.broadcast %cst_273 : f32 to vector<8x20xf32>
      %479 = arith.mulf %478, %477 : vector<8x20xf32>
      %480 = arith.subf %476, %479 : vector<8x20xf32>
      %cst_274 = arith.constant 5.000000e-02 : f32
      %481 = vector.broadcast %cst_274 : f32 to vector<8x20xf32>
      %482 = arith.mulf %481, %arg58 : vector<8x20xf32>
      %cst_275 = arith.constant 5.000000e-02 : f32
      %483 = vector.broadcast %cst_275 : f32 to vector<8x20xf32>
      %484 = arith.mulf %483, %161 : vector<8x20xf32>
      %485 = arith.addf %482, %484 : vector<8x20xf32>
      %cst_276 = arith.constant 1.250000e-01 : f32
      %486 = vector.broadcast %cst_276 : f32 to vector<8x20xf32>
      %487 = arith.mulf %485, %486 : vector<8x20xf32>
      %488 = arith.addf %arg58, %487 : vector<8x20xf32>
      %cst_277 = arith.constant 2.000000e-01 : f32
      %489 = vector.broadcast %cst_277 : f32 to vector<8x20xf32>
      %490 = arith.mulf %489, %161 : vector<8x20xf32>
      %491 = vector.broadcast %449 : vector<8x1xf32> to vector<8x20xf32>
      %492 = arith.mulf %490, %491 : vector<8x20xf32>
      %493 = arith.mulf %arg58, %492 : vector<8x20xf32>
      %494 = arith.addf %488, %493 : vector<8x20xf32>
      %cst_278 = arith.constant dense<0.000000e+00> : vector<8x20xf32>
      %495 = tpu.matmul %8, %451, %cst_278 {dimension_numbers = #tpu.dot_dimension_numbers<[1], [0], [0], [1], [0, 0, 1, 1], [], []>} : vector<8x32xf32>, vector<32x20xf32>, vector<8x20xf32> -> vector<8x20xf32>
      %496 = arith.mulf %161, %495 : vector<8x20xf32>
      %497 = arith.addf %494, %496 : vector<8x20xf32>
      %cst_279 = arith.constant -1.250000e-02 : f32
      %498 = vector.broadcast %cst_279 : f32 to vector<8x20xf32>
      %499 = arith.mulf %498, %161 : vector<8x20xf32>
      %500 = arith.subf %497, %499 : vector<8x20xf32>
      scf.yield %500, %480, %466 : vector<8x20xf32>, vector<8x20xf32>, vector<8x20xf32>
    }
    %c8_i32_26 = arith.constant 8 : i32
    %c0_27 = arith.constant 0 : index
    %c0_28 = arith.constant 0 : index
    %22 = vector.load %arg54[%c0_27, %c0_28] : memref<8x20xf32, #tpu.memory_space<vmem>>, vector<8x20xf32>
    tpu.vector_store %arg54[%c0_27, %c0_28], %21#0 {strides = array<i32>} : memref<8x20xf32, #tpu.memory_space<vmem>>, vector<8x20xf32>,
    %c0_29 = arith.constant 0 : index
    %c0_30 = arith.constant 0 : index
    %23 = vector.load %arg55[%c0_29, %c0_30] : memref<8x20xf32, #tpu.memory_space<vmem>>, vector<8x20xf32>
    tpu.vector_store %arg55[%c0_29, %c0_30], %21#1 {strides = array<i32>} : memref<8x20xf32, #tpu.memory_space<vmem>>, vector<8x20xf32>,
    %c0_31 = arith.constant 0 : index
    %c0_32 = arith.constant 0 : index
    %24 = vector.load %arg56[%c0_31, %c0_32] : memref<8x20xf32, #tpu.memory_space<vmem>>, vector<8x20xf32>
    tpu.vector_store %arg56[%c0_31, %c0_32], %21#2 {strides = array<i32>} : memref<8x20xf32, #tpu.memory_space<vmem>>, vector<8x20xf32>,
    return
  }
}

</mosaic_0001>

<llo_original>
// kernel: tile.17
$region0: #{tile.17}
  %s0 = inlined_call_operand.vmem [shape: f32[8,10,20], index: 0, kind: input, shape index: {}]
  %s1 = inlined_call_operand.vmem [shape: f32[80,20], index: 1, kind: output, shape index: {}]
  %v2 = vld [vmem:[%s0] ss:$8 sm:$0xf]
  %v3 = vld [vmem:[%s0] ss:$8 sm:$0xf0]
  %vm4 = vcmask 1047556
  %v5 = vsel %vm4, %v3, %v2
  %vm6 = vcmask 80896
  %7 = vst.msk [vmem:[%s1] sm:$0xff] %vm6, %v5
  %s8 = scalar_lea.vmem %s0, 64
  %v9 = vld [vmem:[%s8] ss:$8 sm:$0xf]
  %s10 = scalar_lea.vmem %s0, 64
  %v11 = vld [vmem:[%s10] ss:$8 sm:$0xf0]
  %vm12 = vcmask 1047556
  %v13 = vsel %vm12, %v11, %v9
  %vm14 = vcmask 80896
  %s15 = scalar_lea.vmem %s1, 8
  %16 = vst.msk [vmem:[%s15] sm:$0xff] %vm14, %v13
  %s17 = scalar_lea.vmem %s0, 128
  %v18 = vld [vmem:[%s17] ss:$8 sm:$0xf]
  %vm19 = vcmask 80896
  %s20 = scalar_lea.vmem %s1, 16
  %21 = vst.msk [vmem:[%s20] sm:$0xf] %vm19, %v18
  %s22 = scalar_lea.vmem %s0, 7
  %v23 = vld [vmem:[%s22] ss:$8 sm:$0xf]
  %s24 = scalar_lea.vmem %s0, 7
  %v25 = vld [vmem:[%s24] ss:$8 sm:$0xf0]
  %vm26 = vcmask 1047556
  %v27 = vsel %vm26, %v25, %v23
  %28 = vrot.lane.b32.xlu0 %v27, 70
  %v29 = vpop.permute.xlu0 %28
  %vm30 = vcmask 654896
  %31 = vst.msk [vmem:[%s1] sm:$0xff] %vm30, %v29
  %s32 = scalar_lea.vmem %s0, 71
  %v33 = vld [vmem:[%s32] ss:$8 sm:$0xf]
  %s34 = scalar_lea.vmem %s0, 71
  %v35 = vld [vmem:[%s34] ss:$8 sm:$0xf0]
  %vm36 = vcmask 1047556
  %v37 = vsel %vm36, %v35, %v33
  %38 = vrot.lane.b32.xlu0 %v37, 70
  %v39 = vpop.permute.xlu0 %38
  %vm40 = vcmask 654896
  %s41 = scalar_lea.vmem %s1, 8
  %42 = vst.msk [vmem:[%s41] sm:$0xff] %vm40, %v39
  %s43 = scalar_lea.vmem %s0, 135
  %v44 = vld [vmem:[%s43] ss:$8 sm:$0xf]
  %45 = vrot.lane.b32.xlu0 %v44, 70
  %v46 = vpop.permute.xlu0 %45
  %vm47 = vcmask 654896
  %s48 = scalar_lea.vmem %s1, 16
  %49 = vst.msk [vmem:[%s48] sm:$0xf] %vm47, %v46
  %s50 = scalar_lea.vmem %s0, 6
  %v51 = vld [vmem:[%s50] ss:$8 sm:$0xf]
  %s52 = scalar_lea.vmem %s0, 6
  %v53 = vld [vmem:[%s52] ss:$8 sm:$0xf0]
  %vm54 = vcmask 1047556
  %v55 = vsel %vm54, %v53, %v51
  %56 = vrot.lane.b32.xlu0 %v55, 60
  %v57 = vpop.permute.xlu0 %56
  %vm58 = vcmask 572896
  %59 = vst.msk [vmem:[%s1] sm:$0xff] %vm58, %v57
  %s60 = scalar_lea.vmem %s0, 70
  %v61 = vld [vmem:[%s60] ss:$8 sm:$0xf]
  %s62 = scalar_lea.vmem %s0, 70
  %v63 = vld [vmem:[%s62] ss:$8 sm:$0xf0]
  %vm64 = vcmask 1047556
  %v65 = vsel %vm64, %v63, %v61
  %66 = vrot.lane.b32.xlu0 %v65, 60
  %v67 = vpop.permute.xlu0 %66
  %vm68 = vcmask 572896
  %s69 = scalar_lea.vmem %s1, 8
  %70 = vst.msk [vmem:[%s69] sm:$0xff] %vm68, %v67
  %s71 = scalar_lea.vmem %s0, 134
  %v72 = vld [vmem:[%s71] ss:$8 sm:$0xf]
  %73 = vrot.lane.b32.xlu0 %v72, 60
  %v74 = vpop.permute.xlu0 %73
  %vm75 = vcmask 572896
  %s76 = scalar_lea.vmem %s1, 16
  %77 = vst.msk [vmem:[%s76] sm:$0xf] %vm75, %v74
  %s78 = scalar_lea.vmem %s0, 5
  %v79 = vld [vmem:[%s78] ss:$8 sm:$0xf]
  %s80 = scalar_lea.vmem %s0, 5
  %v81 = vld [vmem:[%s80] ss:$8 sm:$0xf0]
  %vm82 = vcmask 1047556
  %v83 = vsel %vm82, %v81, %v79
  %84 = vrot.lane.b32.xlu0 %v83, 50
  %v85 = vpop.permute.xlu0 %84
  %vm86 = vcmask 490896
  %87 = vst.msk [vmem:[%s1] sm:$0xff] %vm86, %v85
  %s88 = scalar_lea.vmem %s0, 69
  %v89 = vld [vmem:[%s88] ss:$8 sm:$0xf]
  %s90 = scalar_lea.vmem %s0, 69
  %v91 = vld [vmem:[%s90] ss:$8 sm:$0xf0]
  %vm92 = vcmask 1047556
  %v93 = vsel %vm92, %v91, %v89
  %94 = vrot.lane.b32.xlu0 %v93, 50
  %v95 = vpop.permute.xlu0 %94
  %vm96 = vcmask 490896
  %s97 = scalar_lea.vmem %s1, 8
  %98 = vst.msk [vmem:[%s97] sm:$0xff] %vm96, %v95
  %s99 = scalar_lea.vmem %s0, 133
  %v100 = vld [vmem:[%s99] ss:$8 sm:$0xf]
  %101 = vrot.lane.b32.xlu0 %v100, 50
  %v102 = vpop.permute.xlu0 %101
  %vm103 = vcmask 490896
  %s104 = scalar_lea.vmem %s1, 16
  %105 = vst.msk [vmem:[%s104] sm:$0xf] %vm103, %v102
  %s106 = scalar_lea.vmem %s0, 4
  %v107 = vld [vmem:[%s106] ss:$8 sm:$0xf]
  %s108 = scalar_lea.vmem %s0, 4
  %v109 = vld [vmem:[%s108] ss:$8 sm:$0xf0]
  %vm110 = vcmask 1047556
  %v111 = vsel %vm110, %v109, %v107
  %112 = vrot.lane.b32.xlu0 %v111, 40
  %v113 = vpop.permute.xlu0 %112
  %vm114 = vcmask 408896
  %115 = vst.msk [vmem:[%s1] sm:$0xff] %vm114, %v113
  %s116 = scalar_lea.vmem %s0, 68
  %v117 = vld [vmem:[%s116] ss:$8 sm:$0xf]
  %s118 = scalar_lea.vmem %s0, 68
  %v119 = vld [vmem:[%s118] ss:$8 sm:$0xf0]
  %vm120 = vcmask 1047556
  %v121 = vsel %vm120, %v119, %v117
  %122 = vrot.lane.b32.xlu0 %v121, 40
  %v123 = vpop.permute.xlu0 %122
  %vm124 = vcmask 408896
  %s125 = scalar_lea.vmem %s1, 8
  %126 = vst.msk [vmem:[%s125] sm:$0xff] %vm124, %v123
  %s127 = scalar_lea.vmem %s0, 132
  %v128 = vld [vmem:[%s127] ss:$8 sm:$0xf]
  %129 = vrot.lane.b32.xlu0 %v128, 40
  %v130 = vpop.permute.xlu0 %129
  %vm131 = vcmask 408896
  %s132 = scalar_lea.vmem %s1, 16
  %133 = vst.msk [vmem:[%s132] sm:$0xf] %vm131, %v130
  %s134 = scalar_lea.vmem %s0, 3
  %v135 = vld [vmem:[%s134] ss:$8 sm:$0xf]
  %s136 = scalar_lea.vmem %s0, 3
  %v137 = vld [vmem:[%s136] ss:$8 sm:$0xf0]
  %vm138 = vcmask 1047556
  %v139 = vsel %vm138, %v137, %v135
  %140 = vrot.lane.b32.xlu0 %v139, 30
  %v141 = vpop.permute.xlu0 %140
  %vm142 = vcmask 326896
  %143 = vst.msk [vmem:[%s1] sm:$0xff] %vm142, %v141
  %s144 = scalar_lea.vmem %s0, 67
  %v145 = vld [vmem:[%s144] ss:$8 sm:$0xf]
  %s146 = scalar_lea.vmem %s0, 67
  %v147 = vld [vmem:[%s146] ss:$8 sm:$0xf0]
  %vm148 = vcmask 1047556
  %v149 = vsel %vm148, %v147, %v145
  %150 = vrot.lane.b32.xlu0 %v149, 30
  %v151 = vpop.permute.xlu0 %150
  %vm152 = vcmask 326896
  %s153 = scalar_lea.vmem %s1, 8
  %154 = vst.msk [vmem:[%s153] sm:$0xff] %vm152, %v151
  %s155 = scalar_lea.vmem %s0, 131
  %v156 = vld [vmem:[%s155] ss:$8 sm:$0xf]
  %157 = vrot.lane.b32.xlu0 %v156, 30
  %v158 = vpop.permute.xlu0 %157
  %vm159 = vcmask 326896
  %s160 = scalar_lea.vmem %s1, 16
  %161 = vst.msk [vmem:[%s160] sm:$0xf] %vm159, %v158
  %s162 = scalar_lea.vmem %s0, 2
  %v163 = vld [vmem:[%s162] ss:$8 sm:$0xf]
  %s164 = scalar_lea.vmem %s0, 2
  %v165 = vld [vmem:[%s164] ss:$8 sm:$0xf0]
  %vm166 = vcmask 1047556
  %v167 = vsel %vm166, %v165, %v163
  %168 = vrot.lane.b32.xlu0 %v167, 20
  %v169 = vpop.permute.xlu0 %168
  %vm170 = vcmask 244896
  %171 = vst.msk [vmem:[%s1] sm:$0xff] %vm170, %v169
  %s172 = scalar_lea.vmem %s0, 66
  %v173 = vld [vmem:[%s172] ss:$8 sm:$0xf]
  %s174 = scalar_lea.vmem %s0, 66
  %v175 = vld [vmem:[%s174] ss:$8 sm:$0xf0]
  %vm176 = vcmask 1047556
  %v177 = vsel %vm176, %v175, %v173
  %178 = vrot.lane.b32.xlu0 %v177, 20
  %v179 = vpop.permute.xlu0 %178
  %vm180 = vcmask 244896
  %s181 = scalar_lea.vmem %s1, 8
  %182 = vst.msk [vmem:[%s181] sm:$0xff] %vm180, %v179
  %s183 = scalar_lea.vmem %s0, 130
  %v184 = vld [vmem:[%s183] ss:$8 sm:$0xf]
  %185 = vrot.lane.b32.xlu0 %v184, 20
  %v186 = vpop.permute.xlu0 %185
  %vm187 = vcmask 244896
  %s188 = scalar_lea.vmem %s1, 16
  %189 = vst.msk [vmem:[%s188] sm:$0xf] %vm187, %v186
  %s190 = scalar_lea.vmem %s0, 1
  %v191 = vld [vmem:[%s190] ss:$8 sm:$0xf]
  %s192 = scalar_lea.vmem %s0, 1
  %v193 = vld [vmem:[%s192] ss:$8 sm:$0xf0]
  %vm194 = vcmask 1047556
  %v195 = vsel %vm194, %v193, %v191
  %196 = vrot.lane.b32.xlu0 %v195, 10
  %v197 = vpop.permute.xlu0 %196
  %vm198 = vcmask 162896
  %199 = vst.msk [vmem:[%s1] sm:$0xff] %vm198, %v197
  %s200 = scalar_lea.vmem %s0, 65
  %v201 = vld [vmem:[%s200] ss:$8 sm:$0xf]
  %s202 = scalar_lea.vmem %s0, 65
  %v203 = vld [vmem:[%s202] ss:$8 sm:$0xf0]
  %vm204 = vcmask 1047556
  %v205 = vsel %vm204, %v203, %v201
  %206 = vrot.lane.b32.xlu0 %v205, 10
  %v207 = vpop.permute.xlu0 %206
  %vm208 = vcmask 162896
  %s209 = scalar_lea.vmem %s1, 8
  %210 = vst.msk [vmem:[%s209] sm:$0xff] %vm208, %v207
  %s211 = scalar_lea.vmem %s0, 129
  %v212 = vld [vmem:[%s211] ss:$8 sm:$0xf]
  %213 = vrot.lane.b32.xlu0 %v212, 10
  %v214 = vpop.permute.xlu0 %213
  %vm215 = vcmask 162896
  %s216 = scalar_lea.vmem %s1, 16
  %217 = vst.msk [vmem:[%s216] sm:$0xf] %vm215, %v214

// kernel: tile.13
$region0: #{tile.13}
  %s0 = inlined_call_operand.vmem [shape: f32[20,20,20], index: 0, kind: input, shape index: {}]
  %s1 = inlined_call_operand.vmem [shape: f32[20,400], index: 1, kind: output, shape index: {}]
  %v2 = vld [vmem:[%s0] ss:$24 sm:$0xf]
  %v3 = vld [vmem:[%s0] ss:$24 sm:$0xf0]
  %vm4 = vcmask 1047556
  %v5 = vsel %vm4, %v3, %v2
  %vm6 = vcmask 162816
  %7 = vst.msk [vmem:[%s1] sm:$0xff] %vm6, %v5
  %s8 = scalar_lea.vmem %s0, 192
  %v9 = vld [vmem:[%s8] ss:$24 sm:$0xf]
  %s10 = scalar_lea.vmem %s0, 192
  %v11 = vld [vmem:[%s10] ss:$24 sm:$0xf0]
  %vm12 = vcmask 1047556
  %v13 = vsel %vm12, %v11, %v9
  %vm14 = vcmask 162816
  %s15 = scalar_lea.vmem %s1, 32
  %16 = vst.msk [vmem:[%s15] sm:$0xff] %vm14, %v13
  %s17 = scalar_lea.vmem %s0, 384
  %v18 = vld [vmem:[%s17] ss:$24 sm:$0xf]
  %vm19 = vcmask 162816
  %s20 = scalar_lea.vmem %s1, 64
  %21 = vst.msk [vmem:[%s20] sm:$0xf] %vm19, %v18
  %s22 = scalar_lea.vmem %s0, 19
  %v23 = vld [vmem:[%s22] ss:$24 sm:$0xf]
  %s24 = scalar_lea.vmem %s0, 19
  %v25 = vld [vmem:[%s24] ss:$24 sm:$0xf0]
  %vm26 = vcmask 1047556
  %v27 = vsel %vm26, %v25, %v23
  %s28 = scalar_lea.vmem %s0, 19
  %v29 = vld [vmem:[%s28] ss:$24 sm:$0xf]
  %s30 = scalar_lea.vmem %s0, 19
  %v31 = vld [vmem:[%s30] ss:$24 sm:$0xf0]
  %vm32 = vcmask 1047556
  %v33 = vsel %vm32, %v31, %v29
  %vm34 = vcmask 31744
  %v35 = vsel %vm34, %v33, %v27
  %36 = vrot.lane.b32.xlu0 %v35, 124
  %v37 = vpop.permute.xlu0 %36
  %vm38 = vcmask 130048
  %s39 = scalar_lea.vmem %s1, 24
  %40 = vst.msk [vmem:[%s39] sm:$0xff] %vm38, %v37
  %vm41 = vcmask 1048544
  %s42 = scalar_lea.vmem %s1, 16
  %43 = vst.msk [vmem:[%s42] sm:$0xff] %vm41, %v37
  %s44 = scalar_lea.vmem %s0, 211
  %v45 = vld [vmem:[%s44] ss:$24 sm:$0xf]
  %s46 = scalar_lea.vmem %s0, 211
  %v47 = vld [vmem:[%s46] ss:$24 sm:$0xf0]
  %vm48 = vcmask 1047556
  %v49 = vsel %vm48, %v47, %v45
  %s50 = scalar_lea.vmem %s0, 211
  %v51 = vld [vmem:[%s50] ss:$24 sm:$0xf]
  %s52 = scalar_lea.vmem %s0, 211
  %v53 = vld [vmem:[%s52] ss:$24 sm:$0xf0]
  %vm54 = vcmask 1047556
  %v55 = vsel %vm54, %v53, %v51
  %vm56 = vcmask 31744
  %v57 = vsel %vm56, %v55, %v49
  %58 = vrot.lane.b32.xlu0 %v57, 124
  %v59 = vpop.permute.xlu0 %58
  %vm60 = vcmask 130048
  %s61 = scalar_lea.vmem %s1, 56
  %62 = vst.msk [vmem:[%s61] sm:$0xff] %vm60, %v59
  %vm63 = vcmask 1048544
  %s64 = scalar_lea.vmem %s1, 48
  %65 = vst.msk [vmem:[%s64] sm:$0xff] %vm63, %v59
  %s66 = scalar_lea.vmem %s0, 403
  %v67 = vld [vmem:[%s66] ss:$24 sm:$0xf]
  %s68 = scalar_lea.vmem %s0, 403
  %v69 = vld [vmem:[%s68] ss:$24 sm:$0xf]
  %vm70 = vcmask 31744
  %v71 = vsel %vm70, %v69, %v67
  %72 = vrot.lane.b32.xlu0 %v71, 124
  %v73 = vpop.permute.xlu0 %72
  %vm74 = vcmask 130048
  %s75 = scalar_lea.vmem %s1, 88
  %76 = vst.msk [vmem:[%s75] sm:$0xf] %vm74, %v73
  %vm77 = vcmask 1048544
  %s78 = scalar_lea.vmem %s1, 80
  %79 = vst.msk [vmem:[%s78] sm:$0xf] %vm77, %v73
  %s80 = scalar_lea.vmem %s0, 6
  %v81 = vld [vmem:[%s80] ss:$24 sm:$0xf]
  %s82 = scalar_lea.vmem %s0, 6
  %v83 = vld [vmem:[%s82] ss:$24 sm:$0xf0]
  %vm84 = vcmask 1047556
  %v85 = vsel %vm84, %v83, %v81
  %s86 = scalar_lea.vmem %s0, 6
  %v87 = vld [vmem:[%s86] ss:$24 sm:$0xf]
  %s88 = scalar_lea.vmem %s0, 6
  %v89 = vld [vmem:[%s88] ss:$24 sm:$0xf0]
  %vm90 = vcmask 1047556
  %v91 = vsel %vm90, %v89, %v87
  %vm92 = vcmask 64512
  %v93 = vsel %vm92, %v91, %v85
  %94 = vrot.lane.b32.xlu0 %v93, 120
  %v95 = vpop.permute.xlu0 %94
  %vm96 = vcmask 97280
  %s97 = scalar_lea.vmem %s1, 8
  %98 = vst.msk [vmem:[%s97] sm:$0xff] %vm96, %v95
  %vm99 = vcmask 1048512
  %100 = vst.msk [vmem:[%s1] sm:$0xff] %vm99, %v95
  %s101 = scalar_lea.vmem %s0, 198
  %v102 = vld [vmem:[%s101] ss:$24 sm:$0xf]
  %s103 = scalar_lea.vmem %s0, 198
  %v104 = vld [vmem:[%s103] ss:$24 sm:$0xf0]
  %vm105 = vcmask 1047556
  %v106 = vsel %vm105, %v104, %v102
  %s107 = scalar_lea.vmem %s0, 198
  %v108 = vld [vmem:[%s107] ss:$24 sm:$0xf]
  %s109 = scalar_lea.vmem %s0, 198
  %v110 = vld [vmem:[%s109] ss:$24 sm:$0xf0]
  %vm111 = vcmask 1047556
  %v112 = vsel %vm111, %v110, %v108
  %vm113 = vcmask 64512
  %v114 = vsel %vm113, %v112, %v106
  %115 = vrot.lane.b32.xlu0 %v114, 120
  %v116 = vpop.permute.xlu0 %115
  %vm117 = vcmask 97280
  %s118 = scalar_lea.vmem %s1, 40
  %119 = vst.msk [vmem:[%s118] sm:$0xff] %vm117, %v116
  %vm120 = vcmask 1048512
  %s121 = scalar_lea.vmem %s1, 32
  %122 = vst.msk [vmem:[%s121] sm:$0xff] %vm120, %v116
  %s123 = scalar_lea.vmem %s0, 390
  %v124 = vld [vmem:[%s123] ss:$24 sm:$0xf]
  %s125 = scalar_lea.vmem %s0, 390
  %v126 = vld [vmem:[%s125] ss:$24 sm:$0xf]
  %vm127 = vcmask 64512
  %v128 = vsel %vm127, %v126, %v124
  %129 = vrot.lane.b32.xlu0 %v128, 120
  %v130 = vpop.permute.xlu0 %129
  %vm131 = vcmask 97280
  %s132 = scalar_lea.vmem %s1, 72
  %133 = vst.msk [vmem:[%s132] sm:$0xf] %vm131, %v130
  %vm134 = vcmask 1048512
  %s135 = scalar_lea.vmem %s1, 64
  %136 = vst.msk [vmem:[%s135] sm:$0xf] %vm134, %v130
  %s137 = scalar_lea.vmem %s0, 12
  %v138 = vld [vmem:[%s137] ss:$24 sm:$0xf]
  %s139 = scalar_lea.vmem %s0, 12
  %v140 = vld [vmem:[%s139] ss:$24 sm:$0xf0]
  %vm141 = vcmask 1047556
  %v142 = vsel %vm141, %v140, %v138
  %s143 = scalar_lea.vmem %s0, 12
  %v144 = vld [vmem:[%s143] ss:$24 sm:$0xf]
  %s145 = scalar_lea.vmem %s0, 12
  %v146 = vld [vmem:[%s145] ss:$24 sm:$0xf0]
  %vm147 = vcmask 1047556
  %v148 = vsel %vm147, %v146, %v144
  %vm149 = vcmask 130048
  %v150 = vsel %vm149, %v148, %v142
  %151 = vrot.lane.b32.xlu0 %v150, 112
  %v152 = vpop.permute.xlu0 %151
  %vm153 = vcmask 31744
  %s154 = scalar_lea.vmem %s1, 16
  %155 = vst.msk [vmem:[%s154] sm:$0xff] %vm153, %v152
  %vm156 = vcmask 1048448
  %s157 = scalar_lea.vmem %s1, 8
  %158 = vst.msk [vmem:[%s157] sm:$0xff] %vm156, %v152
  %s159 = scalar_lea.vmem %s0, 204
  %v160 = vld [vmem:[%s159] ss:$24 sm:$0xf]
  %s161 = scalar_lea.vmem %s0, 204
  %v162 = vld [vmem:[%s161] ss:$24 sm:$0xf0]
  %vm163 = vcmask 1047556
  %v164 = vsel %vm163, %v162, %v160
  %s165 = scalar_lea.vmem %s0, 204
  %v166 = vld [vmem:[%s165] ss:$24 sm:$0xf]
  %s167 = scalar_lea.vmem %s0, 204
  %v168 = vld [vmem:[%s167] ss:$24 sm:$0xf0]
  %vm169 = vcmask 1047556
  %v170 = vsel %vm169, %v168, %v166
  %vm171 = vcmask 130048
  %v172 = vsel %vm171, %v170, %v164
  %173 = vrot.lane.b32.xlu0 %v172, 112
  %v174 = vpop.permute.xlu0 %173
  %vm175 = vcmask 31744
  %s176 = scalar_lea.vmem %s1, 48
  %177 = vst.msk [vmem:[%s176] sm:$0xff] %vm175, %v174
  %vm178 = vcmask 1048448
  %s179 = scalar_lea.vmem %s1, 40
  %180 = vst.msk [vmem:[%s179] sm:$0xff] %vm178, %v174
  %s181 = scalar_lea.vmem %s0, 396
  %v182 = vld [vmem:[%s181] ss:$24 sm:$0xf]
  %s183 = scalar_lea.vmem %s0, 396
  %v184 = vld [vmem:[%s183] ss:$24 sm:$0xf]
  %vm185 = vcmask 130048
  %v186 = vsel %vm185, %v184, %v182
  %187 = vrot.lane.b32.xlu0 %v186, 112
  %v188 = vpop.permute.xlu0 %187
  %vm189 = vcmask 31744
  %s190 = scalar_lea.vmem %s1, 80
  %191 = vst.msk [vmem:[%s190] sm:$0xf] %vm189, %v188
  %vm192 = vcmask 1048448
  %s193 = scalar_lea.vmem %s1, 72
  %194 = vst.msk [vmem:[%s193] sm:$0xf] %vm192, %v188
  %s195 = scalar_lea.vmem %s0, 18
  %v196 = vld [vmem:[%s195] ss:$24 sm:$0xf]
  %s197 = scalar_lea.vmem %s0, 18
  %v198 = vld [vmem:[%s197] ss:$24 sm:$0xf0]
  %vm199 = vcmask 1047556
  %v200 = vsel %vm199, %v198, %v196
  %201 = vrot.lane.b32.xlu0 %v200, 104
  %v202 = vpop.permute.xlu0 %201
  %vm203 = vcmask 1015616
  %s204 = scalar_lea.vmem %s1, 16
  %205 = vst.msk [vmem:[%s204] sm:$0xff] %vm203, %v202
  %s206 = scalar_lea.vmem %s0, 210
  %v207 = vld [vmem:[%s206] ss:$24 sm:$0xf]
  %s208 = scalar_lea.vmem %s0, 210
  %v209 = vld [vmem:[%s208] ss:$24 sm:$0xf0]
  %vm210 = vcmask 1047556
  %v211 = vsel %vm210, %v209, %v207
  %212 = vrot.lane.b32.xlu0 %v211, 104
  %v213 = vpop.permute.xlu0 %212
  %vm214 = vcmask 1015616
  %s215 = scalar_lea.vmem %s1, 48
  %216 = vst.msk [vmem:[%s215] sm:$0xff] %vm214, %v213
  %s217 = scalar_lea.vmem %s0, 402
  %v218 = vld [vmem:[%s217] ss:$24 sm:$0xf]
  %219 = vrot.lane.b32.xlu0 %v218, 104
  %v220 = vpop.permute.xlu0 %219
  %vm221 = vcmask 1015616
  %s222 = scalar_lea.vmem %s1, 80
  %223 = vst.msk [vmem:[%s222] sm:$0xf] %vm221, %v220
  %s224 = scalar_lea.vmem %s0, 5
  %v225 = vld [vmem:[%s224] ss:$24 sm:$0xf]
  %s226 = scalar_lea.vmem %s0, 5
  %v227 = vld [vmem:[%s226] ss:$24 sm:$0xf0]
  %vm228 = vcmask 1047556
  %v229 = vsel %vm228, %v227, %v225
  %230 = vrot.lane.b32.xlu0 %v229, 100
  %v231 = vpop.permute.xlu0 %230
  %vm232 = vcmask 982816
  %233 = vst.msk [vmem:[%s1] sm:$0xff] %vm232, %v231
  %s234 = scalar_lea.vmem %s0, 197
  %v235 = vld [vmem:[%s234] ss:$24 sm:$0xf]
  %s236 = scalar_lea.vmem %s0, 197
  %v237 = vld [vmem:[%s236] ss:$24 sm:$0xf0]
  %vm238 = vcmask 1047556
  %v239 = vsel %vm238, %v237, %v235
  %240 = vrot.lane.b32.xlu0 %v239, 100
  %v241 = vpop.permute.xlu0 %240
  %vm242 = vcmask 982816
  %s243 = scalar_lea.vmem %s1, 32
  %244 = vst.msk [vmem:[%s243] sm:$0xff] %vm242, %v241
  %s245 = scalar_lea.vmem %s0, 389
  %v246 = vld [vmem:[%s245] ss:$24 sm:$0xf]
  %247 = vrot.lane.b32.xlu0 %v246, 100
  %v248 = vpop.permute.xlu0 %247
  %vm249 = vcmask 982816
  %s250 = scalar_lea.vmem %s1, 64
  %251 = vst.msk [vmem:[%s250] sm:$0xf] %vm249, %v248
  %s252 = scalar_lea.vmem %s0, 11
  %v253 = vld [vmem:[%s252] ss:$24 sm:$0xf]
  %s254 = scalar_lea.vmem %s0, 11
  %v255 = vld [vmem:[%s254] ss:$24 sm:$0xf0]
  %vm256 = vcmask 1047556
  %v257 = vsel %vm256, %v255, %v253
  %258 = vrot.lane.b32.xlu0 %v257, 92
  %v259 = vpop.permute.xlu0 %258
  %vm260 = vcmask 917216
  %s261 = scalar_lea.vmem %s1, 8
  %262 = vst.msk [vmem:[%s261] sm:$0xff] %vm260, %v259
  %s263 = scalar_lea.vmem %s0, 203
  %v264 = vld [vmem:[%s263] ss:$24 sm:$0xf]
  %s265 = scalar_lea.vmem %s0, 203
  %v266 = vld [vmem:[%s265] ss:$24 sm:$0xf0]
  %vm267 = vcmask 1047556
  %v268 = vsel %vm267, %v266, %v264
  %269 = vrot.lane.b32.xlu0 %v268, 92
  %v270 = vpop.permute.xlu0 %269
  %vm271 = vcmask 917216
  %s272 = scalar_lea.vmem %s1, 40
  %273 = vst.msk [vmem:[%s272] sm:$0xff] %vm271, %v270
  %s274 = scalar_lea.vmem %s0, 395
  %v275 = vld [vmem:[%s274] ss:$24 sm:$0xf]
  %276 = vrot.lane.b32.xlu0 %v275, 92
  %v277 = vpop.permute.xlu0 %276
  %vm278 = vcmask 917216
  %s279 = scalar_lea.vmem %s1, 72
  %280 = vst.msk [vmem:[%s279] sm:$0xf] %vm278, %v277
  %s281 = scalar_lea.vmem %s0, 17
  %v282 = vld [vmem:[%s281] ss:$24 sm:$0xf]
  %s283 = scalar_lea.vmem %s0, 17
  %v284 = vld [vmem:[%s283] ss:$24 sm:$0xf0]
  %vm285 = vcmask 1047556
  %v286 = vsel %vm285, %v284, %v282
  %287 = vrot.lane.b32.xlu0 %v286, 84
  %v288 = vpop.permute.xlu0 %287
  %vm289 = vcmask 851616
  %s290 = scalar_lea.vmem %s1, 16
  %291 = vst.msk [vmem:[%s290] sm:$0xff] %vm289, %v288
  %s292 = scalar_lea.vmem %s0, 209
  %v293 = vld [vmem:[%s292] ss:$24 sm:$0xf]
  %s294 = scalar_lea.vmem %s0, 209
  %v295 = vld [vmem:[%s294] ss:$24 sm:$0xf0]
  %vm296 = vcmask 1047556
  %v297 = vsel %vm296, %v295, %v293
  %298 = vrot.lane.b32.xlu0 %v297, 84
  %v299 = vpop.permute.xlu0 %298
  %vm300 = vcmask 851616
  %s301 = scalar_lea.vmem %s1, 48
  %302 = vst.msk [vmem:[%s301] sm:$0xff] %vm300, %v299
  %s303 = scalar_lea.vmem %s0, 401
  %v304 = vld [vmem:[%s303] ss:$24 sm:$0xf]
  %305 = vrot.lane.b32.xlu0 %v304, 84
  %v306 = vpop.permute.xlu0 %305
  %vm307 = vcmask 851616
  %s308 = scalar_lea.vmem %s1, 80
  %309 = vst.msk [vmem:[%s308] sm:$0xf] %vm307, %v306
  %s310 = scalar_lea.vmem %s0, 4
  %v311 = vld [vmem:[%s310] ss:$24 sm:$0xf]
  %s312 = scalar_lea.vmem %s0, 4
  %v313 = vld [vmem:[%s312] ss:$24 sm:$0xf0]
  %vm314 = vcmask 1047556
  %v315 = vsel %vm314, %v313, %v311
  %316 = vrot.lane.b32.xlu0 %v315, 80
  %v317 = vpop.permute.xlu0 %316
  %vm318 = vcmask 818816
  %319 = vst.msk [vmem:[%s1] sm:$0xff] %vm318, %v317
  %s320 = scalar_lea.vmem %s0, 196
  %v321 = vld [vmem:[%s320] ss:$24 sm:$0xf]
  %s322 = scalar_lea.vmem %s0, 196
  %v323 = vld [vmem:[%s322] ss:$24 sm:$0xf0]
  %vm324 = vcmask 1047556
  %v325 = vsel %vm324, %v323, %v321
  %326 = vrot.lane.b32.xlu0 %v325, 80
  %v327 = vpop.permute.xlu0 %326
  %vm328 = vcmask 818816
  %s329 = scalar_lea.vmem %s1, 32
  %330 = vst.msk [vmem:[%s329] sm:$0xff] %vm328, %v327
  %s331 = scalar_lea.vmem %s0, 388
  %v332 = vld [vmem:[%s331] ss:$24 sm:$0xf]
  %333 = vrot.lane.b32.xlu0 %v332, 80
  %v334 = vpop.permute.xlu0 %333
  %vm335 = vcmask 818816
  %s336 = scalar_lea.vmem %s1, 64
  %337 = vst.msk [vmem:[%s336] sm:$0xf] %vm335, %v334
  %s338 = scalar_lea.vmem %s0, 10
  %v339 = vld [vmem:[%s338] ss:$24 sm:$0xf]
  %s340 = scalar_lea.vmem %s0, 10
  %v341 = vld [vmem:[%s340] ss:$24 sm:$0xf0]
  %vm342 = vcmask 1047556
  %v343 = vsel %vm342, %v341, %v339
  %344 = vrot.lane.b32.xlu0 %v343, 72
  %v345 = vpop.permute.xlu0 %344
  %vm346 = vcmask 753216
  %s347 = scalar_lea.vmem %s1, 8
  %348 = vst.msk [vmem:[%s347] sm:$0xff] %vm346, %v345
  %s349 = scalar_lea.vmem %s0, 202
  %v350 = vld [vmem:[%s349] ss:$24 sm:$0xf]
  %s351 = scalar_lea.vmem %s0, 202
  %v352 = vld [vmem:[%s351] ss:$24 sm:$0xf0]
  %vm353 = vcmask 1047556
  %v354 = vsel %vm353, %v352, %v350
  %355 = vrot.lane.b32.xlu0 %v354, 72
  %v356 = vpop.permute.xlu0 %355
  %vm357 = vcmask 753216
  %s358 = scalar_lea.vmem %s1, 40
  %359 = vst.msk [vmem:[%s358] sm:$0xff] %vm357, %v356
  %s360 = scalar_lea.vmem %s0, 394
  %v361 = vld [vmem:[%s360] ss:$24 sm:$0xf]
  %362 = vrot.lane.b32.xlu0 %v361, 72
  %v363 = vpop.permute.xlu0 %362
  %vm364 = vcmask 753216
  %s365 = scalar_lea.vmem %s1, 72
  %366 = vst.msk [vmem:[%s365] sm:$0xf] %vm364, %v363
  %s367 = scalar_lea.vmem %s0, 16
  %v368 = vld [vmem:[%s367] ss:$24 sm:$0xf]
  %s369 = scalar_lea.vmem %s0, 16
  %v370 = vld [vmem:[%s369] ss:$24 sm:$0xf0]
  %vm371 = vcmask 1047556
  %v372 = vsel %vm371, %v370, %v368
  %373 = vrot.lane.b32.xlu0 %v372, 64
  %v374 = vpop.permute.xlu0 %373
  %vm375 = vcmask 687616
  %s376 = scalar_lea.vmem %s1, 16
  %377 = vst.msk [vmem:[%s376] sm:$0xff] %vm375, %v374
  %s378 = scalar_lea.vmem %s0, 208
  %v379 = vld [vmem:[%s378] ss:$24 sm:$0xf]
  %s380 = scalar_lea.vmem %s0, 208
  %v381 = vld [vmem:[%s380] ss:$24 sm:$0xf0]
  %vm382 = vcmask 1047556
  %v383 = vsel %vm382, %v381, %v379
  %384 = vrot.lane.b32.xlu0 %v383, 64
  %v385 = vpop.permute.xlu0 %384
  %vm386 = vcmask 687616
  %s387 = scalar_lea.vmem %s1, 48
  %388 = vst.msk [vmem:[%s387] sm:$0xff] %vm386, %v385
  %s389 = scalar_lea.vmem %s0, 400
  %v390 = vld [vmem:[%s389] ss:$24 sm:$0xf]
  %391 = vrot.lane.b32.xlu0 %v390, 64
  %v392 = vpop.permute.xlu0 %391
  %vm393 = vcmask 687616
  %s394 = scalar_lea.vmem %s1, 80
  %395 = vst.msk [vmem:[%s394] sm:$0xf] %vm393, %v392
  %s396 = scalar_lea.vmem %s0, 3
  %v397 = vld [vmem:[%s396] ss:$24 sm:$0xf]
  %s398 = scalar_lea.vmem %s0, 3
  %v399 = vld [vmem:[%s398] ss:$24 sm:$0xf0]
  %vm400 = vcmask 1047556
  %v401 = vsel %vm400, %v399, %v397
  %402 = vrot.lane.b32.xlu0 %v401, 60
  %v403 = vpop.permute.xlu0 %402
  %vm404 = vcmask 654816
  %405 = vst.msk [vmem:[%s1] sm:$0xff] %vm404, %v403
  %s406 = scalar_lea.vmem %s0, 195
  %v407 = vld [vmem:[%s406] ss:$24 sm:$0xf]
  %s408 = scalar_lea.vmem %s0, 195
  %v409 = vld [vmem:[%s408] ss:$24 sm:$0xf0]
  %vm410 = vcmask 1047556
  %v411 = vsel %vm410, %v409, %v407
  %412 = vrot.lane.b32.xlu0 %v411, 60
  %v413 = vpop.permute.xlu0 %412
  %vm414 = vcmask 654816
  %s415 = scalar_lea.vmem %s1, 32
  %416 = vst.msk [vmem:[%s415] sm:$0xff] %vm414, %v413
  %s417 = scalar_lea.vmem %s0, 387
  %v418 = vld [vmem:[%s417] ss:$24 sm:$0xf]
  %419 = vrot.lane.b32.xlu0 %v418, 60
  %v420 = vpop.permute.xlu0 %419
  %vm421 = vcmask 654816
  %s422 = scalar_lea.vmem %s1, 64
  %423 = vst.msk [vmem:[%s422] sm:$0xf] %vm421, %v420
  %s424 = scalar_lea.vmem %s0, 9
  %v425 = vld [vmem:[%s424] ss:$24 sm:$0xf]
  %s426 = scalar_lea.vmem %s0, 9
  %v427 = vld [vmem:[%s426] ss:$24 sm:$0xf0]
  %vm428 = vcmask 1047556
  %v429 = vsel %vm428, %v427, %v425
  %430 = vrot.lane.b32.xlu0 %v429, 52
  %v431 = vpop.permute.xlu0 %430
  %vm432 = vcmask 589216
  %s433 = scalar_lea.vmem %s1, 8
  %434 = vst.msk [vmem:[%s433] sm:$0xff] %vm432, %v431
  %s435 = scalar_lea.vmem %s0, 201
  %v436 = vld [vmem:[%s435] ss:$24 sm:$0xf]
  %s437 = scalar_lea.vmem %s0, 201
  %v438 = vld [vmem:[%s437] ss:$24 sm:$0xf0]
  %vm439 = vcmask 1047556
  %v440 = vsel %vm439, %v438, %v436
  %441 = vrot.lane.b32.xlu0 %v440, 52
  %v442 = vpop.permute.xlu0 %441
  %vm443 = vcmask 589216
  %s444 = scalar_lea.vmem %s1, 40
  %445 = vst.msk [vmem:[%s444] sm:$0xff] %vm443, %v442
  %s446 = scalar_lea.vmem %s0, 393
  %v447 = vld [vmem:[%s446] ss:$24 sm:$0xf]
  %448 = vrot.lane.b32.xlu0 %v447, 52
  %v449 = vpop.permute.xlu0 %448
  %vm450 = vcmask 589216
  %s451 = scalar_lea.vmem %s1, 72
  %452 = vst.msk [vmem:[%s451] sm:$0xf] %vm450, %v449
  %s453 = scalar_lea.vmem %s0, 15
  %v454 = vld [vmem:[%s453] ss:$24 sm:$0xf]
  %s455 = scalar_lea.vmem %s0, 15
  %v456 = vld [vmem:[%s455] ss:$24 sm:$0xf0]
  %vm457 = vcmask 1047556
  %v458 = vsel %vm457, %v456, %v454
  %459 = vrot.lane.b32.xlu0 %v458, 44
  %v460 = vpop.permute.xlu0 %459
  %vm461 = vcmask 523616
  %s462 = scalar_lea.vmem %s1, 16
  %463 = vst.msk [vmem:[%s462] sm:$0xff] %vm461, %v460
  %s464 = scalar_lea.vmem %s0, 207
  %v465 = vld [vmem:[%s464] ss:$24 sm:$0xf]
  %s466 = scalar_lea.vmem %s0, 207
  %v467 = vld [vmem:[%s466] ss:$24 sm:$0xf0]
  %vm468 = vcmask 1047556
  %v469 = vsel %vm468, %v467, %v465
  %470 = vrot.lane.b32.xlu0 %v469, 44
  %v471 = vpop.permute.xlu0 %470
  %vm472 = vcmask 523616
  %s473 = scalar_lea.vmem %s1, 48
  %474 = vst.msk [vmem:[%s473] sm:$0xff] %vm472, %v471
  %s475 = scalar_lea.vmem %s0, 399
  %v476 = vld [vmem:[%s475] ss:$24 sm:$0xf]
  %477 = vrot.lane.b32.xlu0 %v476, 44
  %v478 = vpop.permute.xlu0 %477
  %vm479 = vcmask 523616
  %s480 = scalar_lea.vmem %s1, 80
  %481 = vst.msk [vmem:[%s480] sm:$0xf] %vm479, %v478
  %s482 = scalar_lea.vmem %s0, 2
  %v483 = vld [vmem:[%s482] ss:$24 sm:$0xf]
  %s484 = scalar_lea.vmem %s0, 2
  %v485 = vld [vmem:[%s484] ss:$24 sm:$0xf0]
  %vm486 = vcmask 1047556
  %v487 = vsel %vm486, %v485, %v483
  %488 = vrot.lane.b32.xlu0 %v487, 40
  %v489 = vpop.permute.xlu0 %488
  %vm490 = vcmask 490816
  %491 = vst.msk [vmem:[%s1] sm:$0xff] %vm490, %v489
  %s492 = scalar_lea.vmem %s0, 194
  %v493 = vld [vmem:[%s492] ss:$24 sm:$0xf]
  %s494 = scalar_lea.vmem %s0, 194
  %v495 = vld [vmem:[%s494] ss:$24 sm:$0xf0]
  %vm496 = vcmask 1047556
  %v497 = vsel %vm496, %v495, %v493
  %498 = vrot.lane.b32.xlu0 %v497, 40
  %v499 = vpop.permute.xlu0 %498
  %vm500 = vcmask 490816
  %s501 = scalar_lea.vmem %s1, 32
  %502 = vst.msk [vmem:[%s501] sm:$0xff] %vm500, %v499
  %s503 = scalar_lea.vmem %s0, 386
  %v504 = vld [vmem:[%s503] ss:$24 sm:$0xf]
  %505 = vrot.lane.b32.xlu0 %v504, 40
  %v506 = vpop.permute.xlu0 %505
  %vm507 = vcmask 490816
  %s508 = scalar_lea.vmem %s1, 64
  %509 = vst.msk [vmem:[%s508] sm:$0xf] %vm507, %v506
  %s510 = scalar_lea.vmem %s0, 8
  %v511 = vld [vmem:[%s510] ss:$24 sm:$0xf]
  %s512 = scalar_lea.vmem %s0, 8
  %v513 = vld [vmem:[%s512] ss:$24 sm:$0xf0]
  %vm514 = vcmask 1047556
  %v515 = vsel %vm514, %v513, %v511
  %516 = vrot.lane.b32.xlu0 %v515, 32
  %v517 = vpop.permute.xlu0 %516
  %vm518 = vcmask 425216
  %s519 = scalar_lea.vmem %s1, 8
  %520 = vst.msk [vmem:[%s519] sm:$0xff] %vm518, %v517
  %s521 = scalar_lea.vmem %s0, 200
  %v522 = vld [vmem:[%s521] ss:$24 sm:$0xf]
  %s523 = scalar_lea.vmem %s0, 200
  %v524 = vld [vmem:[%s523] ss:$24 sm:$0xf0]
  %vm525 = vcmask 1047556
  %v526 = vsel %vm525, %v524, %v522
  %527 = vrot.lane.b32.xlu0 %v526, 32
  %v528 = vpop.permute.xlu0 %527
  %vm529 = vcmask 425216
  %s530 = scalar_lea.vmem %s1, 40
  %531 = vst.msk [vmem:[%s530] sm:$0xff] %vm529, %v528
  %s532 = scalar_lea.vmem %s0, 392
  %v533 = vld [vmem:[%s532] ss:$24 sm:$0xf]
  %534 = vrot.lane.b32.xlu0 %v533, 32
  %v535 = vpop.permute.xlu0 %534
  %vm536 = vcmask 425216
  %s537 = scalar_lea.vmem %s1, 72
  %538 = vst.msk [vmem:[%s537] sm:$0xf] %vm536, %v535
  %s539 = scalar_lea.vmem %s0, 14
  %v540 = vld [vmem:[%s539] ss:$24 sm:$0xf]
  %s541 = scalar_lea.vmem %s0, 14
  %v542 = vld [vmem:[%s541] ss:$24 sm:$0xf0]
  %vm543 = vcmask 1047556
  %v544 = vsel %vm543, %v542, %v540
  %545 = vrot.lane.b32.xlu0 %v544, 24
  %v546 = vpop.permute.xlu0 %545
  %vm547 = vcmask 359616
  %s548 = scalar_lea.vmem %s1, 16
  %549 = vst.msk [vmem:[%s548] sm:$0xff] %vm547, %v546
  %s550 = scalar_lea.vmem %s0, 206
  %v551 = vld [vmem:[%s550] ss:$24 sm:$0xf]
  %s552 = scalar_lea.vmem %s0, 206
  %v553 = vld [vmem:[%s552] ss:$24 sm:$0xf0]
  %vm554 = vcmask 1047556
  %v555 = vsel %vm554, %v553, %v551
  %556 = vrot.lane.b32.xlu0 %v555, 24
  %v557 = vpop.permute.xlu0 %556
  %vm558 = vcmask 359616
  %s559 = scalar_lea.vmem %s1, 48
  %560 = vst.msk [vmem:[%s559] sm:$0xff] %vm558, %v557
  %s561 = scalar_lea.vmem %s0, 398
  %v562 = vld [vmem:[%s561] ss:$24 sm:$0xf]
  %563 = vrot.lane.b32.xlu0 %v562, 24
  %v564 = vpop.permute.xlu0 %563
  %vm565 = vcmask 359616
  %s566 = scalar_lea.vmem %s1, 80
  %567 = vst.msk [vmem:[%s566] sm:$0xf] %vm565, %v564
  %s568 = scalar_lea.vmem %s0, 1
  %v569 = vld [vmem:[%s568] ss:$24 sm:$0xf]
  %s570 = scalar_lea.vmem %s0, 1
  %v571 = vld [vmem:[%s570] ss:$24 sm:$0xf0]
  %vm572 = vcmask 1047556
  %v573 = vsel %vm572, %v571, %v569
  %574 = vrot.lane.b32.xlu0 %v573, 20
  %v575 = vpop.permute.xlu0 %574
  %vm576 = vcmask 326816
  %577 = vst.msk [vmem:[%s1] sm:$0xff] %vm576, %v575
  %s578 = scalar_lea.vmem %s0, 193
  %v579 = vld [vmem:[%s578] ss:$24 sm:$0xf]
  %s580 = scalar_lea.vmem %s0, 193
  %v581 = vld [vmem:[%s580] ss:$24 sm:$0xf0]
  %vm582 = vcmask 1047556
  %v583 = vsel %vm582, %v581, %v579
  %584 = vrot.lane.b32.xlu0 %v583, 20
  %v585 = vpop.permute.xlu0 %584
  %vm586 = vcmask 326816
  %s587 = scalar_lea.vmem %s1, 32
  %588 = vst.msk [vmem:[%s587] sm:$0xff] %vm586, %v585
  %s589 = scalar_lea.vmem %s0, 385
  %v590 = vld [vmem:[%s589] ss:$24 sm:$0xf]
  %591 = vrot.lane.b32.xlu0 %v590, 20
  %v592 = vpop.permute.xlu0 %591
  %vm593 = vcmask 326816
  %s594 = scalar_lea.vmem %s1, 64
  %595 = vst.msk [vmem:[%s594] sm:$0xf] %vm593, %v592
  %s596 = scalar_lea.vmem %s0, 7
  %v597 = vld [vmem:[%s596] ss:$24 sm:$0xf]
  %s598 = scalar_lea.vmem %s0, 7
  %v599 = vld [vmem:[%s598] ss:$24 sm:$0xf0]
  %vm600 = vcmask 1047556
  %v601 = vsel %vm600, %v599, %v597
  %602 = vrot.lane.b32.xlu0 %v601, 12
  %v603 = vpop.permute.xlu0 %602
  %vm604 = vcmask 261216
  %s605 = scalar_lea.vmem %s1, 8
  %606 = vst.msk [vmem:[%s605] sm:$0xff] %vm604, %v603
  %s607 = scalar_lea.vmem %s0, 199
  %v608 = vld [vmem:[%s607] ss:$24 sm:$0xf]
  %s609 = scalar_lea.vmem %s0, 199
  %v610 = vld [vmem:[%s609] ss:$24 sm:$0xf0]
  %vm611 = vcmask 1047556
  %v612 = vsel %vm611, %v610, %v608
  %613 = vrot.lane.b32.xlu0 %v612, 12
  %v614 = vpop.permute.xlu0 %613
  %vm615 = vcmask 261216
  %s616 = scalar_lea.vmem %s1, 40
  %617 = vst.msk [vmem:[%s616] sm:$0xff] %vm615, %v614
  %s618 = scalar_lea.vmem %s0, 391
  %v619 = vld [vmem:[%s618] ss:$24 sm:$0xf]
  %620 = vrot.lane.b32.xlu0 %v619, 12
  %v621 = vpop.permute.xlu0 %620
  %vm622 = vcmask 261216
  %s623 = scalar_lea.vmem %s1, 72
  %624 = vst.msk [vmem:[%s623] sm:$0xf] %vm622, %v621
  %s625 = scalar_lea.vmem %s0, 13
  %v626 = vld [vmem:[%s625] ss:$24 sm:$0xf]
  %s627 = scalar_lea.vmem %s0, 13
  %v628 = vld [vmem:[%s627] ss:$24 sm:$0xf0]
  %vm629 = vcmask 1047556
  %v630 = vsel %vm629, %v628, %v626
  %631 = vrot.lane.b32.xlu0 %v630, 4
  %v632 = vpop.permute.xlu0 %631
  %vm633 = vcmask 195616
  %s634 = scalar_lea.vmem %s1, 16
  %635 = vst.msk [vmem:[%s634] sm:$0xff] %vm633, %v632
  %s636 = scalar_lea.vmem %s0, 205
  %v637 = vld [vmem:[%s636] ss:$24 sm:$0xf]
  %s638 = scalar_lea.vmem %s0, 205
  %v639 = vld [vmem:[%s638] ss:$24 sm:$0xf0]
  %vm640 = vcmask 1047556
  %v641 = vsel %vm640, %v639, %v637
  %642 = vrot.lane.b32.xlu0 %v641, 4
  %v643 = vpop.permute.xlu0 %642
  %vm644 = vcmask 195616
  %s645 = scalar_lea.vmem %s1, 48
  %646 = vst.msk [vmem:[%s645] sm:$0xff] %vm644, %v643
  %s647 = scalar_lea.vmem %s0, 397
  %v648 = vld [vmem:[%s647] ss:$24 sm:$0xf]
  %649 = vrot.lane.b32.xlu0 %v648, 4
  %v650 = vpop.permute.xlu0 %649
  %vm651 = vcmask 195616
  %s652 = scalar_lea.vmem %s1, 80
  %653 = vst.msk [vmem:[%s652] sm:$0xf] %vm651, %v650

// kernel: whole_net_forward.1
$region0: #{whole_net_forward.1}
  #allocation0 [shape = 'u32[]', space=smem, size = 0x4, offset = 0x4, fixed_abs, tag = 'smem constant byte address 0x4 - core index']
  #allocation1 [shape = 'u32[144,128]{1,0:T(1,128)}', space=vmem, size = 0x12000, scoped, tag = 'internal scratch']
  %s0 = inlined_call_operand.smem [shape: u32[57], index: -1, kind: input, shape index: {}]
  %s1 = sld [smem:[%s0]]
  %s2 = scalar_lea.smem %s0, 1
  %s3 = sld [smem:[%s2]]
  %s4 = scalar_lea.smem %s0, 2
  %s5 = sld [smem:[%s4]]
  %s6 = scalar_lea.smem %s0, 3
  %s7 = sld [smem:[%s6]]
  %s8 = scalar_lea.smem %s0, 4
  %s9 = sld [smem:[%s8]]
  %s10 = scalar_lea.smem %s0, 5
  %s11 = sld [smem:[%s10]]
  %s12 = scalar_lea.smem %s0, 6
  %s13 = sld [smem:[%s12]]
  %s14 = scalar_lea.smem %s0, 7
  %s15 = sld [smem:[%s14]]
  %s16 = scalar_lea.smem %s0, 8
  %s17 = sld [smem:[%s16]]
  %s18 = scalar_lea.smem %s0, 9
  %s19 = sld [smem:[%s18]]
  %s20 = scalar_lea.smem %s0, 10
  %s21 = sld [smem:[%s20]]
  %s22 = scalar_lea.smem %s0, 11
  %s23 = sld [smem:[%s22]]
  %s24 = scalar_lea.smem %s0, 12
  %s25 = sld [smem:[%s24]]
  %s26 = scalar_lea.smem %s0, 13
  %s27 = sld [smem:[%s26]]
  %s28 = scalar_lea.smem %s0, 14
  %s29 = sld [smem:[%s28]]
  %s30 = scalar_lea.smem %s0, 15
  %s31 = sld [smem:[%s30]]
  %s32 = scalar_lea.smem %s0, 16
  %s33 = sld [smem:[%s32]]
  %s34 = scalar_lea.smem %s0, 17
  %s35 = sld [smem:[%s34]]
  %s36 = scalar_lea.smem %s0, 18
  %s37 = sld [smem:[%s36]]
  %s38 = scalar_lea.smem %s0, 19
  %s39 = sld [smem:[%s38]]
  %s40 = scalar_lea.smem %s0, 20
  %s41 = sld [smem:[%s40]]
  %s42 = scalar_lea.smem %s0, 21
  %s43 = sld [smem:[%s42]]
  %s44 = scalar_lea.smem %s0, 22
  %s45 = sld [smem:[%s44]]
  %s46 = scalar_lea.smem %s0, 23
  %s47 = sld [smem:[%s46]]
  %s48 = scalar_lea.smem %s0, 24
  %s49 = sld [smem:[%s48]]
  %s50 = scalar_lea.smem %s0, 25
  %s51 = sld [smem:[%s50]]
  %s52 = scalar_lea.smem %s0, 26
  %s53 = sld [smem:[%s52]]
  %s54 = scalar_lea.smem %s0, 27
  %s55 = sld [smem:[%s54]]
  %s56 = scalar_lea.smem %s0, 28
  %s57 = sld [smem:[%s56]]
  %s58 = scalar_lea.smem %s0, 29
  %s59 = sld [smem:[%s58]]
  %s60 = scalar_lea.smem %s0, 30
  %s61 = sld [smem:[%s60]]
  %s62 = scalar_lea.smem %s0, 31
  %s63 = sld [smem:[%s62]]
  %s64 = scalar_lea.smem %s0, 32
  %s65 = sld [smem:[%s64]]
  %s66 = scalar_lea.smem %s0, 33
  %s67 = sld [smem:[%s66]]
  %s68 = scalar_lea.smem %s0, 34
  %s69 = sld [smem:[%s68]]
  %s70 = scalar_lea.smem %s0, 35
  %s71 = sld [smem:[%s70]]
  %s72 = scalar_lea.smem %s0, 36
  %s73 = sld [smem:[%s72]]
  %s74 = scalar_lea.smem %s0, 37
  %s75 = sld [smem:[%s74]]
  %s76 = scalar_lea.smem %s0, 38
  %s77 = sld [smem:[%s76]]
  %s78 = scalar_lea.smem %s0, 39
  %s79 = sld [smem:[%s78]]
  %s80 = scalar_lea.smem %s0, 40
  %s81 = sld [smem:[%s80]]
  %s82 = scalar_lea.smem %s0, 41
  %s83 = sld [smem:[%s82]]
  %s84 = scalar_lea.smem %s0, 42
  %s85 = sld [smem:[%s84]]
  %s86 = scalar_lea.smem %s0, 43
  %s87 = sld [smem:[%s86]]
  %s88 = scalar_lea.smem %s0, 44
  %s89 = sld [smem:[%s88]]
  %s90 = scalar_lea.smem %s0, 45
  %s91 = sld [smem:[%s90]]
  %s92 = scalar_lea.smem %s0, 46
  %s93 = sld [smem:[%s92]]
  %s94 = scalar_lea.smem %s0, 47
  %s95 = sld [smem:[%s94]]
  %s96 = scalar_lea.smem %s0, 48
  %s97 = sld [smem:[%s96]]
  %s98 = scalar_lea.smem %s0, 49
  %s99 = sld [smem:[%s98]]
  %s100 = scalar_lea.smem %s0, 50
  %s101 = sld [smem:[%s100]]
  %s102 = scalar_lea.smem %s0, 51
  %s103 = sld [smem:[%s102]]
  %s104 = scalar_lea.smem %s0, 52
  %s105 = sld [smem:[%s104]]
  %s106 = scalar_lea.smem %s0, 53
  %s107 = sld [smem:[%s106]]
  %s108 = scalar_lea.smem %s0, 54
  %s109 = sld [smem:[%s108]]
  %s110 = scalar_lea.smem %s0, 55
  %s111 = sld [smem:[%s110]]
  %s112 = scalar_lea.smem %s0, 56
  %s113 = sld [smem:[%s112]]
  %114 = xla_tuple %s109, %s111, %s113
  %s115 = sld [smem:[#allocation0]]
  $region249: #{whole_net_forward.1} parent=0
    _
  %s117 = ssub.s32 1, %s115
  %s118 = scalar_select 0, %s117, %s115
  // Predicated region
  $region2: #{whole_net_forward.1} parent=0 // pred_check
    _
  $region3: #{whole_net_forward.1} parent=0 // pred_check_branch
    %120 = sbr.rel (0) target = $region5
  $region4: #{whole_net_forward.1} parent=0 // pred_region
    _
  $region5: #{whole_net_forward.1} parent=0 // pred_fallthru
    _
  // Predicated region
  $region6: #{whole_net_forward.1} parent=0 // pred_check
    _
  $region7: #{whole_net_forward.1} parent=0 // pred_check_branch
    %122 = sbr.rel (0) target = $region9
  $region8: #{whole_net_forward.1} parent=0 // pred_region
    _
  $region9: #{whole_net_forward.1} parent=0 // pred_fallthru
    _
  // Predicated region
  $region10: #{whole_net_forward.1} parent=0 // pred_check
    _
  $region11: #{whole_net_forward.1} parent=0 // pred_check_branch
    %124 = sbr.rel (0) target = $region13
  $region12: #{whole_net_forward.1} parent=0 // pred_region
    _
  $region13: #{whole_net_forward.1} parent=0 // pred_fallthru
    _
  // Predicated region
  $region14: #{whole_net_forward.1} parent=0 // pred_check
    _
  $region15: #{whole_net_forward.1} parent=0 // pred_check_branch
    %126 = sbr.rel (0) target = $region17
  $region16: #{whole_net_forward.1} parent=0 // pred_region
    _
  $region17: #{whole_net_forward.1} parent=0 // pred_fallthru
    _
  // Predicated region
  $region18: #{whole_net_forward.1} parent=0 // pred_check
    _
  $region19: #{whole_net_forward.1} parent=0 // pred_check_branch
    %128 = sbr.rel (0) target = $region21
  $region20: #{whole_net_forward.1} parent=0 // pred_region
    _
  $region21: #{whole_net_forward.1} parent=0 // pred_fallthru
    _
  // Predicated region
  $region22: #{whole_net_forward.1} parent=0 // pred_check
    _
  $region23: #{whole_net_forward.1} parent=0 // pred_check_branch
    %130 = sbr.rel (0) target = $region25
  $region24: #{whole_net_forward.1} parent=0 // pred_region
    _
  $region25: #{whole_net_forward.1} parent=0 // pred_fallthru
    _
  // Predicated region
  $region26: #{whole_net_forward.1} parent=0 // pred_check
    _
  $region27: #{whole_net_forward.1} parent=0 // pred_check_branch
    %132 = sbr.rel (0) target = $region29
  $region28: #{whole_net_forward.1} parent=0 // pred_region
    _
  $region29: #{whole_net_forward.1} parent=0 // pred_fallthru
    _
  // Predicated region
  $region30: #{whole_net_forward.1} parent=0 // pred_check
    _
  $region31: #{whole_net_forward.1} parent=0 // pred_check_branch
    %134 = sbr.rel (0) target = $region33
  $region32: #{whole_net_forward.1} parent=0 // pred_region
    _
  $region33: #{whole_net_forward.1} parent=0 // pred_fallthru
    _
  // Predicated region
  $region34: #{whole_net_forward.1} parent=0 // pred_check
    _
  $region35: #{whole_net_forward.1} parent=0 // pred_check_branch
    %136 = sbr.rel (0) target = $region37
  $region36: #{whole_net_forward.1} parent=0 // pred_region
    _
  $region37: #{whole_net_forward.1} parent=0 // pred_fallthru
    _
  // Predicated region
  $region38: #{whole_net_forward.1} parent=0 // pred_check
    _
  $region39: #{whole_net_forward.1} parent=0 // pred_check_branch
    %138 = sbr.rel (0) target = $region41
  $region40: #{whole_net_forward.1} parent=0 // pred_region
    _
  $region41: #{whole_net_forward.1} parent=0 // pred_fallthru
    _
  // Predicated region
  $region42: #{whole_net_forward.1} parent=0 // pred_check
    _
  $region43: #{whole_net_forward.1} parent=0 // pred_check_branch
    %140 = sbr.rel (0) target = $region45
  $region44: #{whole_net_forward.1} parent=0 // pred_region
    _
  $region45: #{whole_net_forward.1} parent=0 // pred_fallthru
    _
  // Predicated region
  $region46: #{whole_net_forward.1} parent=0 // pred_check
    _
  $region47: #{whole_net_forward.1} parent=0 // pred_check_branch
    %142 = sbr.rel (0) target = $region49
  $region48: #{whole_net_forward.1} parent=0 // pred_region
    _
  $region49: #{whole_net_forward.1} parent=0 // pred_fallthru
    _
  // Predicated region
  $region50: #{whole_net_forward.1} parent=0 // pred_check
    _
  $region51: #{whole_net_forward.1} parent=0 // pred_check_branch
    %144 = sbr.rel (0) target = $region53
  $region52: #{whole_net_forward.1} parent=0 // pred_region
    _
  $region53: #{whole_net_forward.1} parent=0 // pred_fallthru
    _
  // Predicated region
  $region54: #{whole_net_forward.1} parent=0 // pred_check
    _
  $region55: #{whole_net_forward.1} parent=0 // pred_check_branch
    %146 = sbr.rel (0) target = $region57
  $region56: #{whole_net_forward.1} parent=0 // pred_region
    _
  $region57: #{whole_net_forward.1} parent=0 // pred_fallthru
    _
  // Predicated region
  $region58: #{whole_net_forward.1} parent=0 // pred_check
    _
  $region59: #{whole_net_forward.1} parent=0 // pred_check_branch
    %148 = sbr.rel (0) target = $region61
  $region60: #{whole_net_forward.1} parent=0 // pred_region
    _
  $region61: #{whole_net_forward.1} parent=0 // pred_fallthru
    _
  // Predicated region
  $region62: #{whole_net_forward.1} parent=0 // pred_check
    _
  $region63: #{whole_net_forward.1} parent=0 // pred_check_branch
    %150 = sbr.rel (0) target = $region65
  $region64: #{whole_net_forward.1} parent=0 // pred_region
    _
  $region65: #{whole_net_forward.1} parent=0 // pred_fallthru
    _
  // Predicated region
  $region66: #{whole_net_forward.1} parent=0 // pred_check
    _
  $region67: #{whole_net_forward.1} parent=0 // pred_check_branch
    %152 = sbr.rel (0) target = $region69
  $region68: #{whole_net_forward.1} parent=0 // pred_region
    _
  $region69: #{whole_net_forward.1} parent=0 // pred_fallthru
    _
  // Predicated region
  $region70: #{whole_net_forward.1} parent=0 // pred_check
    _
  $region71: #{whole_net_forward.1} parent=0 // pred_check_branch
    %154 = sbr.rel (0) target = $region73
  $region72: #{whole_net_forward.1} parent=0 // pred_region
    _
  $region73: #{whole_net_forward.1} parent=0 // pred_fallthru
    _
  // Predicated region
  $region74: #{whole_net_forward.1} parent=0 // pred_check
    _
  $region75: #{whole_net_forward.1} parent=0 // pred_check_branch
    %156 = sbr.rel (0) target = $region77
  $region76: #{whole_net_forward.1} parent=0 // pred_region
    _
  $region77: #{whole_net_forward.1} parent=0 // pred_fallthru
    _
  // Predicated region
  $region78: #{whole_net_forward.1} parent=0 // pred_check
    _
  $region79: #{whole_net_forward.1} parent=0 // pred_check_branch
    %158 = sbr.rel (0) target = $region81
  $region80: #{whole_net_forward.1} parent=0 // pred_region
    _
  $region81: #{whole_net_forward.1} parent=0 // pred_fallthru
    _
  // Predicated region
  $region82: #{whole_net_forward.1} parent=0 // pred_check
    _
  $region83: #{whole_net_forward.1} parent=0 // pred_check_branch
    %160 = sbr.rel (0) target = $region85
  $region84: #{whole_net_forward.1} parent=0 // pred_region
    _
  $region85: #{whole_net_forward.1} parent=0 // pred_fallthru
    _
  // Predicated region
  $region86: #{whole_net_forward.1} parent=0 // pred_check
    _
  $region87: #{whole_net_forward.1} parent=0 // pred_check_branch
    %162 = sbr.rel (0) target = $region89
  $region88: #{whole_net_forward.1} parent=0 // pred_region
    _
  $region89: #{whole_net_forward.1} parent=0 // pred_fallthru
    _
  // Predicated region
  $region90: #{whole_net_forward.1} parent=0 // pred_check
    _
  $region91: #{whole_net_forward.1} parent=0 // pred_check_branch
    %164 = sbr.rel (0) target = $region93
  $region92: #{whole_net_forward.1} parent=0 // pred_region
    _
  $region93: #{whole_net_forward.1} parent=0 // pred_fallthru
    _
  // Predicated region
  $region94: #{whole_net_forward.1} parent=0 // pred_check
    _
  $region95: #{whole_net_forward.1} parent=0 // pred_check_branch
    %166 = sbr.rel (0) target = $region97
  $region96: #{whole_net_forward.1} parent=0 // pred_region
    _
  $region97: #{whole_net_forward.1} parent=0 // pred_fallthru
    _
  // Predicated region
  $region98: #{whole_net_forward.1} parent=0 // pred_check
    _
  $region99: #{whole_net_forward.1} parent=0 // pred_check_branch
    %168 = sbr.rel (0) target = $region101
  $region100: #{whole_net_forward.1} parent=0 // pred_region
    _
  $region101: #{whole_net_forward.1} parent=0 // pred_fallthru
    _
  // Predicated region
  $region102: #{whole_net_forward.1} parent=0 // pred_check
    _
  $region103: #{whole_net_forward.1} parent=0 // pred_check_branch
    %170 = sbr.rel (0) target = $region105
  $region104: #{whole_net_forward.1} parent=0 // pred_region
    _
  $region105: #{whole_net_forward.1} parent=0 // pred_fallthru
    _
  // Predicated region
  $region106: #{whole_net_forward.1} parent=0 // pred_check
    _
  $region107: #{whole_net_forward.1} parent=0 // pred_check_branch
    %172 = sbr.rel (0) target = $region109
  $region108: #{whole_net_forward.1} parent=0 // pred_region
    _
  $region109: #{whole_net_forward.1} parent=0 // pred_fallthru
    _
  // Predicated region
  $region110: #{whole_net_forward.1} parent=0 // pred_check
    _
  $region111: #{whole_net_forward.1} parent=0 // pred_check_branch
    %174 = sbr.rel (0) target = $region113
  $region112: #{whole_net_forward.1} parent=0 // pred_region
    _
  $region113: #{whole_net_forward.1} parent=0 // pred_fallthru
    _
  // Predicated region
  $region114: #{whole_net_forward.1} parent=0 // pred_check
    _
  $region115: #{whole_net_forward.1} parent=0 // pred_check_branch
    %176 = sbr.rel (0) target = $region117
  $region116: #{whole_net_forward.1} parent=0 // pred_region
    _
  $region117: #{whole_net_forward.1} parent=0 // pred_fallthru
    _
  // Predicated region
  $region118: #{whole_net_forward.1} parent=0 // pred_check
    _
  $region119: #{whole_net_forward.1} parent=0 // pred_check_branch
    %178 = sbr.rel (0) target = $region121
  $region120: #{whole_net_forward.1} parent=0 // pred_region
    _
  $region121: #{whole_net_forward.1} parent=0 // pred_fallthru
    _
  // Predicated region
  $region122: #{whole_net_forward.1} parent=0 // pred_check
    _
  $region123: #{whole_net_forward.1} parent=0 // pred_check_branch
    %180 = sbr.rel (0) target = $region125
  $region124: #{whole_net_forward.1} parent=0 // pred_region
    _
  $region125: #{whole_net_forward.1} parent=0 // pred_fallthru
    _
  // Predicated region
  $region126: #{whole_net_forward.1} parent=0 // pred_check
    _
  $region127: #{whole_net_forward.1} parent=0 // pred_check_branch
    %182 = sbr.rel (0) target = $region129
  $region128: #{whole_net_forward.1} parent=0 // pred_region
    _
  $region129: #{whole_net_forward.1} parent=0 // pred_fallthru
    _
  // Predicated region
  $region130: #{whole_net_forward.1} parent=0 // pred_check
    _
  $region131: #{whole_net_forward.1} parent=0 // pred_check_branch
    %184 = sbr.rel (0) target = $region133
  $region132: #{whole_net_forward.1} parent=0 // pred_region
    _
  $region133: #{whole_net_forward.1} parent=0 // pred_fallthru
    _
  // Predicated region
  $region134: #{whole_net_forward.1} parent=0 // pred_check
    _
  $region135: #{whole_net_forward.1} parent=0 // pred_check_branch
    %186 = sbr.rel (0) target = $region137
  $region136: #{whole_net_forward.1} parent=0 // pred_region
    _
  $region137: #{whole_net_forward.1} parent=0 // pred_fallthru
    _
  // Predicated region
  $region138: #{whole_net_forward.1} parent=0 // pred_check
    _
  $region139: #{whole_net_forward.1} parent=0 // pred_check_branch
    %188 = sbr.rel (0) target = $region141
  $region140: #{whole_net_forward.1} parent=0 // pred_region
    _
  $region141: #{whole_net_forward.1} parent=0 // pred_fallthru
    _
  // Predicated region
  $region142: #{whole_net_forward.1} parent=0 // pred_check
    _
  $region143: #{whole_net_forward.1} parent=0 // pred_check_branch
    %190 = sbr.rel (0) target = $region145
  $region144: #{whole_net_forward.1} parent=0 // pred_region
    _
  $region145: #{whole_net_forward.1} parent=0 // pred_fallthru
    _
  // Predicated region
  $region146: #{whole_net_forward.1} parent=0 // pred_check
    _
  $region147: #{whole_net_forward.1} parent=0 // pred_check_branch
    %192 = sbr.rel (0) target = $region149
  $region148: #{whole_net_forward.1} parent=0 // pred_region
    _
  $region149: #{whole_net_forward.1} parent=0 // pred_fallthru
    _
  // Predicated region
  $region150: #{whole_net_forward.1} parent=0 // pred_check
    _
  $region151: #{whole_net_forward.1} parent=0 // pred_check_branch
    %194 = sbr.rel (0) target = $region153
  $region152: #{whole_net_forward.1} parent=0 // pred_region
    _
  $region153: #{whole_net_forward.1} parent=0 // pred_fallthru
    _
  // Predicated region
  $region154: #{whole_net_forward.1} parent=0 // pred_check
    _
  $region155: #{whole_net_forward.1} parent=0 // pred_check_branch
    %196 = sbr.rel (0) target = $region157
  $region156: #{whole_net_forward.1} parent=0 // pred_region
    _
  $region157: #{whole_net_forward.1} parent=0 // pred_fallthru
    _
  // Predicated region
  $region158: #{whole_net_forward.1} parent=0 // pred_check
    _
  $region159: #{whole_net_forward.1} parent=0 // pred_check_branch
    %198 = sbr.rel (0) target = $region161
  $region160: #{whole_net_forward.1} parent=0 // pred_region
    _
  $region161: #{whole_net_forward.1} parent=0 // pred_fallthru
    _
  // Predicated region
  $region162: #{whole_net_forward.1} parent=0 // pred_check
    _
  $region163: #{whole_net_forward.1} parent=0 // pred_check_branch
    %200 = sbr.rel (0) target = $region165
  $region164: #{whole_net_forward.1} parent=0 // pred_region
    _
  $region165: #{whole_net_forward.1} parent=0 // pred_fallthru
    _
  // Predicated region
  $region166: #{whole_net_forward.1} parent=0 // pred_check
    _
  $region167: #{whole_net_forward.1} parent=0 // pred_check_branch
    %202 = sbr.rel (0) target = $region169
  $region168: #{whole_net_forward.1} parent=0 // pred_region
    _
  $region169: #{whole_net_forward.1} parent=0 // pred_fallthru
    _
  // Predicated region
  $region170: #{whole_net_forward.1} parent=0 // pred_check
    _
  $region171: #{whole_net_forward.1} parent=0 // pred_check_branch
    %204 = sbr.rel (0) target = $region173
  $region172: #{whole_net_forward.1} parent=0 // pred_region
    _
  $region173: #{whole_net_forward.1} parent=0 // pred_fallthru
    _
  // Predicated region
  $region174: #{whole_net_forward.1} parent=0 // pred_check
    _
  $region175: #{whole_net_forward.1} parent=0 // pred_check_branch
    %206 = sbr.rel (0) target = $region177
  $region176: #{whole_net_forward.1} parent=0 // pred_region
    _
  $region177: #{whole_net_forward.1} parent=0 // pred_fallthru
    _
  // Predicated region
  $region178: #{whole_net_forward.1} parent=0 // pred_check
    _
  $region179: #{whole_net_forward.1} parent=0 // pred_check_branch
    %208 = sbr.rel (0) target = $region181
  $region180: #{whole_net_forward.1} parent=0 // pred_region
    _
  $region181: #{whole_net_forward.1} parent=0 // pred_fallthru
    _
  // Predicated region
  $region182: #{whole_net_forward.1} parent=0 // pred_check
    _
  $region183: #{whole_net_forward.1} parent=0 // pred_check_branch
    %210 = sbr.rel (0) target = $region185
  $region184: #{whole_net_forward.1} parent=0 // pred_region
    _
  $region185: #{whole_net_forward.1} parent=0 // pred_fallthru
    _
  // Predicated region
  $region186: #{whole_net_forward.1} parent=0 // pred_check
    _
  $region187: #{whole_net_forward.1} parent=0 // pred_check_branch
    %212 = sbr.rel (0) target = $region189
  $region188: #{whole_net_forward.1} parent=0 // pred_region
    _
  $region189: #{whole_net_forward.1} parent=0 // pred_fallthru
    _
  // Predicated region
  $region190: #{whole_net_forward.1} parent=0 // pred_check
    _
  $region191: #{whole_net_forward.1} parent=0 // pred_check_branch
    %214 = sbr.rel (0) target = $region193
  $region192: #{whole_net_forward.1} parent=0 // pred_region
    _
  $region193: #{whole_net_forward.1} parent=0 // pred_fallthru
    _
  // Predicated region
  $region194: #{whole_net_forward.1} parent=0 // pred_check
    _
  $region195: #{whole_net_forward.1} parent=0 // pred_check_branch
    %216 = sbr.rel (0) target = $region197
  $region196: #{whole_net_forward.1} parent=0 // pred_region
    _
  $region197: #{whole_net_forward.1} parent=0 // pred_fallthru
    _
  // Predicated region
  $region198: #{whole_net_forward.1} parent=0 // pred_check
    _
  $region199: #{whole_net_forward.1} parent=0 // pred_check_branch
    %218 = sbr.rel (0) target = $region201
  $region200: #{whole_net_forward.1} parent=0 // pred_region
    _
  $region201: #{whole_net_forward.1} parent=0 // pred_fallthru
    _
  // Predicated region
  $region202: #{whole_net_forward.1} parent=0 // pred_check
    _
  $region203: #{whole_net_forward.1} parent=0 // pred_check_branch
    %220 = sbr.rel (0) target = $region205
  $region204: #{whole_net_forward.1} parent=0 // pred_region
    _
  $region205: #{whole_net_forward.1} parent=0 // pred_fallthru
    _
  // Predicated region
  $region206: #{whole_net_forward.1} parent=0 // pred_check
    _
  $region207: #{whole_net_forward.1} parent=0 // pred_check_branch
    %222 = sbr.rel (0) target = $region209
  $region208: #{whole_net_forward.1} parent=0 // pred_region
    _
  $region209: #{whole_net_forward.1} parent=0 // pred_fallthru
    _
  // Predicated region
  $region210: #{whole_net_forward.1} parent=0 // pred_check
    _
  $region211: #{whole_net_forward.1} parent=0 // pred_check_branch
    %224 = sbr.rel (0) target = $region213
  $region212: #{whole_net_forward.1} parent=0 // pred_region
    _
  $region213: #{whole_net_forward.1} parent=0 // pred_fallthru
    _
  // Predicated region
  $region214: #{whole_net_forward.1} parent=0 // pred_check
    _
  $region215: #{whole_net_forward.1} parent=0 // pred_check_branch
    %226 = sbr.rel (0) target = $region217
  $region216: #{whole_net_forward.1} parent=0 // pred_region
    _
  $region217: #{whole_net_forward.1} parent=0 // pred_fallthru
    _
  %v227 = vld [vmem:[%s7] sm:$0xff]
  %v228 = vld [vmem:[%s7 + $0x8] sm:$0xff]
  %v229 = vld [vmem:[%s7 + $0x10] sm:$0xff]
  %v230 = vld [vmem:[%s7 + $0x18] sm:$0xff]
  %v231 = vld [vmem:[%s9] sm:$0xff]
  %v232 = vld [vmem:[%s9 + $0x8] sm:$0xff]
  %v233 = vld [vmem:[%s9 + $0x10] sm:$0xff]
  %v234 = vld [vmem:[%s9 + $0x18] sm:$0xff]
  %v235 = vld [vmem:[%s11] sm:$0xff]
  %v236 = vld [vmem:[%s13] sm:$0xff]
  %v237 = vld [vmem:[%s13 + $0x8] sm:$0xff]
  %v238 = vld [vmem:[%s13 + $0x10] sm:$0xff]
  %v239 = vld [vmem:[%s13 + $0x18] sm:$0xff]
  %v240 = vld [vmem:[%s13 + $0x20] sm:$0xff]
  %v241 = vld [vmem:[%s13 + $0x28] sm:$0xff]
  %v242 = vld [vmem:[%s13 + $0x30] sm:$0xff]
  %v243 = vld [vmem:[%s13 + $0x38] sm:$0xff]
  %v244 = vld [vmem:[%s13 + $0x40] sm:$0xff]
  %v245 = vld [vmem:[%s13 + $0x48] sm:$0xff]
  %v246 = vld [vmem:[%s15] sm:$0xff]
  %v247 = vld [vmem:[%s17] sm:$0xff]
  %v248 = vld [vmem:[%s17 + $0x8] sm:$0xff]
  %v249 = vld [vmem:[%s17 + $0x10] sm:$0xff]
  %v250 = vld [vmem:[%s17 + $0x18] sm:$0xff]
  %v251 = vld [vmem:[%s17 + $0x20] sm:$0xff]
  %v252 = vld [vmem:[%s17 + $0x28] sm:$0xff]
  %v253 = vld [vmem:[%s17 + $0x30] sm:$0xff]
  %v254 = vld [vmem:[%s17 + $0x38] sm:$0xff]
  %v255 = vld [vmem:[%s17 + $0x40] sm:$0xf]
  %v256 = vld [vmem:[%s17 + $0x48] sm:$0xf]
  %v257 = vld [vmem:[%s17 + $0x50] sm:$0xf]
  %v258 = vld [vmem:[%s17 + $0x58] sm:$0xf]
  %v259 = vld [vmem:[%s19] sm:$0xff]
  %v260 = vld [vmem:[%s19 + $0x8] sm:$0xff]
  %v261 = vld [vmem:[%s19 + $0x10] sm:$0xff]
  %v262 = vld [vmem:[%s19 + $0x18] sm:$0xff]
  %v263 = vld [vmem:[%s19 + $0x20] sm:$0xff]
  %v264 = vld [vmem:[%s19 + $0x28] sm:$0xff]
  %v265 = vld [vmem:[%s19 + $0x30] sm:$0xff]
  %v266 = vld [vmem:[%s19 + $0x38] sm:$0xff]
  %v267 = vld [vmem:[%s19 + $0x40] sm:$0xff]
  %v268 = vld [vmem:[%s19 + $0x48] sm:$0xff]
  %v269 = vld [vmem:[%s19 + $0x50] sm:$0xff]
  %v270 = vld [vmem:[%s19 + $0x58] sm:$0xff]
  %v271 = vld [vmem:[%s19 + $0x60] sm:$0xff]
  %v272 = vld [vmem:[%s19 + $0x68] sm:$0xff]
  %v273 = vld [vmem:[%s19 + $0x70] sm:$0xff]
  %v274 = vld [vmem:[%s19 + $0x78] sm:$0xff]
  %v275 = vld [vmem:[%s19 + $0x80] sm:$0xff]
  %v276 = vld [vmem:[%s19 + $0x88] sm:$0xff]
  %v277 = vld [vmem:[%s19 + $0x90] sm:$0xff]
  %v278 = vld [vmem:[%s19 + $0x98] sm:$0xff]
  %v279 = vld [vmem:[%s19 + $0xa0] sm:$0xff]
  %v280 = vld [vmem:[%s19 + $0xa8] sm:$0xff]
  %v281 = vld [vmem:[%s19 + $0xb0] sm:$0xff]
  %v282 = vld [vmem:[%s19 + $0xb8] sm:$0xff]
  %v283 = vld [vmem:[%s19 + $0xc0] sm:$0xff]
  %v284 = vld [vmem:[%s19 + $0xc8] sm:$0xff]
  %v285 = vld [vmem:[%s19 + $0xd0] sm:$0xff]
  %v286 = vld [vmem:[%s19 + $0xd8] sm:$0xff]
  %v287 = vld [vmem:[%s19 + $0xe0] sm:$0xff]
  %v288 = vld [vmem:[%s19 + $0xe8] sm:$0xff]
  %v289 = vld [vmem:[%s19 + $0xf0] sm:$0xff]
  %v290 = vld [vmem:[%s19 + $0xf8] sm:$0xff]
  %v291 = vld [vmem:[%s19 + $0x100] sm:$0xff]
  %v292 = vld [vmem:[%s19 + $0x108] sm:$0xff]
  %v293 = vld [vmem:[%s19 + $0x110] sm:$0xff]
  %v294 = vld [vmem:[%s19 + $0x118] sm:$0xff]
  %v295 = vld [vmem:[%s19 + $0x120] sm:$0xff]
  %v296 = vld [vmem:[%s19 + $0x128] sm:$0xff]
  %v297 = vld [vmem:[%s19 + $0x130] sm:$0xff]
  %v298 = vld [vmem:[%s19 + $0x138] sm:$0xff]
  %v299 = vld [vmem:[%s19 + $0x140] sm:$0xff]
  %v300 = vld [vmem:[%s19 + $0x148] sm:$0xff]
  %v301 = vld [vmem:[%s19 + $0x150] sm:$0xff]
  %v302 = vld [vmem:[%s19 + $0x158] sm:$0xff]
  %v303 = vld [vmem:[%s19 + $0x160] sm:$0xff]
  %v304 = vld [vmem:[%s19 + $0x168] sm:$0xff]
  %v305 = vld [vmem:[%s19 + $0x170] sm:$0xff]
  %v306 = vld [vmem:[%s19 + $0x178] sm:$0xff]
  %v307 = vld [vmem:[%s19 + $0x180] sm:$0xff]
  %v308 = vld [vmem:[%s19 + $0x188] sm:$0xff]
  %v309 = vld [vmem:[%s21] sm:$0xff]
  %v310 = vld [vmem:[%s21 + $0x8] sm:$0xff]
  %v311 = vld [vmem:[%s21 + $0x10] sm:$0xff]
  %v312 = vld [vmem:[%s21 + $0x18] sm:$0xff]
  %v313 = vld [vmem:[%s23] sm:$0xff]
  %v314 = vld [vmem:[%s23 + $0x8] sm:$0xff]
  %v315 = vld [vmem:[%s23 + $0x10] sm:$0xff]
  %v316 = vld [vmem:[%s23 + $0x18] sm:$0xff]
  %v317 = vld [vmem:[%s23 + $0x20] sm:$0xff]
  %v318 = vld [vmem:[%s23 + $0x28] sm:$0xff]
  %v319 = vld [vmem:[%s23 + $0x30] sm:$0xff]
  %v320 = vld [vmem:[%s23 + $0x38] sm:$0xff]
  %v321 = vld [vmem:[%s23 + $0x40] sm:$0xff]
  %v322 = vld [vmem:[%s23 + $0x48] sm:$0xff]
  %v323 = vld [vmem:[%s5] sm:$0x1]
  %v325 = vlaneseq
  %v326 = vshrl.u32 %v325, 7
  %v327 = vsub.s32 0, %v326
  %v328 = vrot.slane %v323, %v327
  loop: start=0, step=1, limit=8
  $region218: #{whole_net_forward.1} parent=0 // loop_pre_header
    _
  $region219: #{whole_net_forward.1} parent=0 // loop_header
    %s331 = sphi 0, %s335
    %p332 = scmp.ge.s32.totalorder %s331, 8
    %v336 = vphi 1.0, %v7209
    %v337 = vphi %v328, %v7121
    %v338 = vphi 0.0, %v6667
  $region220: #{whole_net_forward.1} parent=0 // loop_header_branch
    %334 = sbr.rel (%p332) target = $region224
  $region221: #{whole_net_forward.1} parent=0 // loop_body
    %s339 = smul.u32 %s331, 8
    %s340 = scalar_lea.vmem %s1, %s339
    %v341 = vld [vmem:[%s340] sm:$0xff]
    %s342 = smul.u32 %s331, 32
    %s343 = scalar_lea.vmem %s3, %s342
    %v344 = vld [vmem:[%s343] sm:$0xff]
    %v345 = vld [vmem:[%s343 + $0x8] sm:$0xff]
    %v346 = vld [vmem:[%s343 + $0x10] sm:$0xff]
    %v347 = vld [vmem:[%s343 + $0x18] sm:$0xff]
    %vm348 = vcmask 64512
    %v350 = vsel %vm348, 1.0, 0
    %352 = vmatprep.subr.mxu0 0.0
    %353 = vmatpush1.msra.mxu0 0.0
    %354 = vmatprep.subr.mxu0 0.0
    %355 = vmatpush1.msra.mxu0 0.0
    %356 = vmatprep.subr.mxu0 0.0
    %357 = vmatpush1.msra.mxu0 0.0
    %358 = vmatprep.subr.mxu0 0.0
    %359 = vmatpush1.msra.mxu0 0.0
    %360 = vmatprep.subr.mxu0 0.0
    %361 = vmatpush1.msra.mxu0 0.0
    %362 = vmatprep.subr.mxu0 0.0
    %363 = vmatpush1.msra.mxu0 0.0
    %364 = vmatprep.subr.mxu0 0.0
    %365 = vmatpush1.msra.mxu0 0.0
    %366 = vmatprep.subr.mxu0 0.0
    %367 = vmatpush1.msra.mxu0 0.0
    %368 = vmatprep.subr.mxu0 0.0
    %369 = vmatpush1.msra.mxu0 0.0
    %370 = vmatprep.subr.mxu0 0.0
    %371 = vmatpush1.msra.mxu0 0.0
    %372 = vmatprep.subr.mxu0 0.0
    %373 = vmatpush1.msra.mxu0 0.0
    %374 = vmatprep.subr.mxu0 0.0
    %375 = vmatpush1.msra.mxu0 0.0
    %376 = vmatprep.subr.mxu0 0.0
    %377 = vmatpush1.msra.mxu0 0.0
    %378 = vmatprep.subr.mxu0 0.0
    %379 = vmatpush1.msra.mxu0 0.0
    %380 = vmatprep.subr.mxu0 0.0
    %381 = vmatpush1.msra.mxu0 0.0
    %382 = vmatprep.subr.mxu0 0.0
    %383 = vmatpush1.msra.mxu0 %v336
    %384 = vmatprep.subr.mxu0 0.0
    %385 = vmatpush2.msra.mxu0 0.0
    %386 = vmatprep.subr.mxu0 0.0
    %387 = vmatpush2.msra.mxu0 0.0
    %388 = vmatprep.subr.mxu0 0.0
    %389 = vmatpush2.msra.mxu0 0.0
    %390 = vmatprep.subr.mxu0 0.0
    %391 = vmatpush2.msra.mxu0 0.0
    %392 = vmatprep.subr.mxu0 0.0
    %393 = vmatpush2.msra.mxu0 0.0
    %394 = vmatprep.subr.mxu0 0.0
    %395 = vmatpush2.msra.mxu0 0.0
    %396 = vmatprep.subr.mxu0 0.0
    %397 = vmatpush2.msra.mxu0 0.0
    %398 = vmatprep.subr.mxu0 0.0
    %399 = vmatpush2.msra.mxu0 0.0
    %400 = vmatprep.subr.mxu0 0.0
    %401 = vmatpush2.msra.mxu0 0.0
    %402 = vmatprep.subr.mxu0 0.0
    %403 = vmatpush2.msra.mxu0 0.0
    %404 = vmatprep.subr.mxu0 0.0
    %405 = vmatpush2.msra.mxu0 0.0
    %406 = vmatprep.subr.mxu0 0.0
    %407 = vmatpush2.msra.mxu0 0.0
    %408 = vmatprep.subr.mxu0 0.0
    %409 = vmatpush2.msra.mxu0 0.0
    %410 = vmatprep.subr.mxu0 0.0
    %411 = vmatpush2.msra.mxu0 0.0
    %412 = vmatprep.subr.mxu0 0.0
    %413 = vmatpush2.msra.mxu0 0.0
    %414 = vmatprep.subr.mxu0 0.0
    %415 = vmatpush2.msra.mxu0 0.0
    %416 = vmatprep.mubr.f32.mxu0 0.0
    %417 = vmatmul.mubr.f32.gmra.mxu0 %v350
    %v418 = vpop.f32.mrf.mxu0
    %v419 = vadd.f32 0.0, %v418
    %v420 = vpop.f32.mrf.mxu0
    %421 = vdwg.mxu0
    %v422 = vmul.f32 %v419, 0.125
    %v423 = vlaneseq
    %v424 = vshrl.u32 %v423, 7
    %v425 = vsub.s32 0, %v424
    %v426 = vrot.slane %v422, %v425
    %v427 = vsub.f32 %v336, %v426
    %v428 = vmul.f32 %v427, %v427
    %429 = vmatprep.subr.mxu0 0.0
    %430 = vmatpush1.msra.mxu0 0.0
    %431 = vmatprep.subr.mxu0 0.0
    %432 = vmatpush1.msra.mxu0 0.0
    %433 = vmatprep.subr.mxu0 0.0
    %434 = vmatpush1.msra.mxu0 0.0
    %435 = vmatprep.subr.mxu0 0.0
    %436 = vmatpush1.msra.mxu0 0.0
    %437 = vmatprep.subr.mxu0 0.0
    %438 = vmatpush1.msra.mxu0 0.0
    %439 = vmatprep.subr.mxu0 0.0
    %440 = vmatpush1.msra.mxu0 0.0
    %441 = vmatprep.subr.mxu0 0.0
    %442 = vmatpush1.msra.mxu0 0.0
    %443 = vmatprep.subr.mxu0 0.0
    %444 = vmatpush1.msra.mxu0 0.0
    %445 = vmatprep.subr.mxu0 0.0
    %446 = vmatpush1.msra.mxu0 0.0
    %447 = vmatprep.subr.mxu0 0.0
    %448 = vmatpush1.msra.mxu0 0.0
    %449 = vmatprep.subr.mxu0 0.0
    %450 = vmatpush1.msra.mxu0 0.0
    %451 = vmatprep.subr.mxu0 0.0
    %452 = vmatpush1.msra.mxu0 0.0
    %453 = vmatprep.subr.mxu0 0.0
    %454 = vmatpush1.msra.mxu0 0.0
    %455 = vmatprep.subr.mxu0 0.0
    %456 = vmatpush1.msra.mxu0 0.0
    %457 = vmatprep.subr.mxu0 0.0
    %458 = vmatpush1.msra.mxu0 0.0
    %459 = vmatprep.subr.mxu0 0.0
    %460 = vmatpush1.msra.mxu0 %v428
    %461 = vmatprep.subr.mxu0 0.0
    %462 = vmatpush2.msra.mxu0 0.0
    %463 = vmatprep.subr.mxu0 0.0
    %464 = vmatpush2.msra.mxu0 0.0
    %465 = vmatprep.subr.mxu0 0.0
    %466 = vmatpush2.msra.mxu0 0.0
    %467 = vmatprep.subr.mxu0 0.0
    %468 = vmatpush2.msra.mxu0 0.0
    %469 = vmatprep.subr.mxu0 0.0
    %470 = vmatpush2.msra.mxu0 0.0
    %471 = vmatprep.subr.mxu0 0.0
    %472 = vmatpush2.msra.mxu0 0.0
    %473 = vmatprep.subr.mxu0 0.0
    %474 = vmatpush2.msra.mxu0 0.0
    %475 = vmatprep.subr.mxu0 0.0
    %476 = vmatpush2.msra.mxu0 0.0
    %477 = vmatprep.subr.mxu0 0.0
    %478 = vmatpush2.msra.mxu0 0.0
    %479 = vmatprep.subr.mxu0 0.0
    %480 = vmatpush2.msra.mxu0 0.0
    %481 = vmatprep.subr.mxu0 0.0
    %482 = vmatpush2.msra.mxu0 0.0
    %483 = vmatprep.subr.mxu0 0.0
    %484 = vmatpush2.msra.mxu0 0.0
    %485 = vmatprep.subr.mxu0 0.0
    %486 = vmatpush2.msra.mxu0 0.0
    %487 = vmatprep.subr.mxu0 0.0
    %488 = vmatpush2.msra.mxu0 0.0
    %489 = vmatprep.subr.mxu0 0.0
    %490 = vmatpush2.msra.mxu0 0.0
    %491 = vmatprep.subr.mxu0 0.0
    %492 = vmatpush2.msra.mxu0 0.0
    %493 = vmatprep.mubr.f32.mxu0 0.0
    %494 = vmatmul.mubr.f32.gmra.mxu0 %v350
    %v495 = vpop.f32.mrf.mxu0
    %v496 = vadd.f32 0.0, %v495
    %v497 = vpop.f32.mrf.mxu0
    %498 = vdwg.mxu0
    %v499 = vmul.f32 %v496, 0.125
    %v500 = vadd.f32 %v499, 1e-06
    %v501 = vrsqrt.pop %v500
    %v502 = vlaneseq
    %v503 = vshrl.u32 %v502, 7
    %v504 = vsub.s32 0, %v503
    %v505 = vrot.slane %v501, %v504
    %v506 = vmul.f32 %v427, %v505
    %v507 = vld [vmem:[%s25] sm:$0xff]
    %v508 = vld [vmem:[%s25 + $0x8] sm:$0xff]
    %v509 = vld [vmem:[%s25 + $0x10] sm:$0xf]
    %v510 = vld [vmem:[%s27] sm:$0x1]
    %v512 = vlaneseq
    %v513 = vshrl.u32 %v512, 7
    %v514 = vsub.s32 0, %v513
    %v515 = vrot.slane %v510, %v514
    %vm517 = vcmask 162816
    %v519 = vsel %vm517, %v506, 0
    %vm521 = vcmask 1043456
    %v523 = vsel %vm521, %v509, 0
    %525 = vmatprep.subr.mxu0 0.0
    %526 = vmatpush1.msra.mxu0 0.0
    %527 = vmatprep.subr.mxu0 0.0
    %528 = vmatpush1.msra.mxu0 0.0
    %529 = vmatprep.subr.mxu0 0.0
    %530 = vmatpush1.msra.mxu0 0.0
    %531 = vmatprep.subr.mxu0 0.0
    %532 = vmatpush1.msra.mxu0 0.0
    %533 = vmatprep.subr.mxu0 0.0
    %534 = vmatpush1.msra.mxu0 0.0
    %535 = vmatprep.subr.mxu0 0.0
    %536 = vmatpush1.msra.mxu0 0.0
    %537 = vmatprep.subr.mxu0 0.0
    %538 = vmatpush1.msra.mxu0 0.0
    %539 = vmatprep.subr.mxu0 0.0
    %540 = vmatpush1.msra.mxu0 0.0
    %541 = vmatprep.subr.mxu0 0.0
    %542 = vmatpush1.msra.mxu0 0.0
    %543 = vmatprep.subr.mxu0 0.0
    %544 = vmatpush1.msra.mxu0 0.0
    %545 = vmatprep.subr.mxu0 0.0
    %546 = vmatpush1.msra.mxu0 0.0
    %547 = vmatprep.subr.mxu0 0.0
    %548 = vmatpush1.msra.mxu0 0.0
    %549 = vmatprep.subr.mxu0 0.0
    %550 = vmatpush1.msra.mxu0 0.0
    %551 = vmatprep.subr.mxu0 0.0
    %552 = vmatpush1.msra.mxu0 %v523
    %553 = vmatprep.subr.mxu0 0.0
    %554 = vmatpush1.msra.mxu0 %v508
    %555 = vmatprep.subr.mxu0 0.0
    %556 = vmatpush1.msra.mxu0 %v507
    %557 = vmatprep.subr.mxu0 0.0
    %558 = vmatpush2.msra.mxu0 0.0
    %559 = vmatprep.subr.mxu0 0.0
    %560 = vmatpush2.msra.mxu0 0.0
    %561 = vmatprep.subr.mxu0 0.0
    %562 = vmatpush2.msra.mxu0 0.0
    %563 = vmatprep.subr.mxu0 0.0
    %564 = vmatpush2.msra.mxu0 0.0
    %565 = vmatprep.subr.mxu0 0.0
    %566 = vmatpush2.msra.mxu0 0.0
    %567 = vmatprep.subr.mxu0 0.0
    %568 = vmatpush2.msra.mxu0 0.0
    %569 = vmatprep.subr.mxu0 0.0
    %570 = vmatpush2.msra.mxu0 0.0
    %571 = vmatprep.subr.mxu0 0.0
    %572 = vmatpush2.msra.mxu0 0.0
    %573 = vmatprep.subr.mxu0 0.0
    %574 = vmatpush2.msra.mxu0 0.0
    %575 = vmatprep.subr.mxu0 0.0
    %576 = vmatpush2.msra.mxu0 0.0
    %577 = vmatprep.subr.mxu0 0.0
    %578 = vmatpush2.msra.mxu0 0.0
    %579 = vmatprep.subr.mxu0 0.0
    %580 = vmatpush2.msra.mxu0 0.0
    %581 = vmatprep.subr.mxu0 0.0
    %582 = vmatpush2.msra.mxu0 0.0
    %583 = vmatprep.subr.mxu0 0.0
    %584 = vmatpush2.msra.mxu0 0.0
    %585 = vmatprep.subr.mxu0 0.0
    %586 = vmatpush2.msra.mxu0 0.0
    %587 = vmatprep.subr.mxu0 0.0
    %588 = vmatpush2.msra.mxu0 0.0
    %589 = vmatprep.mubr.f32.mxu0 0.0
    %590 = vmatmul.mubr.f32.gmra.mxu0 %v519
    %v591 = vpop.f32.mrf.mxu0
    %v592 = vadd.f32 %v515, %v591
    %v593 = vpop.f32.mrf.mxu0
    %594 = vdwg.mxu0
    %v595 = vld [vmem:[%s53] sm:$0xff]
    %v596 = vld [vmem:[%s53 + $0x8] sm:$0xff]
    %v597 = vld [vmem:[%s53 + $0x10] sm:$0xf]
    %v598 = vld [vmem:[%s55] sm:$0x1]
    %v600 = vlaneseq
    %v601 = vshrl.u32 %v600, 7
    %v602 = vsub.s32 0, %v601
    %v603 = vrot.slane %v598, %v602
    %v606 = vsel %vm521, %v597, 0
    %608 = vmatprep.subr.mxu0 0.0
    %609 = vmatpush1.msra.mxu0 0.0
    %610 = vmatprep.subr.mxu0 0.0
    %611 = vmatpush1.msra.mxu0 0.0
    %612 = vmatprep.subr.mxu0 0.0
    %613 = vmatpush1.msra.mxu0 0.0
    %614 = vmatprep.subr.mxu0 0.0
    %615 = vmatpush1.msra.mxu0 0.0
    %616 = vmatprep.subr.mxu0 0.0
    %617 = vmatpush1.msra.mxu0 0.0
    %618 = vmatprep.subr.mxu0 0.0
    %619 = vmatpush1.msra.mxu0 0.0
    %620 = vmatprep.subr.mxu0 0.0
    %621 = vmatpush1.msra.mxu0 0.0
    %622 = vmatprep.subr.mxu0 0.0
    %623 = vmatpush1.msra.mxu0 0.0
    %624 = vmatprep.subr.mxu0 0.0
    %625 = vmatpush1.msra.mxu0 0.0
    %626 = vmatprep.subr.mxu0 0.0
    %627 = vmatpush1.msra.mxu0 0.0
    %628 = vmatprep.subr.mxu0 0.0
    %629 = vmatpush1.msra.mxu0 0.0
    %630 = vmatprep.subr.mxu0 0.0
    %631 = vmatpush1.msra.mxu0 0.0
    %632 = vmatprep.subr.mxu0 0.0
    %633 = vmatpush1.msra.mxu0 0.0
    %634 = vmatprep.subr.mxu0 0.0
    %635 = vmatpush1.msra.mxu0 %v606
    %636 = vmatprep.subr.mxu0 0.0
    %637 = vmatpush1.msra.mxu0 %v596
    %638 = vmatprep.subr.mxu0 0.0
    %639 = vmatpush1.msra.mxu0 %v595
    %640 = vmatprep.subr.mxu0 0.0
    %641 = vmatpush2.msra.mxu0 0.0
    %642 = vmatprep.subr.mxu0 0.0
    %643 = vmatpush2.msra.mxu0 0.0
    %644 = vmatprep.subr.mxu0 0.0
    %645 = vmatpush2.msra.mxu0 0.0
    %646 = vmatprep.subr.mxu0 0.0
    %647 = vmatpush2.msra.mxu0 0.0
    %648 = vmatprep.subr.mxu0 0.0
    %649 = vmatpush2.msra.mxu0 0.0
    %650 = vmatprep.subr.mxu0 0.0
    %651 = vmatpush2.msra.mxu0 0.0
    %652 = vmatprep.subr.mxu0 0.0
    %653 = vmatpush2.msra.mxu0 0.0
    %654 = vmatprep.subr.mxu0 0.0
    %655 = vmatpush2.msra.mxu0 0.0
    %656 = vmatprep.subr.mxu0 0.0
    %657 = vmatpush2.msra.mxu0 0.0
    %658 = vmatprep.subr.mxu0 0.0
    %659 = vmatpush2.msra.mxu0 0.0
    %660 = vmatprep.subr.mxu0 0.0
    %661 = vmatpush2.msra.mxu0 0.0
    %662 = vmatprep.subr.mxu0 0.0
    %663 = vmatpush2.msra.mxu0 0.0
    %664 = vmatprep.subr.mxu0 0.0
    %665 = vmatpush2.msra.mxu0 0.0
    %666 = vmatprep.subr.mxu0 0.0
    %667 = vmatpush2.msra.mxu0 0.0
    %668 = vmatprep.subr.mxu0 0.0
    %669 = vmatpush2.msra.mxu0 0.0
    %670 = vmatprep.subr.mxu0 0.0
    %671 = vmatpush2.msra.mxu0 0.0
    %672 = vmatprep.mubr.f32.mxu0 0.0
    %673 = vmatmul.mubr.f32.gmra.mxu0 %v519
    %v674 = vpop.f32.mrf.mxu0
    %v675 = vadd.f32 %v603, %v674
    %v676 = vpop.f32.mrf.mxu0
    %677 = vdwg.mxu0
    %v678 = vld [vmem:[%s81] sm:$0xff]
    %v679 = vld [vmem:[%s81 + $0x8] sm:$0xff]
    %v680 = vld [vmem:[%s81 + $0x10] sm:$0xf]
    %v682 = vsel %vm521, %v680, 0
    %684 = vmatprep.subr.mxu0 0.0
    %685 = vmatpush1.msra.mxu0 0.0
    %686 = vmatprep.subr.mxu0 0.0
    %687 = vmatpush1.msra.mxu0 0.0
    %688 = vmatprep.subr.mxu0 0.0
    %689 = vmatpush1.msra.mxu0 0.0
    %690 = vmatprep.subr.mxu0 0.0
    %691 = vmatpush1.msra.mxu0 0.0
    %692 = vmatprep.subr.mxu0 0.0
    %693 = vmatpush1.msra.mxu0 0.0
    %694 = vmatprep.subr.mxu0 0.0
    %695 = vmatpush1.msra.mxu0 0.0
    %696 = vmatprep.subr.mxu0 0.0
    %697 = vmatpush1.msra.mxu0 0.0
    %698 = vmatprep.subr.mxu0 0.0
    %699 = vmatpush1.msra.mxu0 0.0
    %700 = vmatprep.subr.mxu0 0.0
    %701 = vmatpush1.msra.mxu0 0.0
    %702 = vmatprep.subr.mxu0 0.0
    %703 = vmatpush1.msra.mxu0 0.0
    %704 = vmatprep.subr.mxu0 0.0
    %705 = vmatpush1.msra.mxu0 0.0
    %706 = vmatprep.subr.mxu0 0.0
    %707 = vmatpush1.msra.mxu0 0.0
    %708 = vmatprep.subr.mxu0 0.0
    %709 = vmatpush1.msra.mxu0 0.0
    %710 = vmatprep.subr.mxu0 0.0
    %711 = vmatpush1.msra.mxu0 %v682
    %712 = vmatprep.subr.mxu0 0.0
    %713 = vmatpush1.msra.mxu0 %v679
    %714 = vmatprep.subr.mxu0 0.0
    %715 = vmatpush1.msra.mxu0 %v678
    %716 = vmatprep.subr.mxu0 0.0
    %717 = vmatpush2.msra.mxu0 0.0
    %718 = vmatprep.subr.mxu0 0.0
    %719 = vmatpush2.msra.mxu0 0.0
    %720 = vmatprep.subr.mxu0 0.0
    %721 = vmatpush2.msra.mxu0 0.0
    %722 = vmatprep.subr.mxu0 0.0
    %723 = vmatpush2.msra.mxu0 0.0
    %724 = vmatprep.subr.mxu0 0.0
    %725 = vmatpush2.msra.mxu0 0.0
    %726 = vmatprep.subr.mxu0 0.0
    %727 = vmatpush2.msra.mxu0 0.0
    %728 = vmatprep.subr.mxu0 0.0
    %729 = vmatpush2.msra.mxu0 0.0
    %730 = vmatprep.subr.mxu0 0.0
    %731 = vmatpush2.msra.mxu0 0.0
    %732 = vmatprep.subr.mxu0 0.0
    %733 = vmatpush2.msra.mxu0 0.0
    %734 = vmatprep.subr.mxu0 0.0
    %735 = vmatpush2.msra.mxu0 0.0
    %736 = vmatprep.subr.mxu0 0.0
    %737 = vmatpush2.msra.mxu0 0.0
    %738 = vmatprep.subr.mxu0 0.0
    %739 = vmatpush2.msra.mxu0 0.0
    %740 = vmatprep.subr.mxu0 0.0
    %741 = vmatpush2.msra.mxu0 0.0
    %742 = vmatprep.subr.mxu0 0.0
    %743 = vmatpush2.msra.mxu0 0.0
    %744 = vmatprep.subr.mxu0 0.0
    %745 = vmatpush2.msra.mxu0 0.0
    %746 = vmatprep.subr.mxu0 0.0
    %747 = vmatpush2.msra.mxu0 0.0
    %748 = vmatprep.mubr.f32.mxu0 0.0
    %749 = vmatmul.mubr.f32.gmra.mxu0 %v519
    %v750 = vpop.f32.mrf.mxu0
    %v751 = vadd.f32 0.0, %v750
    %v752 = vpop.f32.mrf.mxu0
    %753 = vdwg.mxu0
    %v754 = vld [vmem:[%s83] sm:$0x1]
    %v756 = vlaneseq
    %v757 = vshrl.u32 %v756, 7
    %v758 = vsub.s32 0, %v757
    %v759 = vrot.slane %v754, %v758
    %v762 = vsel %vm348, %v231, 0
    %v765 = vsel %vm348, %v232, 0
    %v768 = vsel %vm348, %v233, 0
    %v771 = vsel %vm348, %v234, 0
    %773 = vmatprep.subr.mxu0 0.0
    %774 = vmatpush1.msra.mxu0 0.0
    %775 = vmatprep.subr.mxu0 0.0
    %776 = vmatpush1.msra.mxu0 0.0
    %777 = vmatprep.subr.mxu0 0.0
    %778 = vmatpush1.msra.mxu0 0.0
    %779 = vmatprep.subr.mxu0 0.0
    %780 = vmatpush1.msra.mxu0 0.0
    %781 = vmatprep.subr.mxu0 0.0
    %782 = vmatpush1.msra.mxu0 0.0
    %783 = vmatprep.subr.mxu0 0.0
    %784 = vmatpush1.msra.mxu0 0.0
    %785 = vmatprep.subr.mxu0 0.0
    %786 = vmatpush1.msra.mxu0 0.0
    %787 = vmatprep.subr.mxu0 0.0
    %788 = vmatpush1.msra.mxu0 0.0
    %789 = vmatprep.subr.mxu0 0.0
    %790 = vmatpush1.msra.mxu0 0.0
    %791 = vmatprep.subr.mxu0 0.0
    %792 = vmatpush1.msra.mxu0 0.0
    %793 = vmatprep.subr.mxu0 0.0
    %794 = vmatpush1.msra.mxu0 0.0
    %795 = vmatprep.subr.mxu0 0.0
    %796 = vmatpush1.msra.mxu0 0.0
    %797 = vmatprep.subr.mxu0 0.0
    %798 = vmatpush1.msra.mxu0 0.0
    %799 = vmatprep.subr.mxu0 0.0
    %800 = vmatpush1.msra.mxu0 0.0
    %801 = vmatprep.subr.mxu0 0.0
    %802 = vmatpush1.msra.mxu0 0.0
    %803 = vmatprep.subr.mxu0 0.0
    %804 = vmatpush1.msra.mxu0 %v751
    %805 = vmatprep.subr.mxu0 0.0
    %806 = vmatpush2.msra.mxu0 0.0
    %807 = vmatprep.subr.mxu0 0.0
    %808 = vmatpush2.msra.mxu0 0.0
    %809 = vmatprep.subr.mxu0 0.0
    %810 = vmatpush2.msra.mxu0 0.0
    %811 = vmatprep.subr.mxu0 0.0
    %812 = vmatpush2.msra.mxu0 0.0
    %813 = vmatprep.subr.mxu0 0.0
    %814 = vmatpush2.msra.mxu0 0.0
    %815 = vmatprep.subr.mxu0 0.0
    %816 = vmatpush2.msra.mxu0 0.0
    %817 = vmatprep.subr.mxu0 0.0
    %818 = vmatpush2.msra.mxu0 0.0
    %819 = vmatprep.subr.mxu0 0.0
    %820 = vmatpush2.msra.mxu0 0.0
    %821 = vmatprep.subr.mxu0 0.0
    %822 = vmatpush2.msra.mxu0 0.0
    %823 = vmatprep.subr.mxu0 0.0
    %824 = vmatpush2.msra.mxu0 0.0
    %825 = vmatprep.subr.mxu0 0.0
    %826 = vmatpush2.msra.mxu0 0.0
    %827 = vmatprep.subr.mxu0 0.0
    %828 = vmatpush2.msra.mxu0 0.0
    %829 = vmatprep.subr.mxu0 0.0
    %830 = vmatpush2.msra.mxu0 0.0
    %831 = vmatprep.subr.mxu0 0.0
    %832 = vmatpush2.msra.mxu0 0.0
    %833 = vmatprep.subr.mxu0 0.0
    %834 = vmatpush2.msra.mxu0 0.0
    %835 = vmatprep.subr.mxu0 0.0
    %836 = vmatpush2.msra.mxu0 0.0
    %837 = vmatprep.mubr.f32.mxu0 0.0
    %838 = vmatmul.mubr.f32.gmra.mxu0 %v762
    %v839 = vpop.f32.mrf.mxu0
    %v840 = vadd.f32 %v759, %v839
    %v841 = vpop.f32.mrf.mxu0
    %842 = vmatprep.mubr.f32.mxu0 0.0
    %843 = vmatmul.mubr.f32.gmra.mxu0 %v765
    %v844 = vpop.f32.mrf.mxu0
    %v845 = vadd.f32 %v759, %v844
    %v846 = vpop.f32.mrf.mxu0
    %847 = vmatprep.mubr.f32.mxu0 0.0
    %848 = vmatmul.mubr.f32.gmra.mxu0 %v768
    %v849 = vpop.f32.mrf.mxu0
    %v850 = vadd.f32 %v759, %v849
    %v851 = vpop.f32.mrf.mxu0
    %852 = vmatprep.mubr.f32.mxu0 0.0
    %853 = vmatmul.mubr.f32.gmra.mxu0 %v771
    %v854 = vpop.f32.mrf.mxu0
    %v855 = vadd.f32 %v759, %v854
    %v856 = vpop.f32.mrf.mxu0
    %857 = vdwg.mxu0
    %v858 = vadd.f32 %v840, %v309
    %v859 = vadd.f32 %v845, %v310
    %v860 = vadd.f32 %v850, %v311
    %v861 = vadd.f32 %v855, %v312
    %v863 = vsel %vm348, %v236, 0
    %v866 = vsel %vm348, %v237, 0
    %v869 = vsel %vm348, %v238, 0
    %v872 = vsel %vm348, %v239, 0
    %v875 = vsel %vm348, %v240, 0
    %v878 = vsel %vm348, %v241, 0
    %v881 = vsel %vm348, %v242, 0
    %v884 = vsel %vm348, %v243, 0
    %v887 = vsel %vm348, %v244, 0
    %v890 = vsel %vm348, %v245, 0
    %892 = vmatprep.subr.mxu0 0.0
    %893 = vmatpush1.msra.mxu0 0.0
    %894 = vmatprep.subr.mxu0 0.0
    %895 = vmatpush1.msra.mxu0 0.0
    %896 = vmatprep.subr.mxu0 0.0
    %897 = vmatpush1.msra.mxu0 0.0
    %898 = vmatprep.subr.mxu0 0.0
    %899 = vmatpush1.msra.mxu0 0.0
    %900 = vmatprep.subr.mxu0 0.0
    %901 = vmatpush1.msra.mxu0 0.0
    %902 = vmatprep.subr.mxu0 0.0
    %903 = vmatpush1.msra.mxu0 0.0
    %904 = vmatprep.subr.mxu0 0.0
    %905 = vmatpush1.msra.mxu0 0.0
    %906 = vmatprep.subr.mxu0 0.0
    %907 = vmatpush1.msra.mxu0 0.0
    %908 = vmatprep.subr.mxu0 0.0
    %909 = vmatpush1.msra.mxu0 0.0
    %910 = vmatprep.subr.mxu0 0.0
    %911 = vmatpush1.msra.mxu0 0.0
    %912 = vmatprep.subr.mxu0 0.0
    %913 = vmatpush1.msra.mxu0 0.0
    %914 = vmatprep.subr.mxu0 0.0
    %915 = vmatpush1.msra.mxu0 0.0
    %916 = vmatprep.subr.mxu0 0.0
    %917 = vmatpush1.msra.mxu0 0.0
    %918 = vmatprep.subr.mxu0 0.0
    %919 = vmatpush1.msra.mxu0 0.0
    %920 = vmatprep.subr.mxu0 0.0
    %921 = vmatpush1.msra.mxu0 0.0
    %922 = vmatprep.subr.mxu0 0.0
    %923 = vmatpush1.msra.mxu0 %v751
    %924 = vmatprep.subr.mxu0 0.0
    %925 = vmatpush2.msra.mxu0 0.0
    %926 = vmatprep.subr.mxu0 0.0
    %927 = vmatpush2.msra.mxu0 0.0
    %928 = vmatprep.subr.mxu0 0.0
    %929 = vmatpush2.msra.mxu0 0.0
    %930 = vmatprep.subr.mxu0 0.0
    %931 = vmatpush2.msra.mxu0 0.0
    %932 = vmatprep.subr.mxu0 0.0
    %933 = vmatpush2.msra.mxu0 0.0
    %934 = vmatprep.subr.mxu0 0.0
    %935 = vmatpush2.msra.mxu0 0.0
    %936 = vmatprep.subr.mxu0 0.0
    %937 = vmatpush2.msra.mxu0 0.0
    %938 = vmatprep.subr.mxu0 0.0
    %939 = vmatpush2.msra.mxu0 0.0
    %940 = vmatprep.subr.mxu0 0.0
    %941 = vmatpush2.msra.mxu0 0.0
    %942 = vmatprep.subr.mxu0 0.0
    %943 = vmatpush2.msra.mxu0 0.0
    %944 = vmatprep.subr.mxu0 0.0
    %945 = vmatpush2.msra.mxu0 0.0
    %946 = vmatprep.subr.mxu0 0.0
    %947 = vmatpush2.msra.mxu0 0.0
    %948 = vmatprep.subr.mxu0 0.0
    %949 = vmatpush2.msra.mxu0 0.0
    %950 = vmatprep.subr.mxu0 0.0
    %951 = vmatpush2.msra.mxu0 0.0
    %952 = vmatprep.subr.mxu0 0.0
    %953 = vmatpush2.msra.mxu0 0.0
    %954 = vmatprep.subr.mxu0 0.0
    %955 = vmatpush2.msra.mxu0 0.0
    %956 = vmatprep.mubr.f32.mxu0 0.0
    %957 = vmatmul.mubr.f32.gmra.mxu0 %v863
    %v958 = vpop.f32.mrf.mxu0
    %v959 = vadd.f32 %v759, %v958
    %v960 = vpop.f32.mrf.mxu0
    %961 = vmatprep.mubr.f32.mxu0 0.0
    %962 = vmatmul.mubr.f32.gmra.mxu0 %v866
    %v963 = vpop.f32.mrf.mxu0
    %v964 = vadd.f32 %v759, %v963
    %v965 = vpop.f32.mrf.mxu0
    %966 = vmatprep.mubr.f32.mxu0 0.0
    %967 = vmatmul.mubr.f32.gmra.mxu0 %v869
    %v968 = vpop.f32.mrf.mxu0
    %v969 = vadd.f32 %v759, %v968
    %v970 = vpop.f32.mrf.mxu0
    %971 = vmatprep.mubr.f32.mxu0 0.0
    %972 = vmatmul.mubr.f32.gmra.mxu0 %v872
    %v973 = vpop.f32.mrf.mxu0
    %v974 = vadd.f32 %v759, %v973
    %v975 = vpop.f32.mrf.mxu0
    %976 = vmatprep.mubr.f32.mxu0 0.0
    %977 = vmatmul.mubr.f32.gmra.mxu0 %v875
    %v978 = vpop.f32.mrf.mxu0
    %v979 = vadd.f32 %v759, %v978
    %v980 = vpop.f32.mrf.mxu0
    %981 = vmatprep.mubr.f32.mxu0 0.0
    %982 = vmatmul.mubr.f32.gmra.mxu0 %v878
    %v983 = vpop.f32.mrf.mxu0
    %v984 = vadd.f32 %v759, %v983
    %v985 = vpop.f32.mrf.mxu0
    %986 = vmatprep.mubr.f32.mxu0 0.0
    %987 = vmatmul.mubr.f32.gmra.mxu0 %v881
    %v988 = vpop.f32.mrf.mxu0
    %v989 = vadd.f32 %v759, %v988
    %v990 = vpop.f32.mrf.mxu0
    %991 = vmatprep.mubr.f32.mxu0 0.0
    %992 = vmatmul.mubr.f32.gmra.mxu0 %v884
    %v993 = vpop.f32.mrf.mxu0
    %v994 = vadd.f32 %v759, %v993
    %v995 = vpop.f32.mrf.mxu0
    %996 = vmatprep.mubr.f32.mxu0 0.0
    %997 = vmatmul.mubr.f32.gmra.mxu0 %v887
    %v998 = vpop.f32.mrf.mxu0
    %v999 = vadd.f32 %v759, %v998
    %v1000 = vpop.f32.mrf.mxu0
    %1001 = vmatprep.mubr.f32.mxu0 0.0
    %1002 = vmatmul.mubr.f32.gmra.mxu0 %v890
    %v1003 = vpop.f32.mrf.mxu0
    %v1004 = vadd.f32 %v759, %v1003
    %v1005 = vpop.f32.mrf.mxu0
    %1006 = vdwg.mxu0
    %v1007 = vadd.f32 %v959, %v313
    %v1008 = vadd.f32 %v964, %v314
    %v1009 = vadd.f32 %v969, %v315
    %v1010 = vadd.f32 %v974, %v316
    %v1011 = vadd.f32 %v979, %v317
    %v1012 = vadd.f32 %v984, %v318
    %v1013 = vadd.f32 %v989, %v319
    %v1014 = vadd.f32 %v994, %v320
    %v1015 = vadd.f32 %v999, %v321
    %v1016 = vadd.f32 %v1004, %v322
    %1017 = vmatprep.subr.mxu0 0.0
    %1018 = vmatpush1.msra.mxu0 0.0
    %1019 = vmatprep.subr.mxu0 0.0
    %1020 = vmatpush1.msra.mxu0 0.0
    %1021 = vmatprep.subr.mxu0 0.0
    %1022 = vmatpush1.msra.mxu0 0.0
    %1023 = vmatprep.subr.mxu0 0.0
    %1024 = vmatpush1.msra.mxu0 0.0
    %1025 = vmatprep.subr.mxu0 0.0
    %1026 = vmatpush1.msra.mxu0 0.0
    %1027 = vmatprep.subr.mxu0 0.0
    %1028 = vmatpush1.msra.mxu0 0.0
    %1029 = vmatprep.subr.mxu0 0.0
    %1030 = vmatpush1.msra.mxu0 0.0
    %1031 = vmatprep.subr.mxu0 0.0
    %1032 = vmatpush1.msra.mxu0 0.0
    %1033 = vmatprep.subr.mxu0 0.0
    %1034 = vmatpush1.msra.mxu0 0.0
    %1035 = vmatprep.subr.mxu0 0.0
    %1036 = vmatpush1.msra.mxu0 0.0
    %1037 = vmatprep.subr.mxu0 0.0
    %1038 = vmatpush1.msra.mxu0 0.0
    %1039 = vmatprep.subr.mxu0 0.0
    %1040 = vmatpush1.msra.mxu0 0.0
    %1041 = vmatprep.subr.mxu0 0.0
    %1042 = vmatpush1.msra.mxu0 0.0
    %1043 = vmatprep.subr.mxu0 0.0
    %1044 = vmatpush1.msra.mxu0 0.0
    %1045 = vmatprep.subr.mxu0 0.0
    %1046 = vmatpush1.msra.mxu0 0.0
    %1047 = vmatprep.subr.mxu0 0.0
    %1048 = vmatpush1.msra.mxu0 %v592
    %1049 = vmatprep.subr.mxu0 0.0
    %1050 = vmatpush2.msra.mxu0 0.0
    %1051 = vmatprep.subr.mxu0 0.0
    %1052 = vmatpush2.msra.mxu0 0.0
    %1053 = vmatprep.subr.mxu0 0.0
    %1054 = vmatpush2.msra.mxu0 0.0
    %1055 = vmatprep.subr.mxu0 0.0
    %1056 = vmatpush2.msra.mxu0 0.0
    %1057 = vmatprep.subr.mxu0 0.0
    %1058 = vmatpush2.msra.mxu0 0.0
    %1059 = vmatprep.subr.mxu0 0.0
    %1060 = vmatpush2.msra.mxu0 0.0
    %1061 = vmatprep.subr.mxu0 0.0
    %1062 = vmatpush2.msra.mxu0 0.0
    %1063 = vmatprep.subr.mxu0 0.0
    %1064 = vmatpush2.msra.mxu0 0.0
    %1065 = vmatprep.subr.mxu0 0.0
    %1066 = vmatpush2.msra.mxu0 0.0
    %1067 = vmatprep.subr.mxu0 0.0
    %1068 = vmatpush2.msra.mxu0 0.0
    %1069 = vmatprep.subr.mxu0 0.0
    %1070 = vmatpush2.msra.mxu0 0.0
    %1071 = vmatprep.subr.mxu0 0.0
    %1072 = vmatpush2.msra.mxu0 0.0
    %1073 = vmatprep.subr.mxu0 0.0
    %1074 = vmatpush2.msra.mxu0 0.0
    %1075 = vmatprep.subr.mxu0 0.0
    %1076 = vmatpush2.msra.mxu0 0.0
    %1077 = vmatprep.subr.mxu0 0.0
    %1078 = vmatpush2.msra.mxu0 0.0
    %1079 = vmatprep.subr.mxu0 0.0
    %1080 = vmatpush2.msra.mxu0 0.0
    %1081 = vmatprep.mubr.f32.mxu0 0.0
    %1082 = vmatmul.mubr.f32.gmra.mxu0 %v350
    %v1083 = vpop.f32.mrf.mxu0
    %v1084 = vadd.f32 0.0, %v1083
    %v1085 = vpop.f32.mrf.mxu0
    %1086 = vdwg.mxu0
    %v1087 = vmul.f32 %v1084, 0.125
    %v1088 = vlaneseq
    %v1089 = vshrl.u32 %v1088, 7
    %v1090 = vsub.s32 0, %v1089
    %v1091 = vrot.slane %v1087, %v1090
    %v1092 = vsub.f32 %v592, %v1091
    %v1093 = vmul.f32 %v1092, %v1092
    %1094 = vmatprep.subr.mxu0 0.0
    %1095 = vmatpush1.msra.mxu0 0.0
    %1096 = vmatprep.subr.mxu0 0.0
    %1097 = vmatpush1.msra.mxu0 0.0
    %1098 = vmatprep.subr.mxu0 0.0
    %1099 = vmatpush1.msra.mxu0 0.0
    %1100 = vmatprep.subr.mxu0 0.0
    %1101 = vmatpush1.msra.mxu0 0.0
    %1102 = vmatprep.subr.mxu0 0.0
    %1103 = vmatpush1.msra.mxu0 0.0
    %1104 = vmatprep.subr.mxu0 0.0
    %1105 = vmatpush1.msra.mxu0 0.0
    %1106 = vmatprep.subr.mxu0 0.0
    %1107 = vmatpush1.msra.mxu0 0.0
    %1108 = vmatprep.subr.mxu0 0.0
    %1109 = vmatpush1.msra.mxu0 0.0
    %1110 = vmatprep.subr.mxu0 0.0
    %1111 = vmatpush1.msra.mxu0 0.0
    %1112 = vmatprep.subr.mxu0 0.0
    %1113 = vmatpush1.msra.mxu0 0.0
    %1114 = vmatprep.subr.mxu0 0.0
    %1115 = vmatpush1.msra.mxu0 0.0
    %1116 = vmatprep.subr.mxu0 0.0
    %1117 = vmatpush1.msra.mxu0 0.0
    %1118 = vmatprep.subr.mxu0 0.0
    %1119 = vmatpush1.msra.mxu0 0.0
    %1120 = vmatprep.subr.mxu0 0.0
    %1121 = vmatpush1.msra.mxu0 0.0
    %1122 = vmatprep.subr.mxu0 0.0
    %1123 = vmatpush1.msra.mxu0 0.0
    %1124 = vmatprep.subr.mxu0 0.0
    %1125 = vmatpush1.msra.mxu0 %v1093
    %1126 = vmatprep.subr.mxu0 0.0
    %1127 = vmatpush2.msra.mxu0 0.0
    %1128 = vmatprep.subr.mxu0 0.0
    %1129 = vmatpush2.msra.mxu0 0.0
    %1130 = vmatprep.subr.mxu0 0.0
    %1131 = vmatpush2.msra.mxu0 0.0
    %1132 = vmatprep.subr.mxu0 0.0
    %1133 = vmatpush2.msra.mxu0 0.0
    %1134 = vmatprep.subr.mxu0 0.0
    %1135 = vmatpush2.msra.mxu0 0.0
    %1136 = vmatprep.subr.mxu0 0.0
    %1137 = vmatpush2.msra.mxu0 0.0
    %1138 = vmatprep.subr.mxu0 0.0
    %1139 = vmatpush2.msra.mxu0 0.0
    %1140 = vmatprep.subr.mxu0 0.0
    %1141 = vmatpush2.msra.mxu0 0.0
    %1142 = vmatprep.subr.mxu0 0.0
    %1143 = vmatpush2.msra.mxu0 0.0
    %1144 = vmatprep.subr.mxu0 0.0
    %1145 = vmatpush2.msra.mxu0 0.0
    %1146 = vmatprep.subr.mxu0 0.0
    %1147 = vmatpush2.msra.mxu0 0.0
    %1148 = vmatprep.subr.mxu0 0.0
    %1149 = vmatpush2.msra.mxu0 0.0
    %1150 = vmatprep.subr.mxu0 0.0
    %1151 = vmatpush2.msra.mxu0 0.0
    %1152 = vmatprep.subr.mxu0 0.0
    %1153 = vmatpush2.msra.mxu0 0.0
    %1154 = vmatprep.subr.mxu0 0.0
    %1155 = vmatpush2.msra.mxu0 0.0
    %1156 = vmatprep.subr.mxu0 0.0
    %1157 = vmatpush2.msra.mxu0 0.0
    %1158 = vmatprep.mubr.f32.mxu0 0.0
    %1159 = vmatmul.mubr.f32.gmra.mxu0 %v350
    %v1160 = vpop.f32.mrf.mxu0
    %v1161 = vadd.f32 0.0, %v1160
    %v1162 = vpop.f32.mrf.mxu0
    %1163 = vdwg.mxu0
    %v1164 = vmul.f32 %v1161, 0.125
    %v1165 = vadd.f32 %v1164, 1e-06
    %v1166 = vrsqrt.pop %v1165
    %v1167 = vlaneseq
    %v1168 = vshrl.u32 %v1167, 7
    %v1169 = vsub.s32 0, %v1168
    %v1170 = vrot.slane %v1166, %v1169
    %v1171 = vmul.f32 %v1092, %v1170
    %v1172 = vld [vmem:[%s29] sm:$0x1]
    %v1174 = vlaneseq
    %v1175 = vshrl.u32 %v1174, 7
    %v1176 = vsub.s32 0, %v1175
    %v1177 = vrot.slane %v1172, %v1176
    %v1179 = vmul.f32 %v1171, %v1177
    %v1180 = vld [vmem:[%s31] sm:$0x1]
    %v1182 = vlaneseq
    %v1183 = vshrl.u32 %v1182, 7
    %v1184 = vsub.s32 0, %v1183
    %v1185 = vrot.slane %v1180, %v1184
    %v1187 = vadd.f32 %v1179, %v1185
    %v1188 = vmax.f32 %v1187, 0.0
    %v1189 = vld [vmem:[%s33] sm:$0xff]
    %v1190 = vld [vmem:[%s33 + $0x8] sm:$0xff]
    %v1191 = vld [vmem:[%s33 + $0x10] sm:$0xff]
    %v1192 = vld [vmem:[%s33 + $0x18] sm:$0x3f]
    %vm1193 = vcmask 244736
    %v1195 = vsel %vm1193, %v1188, 0
    %vm1197 = vcmask 1045504
    %v1199 = vsel %vm1197, %v1192, 0
    %1201 = vmatprep.subr.mxu0 0.0
    %1202 = vmatpush1.msra.mxu0 0.0
    %1203 = vmatprep.subr.mxu0 0.0
    %1204 = vmatpush1.msra.mxu0 0.0
    %1205 = vmatprep.subr.mxu0 0.0
    %1206 = vmatpush1.msra.mxu0 0.0
    %1207 = vmatprep.subr.mxu0 0.0
    %1208 = vmatpush1.msra.mxu0 0.0
    %1209 = vmatprep.subr.mxu0 0.0
    %1210 = vmatpush1.msra.mxu0 0.0
    %1211 = vmatprep.subr.mxu0 0.0
    %1212 = vmatpush1.msra.mxu0 0.0
    %1213 = vmatprep.subr.mxu0 0.0
    %1214 = vmatpush1.msra.mxu0 0.0
    %1215 = vmatprep.subr.mxu0 0.0
    %1216 = vmatpush1.msra.mxu0 0.0
    %1217 = vmatprep.subr.mxu0 0.0
    %1218 = vmatpush1.msra.mxu0 0.0
    %1219 = vmatprep.subr.mxu0 0.0
    %1220 = vmatpush1.msra.mxu0 0.0
    %1221 = vmatprep.subr.mxu0 0.0
    %1222 = vmatpush1.msra.mxu0 0.0
    %1223 = vmatprep.subr.mxu0 0.0
    %1224 = vmatpush1.msra.mxu0 0.0
    %1225 = vmatprep.subr.mxu0 0.0
    %1226 = vmatpush1.msra.mxu0 %v1199
    %1227 = vmatprep.subr.mxu0 0.0
    %1228 = vmatpush1.msra.mxu0 %v1191
    %1229 = vmatprep.subr.mxu0 0.0
    %1230 = vmatpush1.msra.mxu0 %v1190
    %1231 = vmatprep.subr.mxu0 0.0
    %1232 = vmatpush1.msra.mxu0 %v1189
    %1233 = vmatprep.subr.mxu0 0.0
    %1234 = vmatpush2.msra.mxu0 0.0
    %1235 = vmatprep.subr.mxu0 0.0
    %1236 = vmatpush2.msra.mxu0 0.0
    %1237 = vmatprep.subr.mxu0 0.0
    %1238 = vmatpush2.msra.mxu0 0.0
    %1239 = vmatprep.subr.mxu0 0.0
    %1240 = vmatpush2.msra.mxu0 0.0
    %1241 = vmatprep.subr.mxu0 0.0
    %1242 = vmatpush2.msra.mxu0 0.0
    %1243 = vmatprep.subr.mxu0 0.0
    %1244 = vmatpush2.msra.mxu0 0.0
    %1245 = vmatprep.subr.mxu0 0.0
    %1246 = vmatpush2.msra.mxu0 0.0
    %1247 = vmatprep.subr.mxu0 0.0
    %1248 = vmatpush2.msra.mxu0 0.0
    %1249 = vmatprep.subr.mxu0 0.0
    %1250 = vmatpush2.msra.mxu0 0.0
    %1251 = vmatprep.subr.mxu0 0.0
    %1252 = vmatpush2.msra.mxu0 0.0
    %1253 = vmatprep.subr.mxu0 0.0
    %1254 = vmatpush2.msra.mxu0 0.0
    %1255 = vmatprep.subr.mxu0 0.0
    %1256 = vmatpush2.msra.mxu0 0.0
    %1257 = vmatprep.subr.mxu0 0.0
    %1258 = vmatpush2.msra.mxu0 0.0
    %1259 = vmatprep.subr.mxu0 0.0
    %1260 = vmatpush2.msra.mxu0 0.0
    %1261 = vmatprep.subr.mxu0 0.0
    %1262 = vmatpush2.msra.mxu0 0.0
    %1263 = vmatprep.subr.mxu0 0.0
    %1264 = vmatpush2.msra.mxu0 0.0
    %1265 = vmatprep.mubr.f32.mxu0 0.0
    %1266 = vmatmul.mubr.f32.gmra.mxu0 %v1195
    %v1267 = vpop.f32.mrf.mxu0
    %v1268 = vadd.f32 0.0, %v1267
    %v1269 = vpop.f32.mrf.mxu0
    %1270 = vdwg.mxu0
    %1271 = vmatprep.subr.mxu0 0.0
    %1272 = vmatpush1.msra.mxu0 0.0
    %1273 = vmatprep.subr.mxu0 0.0
    %1274 = vmatpush1.msra.mxu0 0.0
    %1275 = vmatprep.subr.mxu0 0.0
    %1276 = vmatpush1.msra.mxu0 0.0
    %1277 = vmatprep.subr.mxu0 0.0
    %1278 = vmatpush1.msra.mxu0 0.0
    %1279 = vmatprep.subr.mxu0 0.0
    %1280 = vmatpush1.msra.mxu0 0.0
    %1281 = vmatprep.subr.mxu0 0.0
    %1282 = vmatpush1.msra.mxu0 0.0
    %1283 = vmatprep.subr.mxu0 0.0
    %1284 = vmatpush1.msra.mxu0 0.0
    %1285 = vmatprep.subr.mxu0 0.0
    %1286 = vmatpush1.msra.mxu0 0.0
    %1287 = vmatprep.subr.mxu0 0.0
    %1288 = vmatpush1.msra.mxu0 0.0
    %1289 = vmatprep.subr.mxu0 0.0
    %1290 = vmatpush1.msra.mxu0 0.0
    %1291 = vmatprep.subr.mxu0 0.0
    %1292 = vmatpush1.msra.mxu0 0.0
    %1293 = vmatprep.subr.mxu0 0.0
    %1294 = vmatpush1.msra.mxu0 0.0
    %1295 = vmatprep.subr.mxu0 0.0
    %1296 = vmatpush1.msra.mxu0 0.0
    %1297 = vmatprep.subr.mxu0 0.0
    %1298 = vmatpush1.msra.mxu0 0.0
    %1299 = vmatprep.subr.mxu0 0.0
    %1300 = vmatpush1.msra.mxu0 0.0
    %1301 = vmatprep.subr.mxu0 0.0
    %1302 = vmatpush1.msra.mxu0 %v1268
    %1303 = vmatprep.subr.mxu0 0.0
    %1304 = vmatpush2.msra.mxu0 0.0
    %1305 = vmatprep.subr.mxu0 0.0
    %1306 = vmatpush2.msra.mxu0 0.0
    %1307 = vmatprep.subr.mxu0 0.0
    %1308 = vmatpush2.msra.mxu0 0.0
    %1309 = vmatprep.subr.mxu0 0.0
    %1310 = vmatpush2.msra.mxu0 0.0
    %1311 = vmatprep.subr.mxu0 0.0
    %1312 = vmatpush2.msra.mxu0 0.0
    %1313 = vmatprep.subr.mxu0 0.0
    %1314 = vmatpush2.msra.mxu0 0.0
    %1315 = vmatprep.subr.mxu0 0.0
    %1316 = vmatpush2.msra.mxu0 0.0
    %1317 = vmatprep.subr.mxu0 0.0
    %1318 = vmatpush2.msra.mxu0 0.0
    %1319 = vmatprep.subr.mxu0 0.0
    %1320 = vmatpush2.msra.mxu0 0.0
    %1321 = vmatprep.subr.mxu0 0.0
    %1322 = vmatpush2.msra.mxu0 0.0
    %1323 = vmatprep.subr.mxu0 0.0
    %1324 = vmatpush2.msra.mxu0 0.0
    %1325 = vmatprep.subr.mxu0 0.0
    %1326 = vmatpush2.msra.mxu0 0.0
    %1327 = vmatprep.subr.mxu0 0.0
    %1328 = vmatpush2.msra.mxu0 0.0
    %1329 = vmatprep.subr.mxu0 0.0
    %1330 = vmatpush2.msra.mxu0 0.0
    %1331 = vmatprep.subr.mxu0 0.0
    %1332 = vmatpush2.msra.mxu0 0.0
    %1333 = vmatprep.subr.mxu0 0.0
    %1334 = vmatpush2.msra.mxu0 0.0
    %1335 = vmatprep.mubr.f32.mxu0 0.0
    %1336 = vmatmul.mubr.f32.gmra.mxu0 %v350
    %v1337 = vpop.f32.mrf.mxu0
    %v1338 = vadd.f32 0.0, %v1337
    %v1339 = vpop.f32.mrf.mxu0
    %1340 = vdwg.mxu0
    %v1341 = vmul.f32 %v1338, 0.125
    %v1342 = vlaneseq
    %v1343 = vshrl.u32 %v1342, 7
    %v1344 = vsub.s32 0, %v1343
    %v1345 = vrot.slane %v1341, %v1344
    %v1346 = vsub.f32 %v1268, %v1345
    %v1347 = vmul.f32 %v1346, %v1346
    %1348 = vmatprep.subr.mxu0 0.0
    %1349 = vmatpush1.msra.mxu0 0.0
    %1350 = vmatprep.subr.mxu0 0.0
    %1351 = vmatpush1.msra.mxu0 0.0
    %1352 = vmatprep.subr.mxu0 0.0
    %1353 = vmatpush1.msra.mxu0 0.0
    %1354 = vmatprep.subr.mxu0 0.0
    %1355 = vmatpush1.msra.mxu0 0.0
    %1356 = vmatprep.subr.mxu0 0.0
    %1357 = vmatpush1.msra.mxu0 0.0
    %1358 = vmatprep.subr.mxu0 0.0
    %1359 = vmatpush1.msra.mxu0 0.0
    %1360 = vmatprep.subr.mxu0 0.0
    %1361 = vmatpush1.msra.mxu0 0.0
    %1362 = vmatprep.subr.mxu0 0.0
    %1363 = vmatpush1.msra.mxu0 0.0
    %1364 = vmatprep.subr.mxu0 0.0
    %1365 = vmatpush1.msra.mxu0 0.0
    %1366 = vmatprep.subr.mxu0 0.0
    %1367 = vmatpush1.msra.mxu0 0.0
    %1368 = vmatprep.subr.mxu0 0.0
    %1369 = vmatpush1.msra.mxu0 0.0
    %1370 = vmatprep.subr.mxu0 0.0
    %1371 = vmatpush1.msra.mxu0 0.0
    %1372 = vmatprep.subr.mxu0 0.0
    %1373 = vmatpush1.msra.mxu0 0.0
    %1374 = vmatprep.subr.mxu0 0.0
    %1375 = vmatpush1.msra.mxu0 0.0
    %1376 = vmatprep.subr.mxu0 0.0
    %1377 = vmatpush1.msra.mxu0 0.0
    %1378 = vmatprep.subr.mxu0 0.0
    %1379 = vmatpush1.msra.mxu0 %v1347
    %1380 = vmatprep.subr.mxu0 0.0
    %1381 = vmatpush2.msra.mxu0 0.0
    %1382 = vmatprep.subr.mxu0 0.0
    %1383 = vmatpush2.msra.mxu0 0.0
    %1384 = vmatprep.subr.mxu0 0.0
    %1385 = vmatpush2.msra.mxu0 0.0
    %1386 = vmatprep.subr.mxu0 0.0
    %1387 = vmatpush2.msra.mxu0 0.0
    %1388 = vmatprep.subr.mxu0 0.0
    %1389 = vmatpush2.msra.mxu0 0.0
    %1390 = vmatprep.subr.mxu0 0.0
    %1391 = vmatpush2.msra.mxu0 0.0
    %1392 = vmatprep.subr.mxu0 0.0
    %1393 = vmatpush2.msra.mxu0 0.0
    %1394 = vmatprep.subr.mxu0 0.0
    %1395 = vmatpush2.msra.mxu0 0.0
    %1396 = vmatprep.subr.mxu0 0.0
    %1397 = vmatpush2.msra.mxu0 0.0
    %1398 = vmatprep.subr.mxu0 0.0
    %1399 = vmatpush2.msra.mxu0 0.0
    %1400 = vmatprep.subr.mxu0 0.0
    %1401 = vmatpush2.msra.mxu0 0.0
    %1402 = vmatprep.subr.mxu0 0.0
    %1403 = vmatpush2.msra.mxu0 0.0
    %1404 = vmatprep.subr.mxu0 0.0
    %1405 = vmatpush2.msra.mxu0 0.0
    %1406 = vmatprep.subr.mxu0 0.0
    %1407 = vmatpush2.msra.mxu0 0.0
    %1408 = vmatprep.subr.mxu0 0.0
    %1409 = vmatpush2.msra.mxu0 0.0
    %1410 = vmatprep.subr.mxu0 0.0
    %1411 = vmatpush2.msra.mxu0 0.0
    %1412 = vmatprep.mubr.f32.mxu0 0.0
    %1413 = vmatmul.mubr.f32.gmra.mxu0 %v350
    %v1414 = vpop.f32.mrf.mxu0
    %v1415 = vadd.f32 0.0, %v1414
    %v1416 = vpop.f32.mrf.mxu0
    %1417 = vdwg.mxu0
    %v1418 = vmul.f32 %v1415, 0.125
    %v1419 = vadd.f32 %v1418, 1e-06
    %v1420 = vrsqrt.pop %v1419
    %v1421 = vlaneseq
    %v1422 = vshrl.u32 %v1421, 7
    %v1423 = vsub.s32 0, %v1422
    %v1424 = vrot.slane %v1420, %v1423
    %v1425 = vmul.f32 %v1346, %v1424
    %v1426 = vld [vmem:[%s35] sm:$0x1]
    %v1428 = vlaneseq
    %v1429 = vshrl.u32 %v1428, 7
    %v1430 = vsub.s32 0, %v1429
    %v1431 = vrot.slane %v1426, %v1430
    %v1433 = vmul.f32 %v1425, %v1431
    %v1434 = vld [vmem:[%s37] sm:$0x1]
    %v1436 = vlaneseq
    %v1437 = vshrl.u32 %v1436, 7
    %v1438 = vsub.s32 0, %v1437
    %v1439 = vrot.slane %v1434, %v1438
    %v1441 = vadd.f32 %v1433, %v1439
    %v1442 = vmax.f32 %v1441, 0.0
    %v1443 = vld [vmem:[%s39] sm:$0xff]
    %v1444 = vld [vmem:[%s39 + $0x8] sm:$0xff]
    %v1445 = vld [vmem:[%s39 + $0x10] sm:$0xff]
    %v1446 = vld [vmem:[%s39 + $0x18] sm:$0x3f]
    %v1448 = vsel %vm1193, %v1442, 0
    %v1451 = vsel %vm1197, %v1446, 0
    %1453 = vmatprep.subr.mxu0 0.0
    %1454 = vmatpush1.msra.mxu0 0.0
    %1455 = vmatprep.subr.mxu0 0.0
    %1456 = vmatpush1.msra.mxu0 0.0
    %1457 = vmatprep.subr.mxu0 0.0
    %1458 = vmatpush1.msra.mxu0 0.0
    %1459 = vmatprep.subr.mxu0 0.0
    %1460 = vmatpush1.msra.mxu0 0.0
    %1461 = vmatprep.subr.mxu0 0.0
    %1462 = vmatpush1.msra.mxu0 0.0
    %1463 = vmatprep.subr.mxu0 0.0
    %1464 = vmatpush1.msra.mxu0 0.0
    %1465 = vmatprep.subr.mxu0 0.0
    %1466 = vmatpush1.msra.mxu0 0.0
    %1467 = vmatprep.subr.mxu0 0.0
    %1468 = vmatpush1.msra.mxu0 0.0
    %1469 = vmatprep.subr.mxu0 0.0
    %1470 = vmatpush1.msra.mxu0 0.0
    %1471 = vmatprep.subr.mxu0 0.0
    %1472 = vmatpush1.msra.mxu0 0.0
    %1473 = vmatprep.subr.mxu0 0.0
    %1474 = vmatpush1.msra.mxu0 0.0
    %1475 = vmatprep.subr.mxu0 0.0
    %1476 = vmatpush1.msra.mxu0 0.0
    %1477 = vmatprep.subr.mxu0 0.0
    %1478 = vmatpush1.msra.mxu0 %v1451
    %1479 = vmatprep.subr.mxu0 0.0
    %1480 = vmatpush1.msra.mxu0 %v1445
    %1481 = vmatprep.subr.mxu0 0.0
    %1482 = vmatpush1.msra.mxu0 %v1444
    %1483 = vmatprep.subr.mxu0 0.0
    %1484 = vmatpush1.msra.mxu0 %v1443
    %1485 = vmatprep.subr.mxu0 0.0
    %1486 = vmatpush2.msra.mxu0 0.0
    %1487 = vmatprep.subr.mxu0 0.0
    %1488 = vmatpush2.msra.mxu0 0.0
    %1489 = vmatprep.subr.mxu0 0.0
    %1490 = vmatpush2.msra.mxu0 0.0
    %1491 = vmatprep.subr.mxu0 0.0
    %1492 = vmatpush2.msra.mxu0 0.0
    %1493 = vmatprep.subr.mxu0 0.0
    %1494 = vmatpush2.msra.mxu0 0.0
    %1495 = vmatprep.subr.mxu0 0.0
    %1496 = vmatpush2.msra.mxu0 0.0
    %1497 = vmatprep.subr.mxu0 0.0
    %1498 = vmatpush2.msra.mxu0 0.0
    %1499 = vmatprep.subr.mxu0 0.0
    %1500 = vmatpush2.msra.mxu0 0.0
    %1501 = vmatprep.subr.mxu0 0.0
    %1502 = vmatpush2.msra.mxu0 0.0
    %1503 = vmatprep.subr.mxu0 0.0
    %1504 = vmatpush2.msra.mxu0 0.0
    %1505 = vmatprep.subr.mxu0 0.0
    %1506 = vmatpush2.msra.mxu0 0.0
    %1507 = vmatprep.subr.mxu0 0.0
    %1508 = vmatpush2.msra.mxu0 0.0
    %1509 = vmatprep.subr.mxu0 0.0
    %1510 = vmatpush2.msra.mxu0 0.0
    %1511 = vmatprep.subr.mxu0 0.0
    %1512 = vmatpush2.msra.mxu0 0.0
    %1513 = vmatprep.subr.mxu0 0.0
    %1514 = vmatpush2.msra.mxu0 0.0
    %1515 = vmatprep.subr.mxu0 0.0
    %1516 = vmatpush2.msra.mxu0 0.0
    %1517 = vmatprep.mubr.f32.mxu0 0.0
    %1518 = vmatmul.mubr.f32.gmra.mxu0 %v1448
    %v1519 = vpop.f32.mrf.mxu0
    %v1520 = vadd.f32 0.0, %v1519
    %v1521 = vpop.f32.mrf.mxu0
    %1522 = vdwg.mxu0
    %1523 = vmatprep.subr.mxu0 0.0
    %1524 = vmatpush1.msra.mxu0 0.0
    %1525 = vmatprep.subr.mxu0 0.0
    %1526 = vmatpush1.msra.mxu0 0.0
    %1527 = vmatprep.subr.mxu0 0.0
    %1528 = vmatpush1.msra.mxu0 0.0
    %1529 = vmatprep.subr.mxu0 0.0
    %1530 = vmatpush1.msra.mxu0 0.0
    %1531 = vmatprep.subr.mxu0 0.0
    %1532 = vmatpush1.msra.mxu0 0.0
    %1533 = vmatprep.subr.mxu0 0.0
    %1534 = vmatpush1.msra.mxu0 0.0
    %1535 = vmatprep.subr.mxu0 0.0
    %1536 = vmatpush1.msra.mxu0 0.0
    %1537 = vmatprep.subr.mxu0 0.0
    %1538 = vmatpush1.msra.mxu0 0.0
    %1539 = vmatprep.subr.mxu0 0.0
    %1540 = vmatpush1.msra.mxu0 0.0
    %1541 = vmatprep.subr.mxu0 0.0
    %1542 = vmatpush1.msra.mxu0 0.0
    %1543 = vmatprep.subr.mxu0 0.0
    %1544 = vmatpush1.msra.mxu0 0.0
    %1545 = vmatprep.subr.mxu0 0.0
    %1546 = vmatpush1.msra.mxu0 0.0
    %1547 = vmatprep.subr.mxu0 0.0
    %1548 = vmatpush1.msra.mxu0 0.0
    %1549 = vmatprep.subr.mxu0 0.0
    %1550 = vmatpush1.msra.mxu0 0.0
    %1551 = vmatprep.subr.mxu0 0.0
    %1552 = vmatpush1.msra.mxu0 0.0
    %1553 = vmatprep.subr.mxu0 0.0
    %1554 = vmatpush1.msra.mxu0 %v1520
    %1555 = vmatprep.subr.mxu0 0.0
    %1556 = vmatpush2.msra.mxu0 0.0
    %1557 = vmatprep.subr.mxu0 0.0
    %1558 = vmatpush2.msra.mxu0 0.0
    %1559 = vmatprep.subr.mxu0 0.0
    %1560 = vmatpush2.msra.mxu0 0.0
    %1561 = vmatprep.subr.mxu0 0.0
    %1562 = vmatpush2.msra.mxu0 0.0
    %1563 = vmatprep.subr.mxu0 0.0
    %1564 = vmatpush2.msra.mxu0 0.0
    %1565 = vmatprep.subr.mxu0 0.0
    %1566 = vmatpush2.msra.mxu0 0.0
    %1567 = vmatprep.subr.mxu0 0.0
    %1568 = vmatpush2.msra.mxu0 0.0
    %1569 = vmatprep.subr.mxu0 0.0
    %1570 = vmatpush2.msra.mxu0 0.0
    %1571 = vmatprep.subr.mxu0 0.0
    %1572 = vmatpush2.msra.mxu0 0.0
    %1573 = vmatprep.subr.mxu0 0.0
    %1574 = vmatpush2.msra.mxu0 0.0
    %1575 = vmatprep.subr.mxu0 0.0
    %1576 = vmatpush2.msra.mxu0 0.0
    %1577 = vmatprep.subr.mxu0 0.0
    %1578 = vmatpush2.msra.mxu0 0.0
    %1579 = vmatprep.subr.mxu0 0.0
    %1580 = vmatpush2.msra.mxu0 0.0
    %1581 = vmatprep.subr.mxu0 0.0
    %1582 = vmatpush2.msra.mxu0 0.0
    %1583 = vmatprep.subr.mxu0 0.0
    %1584 = vmatpush2.msra.mxu0 0.0
    %1585 = vmatprep.subr.mxu0 0.0
    %1586 = vmatpush2.msra.mxu0 0.0
    %1587 = vmatprep.mubr.f32.mxu0 0.0
    %1588 = vmatmul.mubr.f32.gmra.mxu0 %v350
    %v1589 = vpop.f32.mrf.mxu0
    %v1590 = vadd.f32 0.0, %v1589
    %v1591 = vpop.f32.mrf.mxu0
    %1592 = vdwg.mxu0
    %v1593 = vmul.f32 %v1590, 0.125
    %v1594 = vlaneseq
    %v1595 = vshrl.u32 %v1594, 7
    %v1596 = vsub.s32 0, %v1595
    %v1597 = vrot.slane %v1593, %v1596
    %v1598 = vsub.f32 %v1520, %v1597
    %v1599 = vmul.f32 %v1598, %v1598
    %1600 = vmatprep.subr.mxu0 0.0
    %1601 = vmatpush1.msra.mxu0 0.0
    %1602 = vmatprep.subr.mxu0 0.0
    %1603 = vmatpush1.msra.mxu0 0.0
    %1604 = vmatprep.subr.mxu0 0.0
    %1605 = vmatpush1.msra.mxu0 0.0
    %1606 = vmatprep.subr.mxu0 0.0
    %1607 = vmatpush1.msra.mxu0 0.0
    %1608 = vmatprep.subr.mxu0 0.0
    %1609 = vmatpush1.msra.mxu0 0.0
    %1610 = vmatprep.subr.mxu0 0.0
    %1611 = vmatpush1.msra.mxu0 0.0
    %1612 = vmatprep.subr.mxu0 0.0
    %1613 = vmatpush1.msra.mxu0 0.0
    %1614 = vmatprep.subr.mxu0 0.0
    %1615 = vmatpush1.msra.mxu0 0.0
    %1616 = vmatprep.subr.mxu0 0.0
    %1617 = vmatpush1.msra.mxu0 0.0
    %1618 = vmatprep.subr.mxu0 0.0
    %1619 = vmatpush1.msra.mxu0 0.0
    %1620 = vmatprep.subr.mxu0 0.0
    %1621 = vmatpush1.msra.mxu0 0.0
    %1622 = vmatprep.subr.mxu0 0.0
    %1623 = vmatpush1.msra.mxu0 0.0
    %1624 = vmatprep.subr.mxu0 0.0
    %1625 = vmatpush1.msra.mxu0 0.0
    %1626 = vmatprep.subr.mxu0 0.0
    %1627 = vmatpush1.msra.mxu0 0.0
    %1628 = vmatprep.subr.mxu0 0.0
    %1629 = vmatpush1.msra.mxu0 0.0
    %1630 = vmatprep.subr.mxu0 0.0
    %1631 = vmatpush1.msra.mxu0 %v1599
    %1632 = vmatprep.subr.mxu0 0.0
    %1633 = vmatpush2.msra.mxu0 0.0
    %1634 = vmatprep.subr.mxu0 0.0
    %1635 = vmatpush2.msra.mxu0 0.0
    %1636 = vmatprep.subr.mxu0 0.0
    %1637 = vmatpush2.msra.mxu0 0.0
    %1638 = vmatprep.subr.mxu0 0.0
    %1639 = vmatpush2.msra.mxu0 0.0
    %1640 = vmatprep.subr.mxu0 0.0
    %1641 = vmatpush2.msra.mxu0 0.0
    %1642 = vmatprep.subr.mxu0 0.0
    %1643 = vmatpush2.msra.mxu0 0.0
    %1644 = vmatprep.subr.mxu0 0.0
    %1645 = vmatpush2.msra.mxu0 0.0
    %1646 = vmatprep.subr.mxu0 0.0
    %1647 = vmatpush2.msra.mxu0 0.0
    %1648 = vmatprep.subr.mxu0 0.0
    %1649 = vmatpush2.msra.mxu0 0.0
    %1650 = vmatprep.subr.mxu0 0.0
    %1651 = vmatpush2.msra.mxu0 0.0
    %1652 = vmatprep.subr.mxu0 0.0
    %1653 = vmatpush2.msra.mxu0 0.0
    %1654 = vmatprep.subr.mxu0 0.0
    %1655 = vmatpush2.msra.mxu0 0.0
    %1656 = vmatprep.subr.mxu0 0.0
    %1657 = vmatpush2.msra.mxu0 0.0
    %1658 = vmatprep.subr.mxu0 0.0
    %1659 = vmatpush2.msra.mxu0 0.0
    %1660 = vmatprep.subr.mxu0 0.0
    %1661 = vmatpush2.msra.mxu0 0.0
    %1662 = vmatprep.subr.mxu0 0.0
    %1663 = vmatpush2.msra.mxu0 0.0
    %1664 = vmatprep.mubr.f32.mxu0 0.0
    %1665 = vmatmul.mubr.f32.gmra.mxu0 %v350
    %v1666 = vpop.f32.mrf.mxu0
    %v1667 = vadd.f32 0.0, %v1666
    %v1668 = vpop.f32.mrf.mxu0
    %1669 = vdwg.mxu0
    %v1670 = vmul.f32 %v1667, 0.125
    %v1671 = vadd.f32 %v1670, 1e-06
    %v1672 = vrsqrt.pop %v1671
    %v1673 = vlaneseq
    %v1674 = vshrl.u32 %v1673, 7
    %v1675 = vsub.s32 0, %v1674
    %v1676 = vrot.slane %v1672, %v1675
    %v1677 = vmul.f32 %v1598, %v1676
    %v1678 = vld [vmem:[%s41] sm:$0x1]
    %v1680 = vlaneseq
    %v1681 = vshrl.u32 %v1680, 7
    %v1682 = vsub.s32 0, %v1681
    %v1683 = vrot.slane %v1678, %v1682
    %v1685 = vmul.f32 %v1677, %v1683
    %v1686 = vld [vmem:[%s43] sm:$0x1]
    %v1688 = vlaneseq
    %v1689 = vshrl.u32 %v1688, 7
    %v1690 = vsub.s32 0, %v1689
    %v1691 = vrot.slane %v1686, %v1690
    %v1693 = vadd.f32 %v1685, %v1691
    %v1694 = vmax.f32 %v1693, 0.0
    %v1695 = vld [vmem:[%s45] sm:$0xff]
    %v1696 = vld [vmem:[%s45 + $0x8] sm:$0xff]
    %v1697 = vld [vmem:[%s45 + $0x10] sm:$0xff]
    %v1698 = vld [vmem:[%s45 + $0x18] sm:$0x3f]
    %v1699 = vld [vmem:[%s47] sm:$0x1]
    %v1701 = vlaneseq
    %v1702 = vshrl.u32 %v1701, 7
    %v1703 = vsub.s32 0, %v1702
    %v1704 = vrot.slane %v1699, %v1703
    %v1707 = vsel %vm1193, %v1694, 0
    %v1710 = vsel %vm1197, %v1698, 0
    %1712 = vmatprep.subr.mxu0 0.0
    %1713 = vmatpush1.msra.mxu0 0.0
    %1714 = vmatprep.subr.mxu0 0.0
    %1715 = vmatpush1.msra.mxu0 0.0
    %1716 = vmatprep.subr.mxu0 0.0
    %1717 = vmatpush1.msra.mxu0 0.0
    %1718 = vmatprep.subr.mxu0 0.0
    %1719 = vmatpush1.msra.mxu0 0.0
    %1720 = vmatprep.subr.mxu0 0.0
    %1721 = vmatpush1.msra.mxu0 0.0
    %1722 = vmatprep.subr.mxu0 0.0
    %1723 = vmatpush1.msra.mxu0 0.0
    %1724 = vmatprep.subr.mxu0 0.0
    %1725 = vmatpush1.msra.mxu0 0.0
    %1726 = vmatprep.subr.mxu0 0.0
    %1727 = vmatpush1.msra.mxu0 0.0
    %1728 = vmatprep.subr.mxu0 0.0
    %1729 = vmatpush1.msra.mxu0 0.0
    %1730 = vmatprep.subr.mxu0 0.0
    %1731 = vmatpush1.msra.mxu0 0.0
    %1732 = vmatprep.subr.mxu0 0.0
    %1733 = vmatpush1.msra.mxu0 0.0
    %1734 = vmatprep.subr.mxu0 0.0
    %1735 = vmatpush1.msra.mxu0 0.0
    %1736 = vmatprep.subr.mxu0 0.0
    %1737 = vmatpush1.msra.mxu0 %v1710
    %1738 = vmatprep.subr.mxu0 0.0
    %1739 = vmatpush1.msra.mxu0 %v1697
    %1740 = vmatprep.subr.mxu0 0.0
    %1741 = vmatpush1.msra.mxu0 %v1696
    %1742 = vmatprep.subr.mxu0 0.0
    %1743 = vmatpush1.msra.mxu0 %v1695
    %1744 = vmatprep.subr.mxu0 0.0
    %1745 = vmatpush2.msra.mxu0 0.0
    %1746 = vmatprep.subr.mxu0 0.0
    %1747 = vmatpush2.msra.mxu0 0.0
    %1748 = vmatprep.subr.mxu0 0.0
    %1749 = vmatpush2.msra.mxu0 0.0
    %1750 = vmatprep.subr.mxu0 0.0
    %1751 = vmatpush2.msra.mxu0 0.0
    %1752 = vmatprep.subr.mxu0 0.0
    %1753 = vmatpush2.msra.mxu0 0.0
    %1754 = vmatprep.subr.mxu0 0.0
    %1755 = vmatpush2.msra.mxu0 0.0
    %1756 = vmatprep.subr.mxu0 0.0
    %1757 = vmatpush2.msra.mxu0 0.0
    %1758 = vmatprep.subr.mxu0 0.0
    %1759 = vmatpush2.msra.mxu0 0.0
    %1760 = vmatprep.subr.mxu0 0.0
    %1761 = vmatpush2.msra.mxu0 0.0
    %1762 = vmatprep.subr.mxu0 0.0
    %1763 = vmatpush2.msra.mxu0 0.0
    %1764 = vmatprep.subr.mxu0 0.0
    %1765 = vmatpush2.msra.mxu0 0.0
    %1766 = vmatprep.subr.mxu0 0.0
    %1767 = vmatpush2.msra.mxu0 0.0
    %1768 = vmatprep.subr.mxu0 0.0
    %1769 = vmatpush2.msra.mxu0 0.0
    %1770 = vmatprep.subr.mxu0 0.0
    %1771 = vmatpush2.msra.mxu0 0.0
    %1772 = vmatprep.subr.mxu0 0.0
    %1773 = vmatpush2.msra.mxu0 0.0
    %1774 = vmatprep.subr.mxu0 0.0
    %1775 = vmatpush2.msra.mxu0 0.0
    %1776 = vmatprep.mubr.f32.mxu0 0.0
    %1777 = vmatmul.mubr.f32.gmra.mxu0 %v1707
    %v1778 = vpop.f32.mrf.mxu0
    %v1779 = vadd.f32 %v1704, %v1778
    %v1780 = vpop.f32.mrf.mxu0
    %1781 = vdwg.mxu0
    %1782 = vmatprep.subr.mxu0 0.0
    %1783 = vmatpush1.msra.mxu0 0.0
    %1784 = vmatprep.subr.mxu0 0.0
    %1785 = vmatpush1.msra.mxu0 0.0
    %1786 = vmatprep.subr.mxu0 0.0
    %1787 = vmatpush1.msra.mxu0 0.0
    %1788 = vmatprep.subr.mxu0 0.0
    %1789 = vmatpush1.msra.mxu0 0.0
    %1790 = vmatprep.subr.mxu0 0.0
    %1791 = vmatpush1.msra.mxu0 0.0
    %1792 = vmatprep.subr.mxu0 0.0
    %1793 = vmatpush1.msra.mxu0 0.0
    %1794 = vmatprep.subr.mxu0 0.0
    %1795 = vmatpush1.msra.mxu0 0.0
    %1796 = vmatprep.subr.mxu0 0.0
    %1797 = vmatpush1.msra.mxu0 0.0
    %1798 = vmatprep.subr.mxu0 0.0
    %1799 = vmatpush1.msra.mxu0 0.0
    %1800 = vmatprep.subr.mxu0 0.0
    %1801 = vmatpush1.msra.mxu0 0.0
    %1802 = vmatprep.subr.mxu0 0.0
    %1803 = vmatpush1.msra.mxu0 0.0
    %1804 = vmatprep.subr.mxu0 0.0
    %1805 = vmatpush1.msra.mxu0 0.0
    %1806 = vmatprep.subr.mxu0 0.0
    %1807 = vmatpush1.msra.mxu0 0.0
    %1808 = vmatprep.subr.mxu0 0.0
    %1809 = vmatpush1.msra.mxu0 0.0
    %1810 = vmatprep.subr.mxu0 0.0
    %1811 = vmatpush1.msra.mxu0 0.0
    %1812 = vmatprep.subr.mxu0 0.0
    %1813 = vmatpush1.msra.mxu0 %v1779
    %1814 = vmatprep.subr.mxu0 0.0
    %1815 = vmatpush2.msra.mxu0 0.0
    %1816 = vmatprep.subr.mxu0 0.0
    %1817 = vmatpush2.msra.mxu0 0.0
    %1818 = vmatprep.subr.mxu0 0.0
    %1819 = vmatpush2.msra.mxu0 0.0
    %1820 = vmatprep.subr.mxu0 0.0
    %1821 = vmatpush2.msra.mxu0 0.0
    %1822 = vmatprep.subr.mxu0 0.0
    %1823 = vmatpush2.msra.mxu0 0.0
    %1824 = vmatprep.subr.mxu0 0.0
    %1825 = vmatpush2.msra.mxu0 0.0
    %1826 = vmatprep.subr.mxu0 0.0
    %1827 = vmatpush2.msra.mxu0 0.0
    %1828 = vmatprep.subr.mxu0 0.0
    %1829 = vmatpush2.msra.mxu0 0.0
    %1830 = vmatprep.subr.mxu0 0.0
    %1831 = vmatpush2.msra.mxu0 0.0
    %1832 = vmatprep.subr.mxu0 0.0
    %1833 = vmatpush2.msra.mxu0 0.0
    %1834 = vmatprep.subr.mxu0 0.0
    %1835 = vmatpush2.msra.mxu0 0.0
    %1836 = vmatprep.subr.mxu0 0.0
    %1837 = vmatpush2.msra.mxu0 0.0
    %1838 = vmatprep.subr.mxu0 0.0
    %1839 = vmatpush2.msra.mxu0 0.0
    %1840 = vmatprep.subr.mxu0 0.0
    %1841 = vmatpush2.msra.mxu0 0.0
    %1842 = vmatprep.subr.mxu0 0.0
    %1843 = vmatpush2.msra.mxu0 0.0
    %1844 = vmatprep.subr.mxu0 0.0
    %1845 = vmatpush2.msra.mxu0 0.0
    %1846 = vmatprep.mubr.f32.mxu0 0.0
    %1847 = vmatmul.mubr.f32.gmra.mxu0 %v350
    %v1848 = vpop.f32.mrf.mxu0
    %v1849 = vadd.f32 0.0, %v1848
    %v1850 = vpop.f32.mrf.mxu0
    %1851 = vdwg.mxu0
    %v1852 = vmul.f32 %v1849, 0.125
    %v1853 = vlaneseq
    %v1854 = vshrl.u32 %v1853, 7
    %v1855 = vsub.s32 0, %v1854
    %v1856 = vrot.slane %v1852, %v1855
    %v1857 = vsub.f32 %v1779, %v1856
    %v1858 = vmul.f32 %v1857, %v1857
    %1859 = vmatprep.subr.mxu0 0.0
    %1860 = vmatpush1.msra.mxu0 0.0
    %1861 = vmatprep.subr.mxu0 0.0
    %1862 = vmatpush1.msra.mxu0 0.0
    %1863 = vmatprep.subr.mxu0 0.0
    %1864 = vmatpush1.msra.mxu0 0.0
    %1865 = vmatprep.subr.mxu0 0.0
    %1866 = vmatpush1.msra.mxu0 0.0
    %1867 = vmatprep.subr.mxu0 0.0
    %1868 = vmatpush1.msra.mxu0 0.0
    %1869 = vmatprep.subr.mxu0 0.0
    %1870 = vmatpush1.msra.mxu0 0.0
    %1871 = vmatprep.subr.mxu0 0.0
    %1872 = vmatpush1.msra.mxu0 0.0
    %1873 = vmatprep.subr.mxu0 0.0
    %1874 = vmatpush1.msra.mxu0 0.0
    %1875 = vmatprep.subr.mxu0 0.0
    %1876 = vmatpush1.msra.mxu0 0.0
    %1877 = vmatprep.subr.mxu0 0.0
    %1878 = vmatpush1.msra.mxu0 0.0
    %1879 = vmatprep.subr.mxu0 0.0
    %1880 = vmatpush1.msra.mxu0 0.0
    %1881 = vmatprep.subr.mxu0 0.0
    %1882 = vmatpush1.msra.mxu0 0.0
    %1883 = vmatprep.subr.mxu0 0.0
    %1884 = vmatpush1.msra.mxu0 0.0
    %1885 = vmatprep.subr.mxu0 0.0
    %1886 = vmatpush1.msra.mxu0 0.0
    %1887 = vmatprep.subr.mxu0 0.0
    %1888 = vmatpush1.msra.mxu0 0.0
    %1889 = vmatprep.subr.mxu0 0.0
    %1890 = vmatpush1.msra.mxu0 %v1858
    %1891 = vmatprep.subr.mxu0 0.0
    %1892 = vmatpush2.msra.mxu0 0.0
    %1893 = vmatprep.subr.mxu0 0.0
    %1894 = vmatpush2.msra.mxu0 0.0
    %1895 = vmatprep.subr.mxu0 0.0
    %1896 = vmatpush2.msra.mxu0 0.0
    %1897 = vmatprep.subr.mxu0 0.0
    %1898 = vmatpush2.msra.mxu0 0.0
    %1899 = vmatprep.subr.mxu0 0.0
    %1900 = vmatpush2.msra.mxu0 0.0
    %1901 = vmatprep.subr.mxu0 0.0
    %1902 = vmatpush2.msra.mxu0 0.0
    %1903 = vmatprep.subr.mxu0 0.0
    %1904 = vmatpush2.msra.mxu0 0.0
    %1905 = vmatprep.subr.mxu0 0.0
    %1906 = vmatpush2.msra.mxu0 0.0
    %1907 = vmatprep.subr.mxu0 0.0
    %1908 = vmatpush2.msra.mxu0 0.0
    %1909 = vmatprep.subr.mxu0 0.0
    %1910 = vmatpush2.msra.mxu0 0.0
    %1911 = vmatprep.subr.mxu0 0.0
    %1912 = vmatpush2.msra.mxu0 0.0
    %1913 = vmatprep.subr.mxu0 0.0
    %1914 = vmatpush2.msra.mxu0 0.0
    %1915 = vmatprep.subr.mxu0 0.0
    %1916 = vmatpush2.msra.mxu0 0.0
    %1917 = vmatprep.subr.mxu0 0.0
    %1918 = vmatpush2.msra.mxu0 0.0
    %1919 = vmatprep.subr.mxu0 0.0
    %1920 = vmatpush2.msra.mxu0 0.0
    %1921 = vmatprep.subr.mxu0 0.0
    %1922 = vmatpush2.msra.mxu0 0.0
    %1923 = vmatprep.mubr.f32.mxu0 0.0
    %1924 = vmatmul.mubr.f32.gmra.mxu0 %v350
    %v1925 = vpop.f32.mrf.mxu0
    %v1926 = vadd.f32 0.0, %v1925
    %v1927 = vpop.f32.mrf.mxu0
    %1928 = vdwg.mxu0
    %v1929 = vmul.f32 %v1926, 0.125
    %v1930 = vadd.f32 %v1929, 1e-06
    %v1931 = vrsqrt.pop %v1930
    %v1932 = vlaneseq
    %v1933 = vshrl.u32 %v1932, 7
    %v1934 = vsub.s32 0, %v1933
    %v1935 = vrot.slane %v1931, %v1934
    %v1936 = vmul.f32 %v1857, %v1935
    %v1937 = vld [vmem:[%s49] sm:$0x1]
    %v1939 = vlaneseq
    %v1940 = vshrl.u32 %v1939, 7
    %v1941 = vsub.s32 0, %v1940
    %v1942 = vrot.slane %v1937, %v1941
    %v1944 = vmul.f32 %v1936, %v1942
    %v1945 = vld [vmem:[%s51] sm:$0x1]
    %v1947 = vlaneseq
    %v1948 = vshrl.u32 %v1947, 7
    %v1949 = vsub.s32 0, %v1948
    %v1950 = vrot.slane %v1945, %v1949
    %v1952 = vadd.f32 %v1944, %v1950
    %1953 = vmatprep.subr.mxu0 0.0
    %1954 = vmatpush1.msra.mxu0 0.0
    %1955 = vmatprep.subr.mxu0 0.0
    %1956 = vmatpush1.msra.mxu0 0.0
    %1957 = vmatprep.subr.mxu0 0.0
    %1958 = vmatpush1.msra.mxu0 0.0
    %1959 = vmatprep.subr.mxu0 0.0
    %1960 = vmatpush1.msra.mxu0 0.0
    %1961 = vmatprep.subr.mxu0 0.0
    %1962 = vmatpush1.msra.mxu0 0.0
    %1963 = vmatprep.subr.mxu0 0.0
    %1964 = vmatpush1.msra.mxu0 0.0
    %1965 = vmatprep.subr.mxu0 0.0
    %1966 = vmatpush1.msra.mxu0 0.0
    %1967 = vmatprep.subr.mxu0 0.0
    %1968 = vmatpush1.msra.mxu0 0.0
    %1969 = vmatprep.subr.mxu0 0.0
    %1970 = vmatpush1.msra.mxu0 0.0
    %1971 = vmatprep.subr.mxu0 0.0
    %1972 = vmatpush1.msra.mxu0 0.0
    %1973 = vmatprep.subr.mxu0 0.0
    %1974 = vmatpush1.msra.mxu0 0.0
    %1975 = vmatprep.subr.mxu0 0.0
    %1976 = vmatpush1.msra.mxu0 0.0
    %1977 = vmatprep.subr.mxu0 0.0
    %1978 = vmatpush1.msra.mxu0 0.0
    %1979 = vmatprep.subr.mxu0 0.0
    %1980 = vmatpush1.msra.mxu0 0.0
    %1981 = vmatprep.subr.mxu0 0.0
    %1982 = vmatpush1.msra.mxu0 0.0
    %1983 = vmatprep.subr.mxu0 0.0
    %1984 = vmatpush1.msra.mxu0 %v675
    %1985 = vmatprep.subr.mxu0 0.0
    %1986 = vmatpush2.msra.mxu0 0.0
    %1987 = vmatprep.subr.mxu0 0.0
    %1988 = vmatpush2.msra.mxu0 0.0
    %1989 = vmatprep.subr.mxu0 0.0
    %1990 = vmatpush2.msra.mxu0 0.0
    %1991 = vmatprep.subr.mxu0 0.0
    %1992 = vmatpush2.msra.mxu0 0.0
    %1993 = vmatprep.subr.mxu0 0.0
    %1994 = vmatpush2.msra.mxu0 0.0
    %1995 = vmatprep.subr.mxu0 0.0
    %1996 = vmatpush2.msra.mxu0 0.0
    %1997 = vmatprep.subr.mxu0 0.0
    %1998 = vmatpush2.msra.mxu0 0.0
    %1999 = vmatprep.subr.mxu0 0.0
    %2000 = vmatpush2.msra.mxu0 0.0
    %2001 = vmatprep.subr.mxu0 0.0
    %2002 = vmatpush2.msra.mxu0 0.0
    %2003 = vmatprep.subr.mxu0 0.0
    %2004 = vmatpush2.msra.mxu0 0.0
    %2005 = vmatprep.subr.mxu0 0.0
    %2006 = vmatpush2.msra.mxu0 0.0
    %2007 = vmatprep.subr.mxu0 0.0
    %2008 = vmatpush2.msra.mxu0 0.0
    %2009 = vmatprep.subr.mxu0 0.0
    %2010 = vmatpush2.msra.mxu0 0.0
    %2011 = vmatprep.subr.mxu0 0.0
    %2012 = vmatpush2.msra.mxu0 0.0
    %2013 = vmatprep.subr.mxu0 0.0
    %2014 = vmatpush2.msra.mxu0 0.0
    %2015 = vmatprep.subr.mxu0 0.0
    %2016 = vmatpush2.msra.mxu0 0.0
    %2017 = vmatprep.mubr.f32.mxu0 0.0
    %2018 = vmatmul.mubr.f32.gmra.mxu0 %v350
    %v2019 = vpop.f32.mrf.mxu0
    %v2020 = vadd.f32 0.0, %v2019
    %v2021 = vpop.f32.mrf.mxu0
    %2022 = vdwg.mxu0
    %v2023 = vmul.f32 %v2020, 0.125
    %v2024 = vlaneseq
    %v2025 = vshrl.u32 %v2024, 7
    %v2026 = vsub.s32 0, %v2025
    %v2027 = vrot.slane %v2023, %v2026
    %v2028 = vsub.f32 %v675, %v2027
    %v2029 = vmul.f32 %v2028, %v2028
    %2030 = vmatprep.subr.mxu0 0.0
    %2031 = vmatpush1.msra.mxu0 0.0
    %2032 = vmatprep.subr.mxu0 0.0
    %2033 = vmatpush1.msra.mxu0 0.0
    %2034 = vmatprep.subr.mxu0 0.0
    %2035 = vmatpush1.msra.mxu0 0.0
    %2036 = vmatprep.subr.mxu0 0.0
    %2037 = vmatpush1.msra.mxu0 0.0
    %2038 = vmatprep.subr.mxu0 0.0
    %2039 = vmatpush1.msra.mxu0 0.0
    %2040 = vmatprep.subr.mxu0 0.0
    %2041 = vmatpush1.msra.mxu0 0.0
    %2042 = vmatprep.subr.mxu0 0.0
    %2043 = vmatpush1.msra.mxu0 0.0
    %2044 = vmatprep.subr.mxu0 0.0
    %2045 = vmatpush1.msra.mxu0 0.0
    %2046 = vmatprep.subr.mxu0 0.0
    %2047 = vmatpush1.msra.mxu0 0.0
    %2048 = vmatprep.subr.mxu0 0.0
    %2049 = vmatpush1.msra.mxu0 0.0
    %2050 = vmatprep.subr.mxu0 0.0
    %2051 = vmatpush1.msra.mxu0 0.0
    %2052 = vmatprep.subr.mxu0 0.0
    %2053 = vmatpush1.msra.mxu0 0.0
    %2054 = vmatprep.subr.mxu0 0.0
    %2055 = vmatpush1.msra.mxu0 0.0
    %2056 = vmatprep.subr.mxu0 0.0
    %2057 = vmatpush1.msra.mxu0 0.0
    %2058 = vmatprep.subr.mxu0 0.0
    %2059 = vmatpush1.msra.mxu0 0.0
    %2060 = vmatprep.subr.mxu0 0.0
    %2061 = vmatpush1.msra.mxu0 %v2029
    %2062 = vmatprep.subr.mxu0 0.0
    %2063 = vmatpush2.msra.mxu0 0.0
    %2064 = vmatprep.subr.mxu0 0.0
    %2065 = vmatpush2.msra.mxu0 0.0
    %2066 = vmatprep.subr.mxu0 0.0
    %2067 = vmatpush2.msra.mxu0 0.0
    %2068 = vmatprep.subr.mxu0 0.0
    %2069 = vmatpush2.msra.mxu0 0.0
    %2070 = vmatprep.subr.mxu0 0.0
    %2071 = vmatpush2.msra.mxu0 0.0
    %2072 = vmatprep.subr.mxu0 0.0
    %2073 = vmatpush2.msra.mxu0 0.0
    %2074 = vmatprep.subr.mxu0 0.0
    %2075 = vmatpush2.msra.mxu0 0.0
    %2076 = vmatprep.subr.mxu0 0.0
    %2077 = vmatpush2.msra.mxu0 0.0
    %2078 = vmatprep.subr.mxu0 0.0
    %2079 = vmatpush2.msra.mxu0 0.0
    %2080 = vmatprep.subr.mxu0 0.0
    %2081 = vmatpush2.msra.mxu0 0.0
    %2082 = vmatprep.subr.mxu0 0.0
    %2083 = vmatpush2.msra.mxu0 0.0
    %2084 = vmatprep.subr.mxu0 0.0
    %2085 = vmatpush2.msra.mxu0 0.0
    %2086 = vmatprep.subr.mxu0 0.0
    %2087 = vmatpush2.msra.mxu0 0.0
    %2088 = vmatprep.subr.mxu0 0.0
    %2089 = vmatpush2.msra.mxu0 0.0
    %2090 = vmatprep.subr.mxu0 0.0
    %2091 = vmatpush2.msra.mxu0 0.0
    %2092 = vmatprep.subr.mxu0 0.0
    %2093 = vmatpush2.msra.mxu0 0.0
    %2094 = vmatprep.mubr.f32.mxu0 0.0
    %2095 = vmatmul.mubr.f32.gmra.mxu0 %v350
    %v2096 = vpop.f32.mrf.mxu0
    %v2097 = vadd.f32 0.0, %v2096
    %v2098 = vpop.f32.mrf.mxu0
    %2099 = vdwg.mxu0
    %v2100 = vmul.f32 %v2097, 0.125
    %v2101 = vadd.f32 %v2100, 1e-06
    %v2102 = vrsqrt.pop %v2101
    %v2103 = vlaneseq
    %v2104 = vshrl.u32 %v2103, 7
    %v2105 = vsub.s32 0, %v2104
    %v2106 = vrot.slane %v2102, %v2105
    %v2107 = vmul.f32 %v2028, %v2106
    %v2108 = vld [vmem:[%s57] sm:$0x1]
    %v2110 = vlaneseq
    %v2111 = vshrl.u32 %v2110, 7
    %v2112 = vsub.s32 0, %v2111
    %v2113 = vrot.slane %v2108, %v2112
    %v2115 = vmul.f32 %v2107, %v2113
    %v2116 = vld [vmem:[%s59] sm:$0x1]
    %v2118 = vlaneseq
    %v2119 = vshrl.u32 %v2118, 7
    %v2120 = vsub.s32 0, %v2119
    %v2121 = vrot.slane %v2116, %v2120
    %v2123 = vadd.f32 %v2115, %v2121
    %v2124 = vmax.f32 %v2123, 0.0
    %v2125 = vld [vmem:[%s61] sm:$0xff]
    %v2126 = vld [vmem:[%s61 + $0x8] sm:$0xff]
    %v2127 = vld [vmem:[%s61 + $0x10] sm:$0xff]
    %v2128 = vld [vmem:[%s61 + $0x18] sm:$0x3f]
    %v2130 = vsel %vm1193, %v2124, 0
    %v2133 = vsel %vm1197, %v2128, 0
    %2135 = vmatprep.subr.mxu0 0.0
    %2136 = vmatpush1.msra.mxu0 0.0
    %2137 = vmatprep.subr.mxu0 0.0
    %2138 = vmatpush1.msra.mxu0 0.0
    %2139 = vmatprep.subr.mxu0 0.0
    %2140 = vmatpush1.msra.mxu0 0.0
    %2141 = vmatprep.subr.mxu0 0.0
    %2142 = vmatpush1.msra.mxu0 0.0
    %2143 = vmatprep.subr.mxu0 0.0
    %2144 = vmatpush1.msra.mxu0 0.0
    %2145 = vmatprep.subr.mxu0 0.0
    %2146 = vmatpush1.msra.mxu0 0.0
    %2147 = vmatprep.subr.mxu0 0.0
    %2148 = vmatpush1.msra.mxu0 0.0
    %2149 = vmatprep.subr.mxu0 0.0
    %2150 = vmatpush1.msra.mxu0 0.0
    %2151 = vmatprep.subr.mxu0 0.0
    %2152 = vmatpush1.msra.mxu0 0.0
    %2153 = vmatprep.subr.mxu0 0.0
    %2154 = vmatpush1.msra.mxu0 0.0
    %2155 = vmatprep.subr.mxu0 0.0
    %2156 = vmatpush1.msra.mxu0 0.0
    %2157 = vmatprep.subr.mxu0 0.0
    %2158 = vmatpush1.msra.mxu0 0.0
    %2159 = vmatprep.subr.mxu0 0.0
    %2160 = vmatpush1.msra.mxu0 %v2133
    %2161 = vmatprep.subr.mxu0 0.0
    %2162 = vmatpush1.msra.mxu0 %v2127
    %2163 = vmatprep.subr.mxu0 0.0
    %2164 = vmatpush1.msra.mxu0 %v2126
    %2165 = vmatprep.subr.mxu0 0.0
    %2166 = vmatpush1.msra.mxu0 %v2125
    %2167 = vmatprep.subr.mxu0 0.0
    %2168 = vmatpush2.msra.mxu0 0.0
    %2169 = vmatprep.subr.mxu0 0.0
    %2170 = vmatpush2.msra.mxu0 0.0
    %2171 = vmatprep.subr.mxu0 0.0
    %2172 = vmatpush2.msra.mxu0 0.0
    %2173 = vmatprep.subr.mxu0 0.0
    %2174 = vmatpush2.msra.mxu0 0.0
    %2175 = vmatprep.subr.mxu0 0.0
    %2176 = vmatpush2.msra.mxu0 0.0
    %2177 = vmatprep.subr.mxu0 0.0
    %2178 = vmatpush2.msra.mxu0 0.0
    %2179 = vmatprep.subr.mxu0 0.0
    %2180 = vmatpush2.msra.mxu0 0.0
    %2181 = vmatprep.subr.mxu0 0.0
    %2182 = vmatpush2.msra.mxu0 0.0
    %2183 = vmatprep.subr.mxu0 0.0
    %2184 = vmatpush2.msra.mxu0 0.0
    %2185 = vmatprep.subr.mxu0 0.0
    %2186 = vmatpush2.msra.mxu0 0.0
    %2187 = vmatprep.subr.mxu0 0.0
    %2188 = vmatpush2.msra.mxu0 0.0
    %2189 = vmatprep.subr.mxu0 0.0
    %2190 = vmatpush2.msra.mxu0 0.0
    %2191 = vmatprep.subr.mxu0 0.0
    %2192 = vmatpush2.msra.mxu0 0.0
    %2193 = vmatprep.subr.mxu0 0.0
    %2194 = vmatpush2.msra.mxu0 0.0
    %2195 = vmatprep.subr.mxu0 0.0
    %2196 = vmatpush2.msra.mxu0 0.0
    %2197 = vmatprep.subr.mxu0 0.0
    %2198 = vmatpush2.msra.mxu0 0.0
    %2199 = vmatprep.mubr.f32.mxu0 0.0
    %2200 = vmatmul.mubr.f32.gmra.mxu0 %v2130
    %v2201 = vpop.f32.mrf.mxu0
    %v2202 = vadd.f32 0.0, %v2201
    %v2203 = vpop.f32.mrf.mxu0
    %2204 = vdwg.mxu0
    %2205 = vmatprep.subr.mxu0 0.0
    %2206 = vmatpush1.msra.mxu0 0.0
    %2207 = vmatprep.subr.mxu0 0.0
    %2208 = vmatpush1.msra.mxu0 0.0
    %2209 = vmatprep.subr.mxu0 0.0
    %2210 = vmatpush1.msra.mxu0 0.0
    %2211 = vmatprep.subr.mxu0 0.0
    %2212 = vmatpush1.msra.mxu0 0.0
    %2213 = vmatprep.subr.mxu0 0.0
    %2214 = vmatpush1.msra.mxu0 0.0
    %2215 = vmatprep.subr.mxu0 0.0
    %2216 = vmatpush1.msra.mxu0 0.0
    %2217 = vmatprep.subr.mxu0 0.0
    %2218 = vmatpush1.msra.mxu0 0.0
    %2219 = vmatprep.subr.mxu0 0.0
    %2220 = vmatpush1.msra.mxu0 0.0
    %2221 = vmatprep.subr.mxu0 0.0
    %2222 = vmatpush1.msra.mxu0 0.0
    %2223 = vmatprep.subr.mxu0 0.0
    %2224 = vmatpush1.msra.mxu0 0.0
    %2225 = vmatprep.subr.mxu0 0.0
    %2226 = vmatpush1.msra.mxu0 0.0
    %2227 = vmatprep.subr.mxu0 0.0
    %2228 = vmatpush1.msra.mxu0 0.0
    %2229 = vmatprep.subr.mxu0 0.0
    %2230 = vmatpush1.msra.mxu0 0.0
    %2231 = vmatprep.subr.mxu0 0.0
    %2232 = vmatpush1.msra.mxu0 0.0
    %2233 = vmatprep.subr.mxu0 0.0
    %2234 = vmatpush1.msra.mxu0 0.0
    %2235 = vmatprep.subr.mxu0 0.0
    %2236 = vmatpush1.msra.mxu0 %v2202
    %2237 = vmatprep.subr.mxu0 0.0
    %2238 = vmatpush2.msra.mxu0 0.0
    %2239 = vmatprep.subr.mxu0 0.0
    %2240 = vmatpush2.msra.mxu0 0.0
    %2241 = vmatprep.subr.mxu0 0.0
    %2242 = vmatpush2.msra.mxu0 0.0
    %2243 = vmatprep.subr.mxu0 0.0
    %2244 = vmatpush2.msra.mxu0 0.0
    %2245 = vmatprep.subr.mxu0 0.0
    %2246 = vmatpush2.msra.mxu0 0.0
    %2247 = vmatprep.subr.mxu0 0.0
    %2248 = vmatpush2.msra.mxu0 0.0
    %2249 = vmatprep.subr.mxu0 0.0
    %2250 = vmatpush2.msra.mxu0 0.0
    %2251 = vmatprep.subr.mxu0 0.0
    %2252 = vmatpush2.msra.mxu0 0.0
    %2253 = vmatprep.subr.mxu0 0.0
    %2254 = vmatpush2.msra.mxu0 0.0
    %2255 = vmatprep.subr.mxu0 0.0
    %2256 = vmatpush2.msra.mxu0 0.0
    %2257 = vmatprep.subr.mxu0 0.0
    %2258 = vmatpush2.msra.mxu0 0.0
    %2259 = vmatprep.subr.mxu0 0.0
    %2260 = vmatpush2.msra.mxu0 0.0
    %2261 = vmatprep.subr.mxu0 0.0
    %2262 = vmatpush2.msra.mxu0 0.0
    %2263 = vmatprep.subr.mxu0 0.0
    %2264 = vmatpush2.msra.mxu0 0.0
    %2265 = vmatprep.subr.mxu0 0.0
    %2266 = vmatpush2.msra.mxu0 0.0
    %2267 = vmatprep.subr.mxu0 0.0
    %2268 = vmatpush2.msra.mxu0 0.0
    %2269 = vmatprep.mubr.f32.mxu0 0.0
    %2270 = vmatmul.mubr.f32.gmra.mxu0 %v350
    %v2271 = vpop.f32.mrf.mxu0
    %v2272 = vadd.f32 0.0, %v2271
    %v2273 = vpop.f32.mrf.mxu0
    %2274 = vdwg.mxu0
    %v2275 = vmul.f32 %v2272, 0.125
    %v2276 = vlaneseq
    %v2277 = vshrl.u32 %v2276, 7
    %v2278 = vsub.s32 0, %v2277
    %v2279 = vrot.slane %v2275, %v2278
    %v2280 = vsub.f32 %v2202, %v2279
    %v2281 = vmul.f32 %v2280, %v2280
    %2282 = vmatprep.subr.mxu0 0.0
    %2283 = vmatpush1.msra.mxu0 0.0
    %2284 = vmatprep.subr.mxu0 0.0
    %2285 = vmatpush1.msra.mxu0 0.0
    %2286 = vmatprep.subr.mxu0 0.0
    %2287 = vmatpush1.msra.mxu0 0.0
    %2288 = vmatprep.subr.mxu0 0.0
    %2289 = vmatpush1.msra.mxu0 0.0
    %2290 = vmatprep.subr.mxu0 0.0
    %2291 = vmatpush1.msra.mxu0 0.0
    %2292 = vmatprep.subr.mxu0 0.0
    %2293 = vmatpush1.msra.mxu0 0.0
    %2294 = vmatprep.subr.mxu0 0.0
    %2295 = vmatpush1.msra.mxu0 0.0
    %2296 = vmatprep.subr.mxu0 0.0
    %2297 = vmatpush1.msra.mxu0 0.0
    %2298 = vmatprep.subr.mxu0 0.0
    %2299 = vmatpush1.msra.mxu0 0.0
    %2300 = vmatprep.subr.mxu0 0.0
    %2301 = vmatpush1.msra.mxu0 0.0
    %2302 = vmatprep.subr.mxu0 0.0
    %2303 = vmatpush1.msra.mxu0 0.0
    %2304 = vmatprep.subr.mxu0 0.0
    %2305 = vmatpush1.msra.mxu0 0.0
    %2306 = vmatprep.subr.mxu0 0.0
    %2307 = vmatpush1.msra.mxu0 0.0
    %2308 = vmatprep.subr.mxu0 0.0
    %2309 = vmatpush1.msra.mxu0 0.0
    %2310 = vmatprep.subr.mxu0 0.0
    %2311 = vmatpush1.msra.mxu0 0.0
    %2312 = vmatprep.subr.mxu0 0.0
    %2313 = vmatpush1.msra.mxu0 %v2281
    %2314 = vmatprep.subr.mxu0 0.0
    %2315 = vmatpush2.msra.mxu0 0.0
    %2316 = vmatprep.subr.mxu0 0.0
    %2317 = vmatpush2.msra.mxu0 0.0
    %2318 = vmatprep.subr.mxu0 0.0
    %2319 = vmatpush2.msra.mxu0 0.0
    %2320 = vmatprep.subr.mxu0 0.0
    %2321 = vmatpush2.msra.mxu0 0.0
    %2322 = vmatprep.subr.mxu0 0.0
    %2323 = vmatpush2.msra.mxu0 0.0
    %2324 = vmatprep.subr.mxu0 0.0
    %2325 = vmatpush2.msra.mxu0 0.0
    %2326 = vmatprep.subr.mxu0 0.0
    %2327 = vmatpush2.msra.mxu0 0.0
    %2328 = vmatprep.subr.mxu0 0.0
    %2329 = vmatpush2.msra.mxu0 0.0
    %2330 = vmatprep.subr.mxu0 0.0
    %2331 = vmatpush2.msra.mxu0 0.0
    %2332 = vmatprep.subr.mxu0 0.0
    %2333 = vmatpush2.msra.mxu0 0.0
    %2334 = vmatprep.subr.mxu0 0.0
    %2335 = vmatpush2.msra.mxu0 0.0
    %2336 = vmatprep.subr.mxu0 0.0
    %2337 = vmatpush2.msra.mxu0 0.0
    %2338 = vmatprep.subr.mxu0 0.0
    %2339 = vmatpush2.msra.mxu0 0.0
    %2340 = vmatprep.subr.mxu0 0.0
    %2341 = vmatpush2.msra.mxu0 0.0
    %2342 = vmatprep.subr.mxu0 0.0
    %2343 = vmatpush2.msra.mxu0 0.0
    %2344 = vmatprep.subr.mxu0 0.0
    %2345 = vmatpush2.msra.mxu0 0.0
    %2346 = vmatprep.mubr.f32.mxu0 0.0
    %2347 = vmatmul.mubr.f32.gmra.mxu0 %v350
    %v2348 = vpop.f32.mrf.mxu0
    %v2349 = vadd.f32 0.0, %v2348
    %v2350 = vpop.f32.mrf.mxu0
    %2351 = vdwg.mxu0
    %v2352 = vmul.f32 %v2349, 0.125
    %v2353 = vadd.f32 %v2352, 1e-06
    %v2354 = vrsqrt.pop %v2353
    %v2355 = vlaneseq
    %v2356 = vshrl.u32 %v2355, 7
    %v2357 = vsub.s32 0, %v2356
    %v2358 = vrot.slane %v2354, %v2357
    %v2359 = vmul.f32 %v2280, %v2358
    %v2360 = vld [vmem:[%s63] sm:$0x1]
    %v2362 = vlaneseq
    %v2363 = vshrl.u32 %v2362, 7
    %v2364 = vsub.s32 0, %v2363
    %v2365 = vrot.slane %v2360, %v2364
    %v2367 = vmul.f32 %v2359, %v2365
    %v2368 = vld [vmem:[%s65] sm:$0x1]
    %v2370 = vlaneseq
    %v2371 = vshrl.u32 %v2370, 7
    %v2372 = vsub.s32 0, %v2371
    %v2373 = vrot.slane %v2368, %v2372
    %v2375 = vadd.f32 %v2367, %v2373
    %v2376 = vmax.f32 %v2375, 0.0
    %v2377 = vld [vmem:[%s67] sm:$0xff]
    %v2378 = vld [vmem:[%s67 + $0x8] sm:$0xff]
    %v2379 = vld [vmem:[%s67 + $0x10] sm:$0xff]
    %v2380 = vld [vmem:[%s67 + $0x18] sm:$0xff]
    %v2381 = vld [vmem:[%s67 + $0x20] sm:$0xff]
    %v2382 = vld [vmem:[%s67 + $0x28] sm:$0xff]
    %v2383 = vld [vmem:[%s67 + $0x30] sm:$0xff]
    %v2384 = vld [vmem:[%s67 + $0x38] sm:$0xff]
    %v2385 = vld [vmem:[%s67 + $0x40] sm:$0xff]
    %v2386 = vld [vmem:[%s67 + $0x48] sm:$0xff]
    %v2387 = vld [vmem:[%s67 + $0x50] sm:$0xff]
    %v2388 = vld [vmem:[%s67 + $0x58] sm:$0xff]
    %v2389 = vld [vmem:[%s67 + $0x60] sm:$0xff]
    %v2390 = vld [vmem:[%s67 + $0x68] sm:$0xff]
    %v2391 = vld [vmem:[%s67 + $0x70] sm:$0xff]
    %v2392 = vld [vmem:[%s67 + $0x78] sm:$0xff]
    %v2393 = vld [vmem:[%s67 + $0x80] sm:$0xff]
    %v2394 = vld [vmem:[%s67 + $0x88] sm:$0xff]
    %v2395 = vld [vmem:[%s67 + $0x90] sm:$0xff]
    %v2396 = vld [vmem:[%s67 + $0x98] sm:$0xff]
    %v2397 = vld [vmem:[%s67 + $0xa0] sm:$0xff]
    %v2398 = vld [vmem:[%s67 + $0xa8] sm:$0xff]
    %v2399 = vld [vmem:[%s67 + $0xb0] sm:$0xff]
    %v2400 = vld [vmem:[%s67 + $0xb8] sm:$0xff]
    %v2401 = vld [vmem:[%s67 + $0xc0] sm:$0x3]
    %v2402 = vld [vmem:[%s67 + $0xc8] sm:$0x3]
    %v2403 = vld [vmem:[%s67 + $0xd0] sm:$0x3]
    %v2404 = vld [vmem:[%s67 + $0xd8] sm:$0x3]
    %vm2405 = vcmask 408576
    %v2407 = vsel %vm2405, %v2376, 0
    %vm2409 = vcmask 1041408
    %v2411 = vsel %vm2409, %v2401, 0
    %v2414 = vsel %vm2409, %v2402, 0
    %v2417 = vsel %vm2409, %v2403, 0
    %v2420 = vsel %vm2409, %v2404, 0
    %2422 = vmatprep.subr.mxu0 0.0
    %2423 = vmatpush1.msra.mxu0 0.0
    %2424 = vmatprep.subr.mxu0 0.0
    %2425 = vmatpush1.msra.mxu0 0.0
    %2426 = vmatprep.subr.mxu0 0.0
    %2427 = vmatpush1.msra.mxu0 0.0
    %2428 = vmatprep.subr.mxu0 0.0
    %2429 = vmatpush1.msra.mxu0 0.0
    %2430 = vmatprep.subr.mxu0 0.0
    %2431 = vmatpush1.msra.mxu0 0.0
    %2432 = vmatprep.subr.mxu0 0.0
    %2433 = vmatpush1.msra.mxu0 0.0
    %2434 = vmatprep.subr.mxu0 0.0
    %2435 = vmatpush1.msra.mxu0 0.0
    %2436 = vmatprep.subr.mxu0 0.0
    %2437 = vmatpush1.msra.mxu0 0.0
    %2438 = vmatprep.subr.mxu0 0.0
    %2439 = vmatpush1.msra.mxu0 0.0
    %2440 = vmatprep.subr.mxu0 %v2414
    %2441 = vmatpush1.msra.mxu0 %v2411
    %2442 = vmatprep.subr.mxu0 %v2398
    %2443 = vmatpush1.msra.mxu0 %v2397
    %2444 = vmatprep.subr.mxu0 %v2394
    %2445 = vmatpush1.msra.mxu0 %v2393
    %2446 = vmatprep.subr.mxu0 %v2390
    %2447 = vmatpush1.msra.mxu0 %v2389
    %2448 = vmatprep.subr.mxu0 %v2386
    %2449 = vmatpush1.msra.mxu0 %v2385
    %2450 = vmatprep.subr.mxu0 %v2382
    %2451 = vmatpush1.msra.mxu0 %v2381
    %2452 = vmatprep.subr.mxu0 %v2378
    %2453 = vmatpush1.msra.mxu0 %v2377
    %2454 = vmatprep.subr.mxu0 0.0
    %2455 = vmatpush2.msra.mxu0 0.0
    %2456 = vmatprep.subr.mxu0 0.0
    %2457 = vmatpush2.msra.mxu0 0.0
    %2458 = vmatprep.subr.mxu0 0.0
    %2459 = vmatpush2.msra.mxu0 0.0
    %2460 = vmatprep.subr.mxu0 0.0
    %2461 = vmatpush2.msra.mxu0 0.0
    %2462 = vmatprep.subr.mxu0 0.0
    %2463 = vmatpush2.msra.mxu0 0.0
    %2464 = vmatprep.subr.mxu0 0.0
    %2465 = vmatpush2.msra.mxu0 0.0
    %2466 = vmatprep.subr.mxu0 0.0
    %2467 = vmatpush2.msra.mxu0 0.0
    %2468 = vmatprep.subr.mxu0 0.0
    %2469 = vmatpush2.msra.mxu0 0.0
    %2470 = vmatprep.subr.mxu0 0.0
    %2471 = vmatpush2.msra.mxu0 0.0
    %2472 = vmatprep.subr.mxu0 0.0
    %2473 = vmatpush2.msra.mxu0 0.0
    %2474 = vmatprep.subr.mxu0 0.0
    %2475 = vmatpush2.msra.mxu0 0.0
    %2476 = vmatprep.subr.mxu0 0.0
    %2477 = vmatpush2.msra.mxu0 0.0
    %2478 = vmatprep.subr.mxu0 0.0
    %2479 = vmatpush2.msra.mxu0 0.0
    %2480 = vmatprep.subr.mxu0 0.0
    %2481 = vmatpush2.msra.mxu0 0.0
    %2482 = vmatprep.subr.mxu0 0.0
    %2483 = vmatpush2.msra.mxu0 0.0
    %2484 = vmatprep.subr.mxu0 0.0
    %2485 = vmatpush2.msra.mxu0 0.0
    %2486 = vmatprep.mubr.f32.mxu0 0.0
    %2487 = vmatmul.mubr.f32.gmra.mxu0 %v2407
    %v2488 = vpop.f32.mrf.mxu0
    %v2489 = vadd.f32 0.0, %v2488
    %v2490 = vpop.f32.mrf.mxu0
    %v2491 = vadd.f32 0.0, %v2490
    %2492 = vdwg.mxu0
    %2493 = vmatprep.subr.mxu0 0.0
    %2494 = vmatpush1.msra.mxu0 0.0
    %2495 = vmatprep.subr.mxu0 0.0
    %2496 = vmatpush1.msra.mxu0 0.0
    %2497 = vmatprep.subr.mxu0 0.0
    %2498 = vmatpush1.msra.mxu0 0.0
    %2499 = vmatprep.subr.mxu0 0.0
    %2500 = vmatpush1.msra.mxu0 0.0
    %2501 = vmatprep.subr.mxu0 0.0
    %2502 = vmatpush1.msra.mxu0 0.0
    %2503 = vmatprep.subr.mxu0 0.0
    %2504 = vmatpush1.msra.mxu0 0.0
    %2505 = vmatprep.subr.mxu0 0.0
    %2506 = vmatpush1.msra.mxu0 0.0
    %2507 = vmatprep.subr.mxu0 0.0
    %2508 = vmatpush1.msra.mxu0 0.0
    %2509 = vmatprep.subr.mxu0 0.0
    %2510 = vmatpush1.msra.mxu0 0.0
    %2511 = vmatprep.subr.mxu0 %v2420
    %2512 = vmatpush1.msra.mxu0 %v2417
    %2513 = vmatprep.subr.mxu0 %v2400
    %2514 = vmatpush1.msra.mxu0 %v2399
    %2515 = vmatprep.subr.mxu0 %v2396
    %2516 = vmatpush1.msra.mxu0 %v2395
    %2517 = vmatprep.subr.mxu0 %v2392
    %2518 = vmatpush1.msra.mxu0 %v2391
    %2519 = vmatprep.subr.mxu0 %v2388
    %2520 = vmatpush1.msra.mxu0 %v2387
    %2521 = vmatprep.subr.mxu0 %v2384
    %2522 = vmatpush1.msra.mxu0 %v2383
    %2523 = vmatprep.subr.mxu0 %v2380
    %2524 = vmatpush1.msra.mxu0 %v2379
    %2525 = vmatprep.subr.mxu0 0.0
    %2526 = vmatpush2.msra.mxu0 0.0
    %2527 = vmatprep.subr.mxu0 0.0
    %2528 = vmatpush2.msra.mxu0 0.0
    %2529 = vmatprep.subr.mxu0 0.0
    %2530 = vmatpush2.msra.mxu0 0.0
    %2531 = vmatprep.subr.mxu0 0.0
    %2532 = vmatpush2.msra.mxu0 0.0
    %2533 = vmatprep.subr.mxu0 0.0
    %2534 = vmatpush2.msra.mxu0 0.0
    %2535 = vmatprep.subr.mxu0 0.0
    %2536 = vmatpush2.msra.mxu0 0.0
    %2537 = vmatprep.subr.mxu0 0.0
    %2538 = vmatpush2.msra.mxu0 0.0
    %2539 = vmatprep.subr.mxu0 0.0
    %2540 = vmatpush2.msra.mxu0 0.0
    %2541 = vmatprep.subr.mxu0 0.0
    %2542 = vmatpush2.msra.mxu0 0.0
    %2543 = vmatprep.subr.mxu0 0.0
    %2544 = vmatpush2.msra.mxu0 0.0
    %2545 = vmatprep.subr.mxu0 0.0
    %2546 = vmatpush2.msra.mxu0 0.0
    %2547 = vmatprep.subr.mxu0 0.0
    %2548 = vmatpush2.msra.mxu0 0.0
    %2549 = vmatprep.subr.mxu0 0.0
    %2550 = vmatpush2.msra.mxu0 0.0
    %2551 = vmatprep.subr.mxu0 0.0
    %2552 = vmatpush2.msra.mxu0 0.0
    %2553 = vmatprep.subr.mxu0 0.0
    %2554 = vmatpush2.msra.mxu0 0.0
    %2555 = vmatprep.subr.mxu0 0.0
    %2556 = vmatpush2.msra.mxu0 0.0
    %2557 = vmatprep.mubr.f32.mxu0 0.0
    %2558 = vmatmul.mubr.f32.gmra.mxu0 %v2407
    %v2559 = vpop.f32.mrf.mxu0
    %v2560 = vadd.f32 0.0, %v2559
    %v2561 = vpop.f32.mrf.mxu0
    %v2562 = vadd.f32 0.0, %v2561
    %2563 = vdwg.mxu0
    %2564 = vmatprep.subr.mxu0 0.0
    %2565 = vmatpush1.msra.mxu0 0.0
    %2566 = vmatprep.subr.mxu0 0.0
    %2567 = vmatpush1.msra.mxu0 0.0
    %2568 = vmatprep.subr.mxu0 0.0
    %2569 = vmatpush1.msra.mxu0 0.0
    %2570 = vmatprep.subr.mxu0 0.0
    %2571 = vmatpush1.msra.mxu0 0.0
    %2572 = vmatprep.subr.mxu0 0.0
    %2573 = vmatpush1.msra.mxu0 0.0
    %2574 = vmatprep.subr.mxu0 0.0
    %2575 = vmatpush1.msra.mxu0 0.0
    %2576 = vmatprep.subr.mxu0 0.0
    %2577 = vmatpush1.msra.mxu0 0.0
    %2578 = vmatprep.subr.mxu0 0.0
    %2579 = vmatpush1.msra.mxu0 0.0
    %2580 = vmatprep.subr.mxu0 0.0
    %2581 = vmatpush1.msra.mxu0 0.0
    %2582 = vmatprep.subr.mxu0 0.0
    %2583 = vmatpush1.msra.mxu0 0.0
    %2584 = vmatprep.subr.mxu0 0.0
    %2585 = vmatpush1.msra.mxu0 0.0
    %2586 = vmatprep.subr.mxu0 0.0
    %2587 = vmatpush1.msra.mxu0 0.0
    %2588 = vmatprep.subr.mxu0 0.0
    %2589 = vmatpush1.msra.mxu0 0.0
    %2590 = vmatprep.subr.mxu0 0.0
    %2591 = vmatpush1.msra.mxu0 0.0
    %2592 = vmatprep.subr.mxu0 0.0
    %2593 = vmatpush1.msra.mxu0 0.0
    %2594 = vmatprep.subr.mxu0 %v2491
    %2595 = vmatpush1.msra.mxu0 %v2489
    %2596 = vmatprep.subr.mxu0 0.0
    %2597 = vmatpush2.msra.mxu0 0.0
    %2598 = vmatprep.subr.mxu0 0.0
    %2599 = vmatpush2.msra.mxu0 0.0
    %2600 = vmatprep.subr.mxu0 0.0
    %2601 = vmatpush2.msra.mxu0 0.0
    %2602 = vmatprep.subr.mxu0 0.0
    %2603 = vmatpush2.msra.mxu0 0.0
    %2604 = vmatprep.subr.mxu0 0.0
    %2605 = vmatpush2.msra.mxu0 0.0
    %2606 = vmatprep.subr.mxu0 0.0
    %2607 = vmatpush2.msra.mxu0 0.0
    %2608 = vmatprep.subr.mxu0 0.0
    %2609 = vmatpush2.msra.mxu0 0.0
    %2610 = vmatprep.subr.mxu0 0.0
    %2611 = vmatpush2.msra.mxu0 0.0
    %2612 = vmatprep.subr.mxu0 0.0
    %2613 = vmatpush2.msra.mxu0 0.0
    %2614 = vmatprep.subr.mxu0 0.0
    %2615 = vmatpush2.msra.mxu0 0.0
    %2616 = vmatprep.subr.mxu0 0.0
    %2617 = vmatpush2.msra.mxu0 0.0
    %2618 = vmatprep.subr.mxu0 0.0
    %2619 = vmatpush2.msra.mxu0 0.0
    %2620 = vmatprep.subr.mxu0 0.0
    %2621 = vmatpush2.msra.mxu0 0.0
    %2622 = vmatprep.subr.mxu0 0.0
    %2623 = vmatpush2.msra.mxu0 0.0
    %2624 = vmatprep.subr.mxu0 0.0
    %2625 = vmatpush2.msra.mxu0 0.0
    %2626 = vmatprep.subr.mxu0 0.0
    %2627 = vmatpush2.msra.mxu0 0.0
    %2628 = vmatprep.mubr.f32.mxu0 0.0
    %2629 = vmatmul.mubr.f32.gmra.mxu0 %v350
    %v2630 = vpop.f32.mrf.mxu0
    %v2631 = vadd.f32 0.0, %v2630
    %v2632 = vpop.f32.mrf.mxu0
    %v2633 = vadd.f32 0.0, %v2632
    %2634 = vdwg.mxu0
    %2635 = vmatprep.subr.mxu0 0.0
    %2636 = vmatpush1.msra.mxu0 0.0
    %2637 = vmatprep.subr.mxu0 0.0
    %2638 = vmatpush1.msra.mxu0 0.0
    %2639 = vmatprep.subr.mxu0 0.0
    %2640 = vmatpush1.msra.mxu0 0.0
    %2641 = vmatprep.subr.mxu0 0.0
    %2642 = vmatpush1.msra.mxu0 0.0
    %2643 = vmatprep.subr.mxu0 0.0
    %2644 = vmatpush1.msra.mxu0 0.0
    %2645 = vmatprep.subr.mxu0 0.0
    %2646 = vmatpush1.msra.mxu0 0.0
    %2647 = vmatprep.subr.mxu0 0.0
    %2648 = vmatpush1.msra.mxu0 0.0
    %2649 = vmatprep.subr.mxu0 0.0
    %2650 = vmatpush1.msra.mxu0 0.0
    %2651 = vmatprep.subr.mxu0 0.0
    %2652 = vmatpush1.msra.mxu0 0.0
    %2653 = vmatprep.subr.mxu0 0.0
    %2654 = vmatpush1.msra.mxu0 0.0
    %2655 = vmatprep.subr.mxu0 0.0
    %2656 = vmatpush1.msra.mxu0 0.0
    %2657 = vmatprep.subr.mxu0 0.0
    %2658 = vmatpush1.msra.mxu0 0.0
    %2659 = vmatprep.subr.mxu0 0.0
    %2660 = vmatpush1.msra.mxu0 0.0
    %2661 = vmatprep.subr.mxu0 0.0
    %2662 = vmatpush1.msra.mxu0 0.0
    %2663 = vmatprep.subr.mxu0 0.0
    %2664 = vmatpush1.msra.mxu0 0.0
    %2665 = vmatprep.subr.mxu0 %v2562
    %2666 = vmatpush1.msra.mxu0 %v2560
    %2667 = vmatprep.subr.mxu0 0.0
    %2668 = vmatpush2.msra.mxu0 0.0
    %2669 = vmatprep.subr.mxu0 0.0
    %2670 = vmatpush2.msra.mxu0 0.0
    %2671 = vmatprep.subr.mxu0 0.0
    %2672 = vmatpush2.msra.mxu0 0.0
    %2673 = vmatprep.subr.mxu0 0.0
    %2674 = vmatpush2.msra.mxu0 0.0
    %2675 = vmatprep.subr.mxu0 0.0
    %2676 = vmatpush2.msra.mxu0 0.0
    %2677 = vmatprep.subr.mxu0 0.0
    %2678 = vmatpush2.msra.mxu0 0.0
    %2679 = vmatprep.subr.mxu0 0.0
    %2680 = vmatpush2.msra.mxu0 0.0
    %2681 = vmatprep.subr.mxu0 0.0
    %2682 = vmatpush2.msra.mxu0 0.0
    %2683 = vmatprep.subr.mxu0 0.0
    %2684 = vmatpush2.msra.mxu0 0.0
    %2685 = vmatprep.subr.mxu0 0.0
    %2686 = vmatpush2.msra.mxu0 0.0
    %2687 = vmatprep.subr.mxu0 0.0
    %2688 = vmatpush2.msra.mxu0 0.0
    %2689 = vmatprep.subr.mxu0 0.0
    %2690 = vmatpush2.msra.mxu0 0.0
    %2691 = vmatprep.subr.mxu0 0.0
    %2692 = vmatpush2.msra.mxu0 0.0
    %2693 = vmatprep.subr.mxu0 0.0
    %2694 = vmatpush2.msra.mxu0 0.0
    %2695 = vmatprep.subr.mxu0 0.0
    %2696 = vmatpush2.msra.mxu0 0.0
    %2697 = vmatprep.subr.mxu0 0.0
    %2698 = vmatpush2.msra.mxu0 0.0
    %2699 = vmatprep.mubr.f32.mxu0 0.0
    %2700 = vmatmul.mubr.f32.gmra.mxu0 %v350
    %v2701 = vpop.f32.mrf.mxu0
    %v2702 = vadd.f32 0.0, %v2701
    %v2703 = vpop.f32.mrf.mxu0
    %v2704 = vadd.f32 0.0, %v2703
    %2705 = vdwg.mxu0
    %v2706 = vmul.f32 %v2631, 0.125
    %v2707 = vmul.f32 %v2633, 0.125
    %v2708 = vmul.f32 %v2702, 0.125
    %v2709 = vmul.f32 %v2704, 0.125
    %v2710 = vlaneseq
    %v2711 = vshrl.u32 %v2710, 7
    %v2712 = vsub.s32 0, %v2711
    %v2713 = vrot.slane %v2706, %v2712
    %v2714 = vlaneseq
    %v2715 = vshrl.u32 %v2714, 7
    %v2716 = vsub.s32 0, %v2715
    %v2717 = vrot.slane %v2707, %v2716
    %v2718 = vlaneseq
    %v2719 = vshrl.u32 %v2718, 7
    %v2720 = vsub.s32 0, %v2719
    %v2721 = vrot.slane %v2708, %v2720
    %v2722 = vlaneseq
    %v2723 = vshrl.u32 %v2722, 7
    %v2724 = vsub.s32 0, %v2723
    %v2725 = vrot.slane %v2709, %v2724
    %v2726 = vsub.f32 %v2489, %v2713
    %v2727 = vsub.f32 %v2491, %v2717
    %v2728 = vsub.f32 %v2560, %v2721
    %v2729 = vsub.f32 %v2562, %v2725
    %v2730 = vmul.f32 %v2726, %v2726
    %v2731 = vmul.f32 %v2727, %v2727
    %v2732 = vmul.f32 %v2728, %v2728
    %v2733 = vmul.f32 %v2729, %v2729
    %2734 = vmatprep.subr.mxu0 0.0
    %2735 = vmatpush1.msra.mxu0 0.0
    %2736 = vmatprep.subr.mxu0 0.0
    %2737 = vmatpush1.msra.mxu0 0.0
    %2738 = vmatprep.subr.mxu0 0.0
    %2739 = vmatpush1.msra.mxu0 0.0
    %2740 = vmatprep.subr.mxu0 0.0
    %2741 = vmatpush1.msra.mxu0 0.0
    %2742 = vmatprep.subr.mxu0 0.0
    %2743 = vmatpush1.msra.mxu0 0.0
    %2744 = vmatprep.subr.mxu0 0.0
    %2745 = vmatpush1.msra.mxu0 0.0
    %2746 = vmatprep.subr.mxu0 0.0
    %2747 = vmatpush1.msra.mxu0 0.0
    %2748 = vmatprep.subr.mxu0 0.0
    %2749 = vmatpush1.msra.mxu0 0.0
    %2750 = vmatprep.subr.mxu0 0.0
    %2751 = vmatpush1.msra.mxu0 0.0
    %2752 = vmatprep.subr.mxu0 0.0
    %2753 = vmatpush1.msra.mxu0 0.0
    %2754 = vmatprep.subr.mxu0 0.0
    %2755 = vmatpush1.msra.mxu0 0.0
    %2756 = vmatprep.subr.mxu0 0.0
    %2757 = vmatpush1.msra.mxu0 0.0
    %2758 = vmatprep.subr.mxu0 0.0
    %2759 = vmatpush1.msra.mxu0 0.0
    %2760 = vmatprep.subr.mxu0 0.0
    %2761 = vmatpush1.msra.mxu0 0.0
    %2762 = vmatprep.subr.mxu0 0.0
    %2763 = vmatpush1.msra.mxu0 0.0
    %2764 = vmatprep.subr.mxu0 %v2731
    %2765 = vmatpush1.msra.mxu0 %v2730
    %2766 = vmatprep.subr.mxu0 0.0
    %2767 = vmatpush2.msra.mxu0 0.0
    %2768 = vmatprep.subr.mxu0 0.0
    %2769 = vmatpush2.msra.mxu0 0.0
    %2770 = vmatprep.subr.mxu0 0.0
    %2771 = vmatpush2.msra.mxu0 0.0
    %2772 = vmatprep.subr.mxu0 0.0
    %2773 = vmatpush2.msra.mxu0 0.0
    %2774 = vmatprep.subr.mxu0 0.0
    %2775 = vmatpush2.msra.mxu0 0.0
    %2776 = vmatprep.subr.mxu0 0.0
    %2777 = vmatpush2.msra.mxu0 0.0
    %2778 = vmatprep.subr.mxu0 0.0
    %2779 = vmatpush2.msra.mxu0 0.0
    %2780 = vmatprep.subr.mxu0 0.0
    %2781 = vmatpush2.msra.mxu0 0.0
    %2782 = vmatprep.subr.mxu0 0.0
    %2783 = vmatpush2.msra.mxu0 0.0
    %2784 = vmatprep.subr.mxu0 0.0
    %2785 = vmatpush2.msra.mxu0 0.0
    %2786 = vmatprep.subr.mxu0 0.0
    %2787 = vmatpush2.msra.mxu0 0.0
    %2788 = vmatprep.subr.mxu0 0.0
    %2789 = vmatpush2.msra.mxu0 0.0
    %2790 = vmatprep.subr.mxu0 0.0
    %2791 = vmatpush2.msra.mxu0 0.0
    %2792 = vmatprep.subr.mxu0 0.0
    %2793 = vmatpush2.msra.mxu0 0.0
    %2794 = vmatprep.subr.mxu0 0.0
    %2795 = vmatpush2.msra.mxu0 0.0
    %2796 = vmatprep.subr.mxu0 0.0
    %2797 = vmatpush2.msra.mxu0 0.0
    %2798 = vmatprep.mubr.f32.mxu0 0.0
    %2799 = vmatmul.mubr.f32.gmra.mxu0 %v350
    %v2800 = vpop.f32.mrf.mxu0
    %v2801 = vadd.f32 0.0, %v2800
    %v2802 = vpop.f32.mrf.mxu0
    %v2803 = vadd.f32 0.0, %v2802
    %2804 = vdwg.mxu0
    %2805 = vmatprep.subr.mxu0 0.0
    %2806 = vmatpush1.msra.mxu0 0.0
    %2807 = vmatprep.subr.mxu0 0.0
    %2808 = vmatpush1.msra.mxu0 0.0
    %2809 = vmatprep.subr.mxu0 0.0
    %2810 = vmatpush1.msra.mxu0 0.0
    %2811 = vmatprep.subr.mxu0 0.0
    %2812 = vmatpush1.msra.mxu0 0.0
    %2813 = vmatprep.subr.mxu0 0.0
    %2814 = vmatpush1.msra.mxu0 0.0
    %2815 = vmatprep.subr.mxu0 0.0
    %2816 = vmatpush1.msra.mxu0 0.0
    %2817 = vmatprep.subr.mxu0 0.0
    %2818 = vmatpush1.msra.mxu0 0.0
    %2819 = vmatprep.subr.mxu0 0.0
    %2820 = vmatpush1.msra.mxu0 0.0
    %2821 = vmatprep.subr.mxu0 0.0
    %2822 = vmatpush1.msra.mxu0 0.0
    %2823 = vmatprep.subr.mxu0 0.0
    %2824 = vmatpush1.msra.mxu0 0.0
    %2825 = vmatprep.subr.mxu0 0.0
    %2826 = vmatpush1.msra.mxu0 0.0
    %2827 = vmatprep.subr.mxu0 0.0
    %2828 = vmatpush1.msra.mxu0 0.0
    %2829 = vmatprep.subr.mxu0 0.0
    %2830 = vmatpush1.msra.mxu0 0.0
    %2831 = vmatprep.subr.mxu0 0.0
    %2832 = vmatpush1.msra.mxu0 0.0
    %2833 = vmatprep.subr.mxu0 0.0
    %2834 = vmatpush1.msra.mxu0 0.0
    %2835 = vmatprep.subr.mxu0 %v2733
    %2836 = vmatpush1.msra.mxu0 %v2732
    %2837 = vmatprep.subr.mxu0 0.0
    %2838 = vmatpush2.msra.mxu0 0.0
    %2839 = vmatprep.subr.mxu0 0.0
    %2840 = vmatpush2.msra.mxu0 0.0
    %2841 = vmatprep.subr.mxu0 0.0
    %2842 = vmatpush2.msra.mxu0 0.0
    %2843 = vmatprep.subr.mxu0 0.0
    %2844 = vmatpush2.msra.mxu0 0.0
    %2845 = vmatprep.subr.mxu0 0.0
    %2846 = vmatpush2.msra.mxu0 0.0
    %2847 = vmatprep.subr.mxu0 0.0
    %2848 = vmatpush2.msra.mxu0 0.0
    %2849 = vmatprep.subr.mxu0 0.0
    %2850 = vmatpush2.msra.mxu0 0.0
    %2851 = vmatprep.subr.mxu0 0.0
    %2852 = vmatpush2.msra.mxu0 0.0
    %2853 = vmatprep.subr.mxu0 0.0
    %2854 = vmatpush2.msra.mxu0 0.0
    %2855 = vmatprep.subr.mxu0 0.0
    %2856 = vmatpush2.msra.mxu0 0.0
    %2857 = vmatprep.subr.mxu0 0.0
    %2858 = vmatpush2.msra.mxu0 0.0
    %2859 = vmatprep.subr.mxu0 0.0
    %2860 = vmatpush2.msra.mxu0 0.0
    %2861 = vmatprep.subr.mxu0 0.0
    %2862 = vmatpush2.msra.mxu0 0.0
    %2863 = vmatprep.subr.mxu0 0.0
    %2864 = vmatpush2.msra.mxu0 0.0
    %2865 = vmatprep.subr.mxu0 0.0
    %2866 = vmatpush2.msra.mxu0 0.0
    %2867 = vmatprep.subr.mxu0 0.0
    %2868 = vmatpush2.msra.mxu0 0.0
    %2869 = vmatprep.mubr.f32.mxu0 0.0
    %2870 = vmatmul.mubr.f32.gmra.mxu0 %v350
    %v2871 = vpop.f32.mrf.mxu0
    %v2872 = vadd.f32 0.0, %v2871
    %v2873 = vpop.f32.mrf.mxu0
    %v2874 = vadd.f32 0.0, %v2873
    %2875 = vdwg.mxu0
    %v2876 = vmul.f32 %v2801, 0.125
    %v2877 = vmul.f32 %v2803, 0.125
    %v2878 = vmul.f32 %v2872, 0.125
    %v2879 = vmul.f32 %v2874, 0.125
    %v2880 = vadd.f32 %v2876, 1e-06
    %v2881 = vadd.f32 %v2877, 1e-06
    %v2882 = vadd.f32 %v2878, 1e-06
    %v2883 = vadd.f32 %v2879, 1e-06
    %v2884 = vrsqrt.pop %v2880
    %v2885 = vrsqrt.pop %v2881
    %v2886 = vrsqrt.pop %v2882
    %v2887 = vrsqrt.pop %v2883
    %v2888 = vlaneseq
    %v2889 = vshrl.u32 %v2888, 7
    %v2890 = vsub.s32 0, %v2889
    %v2891 = vrot.slane %v2884, %v2890
    %v2892 = vlaneseq
    %v2893 = vshrl.u32 %v2892, 7
    %v2894 = vsub.s32 0, %v2893
    %v2895 = vrot.slane %v2885, %v2894
    %v2896 = vlaneseq
    %v2897 = vshrl.u32 %v2896, 7
    %v2898 = vsub.s32 0, %v2897
    %v2899 = vrot.slane %v2886, %v2898
    %v2900 = vlaneseq
    %v2901 = vshrl.u32 %v2900, 7
    %v2902 = vsub.s32 0, %v2901
    %v2903 = vrot.slane %v2887, %v2902
    %v2904 = vmul.f32 %v2726, %v2891
    %v2905 = vmul.f32 %v2727, %v2895
    %v2906 = vmul.f32 %v2728, %v2899
    %v2907 = vmul.f32 %v2729, %v2903
    %v2908 = vld [vmem:[%s69] sm:$0xf]
    %v2910 = vlaneseq
    %v2911 = vshrl.u32 %v2910, 7
    %v2912 = vsub.s32 0, %v2911
    %v2913 = vrot.slane %v2908, %v2912
    %v2914 = vlaneseq
    %v2915 = vshrl.u32 %v2914, 7
    %v2916 = vsub.s32 1, %v2915
    %v2917 = vrot.slane %v2908, %v2916
    %v2918 = vlaneseq
    %v2919 = vshrl.u32 %v2918, 7
    %v2920 = vsub.s32 2, %v2919
    %v2921 = vrot.slane %v2908, %v2920
    %v2922 = vlaneseq
    %v2923 = vshrl.u32 %v2922, 7
    %v2924 = vsub.s32 3, %v2923
    %v2925 = vrot.slane %v2908, %v2924
    %v2930 = vmul.f32 %v2904, %v2913
    %v2931 = vmul.f32 %v2905, %v2917
    %v2932 = vmul.f32 %v2906, %v2921
    %v2933 = vmul.f32 %v2907, %v2925
    %v2934 = vld [vmem:[%s71] sm:$0xf]
    %v2936 = vlaneseq
    %v2937 = vshrl.u32 %v2936, 7
    %v2938 = vsub.s32 0, %v2937
    %v2939 = vrot.slane %v2934, %v2938
    %v2940 = vlaneseq
    %v2941 = vshrl.u32 %v2940, 7
    %v2942 = vsub.s32 1, %v2941
    %v2943 = vrot.slane %v2934, %v2942
    %v2944 = vlaneseq
    %v2945 = vshrl.u32 %v2944, 7
    %v2946 = vsub.s32 2, %v2945
    %v2947 = vrot.slane %v2934, %v2946
    %v2948 = vlaneseq
    %v2949 = vshrl.u32 %v2948, 7
    %v2950 = vsub.s32 3, %v2949
    %v2951 = vrot.slane %v2934, %v2950
    %v2956 = vadd.f32 %v2930, %v2939
    %v2957 = vadd.f32 %v2931, %v2943
    %v2958 = vadd.f32 %v2932, %v2947
    %v2959 = vadd.f32 %v2933, %v2951
    %v2960 = vmax.f32 %v2956, 0.0
    %v2961 = vmax.f32 %v2957, 0.0
    %v2962 = vmax.f32 %v2958, 0.0
    %v2963 = vmax.f32 %v2959, 0.0
    %v2964 = vld [vmem:[%s73] sm:$0xff]
    %v2965 = vld [vmem:[%s73 + $0x8] sm:$0xff]
    %v2966 = vld [vmem:[%s73 + $0x10] sm:$0xff]
    %v2967 = vld [vmem:[%s73 + $0x18] sm:$0xff]
    %v2968 = vld [vmem:[%s73 + $0x20] sm:$0xff]
    %v2969 = vld [vmem:[%s73 + $0x28] sm:$0xff]
    %v2970 = vld [vmem:[%s73 + $0x30] sm:$0xff]
    %v2971 = vld [vmem:[%s73 + $0x38] sm:$0xff]
    %v2972 = vld [vmem:[%s73 + $0x40] sm:$0xff]
    %v2973 = vld [vmem:[%s73 + $0x48] sm:$0xff]
    %v2974 = vld [vmem:[%s73 + $0x50] sm:$0xff]
    %v2975 = vld [vmem:[%s73 + $0x58] sm:$0xff]
    %v2976 = vld [vmem:[%s73 + $0x60] sm:$0xff]
    %v2977 = vld [vmem:[%s73 + $0x68] sm:$0xff]
    %v2978 = vld [vmem:[%s73 + $0x70] sm:$0xff]
    %v2979 = vld [vmem:[%s73 + $0x78] sm:$0xff]
    %v2980 = vld [vmem:[%s73 + $0x80] sm:$0xff]
    %v2981 = vld [vmem:[%s73 + $0x88] sm:$0xff]
    %v2982 = vld [vmem:[%s73 + $0x90] sm:$0xff]
    %v2983 = vld [vmem:[%s73 + $0x98] sm:$0xff]
    %v2984 = vld [vmem:[%s73 + $0xa0] sm:$0xff]
    %v2985 = vld [vmem:[%s73 + $0xa8] sm:$0xff]
    %v2986 = vld [vmem:[%s73 + $0xb0] sm:$0xff]
    %v2987 = vld [vmem:[%s73 + $0xb8] sm:$0xff]
    %v2988 = vld [vmem:[%s73 + $0xc0] sm:$0xff]
    %v2989 = vld [vmem:[%s73 + $0xc8] sm:$0xff]
    %v2990 = vld [vmem:[%s73 + $0xd0] sm:$0xff]
    %v2991 = vld [vmem:[%s73 + $0xd8] sm:$0xff]
    %v2992 = vld [vmem:[%s73 + $0xe0] sm:$0xff]
    %v2993 = vld [vmem:[%s73 + $0xe8] sm:$0xff]
    %v2994 = vld [vmem:[%s73 + $0xf0] sm:$0xff]
    %v2995 = vld [vmem:[%s73 + $0xf8] sm:$0xff]
    %v2996 = vld [vmem:[%s73 + $0x100] sm:$0xff]
    %v2997 = vld [vmem:[%s73 + $0x108] sm:$0xff]
    %v2998 = vld [vmem:[%s73 + $0x110] sm:$0xff]
    %v2999 = vld [vmem:[%s73 + $0x118] sm:$0xff]
    %v3000 = vld [vmem:[%s73 + $0x120] sm:$0xff]
    %v3001 = vld [vmem:[%s73 + $0x128] sm:$0xff]
    %v3002 = vld [vmem:[%s73 + $0x130] sm:$0xff]
    %v3003 = vld [vmem:[%s73 + $0x138] sm:$0xff]
    %v3004 = vld [vmem:[%s73 + $0x140] sm:$0xff]
    %v3005 = vld [vmem:[%s73 + $0x148] sm:$0xff]
    %v3006 = vld [vmem:[%s73 + $0x150] sm:$0xff]
    %v3007 = vld [vmem:[%s73 + $0x158] sm:$0xff]
    %v3008 = vld [vmem:[%s73 + $0x160] sm:$0xff]
    %v3009 = vld [vmem:[%s73 + $0x168] sm:$0xff]
    %v3010 = vld [vmem:[%s73 + $0x170] sm:$0xff]
    %v3011 = vld [vmem:[%s73 + $0x178] sm:$0xff]
    %v3012 = vld [vmem:[%s73 + $0x180] sm:$0xff]
    %v3013 = vld [vmem:[%s73 + $0x188] sm:$0xff]
    %v3014 = vld [vmem:[%s73 + $0x190] sm:$0xff]
    %v3015 = vld [vmem:[%s73 + $0x198] sm:$0xff]
    %v3016 = vld [vmem:[%s73 + $0x1a0] sm:$0xff]
    %v3017 = vld [vmem:[%s73 + $0x1a8] sm:$0xff]
    %v3018 = vld [vmem:[%s73 + $0x1b0] sm:$0xff]
    %v3019 = vld [vmem:[%s73 + $0x1b8] sm:$0xff]
    %v3020 = vld [vmem:[%s73 + $0x1c0] sm:$0xff]
    %v3021 = vld [vmem:[%s73 + $0x1c8] sm:$0xff]
    %v3022 = vld [vmem:[%s73 + $0x1d0] sm:$0xff]
    %v3023 = vld [vmem:[%s73 + $0x1d8] sm:$0xff]
    %v3024 = vld [vmem:[%s73 + $0x1e0] sm:$0xff]
    %v3025 = vld [vmem:[%s73 + $0x1e8] sm:$0xff]
    %v3026 = vld [vmem:[%s73 + $0x1f0] sm:$0xff]
    %v3027 = vld [vmem:[%s73 + $0x1f8] sm:$0xff]
    %v3028 = vld [vmem:[%s73 + $0x200] sm:$0xff]
    %v3029 = vld [vmem:[%s73 + $0x208] sm:$0xff]
    %v3030 = vld [vmem:[%s73 + $0x210] sm:$0xff]
    %v3031 = vld [vmem:[%s73 + $0x218] sm:$0xff]
    %v3032 = vld [vmem:[%s73 + $0x220] sm:$0xff]
    %v3033 = vld [vmem:[%s73 + $0x228] sm:$0xff]
    %v3034 = vld [vmem:[%s73 + $0x230] sm:$0xff]
    %v3035 = vld [vmem:[%s73 + $0x238] sm:$0xff]
    %v3036 = vld [vmem:[%s73 + $0x240] sm:$0xff]
    %v3037 = vld [vmem:[%s73 + $0x248] sm:$0xff]
    %v3038 = vld [vmem:[%s73 + $0x250] sm:$0xff]
    %v3039 = vld [vmem:[%s73 + $0x258] sm:$0xff]
    %v3040 = vld [vmem:[%s73 + $0x260] sm:$0xff]
    %v3041 = vld [vmem:[%s73 + $0x268] sm:$0xff]
    %v3042 = vld [vmem:[%s73 + $0x270] sm:$0xff]
    %v3043 = vld [vmem:[%s73 + $0x278] sm:$0xff]
    %v3044 = vld [vmem:[%s73 + $0x280] sm:$0xff]
    %v3045 = vld [vmem:[%s73 + $0x288] sm:$0xff]
    %v3046 = vld [vmem:[%s73 + $0x290] sm:$0xff]
    %v3047 = vld [vmem:[%s73 + $0x298] sm:$0xff]
    %v3048 = vld [vmem:[%s73 + $0x2a0] sm:$0xff]
    %v3049 = vld [vmem:[%s73 + $0x2a8] sm:$0xff]
    %v3050 = vld [vmem:[%s73 + $0x2b0] sm:$0xff]
    %v3051 = vld [vmem:[%s73 + $0x2b8] sm:$0xff]
    %v3052 = vld [vmem:[%s73 + $0x2c0] sm:$0xff]
    %v3053 = vld [vmem:[%s73 + $0x2c8] sm:$0xff]
    %v3054 = vld [vmem:[%s73 + $0x2d0] sm:$0xff]
    %v3055 = vld [vmem:[%s73 + $0x2d8] sm:$0xff]
    %v3056 = vld [vmem:[%s73 + $0x2e0] sm:$0xff]
    %v3057 = vld [vmem:[%s73 + $0x2e8] sm:$0xff]
    %v3058 = vld [vmem:[%s73 + $0x2f0] sm:$0xff]
    %v3059 = vld [vmem:[%s73 + $0x2f8] sm:$0xff]
    %v3060 = vld [vmem:[%s73 + $0x300] sm:$0xff]
    %v3061 = vld [vmem:[%s73 + $0x308] sm:$0xff]
    %v3062 = vld [vmem:[%s73 + $0x310] sm:$0xff]
    %v3063 = vld [vmem:[%s73 + $0x318] sm:$0xff]
    %v3064 = vld [vmem:[%s73 + $0x320] sm:$0xff]
    %v3065 = vld [vmem:[%s73 + $0x328] sm:$0xff]
    %v3066 = vld [vmem:[%s73 + $0x330] sm:$0xff]
    %v3067 = vld [vmem:[%s73 + $0x338] sm:$0xff]
    %v3068 = vld [vmem:[%s73 + $0x340] sm:$0xff]
    %v3069 = vld [vmem:[%s73 + $0x348] sm:$0xff]
    %v3070 = vld [vmem:[%s73 + $0x350] sm:$0xff]
    %v3071 = vld [vmem:[%s73 + $0x358] sm:$0xff]
    %v3072 = vld [vmem:[%s73 + $0x360] sm:$0xff]
    %v3073 = vld [vmem:[%s73 + $0x368] sm:$0xff]
    %v3074 = vld [vmem:[%s73 + $0x370] sm:$0xff]
    %v3075 = vld [vmem:[%s73 + $0x378] sm:$0xff]
    %v3076 = vld [vmem:[%s73 + $0x380] sm:$0xff]
    %v3077 = vld [vmem:[%s73 + $0x388] sm:$0xff]
    %v3078 = vld [vmem:[%s73 + $0x390] sm:$0xff]
    %v3079 = vld [vmem:[%s73 + $0x398] sm:$0xff]
    %v3080 = vld [vmem:[%s73 + $0x3a0] sm:$0xff]
    %v3081 = vld [vmem:[%s73 + $0x3a8] sm:$0xff]
    %v3082 = vld [vmem:[%s73 + $0x3b0] sm:$0xff]
    %v3083 = vld [vmem:[%s73 + $0x3b8] sm:$0xff]
    %v3084 = vld [vmem:[%s73 + $0x3c0] sm:$0xff]
    %v3085 = vld [vmem:[%s73 + $0x3c8] sm:$0xff]
    %v3086 = vld [vmem:[%s73 + $0x3d0] sm:$0xff]
    %v3087 = vld [vmem:[%s73 + $0x3d8] sm:$0xff]
    %v3088 = vld [vmem:[%s73 + $0x3e0] sm:$0xff]
    %v3089 = vld [vmem:[%s73 + $0x3e8] sm:$0xff]
    %v3090 = vld [vmem:[%s73 + $0x3f0] sm:$0xff]
    %v3091 = vld [vmem:[%s73 + $0x3f8] sm:$0xff]
    %v3092 = vld [vmem:[%s73 + $0x400] sm:$0xff]
    %v3093 = vld [vmem:[%s73 + $0x408] sm:$0xff]
    %v3094 = vld [vmem:[%s73 + $0x410] sm:$0xff]
    %v3095 = vld [vmem:[%s73 + $0x418] sm:$0xff]
    %v3096 = vld [vmem:[%s73 + $0x420] sm:$0xff]
    %v3097 = vld [vmem:[%s73 + $0x428] sm:$0xff]
    %v3098 = vld [vmem:[%s73 + $0x430] sm:$0xff]
    %v3099 = vld [vmem:[%s73 + $0x438] sm:$0xff]
    %v3100 = vld [vmem:[%s73 + $0x440] sm:$0xff]
    %v3101 = vld [vmem:[%s73 + $0x448] sm:$0xff]
    %v3102 = vld [vmem:[%s73 + $0x450] sm:$0xff]
    %v3103 = vld [vmem:[%s73 + $0x458] sm:$0xff]
    %v3104 = vld [vmem:[%s73 + $0x460] sm:$0xff]
    %v3105 = vld [vmem:[%s73 + $0x468] sm:$0xff]
    %v3106 = vld [vmem:[%s73 + $0x470] sm:$0xff]
    %v3107 = vld [vmem:[%s73 + $0x478] sm:$0xff]
    %v3108 = vld [vmem:[%s73 + $0x480] sm:$0xff]
    %v3109 = vld [vmem:[%s73 + $0x488] sm:$0xff]
    %v3110 = vld [vmem:[%s73 + $0x490] sm:$0xff]
    %v3111 = vld [vmem:[%s73 + $0x498] sm:$0xff]
    %v3112 = vld [vmem:[%s73 + $0x4a0] sm:$0xff]
    %v3113 = vld [vmem:[%s73 + $0x4a8] sm:$0xff]
    %v3114 = vld [vmem:[%s73 + $0x4b0] sm:$0xff]
    %v3115 = vld [vmem:[%s73 + $0x4b8] sm:$0xff]
    %v3116 = vld [vmem:[%s73 + $0x4c0] sm:$0xff]
    %v3117 = vld [vmem:[%s73 + $0x4c8] sm:$0xff]
    %v3118 = vld [vmem:[%s73 + $0x4d0] sm:$0xff]
    %v3119 = vld [vmem:[%s73 + $0x4d8] sm:$0xff]
    %v3120 = vld [vmem:[%s73 + $0x4e0] sm:$0xff]
    %v3121 = vld [vmem:[%s73 + $0x4e8] sm:$0xff]
    %v3122 = vld [vmem:[%s73 + $0x4f0] sm:$0xff]
    %v3123 = vld [vmem:[%s73 + $0x4f8] sm:$0xff]
    %v3124 = vld [vmem:[%s73 + $0x500] sm:$0xff]
    %v3125 = vld [vmem:[%s73 + $0x508] sm:$0xff]
    %v3126 = vld [vmem:[%s73 + $0x510] sm:$0xff]
    %v3127 = vld [vmem:[%s73 + $0x518] sm:$0xff]
    %v3128 = vld [vmem:[%s73 + $0x520] sm:$0xff]
    %v3129 = vld [vmem:[%s73 + $0x528] sm:$0xff]
    %v3130 = vld [vmem:[%s73 + $0x530] sm:$0xff]
    %v3131 = vld [vmem:[%s73 + $0x538] sm:$0xff]
    %v3132 = vld [vmem:[%s73 + $0x540] sm:$0xff]
    %v3133 = vld [vmem:[%s73 + $0x548] sm:$0xff]
    %v3134 = vld [vmem:[%s73 + $0x550] sm:$0xff]
    %v3135 = vld [vmem:[%s73 + $0x558] sm:$0xff]
    %v3136 = vld [vmem:[%s73 + $0x560] sm:$0xff]
    %v3137 = vld [vmem:[%s73 + $0x568] sm:$0xff]
    %v3138 = vld [vmem:[%s73 + $0x570] sm:$0xff]
    %v3139 = vld [vmem:[%s73 + $0x578] sm:$0xff]
    %v3140 = vld [vmem:[%s73 + $0x580] sm:$0xff]
    %v3141 = vld [vmem:[%s73 + $0x588] sm:$0xff]
    %v3142 = vld [vmem:[%s73 + $0x590] sm:$0xff]
    %v3143 = vld [vmem:[%s73 + $0x598] sm:$0xff]
    %v3144 = vld [vmem:[%s73 + $0x5a0] sm:$0xff]
    %v3145 = vld [vmem:[%s73 + $0x5a8] sm:$0xff]
    %v3146 = vld [vmem:[%s73 + $0x5b0] sm:$0xff]
    %v3147 = vld [vmem:[%s73 + $0x5b8] sm:$0xff]
    %v3148 = vld [vmem:[%s73 + $0x5c0] sm:$0xff]
    %v3149 = vld [vmem:[%s73 + $0x5c8] sm:$0xff]
    %v3150 = vld [vmem:[%s73 + $0x5d0] sm:$0xff]
    %v3151 = vld [vmem:[%s73 + $0x5d8] sm:$0xff]
    %v3152 = vld [vmem:[%s73 + $0x5e0] sm:$0xff]
    %v3153 = vld [vmem:[%s73 + $0x5e8] sm:$0xff]
    %v3154 = vld [vmem:[%s73 + $0x5f0] sm:$0xff]
    %v3155 = vld [vmem:[%s73 + $0x5f8] sm:$0xff]
    %v3156 = vld [vmem:[%s73 + $0x600] sm:$0xff]
    %v3157 = vld [vmem:[%s73 + $0x608] sm:$0xff]
    %v3158 = vld [vmem:[%s73 + $0x610] sm:$0xff]
    %v3159 = vld [vmem:[%s73 + $0x618] sm:$0xff]
    %v3160 = vld [vmem:[%s73 + $0x620] sm:$0xff]
    %v3161 = vld [vmem:[%s73 + $0x628] sm:$0xff]
    %v3162 = vld [vmem:[%s73 + $0x630] sm:$0xff]
    %v3163 = vld [vmem:[%s73 + $0x638] sm:$0xff]
    %v3164 = vld [vmem:[%s73 + $0x640] sm:$0xff]
    %v3165 = vld [vmem:[%s73 + $0x648] sm:$0xff]
    %v3166 = vld [vmem:[%s73 + $0x650] sm:$0xff]
    %v3167 = vld [vmem:[%s73 + $0x658] sm:$0xff]
    %v3168 = vld [vmem:[%s73 + $0x660] sm:$0x3]
    %v3169 = vld [vmem:[%s73 + $0x668] sm:$0x3]
    %v3170 = vld [vmem:[%s73 + $0x670] sm:$0x3]
    %v3171 = vld [vmem:[%s73 + $0x678] sm:$0x3]
    %v3172 = vld [vmem:[%s75] sm:$0xf]
    %v3174 = vlaneseq
    %v3175 = vshrl.u32 %v3174, 7
    %v3176 = vsub.s32 0, %v3175
    %v3177 = vrot.slane %v3172, %v3176
    %v3178 = vlaneseq
    %v3179 = vshrl.u32 %v3178, 7
    %v3180 = vsub.s32 1, %v3179
    %v3181 = vrot.slane %v3172, %v3180
    %v3182 = vlaneseq
    %v3183 = vshrl.u32 %v3182, 7
    %v3184 = vsub.s32 2, %v3183
    %v3185 = vrot.slane %v3172, %v3184
    %v3186 = vlaneseq
    %v3187 = vshrl.u32 %v3186, 7
    %v3188 = vsub.s32 3, %v3187
    %v3189 = vrot.slane %v3172, %v3188
    %vm3194 = vcmask 211968
    %v3196 = vsel %vm3194, %v2963, 0
    %v3199 = vsel %vm2409, %v3168, 0
    %v3202 = vsel %vm2409, %v3169, 0
    %v3205 = vsel %vm2409, %v3170, 0
    %v3208 = vsel %vm2409, %v3171, 0
    %3210 = vmatprep.subr.mxu0 %v3025
    %3211 = vmatpush1.msra.mxu0 %v3024
    %3212 = vmatprep.subr.mxu0 %v3021
    %3213 = vmatpush1.msra.mxu0 %v3020
    %3214 = vmatprep.subr.mxu0 %v3017
    %3215 = vmatpush1.msra.mxu0 %v3016
    %3216 = vmatprep.subr.mxu0 %v3013
    %3217 = vmatpush1.msra.mxu0 %v3012
    %3218 = vmatprep.subr.mxu0 %v3009
    %3219 = vmatpush1.msra.mxu0 %v3008
    %3220 = vmatprep.subr.mxu0 %v3005
    %3221 = vmatpush1.msra.mxu0 %v3004
    %3222 = vmatprep.subr.mxu0 %v3001
    %3223 = vmatpush1.msra.mxu0 %v3000
    %3224 = vmatprep.subr.mxu0 %v2997
    %3225 = vmatpush1.msra.mxu0 %v2996
    %3226 = vmatprep.subr.mxu0 %v2993
    %3227 = vmatpush1.msra.mxu0 %v2992
    %3228 = vmatprep.subr.mxu0 %v2989
    %3229 = vmatpush1.msra.mxu0 %v2988
    %3230 = vmatprep.subr.mxu0 %v2985
    %3231 = vmatpush1.msra.mxu0 %v2984
    %3232 = vmatprep.subr.mxu0 %v2981
    %3233 = vmatpush1.msra.mxu0 %v2980
    %3234 = vmatprep.subr.mxu0 %v2977
    %3235 = vmatpush1.msra.mxu0 %v2976
    %3236 = vmatprep.subr.mxu0 %v2973
    %3237 = vmatpush1.msra.mxu0 %v2972
    %3238 = vmatprep.subr.mxu0 %v2969
    %3239 = vmatpush1.msra.mxu0 %v2968
    %3240 = vmatprep.subr.mxu0 %v2965
    %3241 = vmatpush1.msra.mxu0 %v2964
    %3242 = vmatprep.subr.mxu0 %v3089
    %3243 = vmatpush2.msra.mxu0 %v3088
    %3244 = vmatprep.subr.mxu0 %v3085
    %3245 = vmatpush2.msra.mxu0 %v3084
    %3246 = vmatprep.subr.mxu0 %v3081
    %3247 = vmatpush2.msra.mxu0 %v3080
    %3248 = vmatprep.subr.mxu0 %v3077
    %3249 = vmatpush2.msra.mxu0 %v3076
    %3250 = vmatprep.subr.mxu0 %v3073
    %3251 = vmatpush2.msra.mxu0 %v3072
    %3252 = vmatprep.subr.mxu0 %v3069
    %3253 = vmatpush2.msra.mxu0 %v3068
    %3254 = vmatprep.subr.mxu0 %v3065
    %3255 = vmatpush2.msra.mxu0 %v3064
    %3256 = vmatprep.subr.mxu0 %v3061
    %3257 = vmatpush2.msra.mxu0 %v3060
    %3258 = vmatprep.subr.mxu0 %v3057
    %3259 = vmatpush2.msra.mxu0 %v3056
    %3260 = vmatprep.subr.mxu0 %v3053
    %3261 = vmatpush2.msra.mxu0 %v3052
    %3262 = vmatprep.subr.mxu0 %v3049
    %3263 = vmatpush2.msra.mxu0 %v3048
    %3264 = vmatprep.subr.mxu0 %v3045
    %3265 = vmatpush2.msra.mxu0 %v3044
    %3266 = vmatprep.subr.mxu0 %v3041
    %3267 = vmatpush2.msra.mxu0 %v3040
    %3268 = vmatprep.subr.mxu0 %v3037
    %3269 = vmatpush2.msra.mxu0 %v3036
    %3270 = vmatprep.subr.mxu0 %v3033
    %3271 = vmatpush2.msra.mxu0 %v3032
    %3272 = vmatprep.subr.mxu0 %v3029
    %3273 = vmatpush2.msra.mxu0 %v3028
    %3274 = vmatprep.mubr.f32.mxu0 %v2961
    %3275 = vmatmul.mubr.f32.gmra.mxu0 %v2960
    %v3276 = vpop.f32.mrf.mxu0
    %v3277 = vadd.f32 %v3177, %v3276
    %v3278 = vpop.f32.mrf.mxu0
    %v3279 = vadd.f32 %v3181, %v3278
    %3280 = vdwg.mxu0
    %3281 = vmatprep.subr.mxu0 %v3153
    %3282 = vmatpush1.msra.mxu0 %v3152
    %3283 = vmatprep.subr.mxu0 %v3149
    %3284 = vmatpush1.msra.mxu0 %v3148
    %3285 = vmatprep.subr.mxu0 %v3145
    %3286 = vmatpush1.msra.mxu0 %v3144
    %3287 = vmatprep.subr.mxu0 %v3141
    %3288 = vmatpush1.msra.mxu0 %v3140
    %3289 = vmatprep.subr.mxu0 %v3137
    %3290 = vmatpush1.msra.mxu0 %v3136
    %3291 = vmatprep.subr.mxu0 %v3133
    %3292 = vmatpush1.msra.mxu0 %v3132
    %3293 = vmatprep.subr.mxu0 %v3129
    %3294 = vmatpush1.msra.mxu0 %v3128
    %3295 = vmatprep.subr.mxu0 %v3125
    %3296 = vmatpush1.msra.mxu0 %v3124
    %3297 = vmatprep.subr.mxu0 %v3121
    %3298 = vmatpush1.msra.mxu0 %v3120
    %3299 = vmatprep.subr.mxu0 %v3117
    %3300 = vmatpush1.msra.mxu0 %v3116
    %3301 = vmatprep.subr.mxu0 %v3113
    %3302 = vmatpush1.msra.mxu0 %v3112
    %3303 = vmatprep.subr.mxu0 %v3109
    %3304 = vmatpush1.msra.mxu0 %v3108
    %3305 = vmatprep.subr.mxu0 %v3105
    %3306 = vmatpush1.msra.mxu0 %v3104
    %3307 = vmatprep.subr.mxu0 %v3101
    %3308 = vmatpush1.msra.mxu0 %v3100
    %3309 = vmatprep.subr.mxu0 %v3097
    %3310 = vmatpush1.msra.mxu0 %v3096
    %3311 = vmatprep.subr.mxu0 %v3093
    %3312 = vmatpush1.msra.mxu0 %v3092
    %3313 = vmatprep.subr.mxu0 0.0
    %3314 = vmatpush2.msra.mxu0 0.0
    %3315 = vmatprep.subr.mxu0 0.0
    %3316 = vmatpush2.msra.mxu0 0.0
    %3317 = vmatprep.subr.mxu0 0.0
    %3318 = vmatpush2.msra.mxu0 0.0
    %3319 = vmatprep.subr.mxu0 0.0
    %3320 = vmatpush2.msra.mxu0 0.0
    %3321 = vmatprep.subr.mxu0 0.0
    %3322 = vmatpush2.msra.mxu0 0.0
    %3323 = vmatprep.subr.mxu0 0.0
    %3324 = vmatpush2.msra.mxu0 0.0
    %3325 = vmatprep.subr.mxu0 0.0
    %3326 = vmatpush2.msra.mxu0 0.0
    %3327 = vmatprep.subr.mxu0 0.0
    %3328 = vmatpush2.msra.mxu0 0.0
    %3329 = vmatprep.subr.mxu0 0.0
    %3330 = vmatpush2.msra.mxu0 0.0
    %3331 = vmatprep.subr.mxu0 0.0
    %3332 = vmatpush2.msra.mxu0 0.0
    %3333 = vmatprep.subr.mxu0 0.0
    %3334 = vmatpush2.msra.mxu0 0.0
    %3335 = vmatprep.subr.mxu0 0.0
    %3336 = vmatpush2.msra.mxu0 0.0
    %3337 = vmatprep.subr.mxu0 %v3202
    %3338 = vmatpush2.msra.mxu0 %v3199
    %3339 = vmatprep.subr.mxu0 %v3165
    %3340 = vmatpush2.msra.mxu0 %v3164
    %3341 = vmatprep.subr.mxu0 %v3161
    %3342 = vmatpush2.msra.mxu0 %v3160
    %3343 = vmatprep.subr.mxu0 %v3157
    %3344 = vmatpush2.msra.mxu0 %v3156
    %3345 = vmatprep.mubr.f32.mxu0 %v3196
    %3346 = vmatmul.mubr.f32.gmra.mxu0 %v2962
    %v3347 = vpop.f32.mrf.mxu0
    %v3348 = vadd.f32 %v3277, %v3347
    %v3349 = vpop.f32.mrf.mxu0
    %v3350 = vadd.f32 %v3279, %v3349
    %3351 = vdwg.mxu0
    %3352 = vmatprep.subr.mxu0 %v3027
    %3353 = vmatpush1.msra.mxu0 %v3026
    %3354 = vmatprep.subr.mxu0 %v3023
    %3355 = vmatpush1.msra.mxu0 %v3022
    %3356 = vmatprep.subr.mxu0 %v3019
    %3357 = vmatpush1.msra.mxu0 %v3018
    %3358 = vmatprep.subr.mxu0 %v3015
    %3359 = vmatpush1.msra.mxu0 %v3014
    %3360 = vmatprep.subr.mxu0 %v3011
    %3361 = vmatpush1.msra.mxu0 %v3010
    %3362 = vmatprep.subr.mxu0 %v3007
    %3363 = vmatpush1.msra.mxu0 %v3006
    %3364 = vmatprep.subr.mxu0 %v3003
    %3365 = vmatpush1.msra.mxu0 %v3002
    %3366 = vmatprep.subr.mxu0 %v2999
    %3367 = vmatpush1.msra.mxu0 %v2998
    %3368 = vmatprep.subr.mxu0 %v2995
    %3369 = vmatpush1.msra.mxu0 %v2994
    %3370 = vmatprep.subr.mxu0 %v2991
    %3371 = vmatpush1.msra.mxu0 %v2990
    %3372 = vmatprep.subr.mxu0 %v2987
    %3373 = vmatpush1.msra.mxu0 %v2986
    %3374 = vmatprep.subr.mxu0 %v2983
    %3375 = vmatpush1.msra.mxu0 %v2982
    %3376 = vmatprep.subr.mxu0 %v2979
    %3377 = vmatpush1.msra.mxu0 %v2978
    %3378 = vmatprep.subr.mxu0 %v2975
    %3379 = vmatpush1.msra.mxu0 %v2974
    %3380 = vmatprep.subr.mxu0 %v2971
    %3381 = vmatpush1.msra.mxu0 %v2970
    %3382 = vmatprep.subr.mxu0 %v2967
    %3383 = vmatpush1.msra.mxu0 %v2966
    %3384 = vmatprep.subr.mxu0 %v3091
    %3385 = vmatpush2.msra.mxu0 %v3090
    %3386 = vmatprep.subr.mxu0 %v3087
    %3387 = vmatpush2.msra.mxu0 %v3086
    %3388 = vmatprep.subr.mxu0 %v3083
    %3389 = vmatpush2.msra.mxu0 %v3082
    %3390 = vmatprep.subr.mxu0 %v3079
    %3391 = vmatpush2.msra.mxu0 %v3078
    %3392 = vmatprep.subr.mxu0 %v3075
    %3393 = vmatpush2.msra.mxu0 %v3074
    %3394 = vmatprep.subr.mxu0 %v3071
    %3395 = vmatpush2.msra.mxu0 %v3070
    %3396 = vmatprep.subr.mxu0 %v3067
    %3397 = vmatpush2.msra.mxu0 %v3066
    %3398 = vmatprep.subr.mxu0 %v3063
    %3399 = vmatpush2.msra.mxu0 %v3062
    %3400 = vmatprep.subr.mxu0 %v3059
    %3401 = vmatpush2.msra.mxu0 %v3058
    %3402 = vmatprep.subr.mxu0 %v3055
    %3403 = vmatpush2.msra.mxu0 %v3054
    %3404 = vmatprep.subr.mxu0 %v3051
    %3405 = vmatpush2.msra.mxu0 %v3050
    %3406 = vmatprep.subr.mxu0 %v3047
    %3407 = vmatpush2.msra.mxu0 %v3046
    %3408 = vmatprep.subr.mxu0 %v3043
    %3409 = vmatpush2.msra.mxu0 %v3042
    %3410 = vmatprep.subr.mxu0 %v3039
    %3411 = vmatpush2.msra.mxu0 %v3038
    %3412 = vmatprep.subr.mxu0 %v3035
    %3413 = vmatpush2.msra.mxu0 %v3034
    %3414 = vmatprep.subr.mxu0 %v3031
    %3415 = vmatpush2.msra.mxu0 %v3030
    %3416 = vmatprep.mubr.f32.mxu0 %v2961
    %3417 = vmatmul.mubr.f32.gmra.mxu0 %v2960
    %v3418 = vpop.f32.mrf.mxu0
    %v3419 = vadd.f32 %v3185, %v3418
    %v3420 = vpop.f32.mrf.mxu0
    %v3421 = vadd.f32 %v3189, %v3420
    %3422 = vdwg.mxu0
    %3423 = vmatprep.subr.mxu0 %v3155
    %3424 = vmatpush1.msra.mxu0 %v3154
    %3425 = vmatprep.subr.mxu0 %v3151
    %3426 = vmatpush1.msra.mxu0 %v3150
    %3427 = vmatprep.subr.mxu0 %v3147
    %3428 = vmatpush1.msra.mxu0 %v3146
    %3429 = vmatprep.subr.mxu0 %v3143
    %3430 = vmatpush1.msra.mxu0 %v3142
    %3431 = vmatprep.subr.mxu0 %v3139
    %3432 = vmatpush1.msra.mxu0 %v3138
    %3433 = vmatprep.subr.mxu0 %v3135
    %3434 = vmatpush1.msra.mxu0 %v3134
    %3435 = vmatprep.subr.mxu0 %v3131
    %3436 = vmatpush1.msra.mxu0 %v3130
    %3437 = vmatprep.subr.mxu0 %v3127
    %3438 = vmatpush1.msra.mxu0 %v3126
    %3439 = vmatprep.subr.mxu0 %v3123
    %3440 = vmatpush1.msra.mxu0 %v3122
    %3441 = vmatprep.subr.mxu0 %v3119
    %3442 = vmatpush1.msra.mxu0 %v3118
    %3443 = vmatprep.subr.mxu0 %v3115
    %3444 = vmatpush1.msra.mxu0 %v3114
    %3445 = vmatprep.subr.mxu0 %v3111
    %3446 = vmatpush1.msra.mxu0 %v3110
    %3447 = vmatprep.subr.mxu0 %v3107
    %3448 = vmatpush1.msra.mxu0 %v3106
    %3449 = vmatprep.subr.mxu0 %v3103
    %3450 = vmatpush1.msra.mxu0 %v3102
    %3451 = vmatprep.subr.mxu0 %v3099
    %3452 = vmatpush1.msra.mxu0 %v3098
    %3453 = vmatprep.subr.mxu0 %v3095
    %3454 = vmatpush1.msra.mxu0 %v3094
    %3455 = vmatprep.subr.mxu0 0.0
    %3456 = vmatpush2.msra.mxu0 0.0
    %3457 = vmatprep.subr.mxu0 0.0
    %3458 = vmatpush2.msra.mxu0 0.0
    %3459 = vmatprep.subr.mxu0 0.0
    %3460 = vmatpush2.msra.mxu0 0.0
    %3461 = vmatprep.subr.mxu0 0.0
    %3462 = vmatpush2.msra.mxu0 0.0
    %3463 = vmatprep.subr.mxu0 0.0
    %3464 = vmatpush2.msra.mxu0 0.0
    %3465 = vmatprep.subr.mxu0 0.0
    %3466 = vmatpush2.msra.mxu0 0.0
    %3467 = vmatprep.subr.mxu0 0.0
    %3468 = vmatpush2.msra.mxu0 0.0
    %3469 = vmatprep.subr.mxu0 0.0
    %3470 = vmatpush2.msra.mxu0 0.0
    %3471 = vmatprep.subr.mxu0 0.0
    %3472 = vmatpush2.msra.mxu0 0.0
    %3473 = vmatprep.subr.mxu0 0.0
    %3474 = vmatpush2.msra.mxu0 0.0
    %3475 = vmatprep.subr.mxu0 0.0
    %3476 = vmatpush2.msra.mxu0 0.0
    %3477 = vmatprep.subr.mxu0 0.0
    %3478 = vmatpush2.msra.mxu0 0.0
    %3479 = vmatprep.subr.mxu0 %v3208
    %3480 = vmatpush2.msra.mxu0 %v3205
    %3481 = vmatprep.subr.mxu0 %v3167
    %3482 = vmatpush2.msra.mxu0 %v3166
    %3483 = vmatprep.subr.mxu0 %v3163
    %3484 = vmatpush2.msra.mxu0 %v3162
    %3485 = vmatprep.subr.mxu0 %v3159
    %3486 = vmatpush2.msra.mxu0 %v3158
    %3487 = vmatprep.mubr.f32.mxu0 %v3196
    %3488 = vmatmul.mubr.f32.gmra.mxu0 %v2962
    %v3489 = vpop.f32.mrf.mxu0
    %v3490 = vadd.f32 %v3419, %v3489
    %v3491 = vpop.f32.mrf.mxu0
    %v3492 = vadd.f32 %v3421, %v3491
    %3493 = vdwg.mxu0
    %3494 = vmatprep.subr.mxu0 0.0
    %3495 = vmatpush1.msra.mxu0 0.0
    %3496 = vmatprep.subr.mxu0 0.0
    %3497 = vmatpush1.msra.mxu0 0.0
    %3498 = vmatprep.subr.mxu0 0.0
    %3499 = vmatpush1.msra.mxu0 0.0
    %3500 = vmatprep.subr.mxu0 0.0
    %3501 = vmatpush1.msra.mxu0 0.0
    %3502 = vmatprep.subr.mxu0 0.0
    %3503 = vmatpush1.msra.mxu0 0.0
    %3504 = vmatprep.subr.mxu0 0.0
    %3505 = vmatpush1.msra.mxu0 0.0
    %3506 = vmatprep.subr.mxu0 0.0
    %3507 = vmatpush1.msra.mxu0 0.0
    %3508 = vmatprep.subr.mxu0 0.0
    %3509 = vmatpush1.msra.mxu0 0.0
    %3510 = vmatprep.subr.mxu0 0.0
    %3511 = vmatpush1.msra.mxu0 0.0
    %3512 = vmatprep.subr.mxu0 0.0
    %3513 = vmatpush1.msra.mxu0 0.0
    %3514 = vmatprep.subr.mxu0 0.0
    %3515 = vmatpush1.msra.mxu0 0.0
    %3516 = vmatprep.subr.mxu0 0.0
    %3517 = vmatpush1.msra.mxu0 0.0
    %3518 = vmatprep.subr.mxu0 0.0
    %3519 = vmatpush1.msra.mxu0 0.0
    %3520 = vmatprep.subr.mxu0 0.0
    %3521 = vmatpush1.msra.mxu0 0.0
    %3522 = vmatprep.subr.mxu0 0.0
    %3523 = vmatpush1.msra.mxu0 0.0
    %3524 = vmatprep.subr.mxu0 %v3350
    %3525 = vmatpush1.msra.mxu0 %v3348
    %3526 = vmatprep.subr.mxu0 0.0
    %3527 = vmatpush2.msra.mxu0 0.0
    %3528 = vmatprep.subr.mxu0 0.0
    %3529 = vmatpush2.msra.mxu0 0.0
    %3530 = vmatprep.subr.mxu0 0.0
    %3531 = vmatpush2.msra.mxu0 0.0
    %3532 = vmatprep.subr.mxu0 0.0
    %3533 = vmatpush2.msra.mxu0 0.0
    %3534 = vmatprep.subr.mxu0 0.0
    %3535 = vmatpush2.msra.mxu0 0.0
    %3536 = vmatprep.subr.mxu0 0.0
    %3537 = vmatpush2.msra.mxu0 0.0
    %3538 = vmatprep.subr.mxu0 0.0
    %3539 = vmatpush2.msra.mxu0 0.0
    %3540 = vmatprep.subr.mxu0 0.0
    %3541 = vmatpush2.msra.mxu0 0.0
    %3542 = vmatprep.subr.mxu0 0.0
    %3543 = vmatpush2.msra.mxu0 0.0
    %3544 = vmatprep.subr.mxu0 0.0
    %3545 = vmatpush2.msra.mxu0 0.0
    %3546 = vmatprep.subr.mxu0 0.0
    %3547 = vmatpush2.msra.mxu0 0.0
    %3548 = vmatprep.subr.mxu0 0.0
    %3549 = vmatpush2.msra.mxu0 0.0
    %3550 = vmatprep.subr.mxu0 0.0
    %3551 = vmatpush2.msra.mxu0 0.0
    %3552 = vmatprep.subr.mxu0 0.0
    %3553 = vmatpush2.msra.mxu0 0.0
    %3554 = vmatprep.subr.mxu0 0.0
    %3555 = vmatpush2.msra.mxu0 0.0
    %3556 = vmatprep.subr.mxu0 0.0
    %3557 = vmatpush2.msra.mxu0 0.0
    %3558 = vmatprep.mubr.f32.mxu0 0.0
    %3559 = vmatmul.mubr.f32.gmra.mxu0 %v350
    %v3560 = vpop.f32.mrf.mxu0
    %v3561 = vadd.f32 0.0, %v3560
    %v3562 = vpop.f32.mrf.mxu0
    %v3563 = vadd.f32 0.0, %v3562
    %3564 = vdwg.mxu0
    %3565 = vmatprep.subr.mxu0 0.0
    %3566 = vmatpush1.msra.mxu0 0.0
    %3567 = vmatprep.subr.mxu0 0.0
    %3568 = vmatpush1.msra.mxu0 0.0
    %3569 = vmatprep.subr.mxu0 0.0
    %3570 = vmatpush1.msra.mxu0 0.0
    %3571 = vmatprep.subr.mxu0 0.0
    %3572 = vmatpush1.msra.mxu0 0.0
    %3573 = vmatprep.subr.mxu0 0.0
    %3574 = vmatpush1.msra.mxu0 0.0
    %3575 = vmatprep.subr.mxu0 0.0
    %3576 = vmatpush1.msra.mxu0 0.0
    %3577 = vmatprep.subr.mxu0 0.0
    %3578 = vmatpush1.msra.mxu0 0.0
    %3579 = vmatprep.subr.mxu0 0.0
    %3580 = vmatpush1.msra.mxu0 0.0
    %3581 = vmatprep.subr.mxu0 0.0
    %3582 = vmatpush1.msra.mxu0 0.0
    %3583 = vmatprep.subr.mxu0 0.0
    %3584 = vmatpush1.msra.mxu0 0.0
    %3585 = vmatprep.subr.mxu0 0.0
    %3586 = vmatpush1.msra.mxu0 0.0
    %3587 = vmatprep.subr.mxu0 0.0
    %3588 = vmatpush1.msra.mxu0 0.0
    %3589 = vmatprep.subr.mxu0 0.0
    %3590 = vmatpush1.msra.mxu0 0.0
    %3591 = vmatprep.subr.mxu0 0.0
    %3592 = vmatpush1.msra.mxu0 0.0
    %3593 = vmatprep.subr.mxu0 0.0
    %3594 = vmatpush1.msra.mxu0 0.0
    %3595 = vmatprep.subr.mxu0 %v3492
    %3596 = vmatpush1.msra.mxu0 %v3490
    %3597 = vmatprep.subr.mxu0 0.0
    %3598 = vmatpush2.msra.mxu0 0.0
    %3599 = vmatprep.subr.mxu0 0.0
    %3600 = vmatpush2.msra.mxu0 0.0
    %3601 = vmatprep.subr.mxu0 0.0
    %3602 = vmatpush2.msra.mxu0 0.0
    %3603 = vmatprep.subr.mxu0 0.0
    %3604 = vmatpush2.msra.mxu0 0.0
    %3605 = vmatprep.subr.mxu0 0.0
    %3606 = vmatpush2.msra.mxu0 0.0
    %3607 = vmatprep.subr.mxu0 0.0
    %3608 = vmatpush2.msra.mxu0 0.0
    %3609 = vmatprep.subr.mxu0 0.0
    %3610 = vmatpush2.msra.mxu0 0.0
    %3611 = vmatprep.subr.mxu0 0.0
    %3612 = vmatpush2.msra.mxu0 0.0
    %3613 = vmatprep.subr.mxu0 0.0
    %3614 = vmatpush2.msra.mxu0 0.0
    %3615 = vmatprep.subr.mxu0 0.0
    %3616 = vmatpush2.msra.mxu0 0.0
    %3617 = vmatprep.subr.mxu0 0.0
    %3618 = vmatpush2.msra.mxu0 0.0
    %3619 = vmatprep.subr.mxu0 0.0
    %3620 = vmatpush2.msra.mxu0 0.0
    %3621 = vmatprep.subr.mxu0 0.0
    %3622 = vmatpush2.msra.mxu0 0.0
    %3623 = vmatprep.subr.mxu0 0.0
    %3624 = vmatpush2.msra.mxu0 0.0
    %3625 = vmatprep.subr.mxu0 0.0
    %3626 = vmatpush2.msra.mxu0 0.0
    %3627 = vmatprep.subr.mxu0 0.0
    %3628 = vmatpush2.msra.mxu0 0.0
    %3629 = vmatprep.mubr.f32.mxu0 0.0
    %3630 = vmatmul.mubr.f32.gmra.mxu0 %v350
    %v3631 = vpop.f32.mrf.mxu0
    %v3632 = vadd.f32 0.0, %v3631
    %v3633 = vpop.f32.mrf.mxu0
    %v3634 = vadd.f32 0.0, %v3633
    %3635 = vdwg.mxu0
    %v3636 = vmul.f32 %v3561, 0.125
    %v3637 = vmul.f32 %v3563, 0.125
    %v3638 = vmul.f32 %v3632, 0.125
    %v3639 = vmul.f32 %v3634, 0.125
    %v3640 = vlaneseq
    %v3641 = vshrl.u32 %v3640, 7
    %v3642 = vsub.s32 0, %v3641
    %v3643 = vrot.slane %v3636, %v3642
    %v3644 = vlaneseq
    %v3645 = vshrl.u32 %v3644, 7
    %v3646 = vsub.s32 0, %v3645
    %v3647 = vrot.slane %v3637, %v3646
    %v3648 = vlaneseq
    %v3649 = vshrl.u32 %v3648, 7
    %v3650 = vsub.s32 0, %v3649
    %v3651 = vrot.slane %v3638, %v3650
    %v3652 = vlaneseq
    %v3653 = vshrl.u32 %v3652, 7
    %v3654 = vsub.s32 0, %v3653
    %v3655 = vrot.slane %v3639, %v3654
    %v3656 = vsub.f32 %v3348, %v3643
    %v3657 = vsub.f32 %v3350, %v3647
    %v3658 = vsub.f32 %v3490, %v3651
    %v3659 = vsub.f32 %v3492, %v3655
    %v3660 = vmul.f32 %v3656, %v3656
    %v3661 = vmul.f32 %v3657, %v3657
    %v3662 = vmul.f32 %v3658, %v3658
    %v3663 = vmul.f32 %v3659, %v3659
    %3664 = vmatprep.subr.mxu0 0.0
    %3665 = vmatpush1.msra.mxu0 0.0
    %3666 = vmatprep.subr.mxu0 0.0
    %3667 = vmatpush1.msra.mxu0 0.0
    %3668 = vmatprep.subr.mxu0 0.0
    %3669 = vmatpush1.msra.mxu0 0.0
    %3670 = vmatprep.subr.mxu0 0.0
    %3671 = vmatpush1.msra.mxu0 0.0
    %3672 = vmatprep.subr.mxu0 0.0
    %3673 = vmatpush1.msra.mxu0 0.0
    %3674 = vmatprep.subr.mxu0 0.0
    %3675 = vmatpush1.msra.mxu0 0.0
    %3676 = vmatprep.subr.mxu0 0.0
    %3677 = vmatpush1.msra.mxu0 0.0
    %3678 = vmatprep.subr.mxu0 0.0
    %3679 = vmatpush1.msra.mxu0 0.0
    %3680 = vmatprep.subr.mxu0 0.0
    %3681 = vmatpush1.msra.mxu0 0.0
    %3682 = vmatprep.subr.mxu0 0.0
    %3683 = vmatpush1.msra.mxu0 0.0
    %3684 = vmatprep.subr.mxu0 0.0
    %3685 = vmatpush1.msra.mxu0 0.0
    %3686 = vmatprep.subr.mxu0 0.0
    %3687 = vmatpush1.msra.mxu0 0.0
    %3688 = vmatprep.subr.mxu0 0.0
    %3689 = vmatpush1.msra.mxu0 0.0
    %3690 = vmatprep.subr.mxu0 0.0
    %3691 = vmatpush1.msra.mxu0 0.0
    %3692 = vmatprep.subr.mxu0 0.0
    %3693 = vmatpush1.msra.mxu0 0.0
    %3694 = vmatprep.subr.mxu0 %v3661
    %3695 = vmatpush1.msra.mxu0 %v3660
    %3696 = vmatprep.subr.mxu0 0.0
    %3697 = vmatpush2.msra.mxu0 0.0
    %3698 = vmatprep.subr.mxu0 0.0
    %3699 = vmatpush2.msra.mxu0 0.0
    %3700 = vmatprep.subr.mxu0 0.0
    %3701 = vmatpush2.msra.mxu0 0.0
    %3702 = vmatprep.subr.mxu0 0.0
    %3703 = vmatpush2.msra.mxu0 0.0
    %3704 = vmatprep.subr.mxu0 0.0
    %3705 = vmatpush2.msra.mxu0 0.0
    %3706 = vmatprep.subr.mxu0 0.0
    %3707 = vmatpush2.msra.mxu0 0.0
    %3708 = vmatprep.subr.mxu0 0.0
    %3709 = vmatpush2.msra.mxu0 0.0
    %3710 = vmatprep.subr.mxu0 0.0
    %3711 = vmatpush2.msra.mxu0 0.0
    %3712 = vmatprep.subr.mxu0 0.0
    %3713 = vmatpush2.msra.mxu0 0.0
    %3714 = vmatprep.subr.mxu0 0.0
    %3715 = vmatpush2.msra.mxu0 0.0
    %3716 = vmatprep.subr.mxu0 0.0
    %3717 = vmatpush2.msra.mxu0 0.0
    %3718 = vmatprep.subr.mxu0 0.0
    %3719 = vmatpush2.msra.mxu0 0.0
    %3720 = vmatprep.subr.mxu0 0.0
    %3721 = vmatpush2.msra.mxu0 0.0
    %3722 = vmatprep.subr.mxu0 0.0
    %3723 = vmatpush2.msra.mxu0 0.0
    %3724 = vmatprep.subr.mxu0 0.0
    %3725 = vmatpush2.msra.mxu0 0.0
    %3726 = vmatprep.subr.mxu0 0.0
    %3727 = vmatpush2.msra.mxu0 0.0
    %3728 = vmatprep.mubr.f32.mxu0 0.0
    %3729 = vmatmul.mubr.f32.gmra.mxu0 %v350
    %v3730 = vpop.f32.mrf.mxu0
    %v3731 = vadd.f32 0.0, %v3730
    %v3732 = vpop.f32.mrf.mxu0
    %v3733 = vadd.f32 0.0, %v3732
    %3734 = vdwg.mxu0
    %3735 = vmatprep.subr.mxu0 0.0
    %3736 = vmatpush1.msra.mxu0 0.0
    %3737 = vmatprep.subr.mxu0 0.0
    %3738 = vmatpush1.msra.mxu0 0.0
    %3739 = vmatprep.subr.mxu0 0.0
    %3740 = vmatpush1.msra.mxu0 0.0
    %3741 = vmatprep.subr.mxu0 0.0
    %3742 = vmatpush1.msra.mxu0 0.0
    %3743 = vmatprep.subr.mxu0 0.0
    %3744 = vmatpush1.msra.mxu0 0.0
    %3745 = vmatprep.subr.mxu0 0.0
    %3746 = vmatpush1.msra.mxu0 0.0
    %3747 = vmatprep.subr.mxu0 0.0
    %3748 = vmatpush1.msra.mxu0 0.0
    %3749 = vmatprep.subr.mxu0 0.0
    %3750 = vmatpush1.msra.mxu0 0.0
    %3751 = vmatprep.subr.mxu0 0.0
    %3752 = vmatpush1.msra.mxu0 0.0
    %3753 = vmatprep.subr.mxu0 0.0
    %3754 = vmatpush1.msra.mxu0 0.0
    %3755 = vmatprep.subr.mxu0 0.0
    %3756 = vmatpush1.msra.mxu0 0.0
    %3757 = vmatprep.subr.mxu0 0.0
    %3758 = vmatpush1.msra.mxu0 0.0
    %3759 = vmatprep.subr.mxu0 0.0
    %3760 = vmatpush1.msra.mxu0 0.0
    %3761 = vmatprep.subr.mxu0 0.0
    %3762 = vmatpush1.msra.mxu0 0.0
    %3763 = vmatprep.subr.mxu0 0.0
    %3764 = vmatpush1.msra.mxu0 0.0
    %3765 = vmatprep.subr.mxu0 %v3663
    %3766 = vmatpush1.msra.mxu0 %v3662
    %3767 = vmatprep.subr.mxu0 0.0
    %3768 = vmatpush2.msra.mxu0 0.0
    %3769 = vmatprep.subr.mxu0 0.0
    %3770 = vmatpush2.msra.mxu0 0.0
    %3771 = vmatprep.subr.mxu0 0.0
    %3772 = vmatpush2.msra.mxu0 0.0
    %3773 = vmatprep.subr.mxu0 0.0
    %3774 = vmatpush2.msra.mxu0 0.0
    %3775 = vmatprep.subr.mxu0 0.0
    %3776 = vmatpush2.msra.mxu0 0.0
    %3777 = vmatprep.subr.mxu0 0.0
    %3778 = vmatpush2.msra.mxu0 0.0
    %3779 = vmatprep.subr.mxu0 0.0
    %3780 = vmatpush2.msra.mxu0 0.0
    %3781 = vmatprep.subr.mxu0 0.0
    %3782 = vmatpush2.msra.mxu0 0.0
    %3783 = vmatprep.subr.mxu0 0.0
    %3784 = vmatpush2.msra.mxu0 0.0
    %3785 = vmatprep.subr.mxu0 0.0
    %3786 = vmatpush2.msra.mxu0 0.0
    %3787 = vmatprep.subr.mxu0 0.0
    %3788 = vmatpush2.msra.mxu0 0.0
    %3789 = vmatprep.subr.mxu0 0.0
    %3790 = vmatpush2.msra.mxu0 0.0
    %3791 = vmatprep.subr.mxu0 0.0
    %3792 = vmatpush2.msra.mxu0 0.0
    %3793 = vmatprep.subr.mxu0 0.0
    %3794 = vmatpush2.msra.mxu0 0.0
    %3795 = vmatprep.subr.mxu0 0.0
    %3796 = vmatpush2.msra.mxu0 0.0
    %3797 = vmatprep.subr.mxu0 0.0
    %3798 = vmatpush2.msra.mxu0 0.0
    %3799 = vmatprep.mubr.f32.mxu0 0.0
    %3800 = vmatmul.mubr.f32.gmra.mxu0 %v350
    %v3801 = vpop.f32.mrf.mxu0
    %v3802 = vadd.f32 0.0, %v3801
    %v3803 = vpop.f32.mrf.mxu0
    %v3804 = vadd.f32 0.0, %v3803
    %3805 = vdwg.mxu0
    %v3806 = vmul.f32 %v3731, 0.125
    %v3807 = vmul.f32 %v3733, 0.125
    %v3808 = vmul.f32 %v3802, 0.125
    %v3809 = vmul.f32 %v3804, 0.125
    %v3810 = vadd.f32 %v3806, 1e-06
    %v3811 = vadd.f32 %v3807, 1e-06
    %v3812 = vadd.f32 %v3808, 1e-06
    %v3813 = vadd.f32 %v3809, 1e-06
    %v3814 = vrsqrt.pop %v3810
    %v3815 = vrsqrt.pop %v3811
    %v3816 = vrsqrt.pop %v3812
    %v3817 = vrsqrt.pop %v3813
    %v3818 = vlaneseq
    %v3819 = vshrl.u32 %v3818, 7
    %v3820 = vsub.s32 0, %v3819
    %v3821 = vrot.slane %v3814, %v3820
    %v3822 = vlaneseq
    %v3823 = vshrl.u32 %v3822, 7
    %v3824 = vsub.s32 0, %v3823
    %v3825 = vrot.slane %v3815, %v3824
    %v3826 = vlaneseq
    %v3827 = vshrl.u32 %v3826, 7
    %v3828 = vsub.s32 0, %v3827
    %v3829 = vrot.slane %v3816, %v3828
    %v3830 = vlaneseq
    %v3831 = vshrl.u32 %v3830, 7
    %v3832 = vsub.s32 0, %v3831
    %v3833 = vrot.slane %v3817, %v3832
    %v3834 = vmul.f32 %v3656, %v3821
    %v3835 = vmul.f32 %v3657, %v3825
    %v3836 = vmul.f32 %v3658, %v3829
    %v3837 = vmul.f32 %v3659, %v3833
    %v3838 = vld [vmem:[%s77] sm:$0xf]
    %v3840 = vlaneseq
    %v3841 = vshrl.u32 %v3840, 7
    %v3842 = vsub.s32 0, %v3841
    %v3843 = vrot.slane %v3838, %v3842
    %v3844 = vlaneseq
    %v3845 = vshrl.u32 %v3844, 7
    %v3846 = vsub.s32 1, %v3845
    %v3847 = vrot.slane %v3838, %v3846
    %v3848 = vlaneseq
    %v3849 = vshrl.u32 %v3848, 7
    %v3850 = vsub.s32 2, %v3849
    %v3851 = vrot.slane %v3838, %v3850
    %v3852 = vlaneseq
    %v3853 = vshrl.u32 %v3852, 7
    %v3854 = vsub.s32 3, %v3853
    %v3855 = vrot.slane %v3838, %v3854
    %v3860 = vmul.f32 %v3834, %v3843
    %v3861 = vmul.f32 %v3835, %v3847
    %v3862 = vmul.f32 %v3836, %v3851
    %v3863 = vmul.f32 %v3837, %v3855
    %v3864 = vld [vmem:[%s79] sm:$0xf]
    %v3866 = vlaneseq
    %v3867 = vshrl.u32 %v3866, 7
    %v3868 = vsub.s32 0, %v3867
    %v3869 = vrot.slane %v3864, %v3868
    %v3870 = vlaneseq
    %v3871 = vshrl.u32 %v3870, 7
    %v3872 = vsub.s32 1, %v3871
    %v3873 = vrot.slane %v3864, %v3872
    %v3874 = vlaneseq
    %v3875 = vshrl.u32 %v3874, 7
    %v3876 = vsub.s32 2, %v3875
    %v3877 = vrot.slane %v3864, %v3876
    %v3878 = vlaneseq
    %v3879 = vshrl.u32 %v3878, 7
    %v3880 = vsub.s32 3, %v3879
    %v3881 = vrot.slane %v3864, %v3880
    %v3886 = vadd.f32 %v3860, %v3869
    %v3887 = vadd.f32 %v3861, %v3873
    %v3888 = vadd.f32 %v3862, %v3877
    %v3889 = vadd.f32 %v3863, %v3881
    %vm3890 = vcmask 261120
    %v3891 = vsel %vm3890, 1.0, 0
    %3893 = vmatprep.subr.mxu0 0.0
    %3894 = vmatpush1.msra.mxu0 0.0
    %3895 = vmatprep.subr.mxu0 0.0
    %3896 = vmatpush1.msra.mxu0 0.0
    %3897 = vmatprep.subr.mxu0 0.0
    %3898 = vmatpush1.msra.mxu0 0.0
    %3899 = vmatprep.subr.mxu0 0.0
    %3900 = vmatpush1.msra.mxu0 0.0
    %3901 = vmatprep.subr.mxu0 0.0
    %3902 = vmatpush1.msra.mxu0 0.0
    %3903 = vmatprep.subr.mxu0 0.0
    %3904 = vmatpush1.msra.mxu0 0.0
    %3905 = vmatprep.subr.mxu0 0.0
    %3906 = vmatpush1.msra.mxu0 0.0
    %3907 = vmatprep.subr.mxu0 0.0
    %3908 = vmatpush1.msra.mxu0 0.0
    %3909 = vmatprep.subr.mxu0 0.0
    %3910 = vmatpush1.msra.mxu0 0.0
    %3911 = vmatprep.subr.mxu0 0.0
    %3912 = vmatpush1.msra.mxu0 0.0
    %3913 = vmatprep.subr.mxu0 0.0
    %3914 = vmatpush1.msra.mxu0 0.0
    %3915 = vmatprep.subr.mxu0 0.0
    %3916 = vmatpush1.msra.mxu0 0.0
    %3917 = vmatprep.subr.mxu0 0.0
    %3918 = vmatpush1.msra.mxu0 %v861
    %3919 = vmatprep.subr.mxu0 0.0
    %3920 = vmatpush1.msra.mxu0 %v860
    %3921 = vmatprep.subr.mxu0 0.0
    %3922 = vmatpush1.msra.mxu0 %v859
    %3923 = vmatprep.subr.mxu0 0.0
    %3924 = vmatpush1.msra.mxu0 %v858
    %3925 = vmatprep.subr.mxu0 0.0
    %3926 = vmatpush2.msra.mxu0 0.0
    %3927 = vmatprep.subr.mxu0 0.0
    %3928 = vmatpush2.msra.mxu0 0.0
    %3929 = vmatprep.subr.mxu0 0.0
    %3930 = vmatpush2.msra.mxu0 0.0
    %3931 = vmatprep.subr.mxu0 0.0
    %3932 = vmatpush2.msra.mxu0 0.0
    %3933 = vmatprep.subr.mxu0 0.0
    %3934 = vmatpush2.msra.mxu0 0.0
    %3935 = vmatprep.subr.mxu0 0.0
    %3936 = vmatpush2.msra.mxu0 0.0
    %3937 = vmatprep.subr.mxu0 0.0
    %3938 = vmatpush2.msra.mxu0 0.0
    %3939 = vmatprep.subr.mxu0 0.0
    %3940 = vmatpush2.msra.mxu0 0.0
    %3941 = vmatprep.subr.mxu0 0.0
    %3942 = vmatpush2.msra.mxu0 0.0
    %3943 = vmatprep.subr.mxu0 0.0
    %3944 = vmatpush2.msra.mxu0 0.0
    %3945 = vmatprep.subr.mxu0 0.0
    %3946 = vmatpush2.msra.mxu0 0.0
    %3947 = vmatprep.subr.mxu0 0.0
    %3948 = vmatpush2.msra.mxu0 0.0
    %3949 = vmatprep.subr.mxu0 0.0
    %3950 = vmatpush2.msra.mxu0 0.0
    %3951 = vmatprep.subr.mxu0 0.0
    %3952 = vmatpush2.msra.mxu0 0.0
    %3953 = vmatprep.subr.mxu0 0.0
    %3954 = vmatpush2.msra.mxu0 0.0
    %3955 = vmatprep.subr.mxu0 0.0
    %3956 = vmatpush2.msra.mxu0 0.0
    %3957 = vmatprep.mubr.f32.mxu0 0.0
    %3958 = vmatmul.mubr.f32.gmra.mxu0 %v3891
    %v3959 = vpop.f32.mrf.mxu0
    %v3960 = vadd.f32 0.0, %v3959
    %v3961 = vpop.f32.mrf.mxu0
    %3962 = vdwg.mxu0
    %v3963 = vmul.f32 %v3960, 0.03125
    %v3964 = vlaneseq
    %v3965 = vshrl.u32 %v3964, 7
    %v3966 = vsub.s32 0, %v3965
    %v3967 = vrot.slane %v3963, %v3966
    %v3968 = vsub.f32 %v858, %v3967
    %v3969 = vsub.f32 %v859, %v3967
    %v3970 = vsub.f32 %v860, %v3967
    %v3971 = vsub.f32 %v861, %v3967
    %v3972 = vmul.f32 %v3968, %v3968
    %v3973 = vmul.f32 %v3969, %v3969
    %v3974 = vmul.f32 %v3970, %v3970
    %v3975 = vmul.f32 %v3971, %v3971
    %3976 = vmatprep.subr.mxu0 0.0
    %3977 = vmatpush1.msra.mxu0 0.0
    %3978 = vmatprep.subr.mxu0 0.0
    %3979 = vmatpush1.msra.mxu0 0.0
    %3980 = vmatprep.subr.mxu0 0.0
    %3981 = vmatpush1.msra.mxu0 0.0
    %3982 = vmatprep.subr.mxu0 0.0
    %3983 = vmatpush1.msra.mxu0 0.0
    %3984 = vmatprep.subr.mxu0 0.0
    %3985 = vmatpush1.msra.mxu0 0.0
    %3986 = vmatprep.subr.mxu0 0.0
    %3987 = vmatpush1.msra.mxu0 0.0
    %3988 = vmatprep.subr.mxu0 0.0
    %3989 = vmatpush1.msra.mxu0 0.0
    %3990 = vmatprep.subr.mxu0 0.0
    %3991 = vmatpush1.msra.mxu0 0.0
    %3992 = vmatprep.subr.mxu0 0.0
    %3993 = vmatpush1.msra.mxu0 0.0
    %3994 = vmatprep.subr.mxu0 0.0
    %3995 = vmatpush1.msra.mxu0 0.0
    %3996 = vmatprep.subr.mxu0 0.0
    %3997 = vmatpush1.msra.mxu0 0.0
    %3998 = vmatprep.subr.mxu0 0.0
    %3999 = vmatpush1.msra.mxu0 0.0
    %4000 = vmatprep.subr.mxu0 0.0
    %4001 = vmatpush1.msra.mxu0 %v3975
    %4002 = vmatprep.subr.mxu0 0.0
    %4003 = vmatpush1.msra.mxu0 %v3974
    %4004 = vmatprep.subr.mxu0 0.0
    %4005 = vmatpush1.msra.mxu0 %v3973
    %4006 = vmatprep.subr.mxu0 0.0
    %4007 = vmatpush1.msra.mxu0 %v3972
    %4008 = vmatprep.subr.mxu0 0.0
    %4009 = vmatpush2.msra.mxu0 0.0
    %4010 = vmatprep.subr.mxu0 0.0
    %4011 = vmatpush2.msra.mxu0 0.0
    %4012 = vmatprep.subr.mxu0 0.0
    %4013 = vmatpush2.msra.mxu0 0.0
    %4014 = vmatprep.subr.mxu0 0.0
    %4015 = vmatpush2.msra.mxu0 0.0
    %4016 = vmatprep.subr.mxu0 0.0
    %4017 = vmatpush2.msra.mxu0 0.0
    %4018 = vmatprep.subr.mxu0 0.0
    %4019 = vmatpush2.msra.mxu0 0.0
    %4020 = vmatprep.subr.mxu0 0.0
    %4021 = vmatpush2.msra.mxu0 0.0
    %4022 = vmatprep.subr.mxu0 0.0
    %4023 = vmatpush2.msra.mxu0 0.0
    %4024 = vmatprep.subr.mxu0 0.0
    %4025 = vmatpush2.msra.mxu0 0.0
    %4026 = vmatprep.subr.mxu0 0.0
    %4027 = vmatpush2.msra.mxu0 0.0
    %4028 = vmatprep.subr.mxu0 0.0
    %4029 = vmatpush2.msra.mxu0 0.0
    %4030 = vmatprep.subr.mxu0 0.0
    %4031 = vmatpush2.msra.mxu0 0.0
    %4032 = vmatprep.subr.mxu0 0.0
    %4033 = vmatpush2.msra.mxu0 0.0
    %4034 = vmatprep.subr.mxu0 0.0
    %4035 = vmatpush2.msra.mxu0 0.0
    %4036 = vmatprep.subr.mxu0 0.0
    %4037 = vmatpush2.msra.mxu0 0.0
    %4038 = vmatprep.subr.mxu0 0.0
    %4039 = vmatpush2.msra.mxu0 0.0
    %4040 = vmatprep.mubr.f32.mxu0 0.0
    %4041 = vmatmul.mubr.f32.gmra.mxu0 %v3891
    %v4042 = vpop.f32.mrf.mxu0
    %v4043 = vadd.f32 0.0, %v4042
    %v4044 = vpop.f32.mrf.mxu0
    %4045 = vdwg.mxu0
    %v4046 = vmul.f32 %v4043, 0.03125
    %v4047 = vadd.f32 %v4046, 1e-06
    %v4048 = vrsqrt.pop %v4047
    %v4049 = vlaneseq
    %v4050 = vshrl.u32 %v4049, 7
    %v4051 = vsub.s32 0, %v4050
    %v4052 = vrot.slane %v4048, %v4051
    %v4053 = vmul.f32 %v3968, %v4052
    %v4054 = vmul.f32 %v3969, %v4052
    %v4055 = vmul.f32 %v3970, %v4052
    %v4056 = vmul.f32 %v3971, %v4052
    %v4057 = vld [vmem:[%s85] sm:$0x1]
    %v4059 = vlaneseq
    %v4060 = vshrl.u32 %v4059, 7
    %v4061 = vsub.s32 0, %v4060
    %v4062 = vrot.slane %v4057, %v4061
    %v4064 = vmul.f32 %v4053, %v4062
    %v4065 = vmul.f32 %v4054, %v4062
    %v4066 = vmul.f32 %v4055, %v4062
    %v4067 = vmul.f32 %v4056, %v4062
    %v4068 = vld [vmem:[%s87] sm:$0x1]
    %v4070 = vlaneseq
    %v4071 = vshrl.u32 %v4070, 7
    %v4072 = vsub.s32 0, %v4071
    %v4073 = vrot.slane %v4068, %v4072
    %v4075 = vadd.f32 %v4064, %v4073
    %v4076 = vadd.f32 %v4065, %v4073
    %v4077 = vadd.f32 %v4066, %v4073
    %v4078 = vadd.f32 %v4067, %v4073
    %v4079 = vmax.f32 %v4075, 0.0
    %v4080 = vmax.f32 %v4076, 0.0
    %v4081 = vmax.f32 %v4077, 0.0
    %v4082 = vmax.f32 %v4078, 0.0
    %v4083 = vld [vmem:[%s89] sm:$0xff]
    %v4084 = vld [vmem:[%s89 + $0x8] sm:$0xff]
    %v4085 = vld [vmem:[%s89 + $0x10] sm:$0xff]
    %v4086 = vld [vmem:[%s89 + $0x18] sm:$0xff]
    %v4087 = vld [vmem:[%s89 + $0x20] sm:$0xff]
    %v4088 = vld [vmem:[%s89 + $0x28] sm:$0xff]
    %v4089 = vld [vmem:[%s89 + $0x30] sm:$0x3]
    %v4091 = vsel %vm2405, %v4079, 0
    %v4094 = vsel %vm2405, %v4080, 0
    %v4097 = vsel %vm2405, %v4081, 0
    %v4100 = vsel %vm2405, %v4082, 0
    %v4103 = vsel %vm2409, %v4089, 0
    %4105 = vmatprep.subr.mxu0 0.0
    %4106 = vmatpush1.msra.mxu0 0.0
    %4107 = vmatprep.subr.mxu0 0.0
    %4108 = vmatpush1.msra.mxu0 0.0
    %4109 = vmatprep.subr.mxu0 0.0
    %4110 = vmatpush1.msra.mxu0 0.0
    %4111 = vmatprep.subr.mxu0 0.0
    %4112 = vmatpush1.msra.mxu0 0.0
    %4113 = vmatprep.subr.mxu0 0.0
    %4114 = vmatpush1.msra.mxu0 0.0
    %4115 = vmatprep.subr.mxu0 0.0
    %4116 = vmatpush1.msra.mxu0 0.0
    %4117 = vmatprep.subr.mxu0 0.0
    %4118 = vmatpush1.msra.mxu0 0.0
    %4119 = vmatprep.subr.mxu0 0.0
    %4120 = vmatpush1.msra.mxu0 0.0
    %4121 = vmatprep.subr.mxu0 0.0
    %4122 = vmatpush1.msra.mxu0 0.0
    %4123 = vmatprep.subr.mxu0 0.0
    %4124 = vmatpush1.msra.mxu0 %v4103
    %4125 = vmatprep.subr.mxu0 0.0
    %4126 = vmatpush1.msra.mxu0 %v4088
    %4127 = vmatprep.subr.mxu0 0.0
    %4128 = vmatpush1.msra.mxu0 %v4087
    %4129 = vmatprep.subr.mxu0 0.0
    %4130 = vmatpush1.msra.mxu0 %v4086
    %4131 = vmatprep.subr.mxu0 0.0
    %4132 = vmatpush1.msra.mxu0 %v4085
    %4133 = vmatprep.subr.mxu0 0.0
    %4134 = vmatpush1.msra.mxu0 %v4084
    %4135 = vmatprep.subr.mxu0 0.0
    %4136 = vmatpush1.msra.mxu0 %v4083
    %4137 = vmatprep.subr.mxu0 0.0
    %4138 = vmatpush2.msra.mxu0 0.0
    %4139 = vmatprep.subr.mxu0 0.0
    %4140 = vmatpush2.msra.mxu0 0.0
    %4141 = vmatprep.subr.mxu0 0.0
    %4142 = vmatpush2.msra.mxu0 0.0
    %4143 = vmatprep.subr.mxu0 0.0
    %4144 = vmatpush2.msra.mxu0 0.0
    %4145 = vmatprep.subr.mxu0 0.0
    %4146 = vmatpush2.msra.mxu0 0.0
    %4147 = vmatprep.subr.mxu0 0.0
    %4148 = vmatpush2.msra.mxu0 0.0
    %4149 = vmatprep.subr.mxu0 0.0
    %4150 = vmatpush2.msra.mxu0 0.0
    %4151 = vmatprep.subr.mxu0 0.0
    %4152 = vmatpush2.msra.mxu0 0.0
    %4153 = vmatprep.subr.mxu0 0.0
    %4154 = vmatpush2.msra.mxu0 0.0
    %4155 = vmatprep.subr.mxu0 0.0
    %4156 = vmatpush2.msra.mxu0 0.0
    %4157 = vmatprep.subr.mxu0 0.0
    %4158 = vmatpush2.msra.mxu0 0.0
    %4159 = vmatprep.subr.mxu0 0.0
    %4160 = vmatpush2.msra.mxu0 0.0
    %4161 = vmatprep.subr.mxu0 0.0
    %4162 = vmatpush2.msra.mxu0 0.0
    %4163 = vmatprep.subr.mxu0 0.0
    %4164 = vmatpush2.msra.mxu0 0.0
    %4165 = vmatprep.subr.mxu0 0.0
    %4166 = vmatpush2.msra.mxu0 0.0
    %4167 = vmatprep.subr.mxu0 0.0
    %4168 = vmatpush2.msra.mxu0 0.0
    %4169 = vmatprep.mubr.f32.mxu0 0.0
    %4170 = vmatmul.mubr.f32.gmra.mxu0 %v4091
    %v4171 = vpop.f32.mrf.mxu0
    %v4172 = vadd.f32 0.0, %v4171
    %v4173 = vpop.f32.mrf.mxu0
    %4174 = vmatprep.mubr.f32.mxu0 0.0
    %4175 = vmatmul.mubr.f32.gmra.mxu0 %v4094
    %v4176 = vpop.f32.mrf.mxu0
    %v4177 = vadd.f32 0.0, %v4176
    %v4178 = vpop.f32.mrf.mxu0
    %4179 = vmatprep.mubr.f32.mxu0 0.0
    %4180 = vmatmul.mubr.f32.gmra.mxu0 %v4097
    %v4181 = vpop.f32.mrf.mxu0
    %v4182 = vadd.f32 0.0, %v4181
    %v4183 = vpop.f32.mrf.mxu0
    %4184 = vmatprep.mubr.f32.mxu0 0.0
    %4185 = vmatmul.mubr.f32.gmra.mxu0 %v4100
    %v4186 = vpop.f32.mrf.mxu0
    %v4187 = vadd.f32 0.0, %v4186
    %v4188 = vpop.f32.mrf.mxu0
    %4189 = vdwg.mxu0
    %4190 = vmatprep.subr.mxu0 0.0
    %4191 = vmatpush1.msra.mxu0 0.0
    %4192 = vmatprep.subr.mxu0 0.0
    %4193 = vmatpush1.msra.mxu0 0.0
    %4194 = vmatprep.subr.mxu0 0.0
    %4195 = vmatpush1.msra.mxu0 0.0
    %4196 = vmatprep.subr.mxu0 0.0
    %4197 = vmatpush1.msra.mxu0 0.0
    %4198 = vmatprep.subr.mxu0 0.0
    %4199 = vmatpush1.msra.mxu0 0.0
    %4200 = vmatprep.subr.mxu0 0.0
    %4201 = vmatpush1.msra.mxu0 0.0
    %4202 = vmatprep.subr.mxu0 0.0
    %4203 = vmatpush1.msra.mxu0 0.0
    %4204 = vmatprep.subr.mxu0 0.0
    %4205 = vmatpush1.msra.mxu0 0.0
    %4206 = vmatprep.subr.mxu0 0.0
    %4207 = vmatpush1.msra.mxu0 0.0
    %4208 = vmatprep.subr.mxu0 0.0
    %4209 = vmatpush1.msra.mxu0 0.0
    %4210 = vmatprep.subr.mxu0 0.0
    %4211 = vmatpush1.msra.mxu0 0.0
    %4212 = vmatprep.subr.mxu0 0.0
    %4213 = vmatpush1.msra.mxu0 0.0
    %4214 = vmatprep.subr.mxu0 0.0
    %4215 = vmatpush1.msra.mxu0 %v4187
    %4216 = vmatprep.subr.mxu0 0.0
    %4217 = vmatpush1.msra.mxu0 %v4182
    %4218 = vmatprep.subr.mxu0 0.0
    %4219 = vmatpush1.msra.mxu0 %v4177
    %4220 = vmatprep.subr.mxu0 0.0
    %4221 = vmatpush1.msra.mxu0 %v4172
    %4222 = vmatprep.subr.mxu0 0.0
    %4223 = vmatpush2.msra.mxu0 0.0
    %4224 = vmatprep.subr.mxu0 0.0
    %4225 = vmatpush2.msra.mxu0 0.0
    %4226 = vmatprep.subr.mxu0 0.0
    %4227 = vmatpush2.msra.mxu0 0.0
    %4228 = vmatprep.subr.mxu0 0.0
    %4229 = vmatpush2.msra.mxu0 0.0
    %4230 = vmatprep.subr.mxu0 0.0
    %4231 = vmatpush2.msra.mxu0 0.0
    %4232 = vmatprep.subr.mxu0 0.0
    %4233 = vmatpush2.msra.mxu0 0.0
    %4234 = vmatprep.subr.mxu0 0.0
    %4235 = vmatpush2.msra.mxu0 0.0
    %4236 = vmatprep.subr.mxu0 0.0
    %4237 = vmatpush2.msra.mxu0 0.0
    %4238 = vmatprep.subr.mxu0 0.0
    %4239 = vmatpush2.msra.mxu0 0.0
    %4240 = vmatprep.subr.mxu0 0.0
    %4241 = vmatpush2.msra.mxu0 0.0
    %4242 = vmatprep.subr.mxu0 0.0
    %4243 = vmatpush2.msra.mxu0 0.0
    %4244 = vmatprep.subr.mxu0 0.0
    %4245 = vmatpush2.msra.mxu0 0.0
    %4246 = vmatprep.subr.mxu0 0.0
    %4247 = vmatpush2.msra.mxu0 0.0
    %4248 = vmatprep.subr.mxu0 0.0
    %4249 = vmatpush2.msra.mxu0 0.0
    %4250 = vmatprep.subr.mxu0 0.0
    %4251 = vmatpush2.msra.mxu0 0.0
    %4252 = vmatprep.subr.mxu0 0.0
    %4253 = vmatpush2.msra.mxu0 0.0
    %4254 = vmatprep.mubr.f32.mxu0 0.0
    %4255 = vmatmul.mubr.f32.gmra.mxu0 %v3891
    %v4256 = vpop.f32.mrf.mxu0
    %v4257 = vadd.f32 0.0, %v4256
    %v4258 = vpop.f32.mrf.mxu0
    %4259 = vdwg.mxu0
    %v4260 = vmul.f32 %v4257, 0.03125
    %v4261 = vlaneseq
    %v4262 = vshrl.u32 %v4261, 7
    %v4263 = vsub.s32 0, %v4262
    %v4264 = vrot.slane %v4260, %v4263
    %v4265 = vsub.f32 %v4172, %v4264
    %v4266 = vsub.f32 %v4177, %v4264
    %v4267 = vsub.f32 %v4182, %v4264
    %v4268 = vsub.f32 %v4187, %v4264
    %v4269 = vmul.f32 %v4265, %v4265
    %v4270 = vmul.f32 %v4266, %v4266
    %v4271 = vmul.f32 %v4267, %v4267
    %v4272 = vmul.f32 %v4268, %v4268
    %4273 = vmatprep.subr.mxu0 0.0
    %4274 = vmatpush1.msra.mxu0 0.0
    %4275 = vmatprep.subr.mxu0 0.0
    %4276 = vmatpush1.msra.mxu0 0.0
    %4277 = vmatprep.subr.mxu0 0.0
    %4278 = vmatpush1.msra.mxu0 0.0
    %4279 = vmatprep.subr.mxu0 0.0
    %4280 = vmatpush1.msra.mxu0 0.0
    %4281 = vmatprep.subr.mxu0 0.0
    %4282 = vmatpush1.msra.mxu0 0.0
    %4283 = vmatprep.subr.mxu0 0.0
    %4284 = vmatpush1.msra.mxu0 0.0
    %4285 = vmatprep.subr.mxu0 0.0
    %4286 = vmatpush1.msra.mxu0 0.0
    %4287 = vmatprep.subr.mxu0 0.0
    %4288 = vmatpush1.msra.mxu0 0.0
    %4289 = vmatprep.subr.mxu0 0.0
    %4290 = vmatpush1.msra.mxu0 0.0
    %4291 = vmatprep.subr.mxu0 0.0
    %4292 = vmatpush1.msra.mxu0 0.0
    %4293 = vmatprep.subr.mxu0 0.0
    %4294 = vmatpush1.msra.mxu0 0.0
    %4295 = vmatprep.subr.mxu0 0.0
    %4296 = vmatpush1.msra.mxu0 0.0
    %4297 = vmatprep.subr.mxu0 0.0
    %4298 = vmatpush1.msra.mxu0 %v4272
    %4299 = vmatprep.subr.mxu0 0.0
    %4300 = vmatpush1.msra.mxu0 %v4271
    %4301 = vmatprep.subr.mxu0 0.0
    %4302 = vmatpush1.msra.mxu0 %v4270
    %4303 = vmatprep.subr.mxu0 0.0
    %4304 = vmatpush1.msra.mxu0 %v4269
    %4305 = vmatprep.subr.mxu0 0.0
    %4306 = vmatpush2.msra.mxu0 0.0
    %4307 = vmatprep.subr.mxu0 0.0
    %4308 = vmatpush2.msra.mxu0 0.0
    %4309 = vmatprep.subr.mxu0 0.0
    %4310 = vmatpush2.msra.mxu0 0.0
    %4311 = vmatprep.subr.mxu0 0.0
    %4312 = vmatpush2.msra.mxu0 0.0
    %4313 = vmatprep.subr.mxu0 0.0
    %4314 = vmatpush2.msra.mxu0 0.0
    %4315 = vmatprep.subr.mxu0 0.0
    %4316 = vmatpush2.msra.mxu0 0.0
    %4317 = vmatprep.subr.mxu0 0.0
    %4318 = vmatpush2.msra.mxu0 0.0
    %4319 = vmatprep.subr.mxu0 0.0
    %4320 = vmatpush2.msra.mxu0 0.0
    %4321 = vmatprep.subr.mxu0 0.0
    %4322 = vmatpush2.msra.mxu0 0.0
    %4323 = vmatprep.subr.mxu0 0.0
    %4324 = vmatpush2.msra.mxu0 0.0
    %4325 = vmatprep.subr.mxu0 0.0
    %4326 = vmatpush2.msra.mxu0 0.0
    %4327 = vmatprep.subr.mxu0 0.0
    %4328 = vmatpush2.msra.mxu0 0.0
    %4329 = vmatprep.subr.mxu0 0.0
    %4330 = vmatpush2.msra.mxu0 0.0
    %4331 = vmatprep.subr.mxu0 0.0
    %4332 = vmatpush2.msra.mxu0 0.0
    %4333 = vmatprep.subr.mxu0 0.0
    %4334 = vmatpush2.msra.mxu0 0.0
    %4335 = vmatprep.subr.mxu0 0.0
    %4336 = vmatpush2.msra.mxu0 0.0
    %4337 = vmatprep.mubr.f32.mxu0 0.0
    %4338 = vmatmul.mubr.f32.gmra.mxu0 %v3891
    %v4339 = vpop.f32.mrf.mxu0
    %v4340 = vadd.f32 0.0, %v4339
    %v4341 = vpop.f32.mrf.mxu0
    %4342 = vdwg.mxu0
    %v4343 = vmul.f32 %v4340, 0.03125
    %v4344 = vadd.f32 %v4343, 1e-06
    %v4345 = vrsqrt.pop %v4344
    %v4346 = vlaneseq
    %v4347 = vshrl.u32 %v4346, 7
    %v4348 = vsub.s32 0, %v4347
    %v4349 = vrot.slane %v4345, %v4348
    %v4350 = vmul.f32 %v4265, %v4349
    %v4351 = vmul.f32 %v4266, %v4349
    %v4352 = vmul.f32 %v4267, %v4349
    %v4353 = vmul.f32 %v4268, %v4349
    %v4354 = vld [vmem:[%s91] sm:$0x1]
    %v4356 = vlaneseq
    %v4357 = vshrl.u32 %v4356, 7
    %v4358 = vsub.s32 0, %v4357
    %v4359 = vrot.slane %v4354, %v4358
    %v4361 = vmul.f32 %v4350, %v4359
    %v4362 = vmul.f32 %v4351, %v4359
    %v4363 = vmul.f32 %v4352, %v4359
    %v4364 = vmul.f32 %v4353, %v4359
    %v4365 = vld [vmem:[%s93] sm:$0x1]
    %v4367 = vlaneseq
    %v4368 = vshrl.u32 %v4367, 7
    %v4369 = vsub.s32 0, %v4368
    %v4370 = vrot.slane %v4365, %v4369
    %v4372 = vadd.f32 %v4361, %v4370
    %v4373 = vadd.f32 %v4362, %v4370
    %v4374 = vadd.f32 %v4363, %v4370
    %v4375 = vadd.f32 %v4364, %v4370
    %v4376 = vmax.f32 %v4372, 0.0
    %v4377 = vmax.f32 %v4373, 0.0
    %v4378 = vmax.f32 %v4374, 0.0
    %v4379 = vmax.f32 %v4375, 0.0
    %v4380 = vld [vmem:[%s95] sm:$0xff]
    %v4381 = vld [vmem:[%s95 + $0x8] sm:$0xff]
    %v4382 = vld [vmem:[%s95 + $0x10] sm:$0xff]
    %v4383 = vld [vmem:[%s95 + $0x18] sm:$0xff]
    %v4384 = vld [vmem:[%s95 + $0x20] sm:$0xff]
    %v4385 = vld [vmem:[%s95 + $0x28] sm:$0xff]
    %v4386 = vld [vmem:[%s95 + $0x30] sm:$0xff]
    %v4387 = vld [vmem:[%s95 + $0x38] sm:$0xff]
    %v4388 = vld [vmem:[%s95 + $0x40] sm:$0xff]
    %v4389 = vld [vmem:[%s95 + $0x48] sm:$0xff]
    %v4390 = vld [vmem:[%s95 + $0x50] sm:$0xff]
    %v4391 = vld [vmem:[%s95 + $0x58] sm:$0x3]
    %vm4392 = vcmask 736256
    %v4394 = vsel %vm4392, %v4376, 0
    %v4397 = vsel %vm4392, %v4377, 0
    %v4400 = vsel %vm4392, %v4378, 0
    %v4403 = vsel %vm4392, %v4379, 0
    %v4406 = vsel %vm2409, %v4391, 0
    %4408 = vmatprep.subr.mxu0 0.0
    %4409 = vmatpush1.msra.mxu0 0.0
    %4410 = vmatprep.subr.mxu0 0.0
    %4411 = vmatpush1.msra.mxu0 0.0
    %4412 = vmatprep.subr.mxu0 0.0
    %4413 = vmatpush1.msra.mxu0 0.0
    %4414 = vmatprep.subr.mxu0 0.0
    %4415 = vmatpush1.msra.mxu0 0.0
    %4416 = vmatprep.subr.mxu0 0.0
    %4417 = vmatpush1.msra.mxu0 %v4406
    %4418 = vmatprep.subr.mxu0 0.0
    %4419 = vmatpush1.msra.mxu0 %v4390
    %4420 = vmatprep.subr.mxu0 0.0
    %4421 = vmatpush1.msra.mxu0 %v4389
    %4422 = vmatprep.subr.mxu0 0.0
    %4423 = vmatpush1.msra.mxu0 %v4388
    %4424 = vmatprep.subr.mxu0 0.0
    %4425 = vmatpush1.msra.mxu0 %v4387
    %4426 = vmatprep.subr.mxu0 0.0
    %4427 = vmatpush1.msra.mxu0 %v4386
    %4428 = vmatprep.subr.mxu0 0.0
    %4429 = vmatpush1.msra.mxu0 %v4385
    %4430 = vmatprep.subr.mxu0 0.0
    %4431 = vmatpush1.msra.mxu0 %v4384
    %4432 = vmatprep.subr.mxu0 0.0
    %4433 = vmatpush1.msra.mxu0 %v4383
    %4434 = vmatprep.subr.mxu0 0.0
    %4435 = vmatpush1.msra.mxu0 %v4382
    %4436 = vmatprep.subr.mxu0 0.0
    %4437 = vmatpush1.msra.mxu0 %v4381
    %4438 = vmatprep.subr.mxu0 0.0
    %4439 = vmatpush1.msra.mxu0 %v4380
    %4440 = vmatprep.subr.mxu0 0.0
    %4441 = vmatpush2.msra.mxu0 0.0
    %4442 = vmatprep.subr.mxu0 0.0
    %4443 = vmatpush2.msra.mxu0 0.0
    %4444 = vmatprep.subr.mxu0 0.0
    %4445 = vmatpush2.msra.mxu0 0.0
    %4446 = vmatprep.subr.mxu0 0.0
    %4447 = vmatpush2.msra.mxu0 0.0
    %4448 = vmatprep.subr.mxu0 0.0
    %4449 = vmatpush2.msra.mxu0 0.0
    %4450 = vmatprep.subr.mxu0 0.0
    %4451 = vmatpush2.msra.mxu0 0.0
    %4452 = vmatprep.subr.mxu0 0.0
    %4453 = vmatpush2.msra.mxu0 0.0
    %4454 = vmatprep.subr.mxu0 0.0
    %4455 = vmatpush2.msra.mxu0 0.0
    %4456 = vmatprep.subr.mxu0 0.0
    %4457 = vmatpush2.msra.mxu0 0.0
    %4458 = vmatprep.subr.mxu0 0.0
    %4459 = vmatpush2.msra.mxu0 0.0
    %4460 = vmatprep.subr.mxu0 0.0
    %4461 = vmatpush2.msra.mxu0 0.0
    %4462 = vmatprep.subr.mxu0 0.0
    %4463 = vmatpush2.msra.mxu0 0.0
    %4464 = vmatprep.subr.mxu0 0.0
    %4465 = vmatpush2.msra.mxu0 0.0
    %4466 = vmatprep.subr.mxu0 0.0
    %4467 = vmatpush2.msra.mxu0 0.0
    %4468 = vmatprep.subr.mxu0 0.0
    %4469 = vmatpush2.msra.mxu0 0.0
    %4470 = vmatprep.subr.mxu0 0.0
    %4471 = vmatpush2.msra.mxu0 0.0
    %4472 = vmatprep.mubr.f32.mxu0 0.0
    %4473 = vmatmul.mubr.f32.gmra.mxu0 %v4394
    %v4474 = vpop.f32.mrf.mxu0
    %v4475 = vadd.f32 0.0, %v4474
    %v4476 = vpop.f32.mrf.mxu0
    %4477 = vmatprep.mubr.f32.mxu0 0.0
    %4478 = vmatmul.mubr.f32.gmra.mxu0 %v4397
    %v4479 = vpop.f32.mrf.mxu0
    %v4480 = vadd.f32 0.0, %v4479
    %v4481 = vpop.f32.mrf.mxu0
    %4482 = vmatprep.mubr.f32.mxu0 0.0
    %4483 = vmatmul.mubr.f32.gmra.mxu0 %v4400
    %v4484 = vpop.f32.mrf.mxu0
    %v4485 = vadd.f32 0.0, %v4484
    %v4486 = vpop.f32.mrf.mxu0
    %4487 = vmatprep.mubr.f32.mxu0 0.0
    %4488 = vmatmul.mubr.f32.gmra.mxu0 %v4403
    %v4489 = vpop.f32.mrf.mxu0
    %v4490 = vadd.f32 0.0, %v4489
    %v4491 = vpop.f32.mrf.mxu0
    %4492 = vdwg.mxu0
    %4493 = vmatprep.subr.mxu0 0.0
    %4494 = vmatpush1.msra.mxu0 0.0
    %4495 = vmatprep.subr.mxu0 0.0
    %4496 = vmatpush1.msra.mxu0 0.0
    %4497 = vmatprep.subr.mxu0 0.0
    %4498 = vmatpush1.msra.mxu0 0.0
    %4499 = vmatprep.subr.mxu0 0.0
    %4500 = vmatpush1.msra.mxu0 0.0
    %4501 = vmatprep.subr.mxu0 0.0
    %4502 = vmatpush1.msra.mxu0 0.0
    %4503 = vmatprep.subr.mxu0 0.0
    %4504 = vmatpush1.msra.mxu0 0.0
    %4505 = vmatprep.subr.mxu0 0.0
    %4506 = vmatpush1.msra.mxu0 0.0
    %4507 = vmatprep.subr.mxu0 0.0
    %4508 = vmatpush1.msra.mxu0 0.0
    %4509 = vmatprep.subr.mxu0 0.0
    %4510 = vmatpush1.msra.mxu0 0.0
    %4511 = vmatprep.subr.mxu0 0.0
    %4512 = vmatpush1.msra.mxu0 0.0
    %4513 = vmatprep.subr.mxu0 0.0
    %4514 = vmatpush1.msra.mxu0 0.0
    %4515 = vmatprep.subr.mxu0 0.0
    %4516 = vmatpush1.msra.mxu0 0.0
    %4517 = vmatprep.subr.mxu0 0.0
    %4518 = vmatpush1.msra.mxu0 %v4490
    %4519 = vmatprep.subr.mxu0 0.0
    %4520 = vmatpush1.msra.mxu0 %v4485
    %4521 = vmatprep.subr.mxu0 0.0
    %4522 = vmatpush1.msra.mxu0 %v4480
    %4523 = vmatprep.subr.mxu0 0.0
    %4524 = vmatpush1.msra.mxu0 %v4475
    %4525 = vmatprep.subr.mxu0 0.0
    %4526 = vmatpush2.msra.mxu0 0.0
    %4527 = vmatprep.subr.mxu0 0.0
    %4528 = vmatpush2.msra.mxu0 0.0
    %4529 = vmatprep.subr.mxu0 0.0
    %4530 = vmatpush2.msra.mxu0 0.0
    %4531 = vmatprep.subr.mxu0 0.0
    %4532 = vmatpush2.msra.mxu0 0.0
    %4533 = vmatprep.subr.mxu0 0.0
    %4534 = vmatpush2.msra.mxu0 0.0
    %4535 = vmatprep.subr.mxu0 0.0
    %4536 = vmatpush2.msra.mxu0 0.0
    %4537 = vmatprep.subr.mxu0 0.0
    %4538 = vmatpush2.msra.mxu0 0.0
    %4539 = vmatprep.subr.mxu0 0.0
    %4540 = vmatpush2.msra.mxu0 0.0
    %4541 = vmatprep.subr.mxu0 0.0
    %4542 = vmatpush2.msra.mxu0 0.0
    %4543 = vmatprep.subr.mxu0 0.0
    %4544 = vmatpush2.msra.mxu0 0.0
    %4545 = vmatprep.subr.mxu0 0.0
    %4546 = vmatpush2.msra.mxu0 0.0
    %4547 = vmatprep.subr.mxu0 0.0
    %4548 = vmatpush2.msra.mxu0 0.0
    %4549 = vmatprep.subr.mxu0 0.0
    %4550 = vmatpush2.msra.mxu0 0.0
    %4551 = vmatprep.subr.mxu0 0.0
    %4552 = vmatpush2.msra.mxu0 0.0
    %4553 = vmatprep.subr.mxu0 0.0
    %4554 = vmatpush2.msra.mxu0 0.0
    %4555 = vmatprep.subr.mxu0 0.0
    %4556 = vmatpush2.msra.mxu0 0.0
    %4557 = vmatprep.mubr.f32.mxu0 0.0
    %4558 = vmatmul.mubr.f32.gmra.mxu0 %v3891
    %v4559 = vpop.f32.mrf.mxu0
    %v4560 = vadd.f32 0.0, %v4559
    %v4561 = vpop.f32.mrf.mxu0
    %4562 = vdwg.mxu0
    %v4563 = vmul.f32 %v4560, 0.03125
    %v4564 = vlaneseq
    %v4565 = vshrl.u32 %v4564, 7
    %v4566 = vsub.s32 0, %v4565
    %v4567 = vrot.slane %v4563, %v4566
    %v4568 = vsub.f32 %v4475, %v4567
    %v4569 = vsub.f32 %v4480, %v4567
    %v4570 = vsub.f32 %v4485, %v4567
    %v4571 = vsub.f32 %v4490, %v4567
    %v4572 = vmul.f32 %v4568, %v4568
    %v4573 = vmul.f32 %v4569, %v4569
    %v4574 = vmul.f32 %v4570, %v4570
    %v4575 = vmul.f32 %v4571, %v4571
    %4576 = vmatprep.subr.mxu0 0.0
    %4577 = vmatpush1.msra.mxu0 0.0
    %4578 = vmatprep.subr.mxu0 0.0
    %4579 = vmatpush1.msra.mxu0 0.0
    %4580 = vmatprep.subr.mxu0 0.0
    %4581 = vmatpush1.msra.mxu0 0.0
    %4582 = vmatprep.subr.mxu0 0.0
    %4583 = vmatpush1.msra.mxu0 0.0
    %4584 = vmatprep.subr.mxu0 0.0
    %4585 = vmatpush1.msra.mxu0 0.0
    %4586 = vmatprep.subr.mxu0 0.0
    %4587 = vmatpush1.msra.mxu0 0.0
    %4588 = vmatprep.subr.mxu0 0.0
    %4589 = vmatpush1.msra.mxu0 0.0
    %4590 = vmatprep.subr.mxu0 0.0
    %4591 = vmatpush1.msra.mxu0 0.0
    %4592 = vmatprep.subr.mxu0 0.0
    %4593 = vmatpush1.msra.mxu0 0.0
    %4594 = vmatprep.subr.mxu0 0.0
    %4595 = vmatpush1.msra.mxu0 0.0
    %4596 = vmatprep.subr.mxu0 0.0
    %4597 = vmatpush1.msra.mxu0 0.0
    %4598 = vmatprep.subr.mxu0 0.0
    %4599 = vmatpush1.msra.mxu0 0.0
    %4600 = vmatprep.subr.mxu0 0.0
    %4601 = vmatpush1.msra.mxu0 %v4575
    %4602 = vmatprep.subr.mxu0 0.0
    %4603 = vmatpush1.msra.mxu0 %v4574
    %4604 = vmatprep.subr.mxu0 0.0
    %4605 = vmatpush1.msra.mxu0 %v4573
    %4606 = vmatprep.subr.mxu0 0.0
    %4607 = vmatpush1.msra.mxu0 %v4572
    %4608 = vmatprep.subr.mxu0 0.0
    %4609 = vmatpush2.msra.mxu0 0.0
    %4610 = vmatprep.subr.mxu0 0.0
    %4611 = vmatpush2.msra.mxu0 0.0
    %4612 = vmatprep.subr.mxu0 0.0
    %4613 = vmatpush2.msra.mxu0 0.0
    %4614 = vmatprep.subr.mxu0 0.0
    %4615 = vmatpush2.msra.mxu0 0.0
    %4616 = vmatprep.subr.mxu0 0.0
    %4617 = vmatpush2.msra.mxu0 0.0
    %4618 = vmatprep.subr.mxu0 0.0
    %4619 = vmatpush2.msra.mxu0 0.0
    %4620 = vmatprep.subr.mxu0 0.0
    %4621 = vmatpush2.msra.mxu0 0.0
    %4622 = vmatprep.subr.mxu0 0.0
    %4623 = vmatpush2.msra.mxu0 0.0
    %4624 = vmatprep.subr.mxu0 0.0
    %4625 = vmatpush2.msra.mxu0 0.0
    %4626 = vmatprep.subr.mxu0 0.0
    %4627 = vmatpush2.msra.mxu0 0.0
    %4628 = vmatprep.subr.mxu0 0.0
    %4629 = vmatpush2.msra.mxu0 0.0
    %4630 = vmatprep.subr.mxu0 0.0
    %4631 = vmatpush2.msra.mxu0 0.0
    %4632 = vmatprep.subr.mxu0 0.0
    %4633 = vmatpush2.msra.mxu0 0.0
    %4634 = vmatprep.subr.mxu0 0.0
    %4635 = vmatpush2.msra.mxu0 0.0
    %4636 = vmatprep.subr.mxu0 0.0
    %4637 = vmatpush2.msra.mxu0 0.0
    %4638 = vmatprep.subr.mxu0 0.0
    %4639 = vmatpush2.msra.mxu0 0.0
    %4640 = vmatprep.mubr.f32.mxu0 0.0
    %4641 = vmatmul.mubr.f32.gmra.mxu0 %v3891
    %v4642 = vpop.f32.mrf.mxu0
    %v4643 = vadd.f32 0.0, %v4642
    %v4644 = vpop.f32.mrf.mxu0
    %4645 = vdwg.mxu0
    %v4646 = vmul.f32 %v4643, 0.03125
    %v4647 = vadd.f32 %v4646, 1e-06
    %v4648 = vrsqrt.pop %v4647
    %v4649 = vlaneseq
    %v4650 = vshrl.u32 %v4649, 7
    %v4651 = vsub.s32 0, %v4650
    %v4652 = vrot.slane %v4648, %v4651
    %v4653 = vmul.f32 %v4568, %v4652
    %v4654 = vmul.f32 %v4569, %v4652
    %v4655 = vmul.f32 %v4570, %v4652
    %v4656 = vmul.f32 %v4571, %v4652
    %v4657 = vld [vmem:[%s97] sm:$0x1]
    %v4659 = vlaneseq
    %v4660 = vshrl.u32 %v4659, 7
    %v4661 = vsub.s32 0, %v4660
    %v4662 = vrot.slane %v4657, %v4661
    %v4664 = vmul.f32 %v4653, %v4662
    %v4665 = vmul.f32 %v4654, %v4662
    %v4666 = vmul.f32 %v4655, %v4662
    %v4667 = vmul.f32 %v4656, %v4662
    %v4668 = vld [vmem:[%s99] sm:$0x1]
    %v4670 = vlaneseq
    %v4671 = vshrl.u32 %v4670, 7
    %v4672 = vsub.s32 0, %v4671
    %v4673 = vrot.slane %v4668, %v4672
    %v4675 = vadd.f32 %v4664, %v4673
    %v4676 = vadd.f32 %v4665, %v4673
    %v4677 = vadd.f32 %v4666, %v4673
    %v4678 = vadd.f32 %v4667, %v4673
    %v4679 = vmax.f32 %v4675, 0.0
    %v4680 = vmax.f32 %v4676, 0.0
    %v4681 = vmax.f32 %v4677, 0.0
    %v4682 = vmax.f32 %v4678, 0.0
    %v4683 = vld [vmem:[%s101] sm:$0xff]
    %v4684 = vld [vmem:[%s101 + $0x8] sm:$0xff]
    %v4685 = vld [vmem:[%s101 + $0x10] sm:$0xff]
    %v4686 = vld [vmem:[%s101 + $0x18] sm:$0xff]
    %v4687 = vld [vmem:[%s101 + $0x20] sm:$0xff]
    %v4688 = vld [vmem:[%s101 + $0x28] sm:$0xff]
    %v4689 = vld [vmem:[%s101 + $0x30] sm:$0x3]
    %v4690 = vld [vmem:[%s103] sm:$0x1]
    %v4692 = vlaneseq
    %v4693 = vshrl.u32 %v4692, 7
    %v4694 = vsub.s32 0, %v4693
    %v4695 = vrot.slane %v4690, %v4694
    %v4698 = vsel %vm2405, %v4679, 0
    %v4701 = vsel %vm2405, %v4680, 0
    %v4704 = vsel %vm2405, %v4681, 0
    %v4707 = vsel %vm2405, %v4682, 0
    %v4710 = vsel %vm2409, %v4689, 0
    %4712 = vmatprep.subr.mxu0 0.0
    %4713 = vmatpush1.msra.mxu0 0.0
    %4714 = vmatprep.subr.mxu0 0.0
    %4715 = vmatpush1.msra.mxu0 0.0
    %4716 = vmatprep.subr.mxu0 0.0
    %4717 = vmatpush1.msra.mxu0 0.0
    %4718 = vmatprep.subr.mxu0 0.0
    %4719 = vmatpush1.msra.mxu0 0.0
    %4720 = vmatprep.subr.mxu0 0.0
    %4721 = vmatpush1.msra.mxu0 0.0
    %4722 = vmatprep.subr.mxu0 0.0
    %4723 = vmatpush1.msra.mxu0 0.0
    %4724 = vmatprep.subr.mxu0 0.0
    %4725 = vmatpush1.msra.mxu0 0.0
    %4726 = vmatprep.subr.mxu0 0.0
    %4727 = vmatpush1.msra.mxu0 0.0
    %4728 = vmatprep.subr.mxu0 0.0
    %4729 = vmatpush1.msra.mxu0 0.0
    %4730 = vmatprep.subr.mxu0 0.0
    %4731 = vmatpush1.msra.mxu0 %v4710
    %4732 = vmatprep.subr.mxu0 0.0
    %4733 = vmatpush1.msra.mxu0 %v4688
    %4734 = vmatprep.subr.mxu0 0.0
    %4735 = vmatpush1.msra.mxu0 %v4687
    %4736 = vmatprep.subr.mxu0 0.0
    %4737 = vmatpush1.msra.mxu0 %v4686
    %4738 = vmatprep.subr.mxu0 0.0
    %4739 = vmatpush1.msra.mxu0 %v4685
    %4740 = vmatprep.subr.mxu0 0.0
    %4741 = vmatpush1.msra.mxu0 %v4684
    %4742 = vmatprep.subr.mxu0 0.0
    %4743 = vmatpush1.msra.mxu0 %v4683
    %4744 = vmatprep.subr.mxu0 0.0
    %4745 = vmatpush2.msra.mxu0 0.0
    %4746 = vmatprep.subr.mxu0 0.0
    %4747 = vmatpush2.msra.mxu0 0.0
    %4748 = vmatprep.subr.mxu0 0.0
    %4749 = vmatpush2.msra.mxu0 0.0
    %4750 = vmatprep.subr.mxu0 0.0
    %4751 = vmatpush2.msra.mxu0 0.0
    %4752 = vmatprep.subr.mxu0 0.0
    %4753 = vmatpush2.msra.mxu0 0.0
    %4754 = vmatprep.subr.mxu0 0.0
    %4755 = vmatpush2.msra.mxu0 0.0
    %4756 = vmatprep.subr.mxu0 0.0
    %4757 = vmatpush2.msra.mxu0 0.0
    %4758 = vmatprep.subr.mxu0 0.0
    %4759 = vmatpush2.msra.mxu0 0.0
    %4760 = vmatprep.subr.mxu0 0.0
    %4761 = vmatpush2.msra.mxu0 0.0
    %4762 = vmatprep.subr.mxu0 0.0
    %4763 = vmatpush2.msra.mxu0 0.0
    %4764 = vmatprep.subr.mxu0 0.0
    %4765 = vmatpush2.msra.mxu0 0.0
    %4766 = vmatprep.subr.mxu0 0.0
    %4767 = vmatpush2.msra.mxu0 0.0
    %4768 = vmatprep.subr.mxu0 0.0
    %4769 = vmatpush2.msra.mxu0 0.0
    %4770 = vmatprep.subr.mxu0 0.0
    %4771 = vmatpush2.msra.mxu0 0.0
    %4772 = vmatprep.subr.mxu0 0.0
    %4773 = vmatpush2.msra.mxu0 0.0
    %4774 = vmatprep.subr.mxu0 0.0
    %4775 = vmatpush2.msra.mxu0 0.0
    %4776 = vmatprep.mubr.f32.mxu0 0.0
    %4777 = vmatmul.mubr.f32.gmra.mxu0 %v4698
    %v4778 = vpop.f32.mrf.mxu0
    %v4779 = vadd.f32 %v4695, %v4778
    %v4780 = vpop.f32.mrf.mxu0
    %4781 = vmatprep.mubr.f32.mxu0 0.0
    %4782 = vmatmul.mubr.f32.gmra.mxu0 %v4701
    %v4783 = vpop.f32.mrf.mxu0
    %v4784 = vadd.f32 %v4695, %v4783
    %v4785 = vpop.f32.mrf.mxu0
    %4786 = vmatprep.mubr.f32.mxu0 0.0
    %4787 = vmatmul.mubr.f32.gmra.mxu0 %v4704
    %v4788 = vpop.f32.mrf.mxu0
    %v4789 = vadd.f32 %v4695, %v4788
    %v4790 = vpop.f32.mrf.mxu0
    %4791 = vmatprep.mubr.f32.mxu0 0.0
    %4792 = vmatmul.mubr.f32.gmra.mxu0 %v4707
    %v4793 = vpop.f32.mrf.mxu0
    %v4794 = vadd.f32 %v4695, %v4793
    %v4795 = vpop.f32.mrf.mxu0
    %4796 = vdwg.mxu0
    %4797 = vmatprep.subr.mxu0 0.0
    %4798 = vmatpush1.msra.mxu0 0.0
    %4799 = vmatprep.subr.mxu0 0.0
    %4800 = vmatpush1.msra.mxu0 0.0
    %4801 = vmatprep.subr.mxu0 0.0
    %4802 = vmatpush1.msra.mxu0 0.0
    %4803 = vmatprep.subr.mxu0 0.0
    %4804 = vmatpush1.msra.mxu0 0.0
    %4805 = vmatprep.subr.mxu0 0.0
    %4806 = vmatpush1.msra.mxu0 0.0
    %4807 = vmatprep.subr.mxu0 0.0
    %4808 = vmatpush1.msra.mxu0 0.0
    %4809 = vmatprep.subr.mxu0 0.0
    %4810 = vmatpush1.msra.mxu0 0.0
    %4811 = vmatprep.subr.mxu0 0.0
    %4812 = vmatpush1.msra.mxu0 0.0
    %4813 = vmatprep.subr.mxu0 0.0
    %4814 = vmatpush1.msra.mxu0 0.0
    %4815 = vmatprep.subr.mxu0 0.0
    %4816 = vmatpush1.msra.mxu0 0.0
    %4817 = vmatprep.subr.mxu0 0.0
    %4818 = vmatpush1.msra.mxu0 0.0
    %4819 = vmatprep.subr.mxu0 0.0
    %4820 = vmatpush1.msra.mxu0 0.0
    %4821 = vmatprep.subr.mxu0 0.0
    %4822 = vmatpush1.msra.mxu0 %v4794
    %4823 = vmatprep.subr.mxu0 0.0
    %4824 = vmatpush1.msra.mxu0 %v4789
    %4825 = vmatprep.subr.mxu0 0.0
    %4826 = vmatpush1.msra.mxu0 %v4784
    %4827 = vmatprep.subr.mxu0 0.0
    %4828 = vmatpush1.msra.mxu0 %v4779
    %4829 = vmatprep.subr.mxu0 0.0
    %4830 = vmatpush2.msra.mxu0 0.0
    %4831 = vmatprep.subr.mxu0 0.0
    %4832 = vmatpush2.msra.mxu0 0.0
    %4833 = vmatprep.subr.mxu0 0.0
    %4834 = vmatpush2.msra.mxu0 0.0
    %4835 = vmatprep.subr.mxu0 0.0
    %4836 = vmatpush2.msra.mxu0 0.0
    %4837 = vmatprep.subr.mxu0 0.0
    %4838 = vmatpush2.msra.mxu0 0.0
    %4839 = vmatprep.subr.mxu0 0.0
    %4840 = vmatpush2.msra.mxu0 0.0
    %4841 = vmatprep.subr.mxu0 0.0
    %4842 = vmatpush2.msra.mxu0 0.0
    %4843 = vmatprep.subr.mxu0 0.0
    %4844 = vmatpush2.msra.mxu0 0.0
    %4845 = vmatprep.subr.mxu0 0.0
    %4846 = vmatpush2.msra.mxu0 0.0
    %4847 = vmatprep.subr.mxu0 0.0
    %4848 = vmatpush2.msra.mxu0 0.0
    %4849 = vmatprep.subr.mxu0 0.0
    %4850 = vmatpush2.msra.mxu0 0.0
    %4851 = vmatprep.subr.mxu0 0.0
    %4852 = vmatpush2.msra.mxu0 0.0
    %4853 = vmatprep.subr.mxu0 0.0
    %4854 = vmatpush2.msra.mxu0 0.0
    %4855 = vmatprep.subr.mxu0 0.0
    %4856 = vmatpush2.msra.mxu0 0.0
    %4857 = vmatprep.subr.mxu0 0.0
    %4858 = vmatpush2.msra.mxu0 0.0
    %4859 = vmatprep.subr.mxu0 0.0
    %4860 = vmatpush2.msra.mxu0 0.0
    %4861 = vmatprep.mubr.f32.mxu0 0.0
    %4862 = vmatmul.mubr.f32.gmra.mxu0 %v3891
    %v4863 = vpop.f32.mrf.mxu0
    %v4864 = vadd.f32 0.0, %v4863
    %v4865 = vpop.f32.mrf.mxu0
    %4866 = vdwg.mxu0
    %v4867 = vmul.f32 %v4864, 0.03125
    %v4868 = vlaneseq
    %v4869 = vshrl.u32 %v4868, 7
    %v4870 = vsub.s32 0, %v4869
    %v4871 = vrot.slane %v4867, %v4870
    %v4872 = vsub.f32 %v4779, %v4871
    %v4873 = vsub.f32 %v4784, %v4871
    %v4874 = vsub.f32 %v4789, %v4871
    %v4875 = vsub.f32 %v4794, %v4871
    %v4876 = vmul.f32 %v4872, %v4872
    %v4877 = vmul.f32 %v4873, %v4873
    %v4878 = vmul.f32 %v4874, %v4874
    %v4879 = vmul.f32 %v4875, %v4875
    %4880 = vmatprep.subr.mxu0 0.0
    %4881 = vmatpush1.msra.mxu0 0.0
    %4882 = vmatprep.subr.mxu0 0.0
    %4883 = vmatpush1.msra.mxu0 0.0
    %4884 = vmatprep.subr.mxu0 0.0
    %4885 = vmatpush1.msra.mxu0 0.0
    %4886 = vmatprep.subr.mxu0 0.0
    %4887 = vmatpush1.msra.mxu0 0.0
    %4888 = vmatprep.subr.mxu0 0.0
    %4889 = vmatpush1.msra.mxu0 0.0
    %4890 = vmatprep.subr.mxu0 0.0
    %4891 = vmatpush1.msra.mxu0 0.0
    %4892 = vmatprep.subr.mxu0 0.0
    %4893 = vmatpush1.msra.mxu0 0.0
    %4894 = vmatprep.subr.mxu0 0.0
    %4895 = vmatpush1.msra.mxu0 0.0
    %4896 = vmatprep.subr.mxu0 0.0
    %4897 = vmatpush1.msra.mxu0 0.0
    %4898 = vmatprep.subr.mxu0 0.0
    %4899 = vmatpush1.msra.mxu0 0.0
    %4900 = vmatprep.subr.mxu0 0.0
    %4901 = vmatpush1.msra.mxu0 0.0
    %4902 = vmatprep.subr.mxu0 0.0
    %4903 = vmatpush1.msra.mxu0 0.0
    %4904 = vmatprep.subr.mxu0 0.0
    %4905 = vmatpush1.msra.mxu0 %v4879
    %4906 = vmatprep.subr.mxu0 0.0
    %4907 = vmatpush1.msra.mxu0 %v4878
    %4908 = vmatprep.subr.mxu0 0.0
    %4909 = vmatpush1.msra.mxu0 %v4877
    %4910 = vmatprep.subr.mxu0 0.0
    %4911 = vmatpush1.msra.mxu0 %v4876
    %4912 = vmatprep.subr.mxu0 0.0
    %4913 = vmatpush2.msra.mxu0 0.0
    %4914 = vmatprep.subr.mxu0 0.0
    %4915 = vmatpush2.msra.mxu0 0.0
    %4916 = vmatprep.subr.mxu0 0.0
    %4917 = vmatpush2.msra.mxu0 0.0
    %4918 = vmatprep.subr.mxu0 0.0
    %4919 = vmatpush2.msra.mxu0 0.0
    %4920 = vmatprep.subr.mxu0 0.0
    %4921 = vmatpush2.msra.mxu0 0.0
    %4922 = vmatprep.subr.mxu0 0.0
    %4923 = vmatpush2.msra.mxu0 0.0
    %4924 = vmatprep.subr.mxu0 0.0
    %4925 = vmatpush2.msra.mxu0 0.0
    %4926 = vmatprep.subr.mxu0 0.0
    %4927 = vmatpush2.msra.mxu0 0.0
    %4928 = vmatprep.subr.mxu0 0.0
    %4929 = vmatpush2.msra.mxu0 0.0
    %4930 = vmatprep.subr.mxu0 0.0
    %4931 = vmatpush2.msra.mxu0 0.0
    %4932 = vmatprep.subr.mxu0 0.0
    %4933 = vmatpush2.msra.mxu0 0.0
    %4934 = vmatprep.subr.mxu0 0.0
    %4935 = vmatpush2.msra.mxu0 0.0
    %4936 = vmatprep.subr.mxu0 0.0
    %4937 = vmatpush2.msra.mxu0 0.0
    %4938 = vmatprep.subr.mxu0 0.0
    %4939 = vmatpush2.msra.mxu0 0.0
    %4940 = vmatprep.subr.mxu0 0.0
    %4941 = vmatpush2.msra.mxu0 0.0
    %4942 = vmatprep.subr.mxu0 0.0
    %4943 = vmatpush2.msra.mxu0 0.0
    %4944 = vmatprep.mubr.f32.mxu0 0.0
    %4945 = vmatmul.mubr.f32.gmra.mxu0 %v3891
    %v4946 = vpop.f32.mrf.mxu0
    %v4947 = vadd.f32 0.0, %v4946
    %v4948 = vpop.f32.mrf.mxu0
    %4949 = vdwg.mxu0
    %v4950 = vmul.f32 %v4947, 0.03125
    %v4951 = vadd.f32 %v4950, 1e-06
    %v4952 = vrsqrt.pop %v4951
    %v4953 = vlaneseq
    %v4954 = vshrl.u32 %v4953, 7
    %v4955 = vsub.s32 0, %v4954
    %v4956 = vrot.slane %v4952, %v4955
    %v4957 = vmul.f32 %v4872, %v4956
    %v4958 = vmul.f32 %v4873, %v4956
    %v4959 = vmul.f32 %v4874, %v4956
    %v4960 = vmul.f32 %v4875, %v4956
    %v4961 = vld [vmem:[%s105] sm:$0x1]
    %v4963 = vlaneseq
    %v4964 = vshrl.u32 %v4963, 7
    %v4965 = vsub.s32 0, %v4964
    %v4966 = vrot.slane %v4961, %v4965
    %v4968 = vmul.f32 %v4957, %v4966
    %v4969 = vmul.f32 %v4958, %v4966
    %v4970 = vmul.f32 %v4959, %v4966
    %v4971 = vmul.f32 %v4960, %v4966
    %v4972 = vld [vmem:[%s107] sm:$0x1]
    %v4974 = vlaneseq
    %v4975 = vshrl.u32 %v4974, 7
    %v4976 = vsub.s32 0, %v4975
    %v4977 = vrot.slane %v4972, %v4976
    %v4979 = vadd.f32 %v4968, %v4977
    %v4980 = vadd.f32 %v4969, %v4977
    %v4981 = vadd.f32 %v4970, %v4977
    %v4982 = vadd.f32 %v4971, %v4977
    %vm4983 = vcmask 654336
    %v4984 = vsel %vm4983, 1.0, 0
    %4986 = vmatprep.subr.mxu0 0.0
    %4987 = vmatpush1.msra.mxu0 0.0
    %4988 = vmatprep.subr.mxu0 0.0
    %4989 = vmatpush1.msra.mxu0 0.0
    %4990 = vmatprep.subr.mxu0 0.0
    %4991 = vmatpush1.msra.mxu0 0.0
    %4992 = vmatprep.subr.mxu0 0.0
    %4993 = vmatpush1.msra.mxu0 0.0
    %4994 = vmatprep.subr.mxu0 0.0
    %4995 = vmatpush1.msra.mxu0 0.0
    %4996 = vmatprep.subr.mxu0 0.0
    %4997 = vmatpush1.msra.mxu0 0.0
    %4998 = vmatprep.subr.mxu0 0.0
    %4999 = vmatpush1.msra.mxu0 %v1016
    %5000 = vmatprep.subr.mxu0 0.0
    %5001 = vmatpush1.msra.mxu0 %v1015
    %5002 = vmatprep.subr.mxu0 0.0
    %5003 = vmatpush1.msra.mxu0 %v1014
    %5004 = vmatprep.subr.mxu0 0.0
    %5005 = vmatpush1.msra.mxu0 %v1013
    %5006 = vmatprep.subr.mxu0 0.0
    %5007 = vmatpush1.msra.mxu0 %v1012
    %5008 = vmatprep.subr.mxu0 0.0
    %5009 = vmatpush1.msra.mxu0 %v1011
    %5010 = vmatprep.subr.mxu0 0.0
    %5011 = vmatpush1.msra.mxu0 %v1010
    %5012 = vmatprep.subr.mxu0 0.0
    %5013 = vmatpush1.msra.mxu0 %v1009
    %5014 = vmatprep.subr.mxu0 0.0
    %5015 = vmatpush1.msra.mxu0 %v1008
    %5016 = vmatprep.subr.mxu0 0.0
    %5017 = vmatpush1.msra.mxu0 %v1007
    %5018 = vmatprep.subr.mxu0 0.0
    %5019 = vmatpush2.msra.mxu0 0.0
    %5020 = vmatprep.subr.mxu0 0.0
    %5021 = vmatpush2.msra.mxu0 0.0
    %5022 = vmatprep.subr.mxu0 0.0
    %5023 = vmatpush2.msra.mxu0 0.0
    %5024 = vmatprep.subr.mxu0 0.0
    %5025 = vmatpush2.msra.mxu0 0.0
    %5026 = vmatprep.subr.mxu0 0.0
    %5027 = vmatpush2.msra.mxu0 0.0
    %5028 = vmatprep.subr.mxu0 0.0
    %5029 = vmatpush2.msra.mxu0 0.0
    %5030 = vmatprep.subr.mxu0 0.0
    %5031 = vmatpush2.msra.mxu0 0.0
    %5032 = vmatprep.subr.mxu0 0.0
    %5033 = vmatpush2.msra.mxu0 0.0
    %5034 = vmatprep.subr.mxu0 0.0
    %5035 = vmatpush2.msra.mxu0 0.0
    %5036 = vmatprep.subr.mxu0 0.0
    %5037 = vmatpush2.msra.mxu0 0.0
    %5038 = vmatprep.subr.mxu0 0.0
    %5039 = vmatpush2.msra.mxu0 0.0
    %5040 = vmatprep.subr.mxu0 0.0
    %5041 = vmatpush2.msra.mxu0 0.0
    %5042 = vmatprep.subr.mxu0 0.0
    %5043 = vmatpush2.msra.mxu0 0.0
    %5044 = vmatprep.subr.mxu0 0.0
    %5045 = vmatpush2.msra.mxu0 0.0
    %5046 = vmatprep.subr.mxu0 0.0
    %5047 = vmatpush2.msra.mxu0 0.0
    %5048 = vmatprep.subr.mxu0 0.0
    %5049 = vmatpush2.msra.mxu0 0.0
    %5050 = vmatprep.mubr.f32.mxu0 0.0
    %5051 = vmatmul.mubr.f32.gmra.mxu0 %v4984
    %v5052 = vpop.f32.mrf.mxu0
    %v5053 = vadd.f32 0.0, %v5052
    %v5054 = vpop.f32.mrf.mxu0
    %5055 = vdwg.mxu0
    %v5056 = vmul.f32 %v5053, 0.0125
    %v5057 = vlaneseq
    %v5058 = vshrl.u32 %v5057, 7
    %v5059 = vsub.s32 0, %v5058
    %v5060 = vrot.slane %v5056, %v5059
    %v5061 = vsub.f32 %v1007, %v5060
    %v5062 = vsub.f32 %v1008, %v5060
    %v5063 = vsub.f32 %v1009, %v5060
    %v5064 = vsub.f32 %v1010, %v5060
    %v5065 = vsub.f32 %v1011, %v5060
    %v5066 = vsub.f32 %v1012, %v5060
    %v5067 = vsub.f32 %v1013, %v5060
    %v5068 = vsub.f32 %v1014, %v5060
    %v5069 = vsub.f32 %v1015, %v5060
    %v5070 = vsub.f32 %v1016, %v5060
    %v5071 = vmul.f32 %v5061, %v5061
    %v5072 = vmul.f32 %v5062, %v5062
    %v5073 = vmul.f32 %v5063, %v5063
    %v5074 = vmul.f32 %v5064, %v5064
    %v5075 = vmul.f32 %v5065, %v5065
    %v5076 = vmul.f32 %v5066, %v5066
    %v5077 = vmul.f32 %v5067, %v5067
    %v5078 = vmul.f32 %v5068, %v5068
    %v5079 = vmul.f32 %v5069, %v5069
    %v5080 = vmul.f32 %v5070, %v5070
    %5081 = vmatprep.subr.mxu0 0.0
    %5082 = vmatpush1.msra.mxu0 0.0
    %5083 = vmatprep.subr.mxu0 0.0
    %5084 = vmatpush1.msra.mxu0 0.0
    %5085 = vmatprep.subr.mxu0 0.0
    %5086 = vmatpush1.msra.mxu0 0.0
    %5087 = vmatprep.subr.mxu0 0.0
    %5088 = vmatpush1.msra.mxu0 0.0
    %5089 = vmatprep.subr.mxu0 0.0
    %5090 = vmatpush1.msra.mxu0 0.0
    %5091 = vmatprep.subr.mxu0 0.0
    %5092 = vmatpush1.msra.mxu0 0.0
    %5093 = vmatprep.subr.mxu0 0.0
    %5094 = vmatpush1.msra.mxu0 %v5080
    %5095 = vmatprep.subr.mxu0 0.0
    %5096 = vmatpush1.msra.mxu0 %v5079
    %5097 = vmatprep.subr.mxu0 0.0
    %5098 = vmatpush1.msra.mxu0 %v5078
    %5099 = vmatprep.subr.mxu0 0.0
    %5100 = vmatpush1.msra.mxu0 %v5077
    %5101 = vmatprep.subr.mxu0 0.0
    %5102 = vmatpush1.msra.mxu0 %v5076
    %5103 = vmatprep.subr.mxu0 0.0
    %5104 = vmatpush1.msra.mxu0 %v5075
    %5105 = vmatprep.subr.mxu0 0.0
    %5106 = vmatpush1.msra.mxu0 %v5074
    %5107 = vmatprep.subr.mxu0 0.0
    %5108 = vmatpush1.msra.mxu0 %v5073
    %5109 = vmatprep.subr.mxu0 0.0
    %5110 = vmatpush1.msra.mxu0 %v5072
    %5111 = vmatprep.subr.mxu0 0.0
    %5112 = vmatpush1.msra.mxu0 %v5071
    %5113 = vmatprep.subr.mxu0 0.0
    %5114 = vmatpush2.msra.mxu0 0.0
    %5115 = vmatprep.subr.mxu0 0.0
    %5116 = vmatpush2.msra.mxu0 0.0
    %5117 = vmatprep.subr.mxu0 0.0
    %5118 = vmatpush2.msra.mxu0 0.0
    %5119 = vmatprep.subr.mxu0 0.0
    %5120 = vmatpush2.msra.mxu0 0.0
    %5121 = vmatprep.subr.mxu0 0.0
    %5122 = vmatpush2.msra.mxu0 0.0
    %5123 = vmatprep.subr.mxu0 0.0
    %5124 = vmatpush2.msra.mxu0 0.0
    %5125 = vmatprep.subr.mxu0 0.0
    %5126 = vmatpush2.msra.mxu0 0.0
    %5127 = vmatprep.subr.mxu0 0.0
    %5128 = vmatpush2.msra.mxu0 0.0
    %5129 = vmatprep.subr.mxu0 0.0
    %5130 = vmatpush2.msra.mxu0 0.0
    %5131 = vmatprep.subr.mxu0 0.0
    %5132 = vmatpush2.msra.mxu0 0.0
    %5133 = vmatprep.subr.mxu0 0.0
    %5134 = vmatpush2.msra.mxu0 0.0
    %5135 = vmatprep.subr.mxu0 0.0
    %5136 = vmatpush2.msra.mxu0 0.0
    %5137 = vmatprep.subr.mxu0 0.0
    %5138 = vmatpush2.msra.mxu0 0.0
    %5139 = vmatprep.subr.mxu0 0.0
    %5140 = vmatpush2.msra.mxu0 0.0
    %5141 = vmatprep.subr.mxu0 0.0
    %5142 = vmatpush2.msra.mxu0 0.0
    %5143 = vmatprep.subr.mxu0 0.0
    %5144 = vmatpush2.msra.mxu0 0.0
    %5145 = vmatprep.mubr.f32.mxu0 0.0
    %5146 = vmatmul.mubr.f32.gmra.mxu0 %v4984
    %v5147 = vpop.f32.mrf.mxu0
    %v5148 = vadd.f32 0.0, %v5147
    %v5149 = vpop.f32.mrf.mxu0
    %5150 = vdwg.mxu0
    %v5151 = vmul.f32 %v5148, 0.0125
    %v5152 = vadd.f32 %v5151, 1e-06
    %v5153 = vrsqrt.pop %v5152
    %v5154 = vlaneseq
    %v5155 = vshrl.u32 %v5154, 7
    %v5156 = vsub.s32 0, %v5155
    %v5157 = vrot.slane %v5153, %v5156
    %v5158 = vmul.f32 %v5061, %v5157
    %v5159 = vmul.f32 %v5062, %v5157
    %v5160 = vmul.f32 %v5063, %v5157
    %v5161 = vmul.f32 %v5064, %v5157
    %v5162 = vmul.f32 %v5065, %v5157
    %v5163 = vmul.f32 %v5066, %v5157
    %v5164 = vmul.f32 %v5067, %v5157
    %v5165 = vmul.f32 %v5068, %v5157
    %v5166 = vmul.f32 %v5069, %v5157
    %v5167 = vmul.f32 %v5070, %v5157
    %v5168 = vmul.f32 %v5158, %v4062
    %v5169 = vmul.f32 %v5159, %v4062
    %v5170 = vmul.f32 %v5160, %v4062
    %v5171 = vmul.f32 %v5161, %v4062
    %v5172 = vmul.f32 %v5162, %v4062
    %v5173 = vmul.f32 %v5163, %v4062
    %v5174 = vmul.f32 %v5164, %v4062
    %v5175 = vmul.f32 %v5165, %v4062
    %v5176 = vmul.f32 %v5166, %v4062
    %v5177 = vmul.f32 %v5167, %v4062
    %v5178 = vadd.f32 %v5168, %v4073
    %v5179 = vadd.f32 %v5169, %v4073
    %v5180 = vadd.f32 %v5170, %v4073
    %v5181 = vadd.f32 %v5171, %v4073
    %v5182 = vadd.f32 %v5172, %v4073
    %v5183 = vadd.f32 %v5173, %v4073
    %v5184 = vadd.f32 %v5174, %v4073
    %v5185 = vadd.f32 %v5175, %v4073
    %v5186 = vadd.f32 %v5176, %v4073
    %v5187 = vadd.f32 %v5177, %v4073
    %v5188 = vmax.f32 %v5178, 0.0
    %v5189 = vmax.f32 %v5179, 0.0
    %v5190 = vmax.f32 %v5180, 0.0
    %v5191 = vmax.f32 %v5181, 0.0
    %v5192 = vmax.f32 %v5182, 0.0
    %v5193 = vmax.f32 %v5183, 0.0
    %v5194 = vmax.f32 %v5184, 0.0
    %v5195 = vmax.f32 %v5185, 0.0
    %v5196 = vmax.f32 %v5186, 0.0
    %v5197 = vmax.f32 %v5187, 0.0
    %v5199 = vsel %vm2405, %v5188, 0
    %v5202 = vsel %vm2405, %v5189, 0
    %v5205 = vsel %vm2405, %v5190, 0
    %v5208 = vsel %vm2405, %v5191, 0
    %v5211 = vsel %vm2405, %v5192, 0
    %v5214 = vsel %vm2405, %v5193, 0
    %v5217 = vsel %vm2405, %v5194, 0
    %v5220 = vsel %vm2405, %v5195, 0
    %v5223 = vsel %vm2405, %v5196, 0
    %v5226 = vsel %vm2405, %v5197, 0
    %5228 = vmatprep.subr.mxu0 0.0
    %5229 = vmatpush1.msra.mxu0 0.0
    %5230 = vmatprep.subr.mxu0 0.0
    %5231 = vmatpush1.msra.mxu0 0.0
    %5232 = vmatprep.subr.mxu0 0.0
    %5233 = vmatpush1.msra.mxu0 0.0
    %5234 = vmatprep.subr.mxu0 0.0
    %5235 = vmatpush1.msra.mxu0 0.0
    %5236 = vmatprep.subr.mxu0 0.0
    %5237 = vmatpush1.msra.mxu0 0.0
    %5238 = vmatprep.subr.mxu0 0.0
    %5239 = vmatpush1.msra.mxu0 0.0
    %5240 = vmatprep.subr.mxu0 0.0
    %5241 = vmatpush1.msra.mxu0 0.0
    %5242 = vmatprep.subr.mxu0 0.0
    %5243 = vmatpush1.msra.mxu0 0.0
    %5244 = vmatprep.subr.mxu0 0.0
    %5245 = vmatpush1.msra.mxu0 0.0
    %5246 = vmatprep.subr.mxu0 0.0
    %5247 = vmatpush1.msra.mxu0 %v4103
    %5248 = vmatprep.subr.mxu0 0.0
    %5249 = vmatpush1.msra.mxu0 %v4088
    %5250 = vmatprep.subr.mxu0 0.0
    %5251 = vmatpush1.msra.mxu0 %v4087
    %5252 = vmatprep.subr.mxu0 0.0
    %5253 = vmatpush1.msra.mxu0 %v4086
    %5254 = vmatprep.subr.mxu0 0.0
    %5255 = vmatpush1.msra.mxu0 %v4085
    %5256 = vmatprep.subr.mxu0 0.0
    %5257 = vmatpush1.msra.mxu0 %v4084
    %5258 = vmatprep.subr.mxu0 0.0
    %5259 = vmatpush1.msra.mxu0 %v4083
    %5260 = vmatprep.subr.mxu0 0.0
    %5261 = vmatpush2.msra.mxu0 0.0
    %5262 = vmatprep.subr.mxu0 0.0
    %5263 = vmatpush2.msra.mxu0 0.0
    %5264 = vmatprep.subr.mxu0 0.0
    %5265 = vmatpush2.msra.mxu0 0.0
    %5266 = vmatprep.subr.mxu0 0.0
    %5267 = vmatpush2.msra.mxu0 0.0
    %5268 = vmatprep.subr.mxu0 0.0
    %5269 = vmatpush2.msra.mxu0 0.0
    %5270 = vmatprep.subr.mxu0 0.0
    %5271 = vmatpush2.msra.mxu0 0.0
    %5272 = vmatprep.subr.mxu0 0.0
    %5273 = vmatpush2.msra.mxu0 0.0
    %5274 = vmatprep.subr.mxu0 0.0
    %5275 = vmatpush2.msra.mxu0 0.0
    %5276 = vmatprep.subr.mxu0 0.0
    %5277 = vmatpush2.msra.mxu0 0.0
    %5278 = vmatprep.subr.mxu0 0.0
    %5279 = vmatpush2.msra.mxu0 0.0
    %5280 = vmatprep.subr.mxu0 0.0
    %5281 = vmatpush2.msra.mxu0 0.0
    %5282 = vmatprep.subr.mxu0 0.0
    %5283 = vmatpush2.msra.mxu0 0.0
    %5284 = vmatprep.subr.mxu0 0.0
    %5285 = vmatpush2.msra.mxu0 0.0
    %5286 = vmatprep.subr.mxu0 0.0
    %5287 = vmatpush2.msra.mxu0 0.0
    %5288 = vmatprep.subr.mxu0 0.0
    %5289 = vmatpush2.msra.mxu0 0.0
    %5290 = vmatprep.subr.mxu0 0.0
    %5291 = vmatpush2.msra.mxu0 0.0
    %5292 = vmatprep.mubr.f32.mxu0 0.0
    %5293 = vmatmul.mubr.f32.gmra.mxu0 %v5199
    %v5294 = vpop.f32.mrf.mxu0
    %v5295 = vadd.f32 0.0, %v5294
    %v5296 = vpop.f32.mrf.mxu0
    %5297 = vmatprep.mubr.f32.mxu0 0.0
    %5298 = vmatmul.mubr.f32.gmra.mxu0 %v5202
    %v5299 = vpop.f32.mrf.mxu0
    %v5300 = vadd.f32 0.0, %v5299
    %v5301 = vpop.f32.mrf.mxu0
    %5302 = vmatprep.mubr.f32.mxu0 0.0
    %5303 = vmatmul.mubr.f32.gmra.mxu0 %v5205
    %v5304 = vpop.f32.mrf.mxu0
    %v5305 = vadd.f32 0.0, %v5304
    %v5306 = vpop.f32.mrf.mxu0
    %5307 = vmatprep.mubr.f32.mxu0 0.0
    %5308 = vmatmul.mubr.f32.gmra.mxu0 %v5208
    %v5309 = vpop.f32.mrf.mxu0
    %v5310 = vadd.f32 0.0, %v5309
    %v5311 = vpop.f32.mrf.mxu0
    %5312 = vmatprep.mubr.f32.mxu0 0.0
    %5313 = vmatmul.mubr.f32.gmra.mxu0 %v5211
    %v5314 = vpop.f32.mrf.mxu0
    %v5315 = vadd.f32 0.0, %v5314
    %v5316 = vpop.f32.mrf.mxu0
    %5317 = vmatprep.mubr.f32.mxu0 0.0
    %5318 = vmatmul.mubr.f32.gmra.mxu0 %v5214
    %v5319 = vpop.f32.mrf.mxu0
    %v5320 = vadd.f32 0.0, %v5319
    %v5321 = vpop.f32.mrf.mxu0
    %5322 = vmatprep.mubr.f32.mxu0 0.0
    %5323 = vmatmul.mubr.f32.gmra.mxu0 %v5217
    %v5324 = vpop.f32.mrf.mxu0
    %v5325 = vadd.f32 0.0, %v5324
    %v5326 = vpop.f32.mrf.mxu0
    %5327 = vmatprep.mubr.f32.mxu0 0.0
    %5328 = vmatmul.mubr.f32.gmra.mxu0 %v5220
    %v5329 = vpop.f32.mrf.mxu0
    %v5330 = vadd.f32 0.0, %v5329
    %v5331 = vpop.f32.mrf.mxu0
    %5332 = vmatprep.mubr.f32.mxu0 0.0
    %5333 = vmatmul.mubr.f32.gmra.mxu0 %v5223
    %v5334 = vpop.f32.mrf.mxu0
    %v5335 = vadd.f32 0.0, %v5334
    %v5336 = vpop.f32.mrf.mxu0
    %5337 = vmatprep.mubr.f32.mxu0 0.0
    %5338 = vmatmul.mubr.f32.gmra.mxu0 %v5226
    %v5339 = vpop.f32.mrf.mxu0
    %v5340 = vadd.f32 0.0, %v5339
    %v5341 = vpop.f32.mrf.mxu0
    %5342 = vdwg.mxu0
    %5343 = vmatprep.subr.mxu0 0.0
    %5344 = vmatpush1.msra.mxu0 0.0
    %5345 = vmatprep.subr.mxu0 0.0
    %5346 = vmatpush1.msra.mxu0 0.0
    %5347 = vmatprep.subr.mxu0 0.0
    %5348 = vmatpush1.msra.mxu0 0.0
    %5349 = vmatprep.subr.mxu0 0.0
    %5350 = vmatpush1.msra.mxu0 0.0
    %5351 = vmatprep.subr.mxu0 0.0
    %5352 = vmatpush1.msra.mxu0 0.0
    %5353 = vmatprep.subr.mxu0 0.0
    %5354 = vmatpush1.msra.mxu0 0.0
    %5355 = vmatprep.subr.mxu0 0.0
    %5356 = vmatpush1.msra.mxu0 %v5340
    %5357 = vmatprep.subr.mxu0 0.0
    %5358 = vmatpush1.msra.mxu0 %v5335
    %5359 = vmatprep.subr.mxu0 0.0
    %5360 = vmatpush1.msra.mxu0 %v5330
    %5361 = vmatprep.subr.mxu0 0.0
    %5362 = vmatpush1.msra.mxu0 %v5325
    %5363 = vmatprep.subr.mxu0 0.0
    %5364 = vmatpush1.msra.mxu0 %v5320
    %5365 = vmatprep.subr.mxu0 0.0
    %5366 = vmatpush1.msra.mxu0 %v5315
    %5367 = vmatprep.subr.mxu0 0.0
    %5368 = vmatpush1.msra.mxu0 %v5310
    %5369 = vmatprep.subr.mxu0 0.0
    %5370 = vmatpush1.msra.mxu0 %v5305
    %5371 = vmatprep.subr.mxu0 0.0
    %5372 = vmatpush1.msra.mxu0 %v5300
    %5373 = vmatprep.subr.mxu0 0.0
    %5374 = vmatpush1.msra.mxu0 %v5295
    %5375 = vmatprep.subr.mxu0 0.0
    %5376 = vmatpush2.msra.mxu0 0.0
    %5377 = vmatprep.subr.mxu0 0.0
    %5378 = vmatpush2.msra.mxu0 0.0
    %5379 = vmatprep.subr.mxu0 0.0
    %5380 = vmatpush2.msra.mxu0 0.0
    %5381 = vmatprep.subr.mxu0 0.0
    %5382 = vmatpush2.msra.mxu0 0.0
    %5383 = vmatprep.subr.mxu0 0.0
    %5384 = vmatpush2.msra.mxu0 0.0
    %5385 = vmatprep.subr.mxu0 0.0
    %5386 = vmatpush2.msra.mxu0 0.0
    %5387 = vmatprep.subr.mxu0 0.0
    %5388 = vmatpush2.msra.mxu0 0.0
    %5389 = vmatprep.subr.mxu0 0.0
    %5390 = vmatpush2.msra.mxu0 0.0
    %5391 = vmatprep.subr.mxu0 0.0
    %5392 = vmatpush2.msra.mxu0 0.0
    %5393 = vmatprep.subr.mxu0 0.0
    %5394 = vmatpush2.msra.mxu0 0.0
    %5395 = vmatprep.subr.mxu0 0.0
    %5396 = vmatpush2.msra.mxu0 0.0
    %5397 = vmatprep.subr.mxu0 0.0
    %5398 = vmatpush2.msra.mxu0 0.0
    %5399 = vmatprep.subr.mxu0 0.0
    %5400 = vmatpush2.msra.mxu0 0.0
    %5401 = vmatprep.subr.mxu0 0.0
    %5402 = vmatpush2.msra.mxu0 0.0
    %5403 = vmatprep.subr.mxu0 0.0
    %5404 = vmatpush2.msra.mxu0 0.0
    %5405 = vmatprep.subr.mxu0 0.0
    %5406 = vmatpush2.msra.mxu0 0.0
    %5407 = vmatprep.mubr.f32.mxu0 0.0
    %5408 = vmatmul.mubr.f32.gmra.mxu0 %v4984
    %v5409 = vpop.f32.mrf.mxu0
    %v5410 = vadd.f32 0.0, %v5409
    %v5411 = vpop.f32.mrf.mxu0
    %5412 = vdwg.mxu0
    %v5413 = vmul.f32 %v5410, 0.0125
    %v5414 = vlaneseq
    %v5415 = vshrl.u32 %v5414, 7
    %v5416 = vsub.s32 0, %v5415
    %v5417 = vrot.slane %v5413, %v5416
    %v5418 = vsub.f32 %v5295, %v5417
    %v5419 = vsub.f32 %v5300, %v5417
    %v5420 = vsub.f32 %v5305, %v5417
    %v5421 = vsub.f32 %v5310, %v5417
    %v5422 = vsub.f32 %v5315, %v5417
    %v5423 = vsub.f32 %v5320, %v5417
    %v5424 = vsub.f32 %v5325, %v5417
    %v5425 = vsub.f32 %v5330, %v5417
    %v5426 = vsub.f32 %v5335, %v5417
    %v5427 = vsub.f32 %v5340, %v5417
    %v5428 = vmul.f32 %v5418, %v5418
    %v5429 = vmul.f32 %v5419, %v5419
    %v5430 = vmul.f32 %v5420, %v5420
    %v5431 = vmul.f32 %v5421, %v5421
    %v5432 = vmul.f32 %v5422, %v5422
    %v5433 = vmul.f32 %v5423, %v5423
    %v5434 = vmul.f32 %v5424, %v5424
    %v5435 = vmul.f32 %v5425, %v5425
    %v5436 = vmul.f32 %v5426, %v5426
    %v5437 = vmul.f32 %v5427, %v5427
    %5438 = vmatprep.subr.mxu0 0.0
    %5439 = vmatpush1.msra.mxu0 0.0
    %5440 = vmatprep.subr.mxu0 0.0
    %5441 = vmatpush1.msra.mxu0 0.0
    %5442 = vmatprep.subr.mxu0 0.0
    %5443 = vmatpush1.msra.mxu0 0.0
    %5444 = vmatprep.subr.mxu0 0.0
    %5445 = vmatpush1.msra.mxu0 0.0
    %5446 = vmatprep.subr.mxu0 0.0
    %5447 = vmatpush1.msra.mxu0 0.0
    %5448 = vmatprep.subr.mxu0 0.0
    %5449 = vmatpush1.msra.mxu0 0.0
    %5450 = vmatprep.subr.mxu0 0.0
    %5451 = vmatpush1.msra.mxu0 %v5437
    %5452 = vmatprep.subr.mxu0 0.0
    %5453 = vmatpush1.msra.mxu0 %v5436
    %5454 = vmatprep.subr.mxu0 0.0
    %5455 = vmatpush1.msra.mxu0 %v5435
    %5456 = vmatprep.subr.mxu0 0.0
    %5457 = vmatpush1.msra.mxu0 %v5434
    %5458 = vmatprep.subr.mxu0 0.0
    %5459 = vmatpush1.msra.mxu0 %v5433
    %5460 = vmatprep.subr.mxu0 0.0
    %5461 = vmatpush1.msra.mxu0 %v5432
    %5462 = vmatprep.subr.mxu0 0.0
    %5463 = vmatpush1.msra.mxu0 %v5431
    %5464 = vmatprep.subr.mxu0 0.0
    %5465 = vmatpush1.msra.mxu0 %v5430
    %5466 = vmatprep.subr.mxu0 0.0
    %5467 = vmatpush1.msra.mxu0 %v5429
    %5468 = vmatprep.subr.mxu0 0.0
    %5469 = vmatpush1.msra.mxu0 %v5428
    %5470 = vmatprep.subr.mxu0 0.0
    %5471 = vmatpush2.msra.mxu0 0.0
    %5472 = vmatprep.subr.mxu0 0.0
    %5473 = vmatpush2.msra.mxu0 0.0
    %5474 = vmatprep.subr.mxu0 0.0
    %5475 = vmatpush2.msra.mxu0 0.0
    %5476 = vmatprep.subr.mxu0 0.0
    %5477 = vmatpush2.msra.mxu0 0.0
    %5478 = vmatprep.subr.mxu0 0.0
    %5479 = vmatpush2.msra.mxu0 0.0
    %5480 = vmatprep.subr.mxu0 0.0
    %5481 = vmatpush2.msra.mxu0 0.0
    %5482 = vmatprep.subr.mxu0 0.0
    %5483 = vmatpush2.msra.mxu0 0.0
    %5484 = vmatprep.subr.mxu0 0.0
    %5485 = vmatpush2.msra.mxu0 0.0
    %5486 = vmatprep.subr.mxu0 0.0
    %5487 = vmatpush2.msra.mxu0 0.0
    %5488 = vmatprep.subr.mxu0 0.0
    %5489 = vmatpush2.msra.mxu0 0.0
    %5490 = vmatprep.subr.mxu0 0.0
    %5491 = vmatpush2.msra.mxu0 0.0
    %5492 = vmatprep.subr.mxu0 0.0
    %5493 = vmatpush2.msra.mxu0 0.0
    %5494 = vmatprep.subr.mxu0 0.0
    %5495 = vmatpush2.msra.mxu0 0.0
    %5496 = vmatprep.subr.mxu0 0.0
    %5497 = vmatpush2.msra.mxu0 0.0
    %5498 = vmatprep.subr.mxu0 0.0
    %5499 = vmatpush2.msra.mxu0 0.0
    %5500 = vmatprep.subr.mxu0 0.0
    %5501 = vmatpush2.msra.mxu0 0.0
    %5502 = vmatprep.mubr.f32.mxu0 0.0
    %5503 = vmatmul.mubr.f32.gmra.mxu0 %v4984
    %v5504 = vpop.f32.mrf.mxu0
    %v5505 = vadd.f32 0.0, %v5504
    %v5506 = vpop.f32.mrf.mxu0
    %5507 = vdwg.mxu0
    %v5508 = vmul.f32 %v5505, 0.0125
    %v5509 = vadd.f32 %v5508, 1e-06
    %v5510 = vrsqrt.pop %v5509
    %v5511 = vlaneseq
    %v5512 = vshrl.u32 %v5511, 7
    %v5513 = vsub.s32 0, %v5512
    %v5514 = vrot.slane %v5510, %v5513
    %v5515 = vmul.f32 %v5418, %v5514
    %v5516 = vmul.f32 %v5419, %v5514
    %v5517 = vmul.f32 %v5420, %v5514
    %v5518 = vmul.f32 %v5421, %v5514
    %v5519 = vmul.f32 %v5422, %v5514
    %v5520 = vmul.f32 %v5423, %v5514
    %v5521 = vmul.f32 %v5424, %v5514
    %v5522 = vmul.f32 %v5425, %v5514
    %v5523 = vmul.f32 %v5426, %v5514
    %v5524 = vmul.f32 %v5427, %v5514
    %v5525 = vmul.f32 %v5515, %v4359
    %v5526 = vmul.f32 %v5516, %v4359
    %v5527 = vmul.f32 %v5517, %v4359
    %v5528 = vmul.f32 %v5518, %v4359
    %v5529 = vmul.f32 %v5519, %v4359
    %v5530 = vmul.f32 %v5520, %v4359
    %v5531 = vmul.f32 %v5521, %v4359
    %v5532 = vmul.f32 %v5522, %v4359
    %v5533 = vmul.f32 %v5523, %v4359
    %v5534 = vmul.f32 %v5524, %v4359
    %v5535 = vadd.f32 %v5525, %v4370
    %v5536 = vadd.f32 %v5526, %v4370
    %v5537 = vadd.f32 %v5527, %v4370
    %v5538 = vadd.f32 %v5528, %v4370
    %v5539 = vadd.f32 %v5529, %v4370
    %v5540 = vadd.f32 %v5530, %v4370
    %v5541 = vadd.f32 %v5531, %v4370
    %v5542 = vadd.f32 %v5532, %v4370
    %v5543 = vadd.f32 %v5533, %v4370
    %v5544 = vadd.f32 %v5534, %v4370
    %v5545 = vmax.f32 %v5535, 0.0
    %v5546 = vmax.f32 %v5536, 0.0
    %v5547 = vmax.f32 %v5537, 0.0
    %v5548 = vmax.f32 %v5538, 0.0
    %v5549 = vmax.f32 %v5539, 0.0
    %v5550 = vmax.f32 %v5540, 0.0
    %v5551 = vmax.f32 %v5541, 0.0
    %v5552 = vmax.f32 %v5542, 0.0
    %v5553 = vmax.f32 %v5543, 0.0
    %v5554 = vmax.f32 %v5544, 0.0
    %v5556 = vsel %vm4392, %v5545, 0
    %v5559 = vsel %vm4392, %v5546, 0
    %v5562 = vsel %vm4392, %v5547, 0
    %v5565 = vsel %vm4392, %v5548, 0
    %v5568 = vsel %vm4392, %v5549, 0
    %v5571 = vsel %vm4392, %v5550, 0
    %v5574 = vsel %vm4392, %v5551, 0
    %v5577 = vsel %vm4392, %v5552, 0
    %v5580 = vsel %vm4392, %v5553, 0
    %v5583 = vsel %vm4392, %v5554, 0
    %5585 = vmatprep.subr.mxu0 0.0
    %5586 = vmatpush1.msra.mxu0 0.0
    %5587 = vmatprep.subr.mxu0 0.0
    %5588 = vmatpush1.msra.mxu0 0.0
    %5589 = vmatprep.subr.mxu0 0.0
    %5590 = vmatpush1.msra.mxu0 0.0
    %5591 = vmatprep.subr.mxu0 0.0
    %5592 = vmatpush1.msra.mxu0 0.0
    %5593 = vmatprep.subr.mxu0 0.0
    %5594 = vmatpush1.msra.mxu0 %v4406
    %5595 = vmatprep.subr.mxu0 0.0
    %5596 = vmatpush1.msra.mxu0 %v4390
    %5597 = vmatprep.subr.mxu0 0.0
    %5598 = vmatpush1.msra.mxu0 %v4389
    %5599 = vmatprep.subr.mxu0 0.0
    %5600 = vmatpush1.msra.mxu0 %v4388
    %5601 = vmatprep.subr.mxu0 0.0
    %5602 = vmatpush1.msra.mxu0 %v4387
    %5603 = vmatprep.subr.mxu0 0.0
    %5604 = vmatpush1.msra.mxu0 %v4386
    %5605 = vmatprep.subr.mxu0 0.0
    %5606 = vmatpush1.msra.mxu0 %v4385
    %5607 = vmatprep.subr.mxu0 0.0
    %5608 = vmatpush1.msra.mxu0 %v4384
    %5609 = vmatprep.subr.mxu0 0.0
    %5610 = vmatpush1.msra.mxu0 %v4383
    %5611 = vmatprep.subr.mxu0 0.0
    %5612 = vmatpush1.msra.mxu0 %v4382
    %5613 = vmatprep.subr.mxu0 0.0
    %5614 = vmatpush1.msra.mxu0 %v4381
    %5615 = vmatprep.subr.mxu0 0.0
    %5616 = vmatpush1.msra.mxu0 %v4380
    %5617 = vmatprep.subr.mxu0 0.0
    %5618 = vmatpush2.msra.mxu0 0.0
    %5619 = vmatprep.subr.mxu0 0.0
    %5620 = vmatpush2.msra.mxu0 0.0
    %5621 = vmatprep.subr.mxu0 0.0
    %5622 = vmatpush2.msra.mxu0 0.0
    %5623 = vmatprep.subr.mxu0 0.0
    %5624 = vmatpush2.msra.mxu0 0.0
    %5625 = vmatprep.subr.mxu0 0.0
    %5626 = vmatpush2.msra.mxu0 0.0
    %5627 = vmatprep.subr.mxu0 0.0
    %5628 = vmatpush2.msra.mxu0 0.0
    %5629 = vmatprep.subr.mxu0 0.0
    %5630 = vmatpush2.msra.mxu0 0.0
    %5631 = vmatprep.subr.mxu0 0.0
    %5632 = vmatpush2.msra.mxu0 0.0
    %5633 = vmatprep.subr.mxu0 0.0
    %5634 = vmatpush2.msra.mxu0 0.0
    %5635 = vmatprep.subr.mxu0 0.0
    %5636 = vmatpush2.msra.mxu0 0.0
    %5637 = vmatprep.subr.mxu0 0.0
    %5638 = vmatpush2.msra.mxu0 0.0
    %5639 = vmatprep.subr.mxu0 0.0
    %5640 = vmatpush2.msra.mxu0 0.0
    %5641 = vmatprep.subr.mxu0 0.0
    %5642 = vmatpush2.msra.mxu0 0.0
    %5643 = vmatprep.subr.mxu0 0.0
    %5644 = vmatpush2.msra.mxu0 0.0
    %5645 = vmatprep.subr.mxu0 0.0
    %5646 = vmatpush2.msra.mxu0 0.0
    %5647 = vmatprep.subr.mxu0 0.0
    %5648 = vmatpush2.msra.mxu0 0.0
    %5649 = vmatprep.mubr.f32.mxu0 0.0
    %5650 = vmatmul.mubr.f32.gmra.mxu0 %v5556
    %v5651 = vpop.f32.mrf.mxu0
    %v5652 = vadd.f32 0.0, %v5651
    %v5653 = vpop.f32.mrf.mxu0
    %5654 = vmatprep.mubr.f32.mxu0 0.0
    %5655 = vmatmul.mubr.f32.gmra.mxu0 %v5559
    %v5656 = vpop.f32.mrf.mxu0
    %v5657 = vadd.f32 0.0, %v5656
    %v5658 = vpop.f32.mrf.mxu0
    %5659 = vmatprep.mubr.f32.mxu0 0.0
    %5660 = vmatmul.mubr.f32.gmra.mxu0 %v5562
    %v5661 = vpop.f32.mrf.mxu0
    %v5662 = vadd.f32 0.0, %v5661
    %v5663 = vpop.f32.mrf.mxu0
    %5664 = vmatprep.mubr.f32.mxu0 0.0
    %5665 = vmatmul.mubr.f32.gmra.mxu0 %v5565
    %v5666 = vpop.f32.mrf.mxu0
    %v5667 = vadd.f32 0.0, %v5666
    %v5668 = vpop.f32.mrf.mxu0
    %5669 = vmatprep.mubr.f32.mxu0 0.0
    %5670 = vmatmul.mubr.f32.gmra.mxu0 %v5568
    %v5671 = vpop.f32.mrf.mxu0
    %v5672 = vadd.f32 0.0, %v5671
    %v5673 = vpop.f32.mrf.mxu0
    %5674 = vmatprep.mubr.f32.mxu0 0.0
    %5675 = vmatmul.mubr.f32.gmra.mxu0 %v5571
    %v5676 = vpop.f32.mrf.mxu0
    %v5677 = vadd.f32 0.0, %v5676
    %v5678 = vpop.f32.mrf.mxu0
    %5679 = vmatprep.mubr.f32.mxu0 0.0
    %5680 = vmatmul.mubr.f32.gmra.mxu0 %v5574
    %v5681 = vpop.f32.mrf.mxu0
    %v5682 = vadd.f32 0.0, %v5681
    %v5683 = vpop.f32.mrf.mxu0
    %5684 = vmatprep.mubr.f32.mxu0 0.0
    %5685 = vmatmul.mubr.f32.gmra.mxu0 %v5577
    %v5686 = vpop.f32.mrf.mxu0
    %v5687 = vadd.f32 0.0, %v5686
    %v5688 = vpop.f32.mrf.mxu0
    %5689 = vmatprep.mubr.f32.mxu0 0.0
    %5690 = vmatmul.mubr.f32.gmra.mxu0 %v5580
    %v5691 = vpop.f32.mrf.mxu0
    %v5692 = vadd.f32 0.0, %v5691
    %v5693 = vpop.f32.mrf.mxu0
    %5694 = vmatprep.mubr.f32.mxu0 0.0
    %5695 = vmatmul.mubr.f32.gmra.mxu0 %v5583
    %v5696 = vpop.f32.mrf.mxu0
    %v5697 = vadd.f32 0.0, %v5696
    %v5698 = vpop.f32.mrf.mxu0
    %5699 = vdwg.mxu0
    %5700 = vmatprep.subr.mxu0 0.0
    %5701 = vmatpush1.msra.mxu0 0.0
    %5702 = vmatprep.subr.mxu0 0.0
    %5703 = vmatpush1.msra.mxu0 0.0
    %5704 = vmatprep.subr.mxu0 0.0
    %5705 = vmatpush1.msra.mxu0 0.0
    %5706 = vmatprep.subr.mxu0 0.0
    %5707 = vmatpush1.msra.mxu0 0.0
    %5708 = vmatprep.subr.mxu0 0.0
    %5709 = vmatpush1.msra.mxu0 0.0
    %5710 = vmatprep.subr.mxu0 0.0
    %5711 = vmatpush1.msra.mxu0 0.0
    %5712 = vmatprep.subr.mxu0 0.0
    %5713 = vmatpush1.msra.mxu0 %v5697
    %5714 = vmatprep.subr.mxu0 0.0
    %5715 = vmatpush1.msra.mxu0 %v5692
    %5716 = vmatprep.subr.mxu0 0.0
    %5717 = vmatpush1.msra.mxu0 %v5687
    %5718 = vmatprep.subr.mxu0 0.0
    %5719 = vmatpush1.msra.mxu0 %v5682
    %5720 = vmatprep.subr.mxu0 0.0
    %5721 = vmatpush1.msra.mxu0 %v5677
    %5722 = vmatprep.subr.mxu0 0.0
    %5723 = vmatpush1.msra.mxu0 %v5672
    %5724 = vmatprep.subr.mxu0 0.0
    %5725 = vmatpush1.msra.mxu0 %v5667
    %5726 = vmatprep.subr.mxu0 0.0
    %5727 = vmatpush1.msra.mxu0 %v5662
    %5728 = vmatprep.subr.mxu0 0.0
    %5729 = vmatpush1.msra.mxu0 %v5657
    %5730 = vmatprep.subr.mxu0 0.0
    %5731 = vmatpush1.msra.mxu0 %v5652
    %5732 = vmatprep.subr.mxu0 0.0
    %5733 = vmatpush2.msra.mxu0 0.0
    %5734 = vmatprep.subr.mxu0 0.0
    %5735 = vmatpush2.msra.mxu0 0.0
    %5736 = vmatprep.subr.mxu0 0.0
    %5737 = vmatpush2.msra.mxu0 0.0
    %5738 = vmatprep.subr.mxu0 0.0
    %5739 = vmatpush2.msra.mxu0 0.0
    %5740 = vmatprep.subr.mxu0 0.0
    %5741 = vmatpush2.msra.mxu0 0.0
    %5742 = vmatprep.subr.mxu0 0.0
    %5743 = vmatpush2.msra.mxu0 0.0
    %5744 = vmatprep.subr.mxu0 0.0
    %5745 = vmatpush2.msra.mxu0 0.0
    %5746 = vmatprep.subr.mxu0 0.0
    %5747 = vmatpush2.msra.mxu0 0.0
    %5748 = vmatprep.subr.mxu0 0.0
    %5749 = vmatpush2.msra.mxu0 0.0
    %5750 = vmatprep.subr.mxu0 0.0
    %5751 = vmatpush2.msra.mxu0 0.0
    %5752 = vmatprep.subr.mxu0 0.0
    %5753 = vmatpush2.msra.mxu0 0.0
    %5754 = vmatprep.subr.mxu0 0.0
    %5755 = vmatpush2.msra.mxu0 0.0
    %5756 = vmatprep.subr.mxu0 0.0
    %5757 = vmatpush2.msra.mxu0 0.0
    %5758 = vmatprep.subr.mxu0 0.0
    %5759 = vmatpush2.msra.mxu0 0.0
    %5760 = vmatprep.subr.mxu0 0.0
    %5761 = vmatpush2.msra.mxu0 0.0
    %5762 = vmatprep.subr.mxu0 0.0
    %5763 = vmatpush2.msra.mxu0 0.0
    %5764 = vmatprep.mubr.f32.mxu0 0.0
    %5765 = vmatmul.mubr.f32.gmra.mxu0 %v4984
    %v5766 = vpop.f32.mrf.mxu0
    %v5767 = vadd.f32 0.0, %v5766
    %v5768 = vpop.f32.mrf.mxu0
    %5769 = vdwg.mxu0
    %v5770 = vmul.f32 %v5767, 0.0125
    %v5771 = vlaneseq
    %v5772 = vshrl.u32 %v5771, 7
    %v5773 = vsub.s32 0, %v5772
    %v5774 = vrot.slane %v5770, %v5773
    %v5775 = vsub.f32 %v5652, %v5774
    %v5776 = vsub.f32 %v5657, %v5774
    %v5777 = vsub.f32 %v5662, %v5774
    %v5778 = vsub.f32 %v5667, %v5774
    %v5779 = vsub.f32 %v5672, %v5774
    %v5780 = vsub.f32 %v5677, %v5774
    %v5781 = vsub.f32 %v5682, %v5774
    %v5782 = vsub.f32 %v5687, %v5774
    %v5783 = vsub.f32 %v5692, %v5774
    %v5784 = vsub.f32 %v5697, %v5774
    %v5785 = vmul.f32 %v5775, %v5775
    %v5786 = vmul.f32 %v5776, %v5776
    %v5787 = vmul.f32 %v5777, %v5777
    %v5788 = vmul.f32 %v5778, %v5778
    %v5789 = vmul.f32 %v5779, %v5779
    %v5790 = vmul.f32 %v5780, %v5780
    %v5791 = vmul.f32 %v5781, %v5781
    %v5792 = vmul.f32 %v5782, %v5782
    %v5793 = vmul.f32 %v5783, %v5783
    %v5794 = vmul.f32 %v5784, %v5784
    %5795 = vmatprep.subr.mxu0 0.0
    %5796 = vmatpush1.msra.mxu0 0.0
    %5797 = vmatprep.subr.mxu0 0.0
    %5798 = vmatpush1.msra.mxu0 0.0
    %5799 = vmatprep.subr.mxu0 0.0
    %5800 = vmatpush1.msra.mxu0 0.0
    %5801 = vmatprep.subr.mxu0 0.0
    %5802 = vmatpush1.msra.mxu0 0.0
    %5803 = vmatprep.subr.mxu0 0.0
    %5804 = vmatpush1.msra.mxu0 0.0
    %5805 = vmatprep.subr.mxu0 0.0
    %5806 = vmatpush1.msra.mxu0 0.0
    %5807 = vmatprep.subr.mxu0 0.0
    %5808 = vmatpush1.msra.mxu0 %v5794
    %5809 = vmatprep.subr.mxu0 0.0
    %5810 = vmatpush1.msra.mxu0 %v5793
    %5811 = vmatprep.subr.mxu0 0.0
    %5812 = vmatpush1.msra.mxu0 %v5792
    %5813 = vmatprep.subr.mxu0 0.0
    %5814 = vmatpush1.msra.mxu0 %v5791
    %5815 = vmatprep.subr.mxu0 0.0
    %5816 = vmatpush1.msra.mxu0 %v5790
    %5817 = vmatprep.subr.mxu0 0.0
    %5818 = vmatpush1.msra.mxu0 %v5789
    %5819 = vmatprep.subr.mxu0 0.0
    %5820 = vmatpush1.msra.mxu0 %v5788
    %5821 = vmatprep.subr.mxu0 0.0
    %5822 = vmatpush1.msra.mxu0 %v5787
    %5823 = vmatprep.subr.mxu0 0.0
    %5824 = vmatpush1.msra.mxu0 %v5786
    %5825 = vmatprep.subr.mxu0 0.0
    %5826 = vmatpush1.msra.mxu0 %v5785
    %5827 = vmatprep.subr.mxu0 0.0
    %5828 = vmatpush2.msra.mxu0 0.0
    %5829 = vmatprep.subr.mxu0 0.0
    %5830 = vmatpush2.msra.mxu0 0.0
    %5831 = vmatprep.subr.mxu0 0.0
    %5832 = vmatpush2.msra.mxu0 0.0
    %5833 = vmatprep.subr.mxu0 0.0
    %5834 = vmatpush2.msra.mxu0 0.0
    %5835 = vmatprep.subr.mxu0 0.0
    %5836 = vmatpush2.msra.mxu0 0.0
    %5837 = vmatprep.subr.mxu0 0.0
    %5838 = vmatpush2.msra.mxu0 0.0
    %5839 = vmatprep.subr.mxu0 0.0
    %5840 = vmatpush2.msra.mxu0 0.0
    %5841 = vmatprep.subr.mxu0 0.0
    %5842 = vmatpush2.msra.mxu0 0.0
    %5843 = vmatprep.subr.mxu0 0.0
    %5844 = vmatpush2.msra.mxu0 0.0
    %5845 = vmatprep.subr.mxu0 0.0
    %5846 = vmatpush2.msra.mxu0 0.0
    %5847 = vmatprep.subr.mxu0 0.0
    %5848 = vmatpush2.msra.mxu0 0.0
    %5849 = vmatprep.subr.mxu0 0.0
    %5850 = vmatpush2.msra.mxu0 0.0
    %5851 = vmatprep.subr.mxu0 0.0
    %5852 = vmatpush2.msra.mxu0 0.0
    %5853 = vmatprep.subr.mxu0 0.0
    %5854 = vmatpush2.msra.mxu0 0.0
    %5855 = vmatprep.subr.mxu0 0.0
    %5856 = vmatpush2.msra.mxu0 0.0
    %5857 = vmatprep.subr.mxu0 0.0
    %5858 = vmatpush2.msra.mxu0 0.0
    %5859 = vmatprep.mubr.f32.mxu0 0.0
    %5860 = vmatmul.mubr.f32.gmra.mxu0 %v4984
    %v5861 = vpop.f32.mrf.mxu0
    %v5862 = vadd.f32 0.0, %v5861
    %v5863 = vpop.f32.mrf.mxu0
    %5864 = vdwg.mxu0
    %v5865 = vmul.f32 %v5862, 0.0125
    %v5866 = vadd.f32 %v5865, 1e-06
    %v5867 = vrsqrt.pop %v5866
    %v5868 = vlaneseq
    %v5869 = vshrl.u32 %v5868, 7
    %v5870 = vsub.s32 0, %v5869
    %v5871 = vrot.slane %v5867, %v5870
    %v5872 = vmul.f32 %v5775, %v5871
    %v5873 = vmul.f32 %v5776, %v5871
    %v5874 = vmul.f32 %v5777, %v5871
    %v5875 = vmul.f32 %v5778, %v5871
    %v5876 = vmul.f32 %v5779, %v5871
    %v5877 = vmul.f32 %v5780, %v5871
    %v5878 = vmul.f32 %v5781, %v5871
    %v5879 = vmul.f32 %v5782, %v5871
    %v5880 = vmul.f32 %v5783, %v5871
    %v5881 = vmul.f32 %v5784, %v5871
    %v5882 = vmul.f32 %v5872, %v4662
    %v5883 = vmul.f32 %v5873, %v4662
    %v5884 = vmul.f32 %v5874, %v4662
    %v5885 = vmul.f32 %v5875, %v4662
    %v5886 = vmul.f32 %v5876, %v4662
    %v5887 = vmul.f32 %v5877, %v4662
    %v5888 = vmul.f32 %v5878, %v4662
    %v5889 = vmul.f32 %v5879, %v4662
    %v5890 = vmul.f32 %v5880, %v4662
    %v5891 = vmul.f32 %v5881, %v4662
    %v5892 = vadd.f32 %v5882, %v4673
    %v5893 = vadd.f32 %v5883, %v4673
    %v5894 = vadd.f32 %v5884, %v4673
    %v5895 = vadd.f32 %v5885, %v4673
    %v5896 = vadd.f32 %v5886, %v4673
    %v5897 = vadd.f32 %v5887, %v4673
    %v5898 = vadd.f32 %v5888, %v4673
    %v5899 = vadd.f32 %v5889, %v4673
    %v5900 = vadd.f32 %v5890, %v4673
    %v5901 = vadd.f32 %v5891, %v4673
    %v5902 = vmax.f32 %v5892, 0.0
    %v5903 = vmax.f32 %v5893, 0.0
    %v5904 = vmax.f32 %v5894, 0.0
    %v5905 = vmax.f32 %v5895, 0.0
    %v5906 = vmax.f32 %v5896, 0.0
    %v5907 = vmax.f32 %v5897, 0.0
    %v5908 = vmax.f32 %v5898, 0.0
    %v5909 = vmax.f32 %v5899, 0.0
    %v5910 = vmax.f32 %v5900, 0.0
    %v5911 = vmax.f32 %v5901, 0.0
    %v5913 = vsel %vm2405, %v5902, 0
    %v5916 = vsel %vm2405, %v5903, 0
    %v5919 = vsel %vm2405, %v5904, 0
    %v5922 = vsel %vm2405, %v5905, 0
    %v5925 = vsel %vm2405, %v5906, 0
    %v5928 = vsel %vm2405, %v5907, 0
    %v5931 = vsel %vm2405, %v5908, 0
    %v5934 = vsel %vm2405, %v5909, 0
    %v5937 = vsel %vm2405, %v5910, 0
    %v5940 = vsel %vm2405, %v5911, 0
    %5942 = vmatprep.subr.mxu0 0.0
    %5943 = vmatpush1.msra.mxu0 0.0
    %5944 = vmatprep.subr.mxu0 0.0
    %5945 = vmatpush1.msra.mxu0 0.0
    %5946 = vmatprep.subr.mxu0 0.0
    %5947 = vmatpush1.msra.mxu0 0.0
    %5948 = vmatprep.subr.mxu0 0.0
    %5949 = vmatpush1.msra.mxu0 0.0
    %5950 = vmatprep.subr.mxu0 0.0
    %5951 = vmatpush1.msra.mxu0 0.0
    %5952 = vmatprep.subr.mxu0 0.0
    %5953 = vmatpush1.msra.mxu0 0.0
    %5954 = vmatprep.subr.mxu0 0.0
    %5955 = vmatpush1.msra.mxu0 0.0
    %5956 = vmatprep.subr.mxu0 0.0
    %5957 = vmatpush1.msra.mxu0 0.0
    %5958 = vmatprep.subr.mxu0 0.0
    %5959 = vmatpush1.msra.mxu0 0.0
    %5960 = vmatprep.subr.mxu0 0.0
    %5961 = vmatpush1.msra.mxu0 %v4710
    %5962 = vmatprep.subr.mxu0 0.0
    %5963 = vmatpush1.msra.mxu0 %v4688
    %5964 = vmatprep.subr.mxu0 0.0
    %5965 = vmatpush1.msra.mxu0 %v4687
    %5966 = vmatprep.subr.mxu0 0.0
    %5967 = vmatpush1.msra.mxu0 %v4686
    %5968 = vmatprep.subr.mxu0 0.0
    %5969 = vmatpush1.msra.mxu0 %v4685
    %5970 = vmatprep.subr.mxu0 0.0
    %5971 = vmatpush1.msra.mxu0 %v4684
    %5972 = vmatprep.subr.mxu0 0.0
    %5973 = vmatpush1.msra.mxu0 %v4683
    %5974 = vmatprep.subr.mxu0 0.0
    %5975 = vmatpush2.msra.mxu0 0.0
    %5976 = vmatprep.subr.mxu0 0.0
    %5977 = vmatpush2.msra.mxu0 0.0
    %5978 = vmatprep.subr.mxu0 0.0
    %5979 = vmatpush2.msra.mxu0 0.0
    %5980 = vmatprep.subr.mxu0 0.0
    %5981 = vmatpush2.msra.mxu0 0.0
    %5982 = vmatprep.subr.mxu0 0.0
    %5983 = vmatpush2.msra.mxu0 0.0
    %5984 = vmatprep.subr.mxu0 0.0
    %5985 = vmatpush2.msra.mxu0 0.0
    %5986 = vmatprep.subr.mxu0 0.0
    %5987 = vmatpush2.msra.mxu0 0.0
    %5988 = vmatprep.subr.mxu0 0.0
    %5989 = vmatpush2.msra.mxu0 0.0
    %5990 = vmatprep.subr.mxu0 0.0
    %5991 = vmatpush2.msra.mxu0 0.0
    %5992 = vmatprep.subr.mxu0 0.0
    %5993 = vmatpush2.msra.mxu0 0.0
    %5994 = vmatprep.subr.mxu0 0.0
    %5995 = vmatpush2.msra.mxu0 0.0
    %5996 = vmatprep.subr.mxu0 0.0
    %5997 = vmatpush2.msra.mxu0 0.0
    %5998 = vmatprep.subr.mxu0 0.0
    %5999 = vmatpush2.msra.mxu0 0.0
    %6000 = vmatprep.subr.mxu0 0.0
    %6001 = vmatpush2.msra.mxu0 0.0
    %6002 = vmatprep.subr.mxu0 0.0
    %6003 = vmatpush2.msra.mxu0 0.0
    %6004 = vmatprep.subr.mxu0 0.0
    %6005 = vmatpush2.msra.mxu0 0.0
    %6006 = vmatprep.mubr.f32.mxu0 0.0
    %6007 = vmatmul.mubr.f32.gmra.mxu0 %v5913
    %v6008 = vpop.f32.mrf.mxu0
    %v6009 = vadd.f32 %v4695, %v6008
    %v6010 = vpop.f32.mrf.mxu0
    %6011 = vmatprep.mubr.f32.mxu0 0.0
    %6012 = vmatmul.mubr.f32.gmra.mxu0 %v5916
    %v6013 = vpop.f32.mrf.mxu0
    %v6014 = vadd.f32 %v4695, %v6013
    %v6015 = vpop.f32.mrf.mxu0
    %6016 = vmatprep.mubr.f32.mxu0 0.0
    %6017 = vmatmul.mubr.f32.gmra.mxu0 %v5919
    %v6018 = vpop.f32.mrf.mxu0
    %v6019 = vadd.f32 %v4695, %v6018
    %v6020 = vpop.f32.mrf.mxu0
    %6021 = vmatprep.mubr.f32.mxu0 0.0
    %6022 = vmatmul.mubr.f32.gmra.mxu0 %v5922
    %v6023 = vpop.f32.mrf.mxu0
    %v6024 = vadd.f32 %v4695, %v6023
    %v6025 = vpop.f32.mrf.mxu0
    %6026 = vmatprep.mubr.f32.mxu0 0.0
    %6027 = vmatmul.mubr.f32.gmra.mxu0 %v5925
    %v6028 = vpop.f32.mrf.mxu0
    %v6029 = vadd.f32 %v4695, %v6028
    %v6030 = vpop.f32.mrf.mxu0
    %6031 = vmatprep.mubr.f32.mxu0 0.0
    %6032 = vmatmul.mubr.f32.gmra.mxu0 %v5928
    %v6033 = vpop.f32.mrf.mxu0
    %v6034 = vadd.f32 %v4695, %v6033
    %v6035 = vpop.f32.mrf.mxu0
    %6036 = vmatprep.mubr.f32.mxu0 0.0
    %6037 = vmatmul.mubr.f32.gmra.mxu0 %v5931
    %v6038 = vpop.f32.mrf.mxu0
    %v6039 = vadd.f32 %v4695, %v6038
    %v6040 = vpop.f32.mrf.mxu0
    %6041 = vmatprep.mubr.f32.mxu0 0.0
    %6042 = vmatmul.mubr.f32.gmra.mxu0 %v5934
    %v6043 = vpop.f32.mrf.mxu0
    %v6044 = vadd.f32 %v4695, %v6043
    %v6045 = vpop.f32.mrf.mxu0
    %6046 = vmatprep.mubr.f32.mxu0 0.0
    %6047 = vmatmul.mubr.f32.gmra.mxu0 %v5937
    %v6048 = vpop.f32.mrf.mxu0
    %v6049 = vadd.f32 %v4695, %v6048
    %v6050 = vpop.f32.mrf.mxu0
    %6051 = vmatprep.mubr.f32.mxu0 0.0
    %6052 = vmatmul.mubr.f32.gmra.mxu0 %v5940
    %v6053 = vpop.f32.mrf.mxu0
    %v6054 = vadd.f32 %v4695, %v6053
    %v6055 = vpop.f32.mrf.mxu0
    %6056 = vdwg.mxu0
    %6057 = vmatprep.subr.mxu0 0.0
    %6058 = vmatpush1.msra.mxu0 0.0
    %6059 = vmatprep.subr.mxu0 0.0
    %6060 = vmatpush1.msra.mxu0 0.0
    %6061 = vmatprep.subr.mxu0 0.0
    %6062 = vmatpush1.msra.mxu0 0.0
    %6063 = vmatprep.subr.mxu0 0.0
    %6064 = vmatpush1.msra.mxu0 0.0
    %6065 = vmatprep.subr.mxu0 0.0
    %6066 = vmatpush1.msra.mxu0 0.0
    %6067 = vmatprep.subr.mxu0 0.0
    %6068 = vmatpush1.msra.mxu0 0.0
    %6069 = vmatprep.subr.mxu0 0.0
    %6070 = vmatpush1.msra.mxu0 %v6054
    %6071 = vmatprep.subr.mxu0 0.0
    %6072 = vmatpush1.msra.mxu0 %v6049
    %6073 = vmatprep.subr.mxu0 0.0
    %6074 = vmatpush1.msra.mxu0 %v6044
    %6075 = vmatprep.subr.mxu0 0.0
    %6076 = vmatpush1.msra.mxu0 %v6039
    %6077 = vmatprep.subr.mxu0 0.0
    %6078 = vmatpush1.msra.mxu0 %v6034
    %6079 = vmatprep.subr.mxu0 0.0
    %6080 = vmatpush1.msra.mxu0 %v6029
    %6081 = vmatprep.subr.mxu0 0.0
    %6082 = vmatpush1.msra.mxu0 %v6024
    %6083 = vmatprep.subr.mxu0 0.0
    %6084 = vmatpush1.msra.mxu0 %v6019
    %6085 = vmatprep.subr.mxu0 0.0
    %6086 = vmatpush1.msra.mxu0 %v6014
    %6087 = vmatprep.subr.mxu0 0.0
    %6088 = vmatpush1.msra.mxu0 %v6009
    %6089 = vmatprep.subr.mxu0 0.0
    %6090 = vmatpush2.msra.mxu0 0.0
    %6091 = vmatprep.subr.mxu0 0.0
    %6092 = vmatpush2.msra.mxu0 0.0
    %6093 = vmatprep.subr.mxu0 0.0
    %6094 = vmatpush2.msra.mxu0 0.0
    %6095 = vmatprep.subr.mxu0 0.0
    %6096 = vmatpush2.msra.mxu0 0.0
    %6097 = vmatprep.subr.mxu0 0.0
    %6098 = vmatpush2.msra.mxu0 0.0
    %6099 = vmatprep.subr.mxu0 0.0
    %6100 = vmatpush2.msra.mxu0 0.0
    %6101 = vmatprep.subr.mxu0 0.0
    %6102 = vmatpush2.msra.mxu0 0.0
    %6103 = vmatprep.subr.mxu0 0.0
    %6104 = vmatpush2.msra.mxu0 0.0
    %6105 = vmatprep.subr.mxu0 0.0
    %6106 = vmatpush2.msra.mxu0 0.0
    %6107 = vmatprep.subr.mxu0 0.0
    %6108 = vmatpush2.msra.mxu0 0.0
    %6109 = vmatprep.subr.mxu0 0.0
    %6110 = vmatpush2.msra.mxu0 0.0
    %6111 = vmatprep.subr.mxu0 0.0
    %6112 = vmatpush2.msra.mxu0 0.0
    %6113 = vmatprep.subr.mxu0 0.0
    %6114 = vmatpush2.msra.mxu0 0.0
    %6115 = vmatprep.subr.mxu0 0.0
    %6116 = vmatpush2.msra.mxu0 0.0
    %6117 = vmatprep.subr.mxu0 0.0
    %6118 = vmatpush2.msra.mxu0 0.0
    %6119 = vmatprep.subr.mxu0 0.0
    %6120 = vmatpush2.msra.mxu0 0.0
    %6121 = vmatprep.mubr.f32.mxu0 0.0
    %6122 = vmatmul.mubr.f32.gmra.mxu0 %v4984
    %v6123 = vpop.f32.mrf.mxu0
    %v6124 = vadd.f32 0.0, %v6123
    %v6125 = vpop.f32.mrf.mxu0
    %6126 = vdwg.mxu0
    %v6127 = vmul.f32 %v6124, 0.0125
    %v6128 = vlaneseq
    %v6129 = vshrl.u32 %v6128, 7
    %v6130 = vsub.s32 0, %v6129
    %v6131 = vrot.slane %v6127, %v6130
    %v6132 = vsub.f32 %v6009, %v6131
    %v6133 = vsub.f32 %v6014, %v6131
    %v6134 = vsub.f32 %v6019, %v6131
    %v6135 = vsub.f32 %v6024, %v6131
    %v6136 = vsub.f32 %v6029, %v6131
    %v6137 = vsub.f32 %v6034, %v6131
    %v6138 = vsub.f32 %v6039, %v6131
    %v6139 = vsub.f32 %v6044, %v6131
    %v6140 = vsub.f32 %v6049, %v6131
    %v6141 = vsub.f32 %v6054, %v6131
    %v6142 = vmul.f32 %v6132, %v6132
    %v6143 = vmul.f32 %v6133, %v6133
    %v6144 = vmul.f32 %v6134, %v6134
    %v6145 = vmul.f32 %v6135, %v6135
    %v6146 = vmul.f32 %v6136, %v6136
    %v6147 = vmul.f32 %v6137, %v6137
    %v6148 = vmul.f32 %v6138, %v6138
    %v6149 = vmul.f32 %v6139, %v6139
    %v6150 = vmul.f32 %v6140, %v6140
    %v6151 = vmul.f32 %v6141, %v6141
    %6152 = vmatprep.subr.mxu0 0.0
    %6153 = vmatpush1.msra.mxu0 0.0
    %6154 = vmatprep.subr.mxu0 0.0
    %6155 = vmatpush1.msra.mxu0 0.0
    %6156 = vmatprep.subr.mxu0 0.0
    %6157 = vmatpush1.msra.mxu0 0.0
    %6158 = vmatprep.subr.mxu0 0.0
    %6159 = vmatpush1.msra.mxu0 0.0
    %6160 = vmatprep.subr.mxu0 0.0
    %6161 = vmatpush1.msra.mxu0 0.0
    %6162 = vmatprep.subr.mxu0 0.0
    %6163 = vmatpush1.msra.mxu0 0.0
    %6164 = vmatprep.subr.mxu0 0.0
    %6165 = vmatpush1.msra.mxu0 %v6151
    %6166 = vmatprep.subr.mxu0 0.0
    %6167 = vmatpush1.msra.mxu0 %v6150
    %6168 = vmatprep.subr.mxu0 0.0
    %6169 = vmatpush1.msra.mxu0 %v6149
    %6170 = vmatprep.subr.mxu0 0.0
    %6171 = vmatpush1.msra.mxu0 %v6148
    %6172 = vmatprep.subr.mxu0 0.0
    %6173 = vmatpush1.msra.mxu0 %v6147
    %6174 = vmatprep.subr.mxu0 0.0
    %6175 = vmatpush1.msra.mxu0 %v6146
    %6176 = vmatprep.subr.mxu0 0.0
    %6177 = vmatpush1.msra.mxu0 %v6145
    %6178 = vmatprep.subr.mxu0 0.0
    %6179 = vmatpush1.msra.mxu0 %v6144
    %6180 = vmatprep.subr.mxu0 0.0
    %6181 = vmatpush1.msra.mxu0 %v6143
    %6182 = vmatprep.subr.mxu0 0.0
    %6183 = vmatpush1.msra.mxu0 %v6142
    %6184 = vmatprep.subr.mxu0 0.0
    %6185 = vmatpush2.msra.mxu0 0.0
    %6186 = vmatprep.subr.mxu0 0.0
    %6187 = vmatpush2.msra.mxu0 0.0
    %6188 = vmatprep.subr.mxu0 0.0
    %6189 = vmatpush2.msra.mxu0 0.0
    %6190 = vmatprep.subr.mxu0 0.0
    %6191 = vmatpush2.msra.mxu0 0.0
    %6192 = vmatprep.subr.mxu0 0.0
    %6193 = vmatpush2.msra.mxu0 0.0
    %6194 = vmatprep.subr.mxu0 0.0
    %6195 = vmatpush2.msra.mxu0 0.0
    %6196 = vmatprep.subr.mxu0 0.0
    %6197 = vmatpush2.msra.mxu0 0.0
    %6198 = vmatprep.subr.mxu0 0.0
    %6199 = vmatpush2.msra.mxu0 0.0
    %6200 = vmatprep.subr.mxu0 0.0
    %6201 = vmatpush2.msra.mxu0 0.0
    %6202 = vmatprep.subr.mxu0 0.0
    %6203 = vmatpush2.msra.mxu0 0.0
    %6204 = vmatprep.subr.mxu0 0.0
    %6205 = vmatpush2.msra.mxu0 0.0
    %6206 = vmatprep.subr.mxu0 0.0
    %6207 = vmatpush2.msra.mxu0 0.0
    %6208 = vmatprep.subr.mxu0 0.0
    %6209 = vmatpush2.msra.mxu0 0.0
    %6210 = vmatprep.subr.mxu0 0.0
    %6211 = vmatpush2.msra.mxu0 0.0
    %6212 = vmatprep.subr.mxu0 0.0
    %6213 = vmatpush2.msra.mxu0 0.0
    %6214 = vmatprep.subr.mxu0 0.0
    %6215 = vmatpush2.msra.mxu0 0.0
    %6216 = vmatprep.mubr.f32.mxu0 0.0
    %6217 = vmatmul.mubr.f32.gmra.mxu0 %v4984
    %v6218 = vpop.f32.mrf.mxu0
    %v6219 = vadd.f32 0.0, %v6218
    %v6220 = vpop.f32.mrf.mxu0
    %6221 = vdwg.mxu0
    %v6222 = vmul.f32 %v6219, 0.0125
    %v6223 = vadd.f32 %v6222, 1e-06
    %v6224 = vrsqrt.pop %v6223
    %v6225 = vlaneseq
    %v6226 = vshrl.u32 %v6225, 7
    %v6227 = vsub.s32 0, %v6226
    %v6228 = vrot.slane %v6224, %v6227
    %v6229 = vmul.f32 %v6132, %v6228
    %v6230 = vmul.f32 %v6133, %v6228
    %v6231 = vmul.f32 %v6134, %v6228
    %v6232 = vmul.f32 %v6135, %v6228
    %v6233 = vmul.f32 %v6136, %v6228
    %v6234 = vmul.f32 %v6137, %v6228
    %v6235 = vmul.f32 %v6138, %v6228
    %v6236 = vmul.f32 %v6139, %v6228
    %v6237 = vmul.f32 %v6140, %v6228
    %v6238 = vmul.f32 %v6141, %v6228
    %v6239 = vmul.f32 %v6229, %v4966
    %v6240 = vmul.f32 %v6230, %v4966
    %v6241 = vmul.f32 %v6231, %v4966
    %v6242 = vmul.f32 %v6232, %v4966
    %v6243 = vmul.f32 %v6233, %v4966
    %v6244 = vmul.f32 %v6234, %v4966
    %v6245 = vmul.f32 %v6235, %v4966
    %v6246 = vmul.f32 %v6236, %v4966
    %v6247 = vmul.f32 %v6237, %v4966
    %v6248 = vmul.f32 %v6238, %v4966
    %v6249 = vadd.f32 %v6239, %v4977
    %v6250 = vadd.f32 %v6240, %v4977
    %v6251 = vadd.f32 %v6241, %v4977
    %v6252 = vadd.f32 %v6242, %v4977
    %v6253 = vadd.f32 %v6243, %v4977
    %v6254 = vadd.f32 %v6244, %v4977
    %v6255 = vadd.f32 %v6245, %v4977
    %v6256 = vadd.f32 %v6246, %v4977
    %v6257 = vadd.f32 %v6247, %v4977
    %v6258 = vadd.f32 %v6248, %v4977
    %v6260 = vsel %vm517, %v337, 0
    %v6262 = vsel %vm521, 1.0, 0
    %6264 = vmatprep.subr.mxu0 0.0
    %6265 = vmatpush1.msra.mxu0 0.0
    %6266 = vmatprep.subr.mxu0 0.0
    %6267 = vmatpush1.msra.mxu0 0.0
    %6268 = vmatprep.subr.mxu0 0.0
    %6269 = vmatpush1.msra.mxu0 0.0
    %6270 = vmatprep.subr.mxu0 0.0
    %6271 = vmatpush1.msra.mxu0 0.0
    %6272 = vmatprep.subr.mxu0 0.0
    %6273 = vmatpush1.msra.mxu0 0.0
    %6274 = vmatprep.subr.mxu0 0.0
    %6275 = vmatpush1.msra.mxu0 0.0
    %6276 = vmatprep.subr.mxu0 0.0
    %6277 = vmatpush1.msra.mxu0 0.0
    %6278 = vmatprep.subr.mxu0 0.0
    %6279 = vmatpush1.msra.mxu0 0.0
    %6280 = vmatprep.subr.mxu0 0.0
    %6281 = vmatpush1.msra.mxu0 0.0
    %6282 = vmatprep.subr.mxu0 0.0
    %6283 = vmatpush1.msra.mxu0 0.0
    %6284 = vmatprep.subr.mxu0 0.0
    %6285 = vmatpush1.msra.mxu0 0.0
    %6286 = vmatprep.subr.mxu0 0.0
    %6287 = vmatpush1.msra.mxu0 0.0
    %6288 = vmatprep.subr.mxu0 0.0
    %6289 = vmatpush1.msra.mxu0 0.0
    %6290 = vmatprep.subr.mxu0 0.0
    %6291 = vmatpush1.msra.mxu0 %v6262
    %6292 = vmatprep.subr.mxu0 0.0
    %6293 = vmatpush1.msra.mxu0 1.0
    %6294 = vmatprep.subr.mxu0 0.0
    %6295 = vmatpush1.msra.mxu0 1.0
    %6296 = vmatprep.subr.mxu0 0.0
    %6297 = vmatpush2.msra.mxu0 0.0
    %6298 = vmatprep.subr.mxu0 0.0
    %6299 = vmatpush2.msra.mxu0 0.0
    %6300 = vmatprep.subr.mxu0 0.0
    %6301 = vmatpush2.msra.mxu0 0.0
    %6302 = vmatprep.subr.mxu0 0.0
    %6303 = vmatpush2.msra.mxu0 0.0
    %6304 = vmatprep.subr.mxu0 0.0
    %6305 = vmatpush2.msra.mxu0 0.0
    %6306 = vmatprep.subr.mxu0 0.0
    %6307 = vmatpush2.msra.mxu0 0.0
    %6308 = vmatprep.subr.mxu0 0.0
    %6309 = vmatpush2.msra.mxu0 0.0
    %6310 = vmatprep.subr.mxu0 0.0
    %6311 = vmatpush2.msra.mxu0 0.0
    %6312 = vmatprep.subr.mxu0 0.0
    %6313 = vmatpush2.msra.mxu0 0.0
    %6314 = vmatprep.subr.mxu0 0.0
    %6315 = vmatpush2.msra.mxu0 0.0
    %6316 = vmatprep.subr.mxu0 0.0
    %6317 = vmatpush2.msra.mxu0 0.0
    %6318 = vmatprep.subr.mxu0 0.0
    %6319 = vmatpush2.msra.mxu0 0.0
    %6320 = vmatprep.subr.mxu0 0.0
    %6321 = vmatpush2.msra.mxu0 0.0
    %6322 = vmatprep.subr.mxu0 0.0
    %6323 = vmatpush2.msra.mxu0 0.0
    %6324 = vmatprep.subr.mxu0 0.0
    %6325 = vmatpush2.msra.mxu0 0.0
    %6326 = vmatprep.subr.mxu0 0.0
    %6327 = vmatpush2.msra.mxu0 0.0
    %6328 = vmatprep.mubr.f32.mxu0 0.0
    %6329 = vmatmul.mubr.f32.gmra.mxu0 %v6260
    %v6330 = vpop.f32.mrf.mxu0
    %v6331 = vadd.f32 0.0, %v6330
    %v6332 = vpop.f32.mrf.mxu0
    %6333 = vdwg.mxu0
    %vm6334 = vcmask 130048
    %v6336 = vsel %vm6334, %v3889, 0
    %6338 = vmatprep.subr.mxu0 0.0
    %6339 = vmatpush1.msra.mxu0 1.0
    %6340 = vmatprep.subr.mxu0 0.0
    %6341 = vmatpush1.msra.mxu0 1.0
    %6342 = vmatprep.subr.mxu0 0.0
    %6343 = vmatpush1.msra.mxu0 1.0
    %6344 = vmatprep.subr.mxu0 0.0
    %6345 = vmatpush1.msra.mxu0 1.0
    %6346 = vmatprep.subr.mxu0 0.0
    %6347 = vmatpush1.msra.mxu0 1.0
    %6348 = vmatprep.subr.mxu0 0.0
    %6349 = vmatpush1.msra.mxu0 1.0
    %6350 = vmatprep.subr.mxu0 0.0
    %6351 = vmatpush1.msra.mxu0 1.0
    %6352 = vmatprep.subr.mxu0 0.0
    %6353 = vmatpush1.msra.mxu0 1.0
    %6354 = vmatprep.subr.mxu0 0.0
    %6355 = vmatpush1.msra.mxu0 1.0
    %6356 = vmatprep.subr.mxu0 0.0
    %6357 = vmatpush1.msra.mxu0 1.0
    %6358 = vmatprep.subr.mxu0 0.0
    %6359 = vmatpush1.msra.mxu0 1.0
    %6360 = vmatprep.subr.mxu0 0.0
    %6361 = vmatpush1.msra.mxu0 1.0
    %6362 = vmatprep.subr.mxu0 0.0
    %6363 = vmatpush1.msra.mxu0 1.0
    %6364 = vmatprep.subr.mxu0 0.0
    %6365 = vmatpush1.msra.mxu0 1.0
    %6366 = vmatprep.subr.mxu0 0.0
    %6367 = vmatpush1.msra.mxu0 1.0
    %6368 = vmatprep.subr.mxu0 0.0
    %6369 = vmatpush1.msra.mxu0 1.0
    %6370 = vmatprep.subr.mxu0 0.0
    %6371 = vmatpush2.msra.mxu0 1.0
    %6372 = vmatprep.subr.mxu0 0.0
    %6373 = vmatpush2.msra.mxu0 1.0
    %6374 = vmatprep.subr.mxu0 0.0
    %6375 = vmatpush2.msra.mxu0 1.0
    %6376 = vmatprep.subr.mxu0 0.0
    %6377 = vmatpush2.msra.mxu0 1.0
    %6378 = vmatprep.subr.mxu0 0.0
    %6379 = vmatpush2.msra.mxu0 1.0
    %6380 = vmatprep.subr.mxu0 0.0
    %6381 = vmatpush2.msra.mxu0 1.0
    %6382 = vmatprep.subr.mxu0 0.0
    %6383 = vmatpush2.msra.mxu0 1.0
    %6384 = vmatprep.subr.mxu0 0.0
    %6385 = vmatpush2.msra.mxu0 1.0
    %6386 = vmatprep.subr.mxu0 0.0
    %6387 = vmatpush2.msra.mxu0 1.0
    %6388 = vmatprep.subr.mxu0 0.0
    %6389 = vmatpush2.msra.mxu0 1.0
    %6390 = vmatprep.subr.mxu0 0.0
    %6391 = vmatpush2.msra.mxu0 1.0
    %6392 = vmatprep.subr.mxu0 0.0
    %6393 = vmatpush2.msra.mxu0 1.0
    %6394 = vmatprep.subr.mxu0 0.0
    %6395 = vmatpush2.msra.mxu0 1.0
    %6396 = vmatprep.subr.mxu0 0.0
    %6397 = vmatpush2.msra.mxu0 1.0
    %6398 = vmatprep.subr.mxu0 0.0
    %6399 = vmatpush2.msra.mxu0 1.0
    %6400 = vmatprep.subr.mxu0 0.0
    %6401 = vmatpush2.msra.mxu0 1.0
    %6402 = vmatprep.mubr.f32.mxu0 %v3887
    %6403 = vmatmul.mubr.f32.gmra.mxu0 %v3886
    %v6404 = vpop.f32.mrf.mxu0
    %v6405 = vadd.f32 0.0, %v6404
    %v6406 = vpop.f32.mrf.mxu0
    %6407 = vdwg.mxu0
    %6408 = vmatprep.subr.mxu0 0.0
    %6409 = vmatpush1.msra.mxu0 1.0
    %6410 = vmatprep.subr.mxu0 0.0
    %6411 = vmatpush1.msra.mxu0 1.0
    %6412 = vmatprep.subr.mxu0 0.0
    %6413 = vmatpush1.msra.mxu0 1.0
    %6414 = vmatprep.subr.mxu0 0.0
    %6415 = vmatpush1.msra.mxu0 1.0
    %6416 = vmatprep.subr.mxu0 0.0
    %6417 = vmatpush1.msra.mxu0 1.0
    %6418 = vmatprep.subr.mxu0 0.0
    %6419 = vmatpush1.msra.mxu0 1.0
    %6420 = vmatprep.subr.mxu0 0.0
    %6421 = vmatpush1.msra.mxu0 1.0
    %6422 = vmatprep.subr.mxu0 0.0
    %6423 = vmatpush1.msra.mxu0 1.0
    %6424 = vmatprep.subr.mxu0 0.0
    %6425 = vmatpush1.msra.mxu0 1.0
    %6426 = vmatprep.subr.mxu0 0.0
    %6427 = vmatpush1.msra.mxu0 1.0
    %6428 = vmatprep.subr.mxu0 0.0
    %6429 = vmatpush1.msra.mxu0 1.0
    %6430 = vmatprep.subr.mxu0 0.0
    %6431 = vmatpush1.msra.mxu0 1.0
    %6432 = vmatprep.subr.mxu0 0.0
    %6433 = vmatpush1.msra.mxu0 1.0
    %6434 = vmatprep.subr.mxu0 0.0
    %6435 = vmatpush1.msra.mxu0 1.0
    %6436 = vmatprep.subr.mxu0 0.0
    %6437 = vmatpush1.msra.mxu0 1.0
    %6438 = vmatprep.subr.mxu0 0.0
    %6439 = vmatpush1.msra.mxu0 1.0
    %6440 = vmatprep.subr.mxu0 0.0
    %6441 = vmatpush2.msra.mxu0 0.0
    %6442 = vmatprep.subr.mxu0 0.0
    %6443 = vmatpush2.msra.mxu0 0.0
    %6444 = vmatprep.subr.mxu0 0.0
    %6445 = vmatpush2.msra.mxu0 0.0
    %6446 = vmatprep.subr.mxu0 0.0
    %6447 = vmatpush2.msra.mxu0 0.0
    %6448 = vmatprep.subr.mxu0 0.0
    %6449 = vmatpush2.msra.mxu0 0.0
    %6450 = vmatprep.subr.mxu0 0.0
    %6451 = vmatpush2.msra.mxu0 0.0
    %6452 = vmatprep.subr.mxu0 0.0
    %6453 = vmatpush2.msra.mxu0 0.0
    %6454 = vmatprep.subr.mxu0 0.0
    %6455 = vmatpush2.msra.mxu0 0.0
    %6456 = vmatprep.subr.mxu0 0.0
    %6457 = vmatpush2.msra.mxu0 0.0
    %6458 = vmatprep.subr.mxu0 0.0
    %6459 = vmatpush2.msra.mxu0 0.0
    %6460 = vmatprep.subr.mxu0 0.0
    %6461 = vmatpush2.msra.mxu0 0.0
    %6462 = vmatprep.subr.mxu0 0.0
    %6463 = vmatpush2.msra.mxu0 0.0
    %6464 = vmatprep.subr.mxu0 0.0
    %6465 = vmatpush2.msra.mxu0 0.0
    %6466 = vmatprep.subr.mxu0 0.0
    %6467 = vmatpush2.msra.mxu0 0.0
    %6468 = vmatprep.subr.mxu0 0.0
    %6469 = vmatpush2.msra.mxu0 1.0
    %6470 = vmatprep.subr.mxu0 0.0
    %6471 = vmatpush2.msra.mxu0 1.0
    %6472 = vmatprep.mubr.f32.mxu0 %v6336
    %6473 = vmatmul.mubr.f32.gmra.mxu0 %v3888
    %v6474 = vpop.f32.mrf.mxu0
    %v6475 = vadd.f32 %v6405, %v6474
    %v6476 = vpop.f32.mrf.mxu0
    %6477 = vdwg.mxu0
    %v6479 = vsel %vm517, %v341, 0
    %6481 = vmatprep.subr.mxu0 0.0
    %6482 = vmatpush1.msra.mxu0 0.0
    %6483 = vmatprep.subr.mxu0 0.0
    %6484 = vmatpush1.msra.mxu0 0.0
    %6485 = vmatprep.subr.mxu0 0.0
    %6486 = vmatpush1.msra.mxu0 0.0
    %6487 = vmatprep.subr.mxu0 0.0
    %6488 = vmatpush1.msra.mxu0 0.0
    %6489 = vmatprep.subr.mxu0 0.0
    %6490 = vmatpush1.msra.mxu0 0.0
    %6491 = vmatprep.subr.mxu0 0.0
    %6492 = vmatpush1.msra.mxu0 0.0
    %6493 = vmatprep.subr.mxu0 0.0
    %6494 = vmatpush1.msra.mxu0 0.0
    %6495 = vmatprep.subr.mxu0 0.0
    %6496 = vmatpush1.msra.mxu0 0.0
    %6497 = vmatprep.subr.mxu0 0.0
    %6498 = vmatpush1.msra.mxu0 0.0
    %6499 = vmatprep.subr.mxu0 0.0
    %6500 = vmatpush1.msra.mxu0 0.0
    %6501 = vmatprep.subr.mxu0 0.0
    %6502 = vmatpush1.msra.mxu0 0.0
    %6503 = vmatprep.subr.mxu0 0.0
    %6504 = vmatpush1.msra.mxu0 0.0
    %6505 = vmatprep.subr.mxu0 0.0
    %6506 = vmatpush1.msra.mxu0 0.0
    %6507 = vmatprep.subr.mxu0 0.0
    %6508 = vmatpush1.msra.mxu0 %v6262
    %6509 = vmatprep.subr.mxu0 0.0
    %6510 = vmatpush1.msra.mxu0 1.0
    %6511 = vmatprep.subr.mxu0 0.0
    %6512 = vmatpush1.msra.mxu0 1.0
    %6513 = vmatprep.subr.mxu0 0.0
    %6514 = vmatpush2.msra.mxu0 0.0
    %6515 = vmatprep.subr.mxu0 0.0
    %6516 = vmatpush2.msra.mxu0 0.0
    %6517 = vmatprep.subr.mxu0 0.0
    %6518 = vmatpush2.msra.mxu0 0.0
    %6519 = vmatprep.subr.mxu0 0.0
    %6520 = vmatpush2.msra.mxu0 0.0
    %6521 = vmatprep.subr.mxu0 0.0
    %6522 = vmatpush2.msra.mxu0 0.0
    %6523 = vmatprep.subr.mxu0 0.0
    %6524 = vmatpush2.msra.mxu0 0.0
    %6525 = vmatprep.subr.mxu0 0.0
    %6526 = vmatpush2.msra.mxu0 0.0
    %6527 = vmatprep.subr.mxu0 0.0
    %6528 = vmatpush2.msra.mxu0 0.0
    %6529 = vmatprep.subr.mxu0 0.0
    %6530 = vmatpush2.msra.mxu0 0.0
    %6531 = vmatprep.subr.mxu0 0.0
    %6532 = vmatpush2.msra.mxu0 0.0
    %6533 = vmatprep.subr.mxu0 0.0
    %6534 = vmatpush2.msra.mxu0 0.0
    %6535 = vmatprep.subr.mxu0 0.0
    %6536 = vmatpush2.msra.mxu0 0.0
    %6537 = vmatprep.subr.mxu0 0.0
    %6538 = vmatpush2.msra.mxu0 0.0
    %6539 = vmatprep.subr.mxu0 0.0
    %6540 = vmatpush2.msra.mxu0 0.0
    %6541 = vmatprep.subr.mxu0 0.0
    %6542 = vmatpush2.msra.mxu0 0.0
    %6543 = vmatprep.subr.mxu0 0.0
    %6544 = vmatpush2.msra.mxu0 0.0
    %6545 = vmatprep.mubr.f32.mxu0 0.0
    %6546 = vmatmul.mubr.f32.gmra.mxu0 %v6479
    %v6547 = vpop.f32.mrf.mxu0
    %v6548 = vadd.f32 0.0, %v6547
    %v6549 = vpop.f32.mrf.mxu0
    %6550 = vdwg.mxu0
    %6552 = vset.pattern.permute.xlu0 0
    %6553 = vperm.xlu0 %6552, %v344
    %v6554 = vpop.permute.xlu0 %6553
    %6557 = vset.pattern.permute.xlu0 0
    %6558 = vperm.xlu0 %6557, %v345
    %v6559 = vpop.permute.xlu0 %6558
    %6562 = vset.pattern.permute.xlu0 0
    %6563 = vperm.xlu0 %6562, %v346
    %v6564 = vpop.permute.xlu0 %6563
    %6567 = vset.pattern.permute.xlu0 0
    %6568 = vperm.xlu0 %6567, %v347
    %v6569 = vpop.permute.xlu0 %6568
    %v6571 = vmul.f32 %v6554, %v227
    %v6572 = vmul.f32 %v6559, %v228
    %v6573 = vmul.f32 %v6564, %v229
    %v6574 = vmul.f32 %v6569, %v230
    %v6575 = vmul.f32 %v6554, %v4979
    %v6576 = vmul.f32 %v6559, %v4980
    %v6577 = vmul.f32 %v6564, %v4981
    %v6578 = vmul.f32 %v6569, %v4982
    %v6579 = vmul.f32 %v6331, 0.05
    %v6580 = vmul.f32 %v6475, 0.2
    %v6581 = vadd.f32 %v6579, %v6580
    %v6582 = vmul.f32 %v6571, %v4979
    %v6583 = vmul.f32 %v6572, %v4980
    %v6584 = vmul.f32 %v6573, %v4981
    %v6585 = vmul.f32 %v6574, %v4982
    %v6587 = vsel %vm3890, %v235, 0
    %6589 = vmatprep.subr.mxu0 0.0
    %6590 = vmatpush1.msra.mxu0 0.0
    %6591 = vmatprep.subr.mxu0 0.0
    %6592 = vmatpush1.msra.mxu0 0.0
    %6593 = vmatprep.subr.mxu0 0.0
    %6594 = vmatpush1.msra.mxu0 0.0
    %6595 = vmatprep.subr.mxu0 0.0
    %6596 = vmatpush1.msra.mxu0 0.0
    %6597 = vmatprep.subr.mxu0 0.0
    %6598 = vmatpush1.msra.mxu0 0.0
    %6599 = vmatprep.subr.mxu0 0.0
    %6600 = vmatpush1.msra.mxu0 0.0
    %6601 = vmatprep.subr.mxu0 0.0
    %6602 = vmatpush1.msra.mxu0 0.0
    %6603 = vmatprep.subr.mxu0 0.0
    %6604 = vmatpush1.msra.mxu0 0.0
    %6605 = vmatprep.subr.mxu0 0.0
    %6606 = vmatpush1.msra.mxu0 0.0
    %6607 = vmatprep.subr.mxu0 0.0
    %6608 = vmatpush1.msra.mxu0 0.0
    %6609 = vmatprep.subr.mxu0 0.0
    %6610 = vmatpush1.msra.mxu0 0.0
    %6611 = vmatprep.subr.mxu0 0.0
    %6612 = vmatpush1.msra.mxu0 0.0
    %6613 = vmatprep.subr.mxu0 0.0
    %6614 = vmatpush1.msra.mxu0 %v6585
    %6615 = vmatprep.subr.mxu0 0.0
    %6616 = vmatpush1.msra.mxu0 %v6584
    %6617 = vmatprep.subr.mxu0 0.0
    %6618 = vmatpush1.msra.mxu0 %v6583
    %6619 = vmatprep.subr.mxu0 0.0
    %6620 = vmatpush1.msra.mxu0 %v6582
    %6621 = vmatprep.subr.mxu0 0.0
    %6622 = vmatpush2.msra.mxu0 0.0
    %6623 = vmatprep.subr.mxu0 0.0
    %6624 = vmatpush2.msra.mxu0 0.0
    %6625 = vmatprep.subr.mxu0 0.0
    %6626 = vmatpush2.msra.mxu0 0.0
    %6627 = vmatprep.subr.mxu0 0.0
    %6628 = vmatpush2.msra.mxu0 0.0
    %6629 = vmatprep.subr.mxu0 0.0
    %6630 = vmatpush2.msra.mxu0 0.0
    %6631 = vmatprep.subr.mxu0 0.0
    %6632 = vmatpush2.msra.mxu0 0.0
    %6633 = vmatprep.subr.mxu0 0.0
    %6634 = vmatpush2.msra.mxu0 0.0
    %6635 = vmatprep.subr.mxu0 0.0
    %6636 = vmatpush2.msra.mxu0 0.0
    %6637 = vmatprep.subr.mxu0 0.0
    %6638 = vmatpush2.msra.mxu0 0.0
    %6639 = vmatprep.subr.mxu0 0.0
    %6640 = vmatpush2.msra.mxu0 0.0
    %6641 = vmatprep.subr.mxu0 0.0
    %6642 = vmatpush2.msra.mxu0 0.0
    %6643 = vmatprep.subr.mxu0 0.0
    %6644 = vmatpush2.msra.mxu0 0.0
    %6645 = vmatprep.subr.mxu0 0.0
    %6646 = vmatpush2.msra.mxu0 0.0
    %6647 = vmatprep.subr.mxu0 0.0
    %6648 = vmatpush2.msra.mxu0 0.0
    %6649 = vmatprep.subr.mxu0 0.0
    %6650 = vmatpush2.msra.mxu0 0.0
    %6651 = vmatprep.subr.mxu0 0.0
    %6652 = vmatpush2.msra.mxu0 0.0
    %6653 = vmatprep.mubr.f32.mxu0 0.0
    %6654 = vmatmul.mubr.f32.gmra.mxu0 %v6587
    %v6655 = vpop.f32.mrf.mxu0
    %v6656 = vadd.f32 0.0, %v6655
    %v6657 = vpop.f32.mrf.mxu0
    %6658 = vdwg.mxu0
    %v6659 = vmul.f32 %v6656, 5.0
    %6661 = vset.pattern.permute.xlu0 0
    %6662 = vperm.xlu0 %6661, %v6581
    %v6663 = vpop.permute.xlu0 %6662
    %v6665 = vadd.f32 %v6663, %v6659
    %v6666 = vmul.f32 %v6665, %v6665
    %v6667 = vadd.f32 %v338, %v6666
    %v6669 = vsel %vm521, %v255, 0
    %v6672 = vsel %vm521, %v256, 0
    %v6675 = vsel %vm521, %v257, 0
    %v6678 = vsel %vm521, %v258, 0
    %6680 = vmatprep.subr.mxu0 0.0
    %6681 = vmatpush1.msra.mxu0 0.0
    %6682 = vmatprep.subr.mxu0 0.0
    %6683 = vmatpush1.msra.mxu0 0.0
    %6684 = vmatprep.subr.mxu0 0.0
    %6685 = vmatpush1.msra.mxu0 0.0
    %6686 = vmatprep.subr.mxu0 0.0
    %6687 = vmatpush1.msra.mxu0 0.0
    %6688 = vmatprep.subr.mxu0 0.0
    %6689 = vmatpush1.msra.mxu0 0.0
    %6690 = vmatprep.subr.mxu0 0.0
    %6691 = vmatpush1.msra.mxu0 0.0
    %6692 = vmatprep.subr.mxu0 0.0
    %6693 = vmatpush1.msra.mxu0 0.0
    %6694 = vmatprep.subr.mxu0 0.0
    %6695 = vmatpush1.msra.mxu0 0.0
    %6696 = vmatprep.subr.mxu0 0.0
    %6697 = vmatpush1.msra.mxu0 0.0
    %6698 = vmatprep.subr.mxu0 0.0
    %6699 = vmatpush1.msra.mxu0 0.0
    %6700 = vmatprep.subr.mxu0 0.0
    %6701 = vmatpush1.msra.mxu0 0.0
    %6702 = vmatprep.subr.mxu0 0.0
    %6703 = vmatpush1.msra.mxu0 0.0
    %6704 = vmatprep.subr.mxu0 0.0
    %6705 = vmatpush1.msra.mxu0 0.0
    %6706 = vmatprep.subr.mxu0 %v6672
    %6707 = vmatpush1.msra.mxu0 %v6669
    %6708 = vmatprep.subr.mxu0 %v252
    %6709 = vmatpush1.msra.mxu0 %v251
    %6710 = vmatprep.subr.mxu0 %v248
    %6711 = vmatpush1.msra.mxu0 %v247
    %6712 = vmatprep.subr.mxu0 0.0
    %6713 = vmatpush2.msra.mxu0 0.0
    %6714 = vmatprep.subr.mxu0 0.0
    %6715 = vmatpush2.msra.mxu0 0.0
    %6716 = vmatprep.subr.mxu0 0.0
    %6717 = vmatpush2.msra.mxu0 0.0
    %6718 = vmatprep.subr.mxu0 0.0
    %6719 = vmatpush2.msra.mxu0 0.0
    %6720 = vmatprep.subr.mxu0 0.0
    %6721 = vmatpush2.msra.mxu0 0.0
    %6722 = vmatprep.subr.mxu0 0.0
    %6723 = vmatpush2.msra.mxu0 0.0
    %6724 = vmatprep.subr.mxu0 0.0
    %6725 = vmatpush2.msra.mxu0 0.0
    %6726 = vmatprep.subr.mxu0 0.0
    %6727 = vmatpush2.msra.mxu0 0.0
    %6728 = vmatprep.subr.mxu0 0.0
    %6729 = vmatpush2.msra.mxu0 0.0
    %6730 = vmatprep.subr.mxu0 0.0
    %6731 = vmatpush2.msra.mxu0 0.0
    %6732 = vmatprep.subr.mxu0 0.0
    %6733 = vmatpush2.msra.mxu0 0.0
    %6734 = vmatprep.subr.mxu0 0.0
    %6735 = vmatpush2.msra.mxu0 0.0
    %6736 = vmatprep.subr.mxu0 0.0
    %6737 = vmatpush2.msra.mxu0 0.0
    %6738 = vmatprep.subr.mxu0 0.0
    %6739 = vmatpush2.msra.mxu0 0.0
    %6740 = vmatprep.subr.mxu0 0.0
    %6741 = vmatpush2.msra.mxu0 0.0
    %6742 = vmatprep.subr.mxu0 0.0
    %6743 = vmatpush2.msra.mxu0 0.0
    %6744 = vmatprep.mubr.f32.mxu0 0.0
    %6745 = vmatmul.mubr.f32.gmra.mxu0 %v6479
    %v6746 = vpop.f32.mrf.mxu0
    %v6747 = vadd.f32 0.0, %v6746
    %v6748 = vpop.f32.mrf.mxu0
    %v6749 = vadd.f32 0.0, %v6748
    %6750 = vdwg.mxu0
    %6751 = vmatprep.subr.mxu0 0.0
    %6752 = vmatpush1.msra.mxu0 0.0
    %6753 = vmatprep.subr.mxu0 0.0
    %6754 = vmatpush1.msra.mxu0 0.0
    %6755 = vmatprep.subr.mxu0 0.0
    %6756 = vmatpush1.msra.mxu0 0.0
    %6757 = vmatprep.subr.mxu0 0.0
    %6758 = vmatpush1.msra.mxu0 0.0
    %6759 = vmatprep.subr.mxu0 0.0
    %6760 = vmatpush1.msra.mxu0 0.0
    %6761 = vmatprep.subr.mxu0 0.0
    %6762 = vmatpush1.msra.mxu0 0.0
    %6763 = vmatprep.subr.mxu0 0.0
    %6764 = vmatpush1.msra.mxu0 0.0
    %6765 = vmatprep.subr.mxu0 0.0
    %6766 = vmatpush1.msra.mxu0 0.0
    %6767 = vmatprep.subr.mxu0 0.0
    %6768 = vmatpush1.msra.mxu0 0.0
    %6769 = vmatprep.subr.mxu0 0.0
    %6770 = vmatpush1.msra.mxu0 0.0
    %6771 = vmatprep.subr.mxu0 0.0
    %6772 = vmatpush1.msra.mxu0 0.0
    %6773 = vmatprep.subr.mxu0 0.0
    %6774 = vmatpush1.msra.mxu0 0.0
    %6775 = vmatprep.subr.mxu0 0.0
    %6776 = vmatpush1.msra.mxu0 0.0
    %6777 = vmatprep.subr.mxu0 %v6678
    %6778 = vmatpush1.msra.mxu0 %v6675
    %6779 = vmatprep.subr.mxu0 %v254
    %6780 = vmatpush1.msra.mxu0 %v253
    %6781 = vmatprep.subr.mxu0 %v250
    %6782 = vmatpush1.msra.mxu0 %v249
    %6783 = vmatprep.subr.mxu0 0.0
    %6784 = vmatpush2.msra.mxu0 0.0
    %6785 = vmatprep.subr.mxu0 0.0
    %6786 = vmatpush2.msra.mxu0 0.0
    %6787 = vmatprep.subr.mxu0 0.0
    %6788 = vmatpush2.msra.mxu0 0.0
    %6789 = vmatprep.subr.mxu0 0.0
    %6790 = vmatpush2.msra.mxu0 0.0
    %6791 = vmatprep.subr.mxu0 0.0
    %6792 = vmatpush2.msra.mxu0 0.0
    %6793 = vmatprep.subr.mxu0 0.0
    %6794 = vmatpush2.msra.mxu0 0.0
    %6795 = vmatprep.subr.mxu0 0.0
    %6796 = vmatpush2.msra.mxu0 0.0
    %6797 = vmatprep.subr.mxu0 0.0
    %6798 = vmatpush2.msra.mxu0 0.0
    %6799 = vmatprep.subr.mxu0 0.0
    %6800 = vmatpush2.msra.mxu0 0.0
    %6801 = vmatprep.subr.mxu0 0.0
    %6802 = vmatpush2.msra.mxu0 0.0
    %6803 = vmatprep.subr.mxu0 0.0
    %6804 = vmatpush2.msra.mxu0 0.0
    %6805 = vmatprep.subr.mxu0 0.0
    %6806 = vmatpush2.msra.mxu0 0.0
    %6807 = vmatprep.subr.mxu0 0.0
    %6808 = vmatpush2.msra.mxu0 0.0
    %6809 = vmatprep.subr.mxu0 0.0
    %6810 = vmatpush2.msra.mxu0 0.0
    %6811 = vmatprep.subr.mxu0 0.0
    %6812 = vmatpush2.msra.mxu0 0.0
    %6813 = vmatprep.subr.mxu0 0.0
    %6814 = vmatpush2.msra.mxu0 0.0
    %6815 = vmatprep.mubr.f32.mxu0 0.0
    %6816 = vmatmul.mubr.f32.gmra.mxu0 %v6479
    %v6817 = vpop.f32.mrf.mxu0
    %v6818 = vadd.f32 0.0, %v6817
    %v6819 = vpop.f32.mrf.mxu0
    %v6820 = vadd.f32 0.0, %v6819
    %6821 = vdwg.mxu0
    %v6822 = vmul.f32 %v3886, %v6747
    %v6823 = vmul.f32 %v3887, %v6749
    %v6824 = vmul.f32 %v3888, %v6818
    %v6825 = vmul.f32 %v3889, %v6820
    %v6827 = vsel %vm6334, %v6825, 0
    %6829 = vmatprep.subr.mxu0 0.0
    %6830 = vmatpush1.msra.mxu0 %v274
    %6831 = vmatprep.subr.mxu0 0.0
    %6832 = vmatpush1.msra.mxu0 %v273
    %6833 = vmatprep.subr.mxu0 0.0
    %6834 = vmatpush1.msra.mxu0 %v272
    %6835 = vmatprep.subr.mxu0 0.0
    %6836 = vmatpush1.msra.mxu0 %v271
    %6837 = vmatprep.subr.mxu0 0.0
    %6838 = vmatpush1.msra.mxu0 %v270
    %6839 = vmatprep.subr.mxu0 0.0
    %6840 = vmatpush1.msra.mxu0 %v269
    %6841 = vmatprep.subr.mxu0 0.0
    %6842 = vmatpush1.msra.mxu0 %v268
    %6843 = vmatprep.subr.mxu0 0.0
    %6844 = vmatpush1.msra.mxu0 %v267
    %6845 = vmatprep.subr.mxu0 0.0
    %6846 = vmatpush1.msra.mxu0 %v266
    %6847 = vmatprep.subr.mxu0 0.0
    %6848 = vmatpush1.msra.mxu0 %v265
    %6849 = vmatprep.subr.mxu0 0.0
    %6850 = vmatpush1.msra.mxu0 %v264
    %6851 = vmatprep.subr.mxu0 0.0
    %6852 = vmatpush1.msra.mxu0 %v263
    %6853 = vmatprep.subr.mxu0 0.0
    %6854 = vmatpush1.msra.mxu0 %v262
    %6855 = vmatprep.subr.mxu0 0.0
    %6856 = vmatpush1.msra.mxu0 %v261
    %6857 = vmatprep.subr.mxu0 0.0
    %6858 = vmatpush1.msra.mxu0 %v260
    %6859 = vmatprep.subr.mxu0 0.0
    %6860 = vmatpush1.msra.mxu0 %v259
    %6861 = vmatprep.subr.mxu0 0.0
    %6862 = vmatpush2.msra.mxu0 %v290
    %6863 = vmatprep.subr.mxu0 0.0
    %6864 = vmatpush2.msra.mxu0 %v289
    %6865 = vmatprep.subr.mxu0 0.0
    %6866 = vmatpush2.msra.mxu0 %v288
    %6867 = vmatprep.subr.mxu0 0.0
    %6868 = vmatpush2.msra.mxu0 %v287
    %6869 = vmatprep.subr.mxu0 0.0
    %6870 = vmatpush2.msra.mxu0 %v286
    %6871 = vmatprep.subr.mxu0 0.0
    %6872 = vmatpush2.msra.mxu0 %v285
    %6873 = vmatprep.subr.mxu0 0.0
    %6874 = vmatpush2.msra.mxu0 %v284
    %6875 = vmatprep.subr.mxu0 0.0
    %6876 = vmatpush2.msra.mxu0 %v283
    %6877 = vmatprep.subr.mxu0 0.0
    %6878 = vmatpush2.msra.mxu0 %v282
    %6879 = vmatprep.subr.mxu0 0.0
    %6880 = vmatpush2.msra.mxu0 %v281
    %6881 = vmatprep.subr.mxu0 0.0
    %6882 = vmatpush2.msra.mxu0 %v280
    %6883 = vmatprep.subr.mxu0 0.0
    %6884 = vmatpush2.msra.mxu0 %v279
    %6885 = vmatprep.subr.mxu0 0.0
    %6886 = vmatpush2.msra.mxu0 %v278
    %6887 = vmatprep.subr.mxu0 0.0
    %6888 = vmatpush2.msra.mxu0 %v277
    %6889 = vmatprep.subr.mxu0 0.0
    %6890 = vmatpush2.msra.mxu0 %v276
    %6891 = vmatprep.subr.mxu0 0.0
    %6892 = vmatpush2.msra.mxu0 %v275
    %6893 = vmatprep.mubr.f32.mxu0 %v6823
    %6894 = vmatmul.mubr.f32.gmra.mxu0 %v6822
    %v6895 = vpop.f32.mrf.mxu0
    %v6896 = vadd.f32 0.0, %v6895
    %v6897 = vpop.f32.mrf.mxu0
    %6898 = vdwg.mxu0
    %6899 = vmatprep.subr.mxu0 0.0
    %6900 = vmatpush1.msra.mxu0 %v306
    %6901 = vmatprep.subr.mxu0 0.0
    %6902 = vmatpush1.msra.mxu0 %v305
    %6903 = vmatprep.subr.mxu0 0.0
    %6904 = vmatpush1.msra.mxu0 %v304
    %6905 = vmatprep.subr.mxu0 0.0
    %6906 = vmatpush1.msra.mxu0 %v303
    %6907 = vmatprep.subr.mxu0 0.0
    %6908 = vmatpush1.msra.mxu0 %v302
    %6909 = vmatprep.subr.mxu0 0.0
    %6910 = vmatpush1.msra.mxu0 %v301
    %6911 = vmatprep.subr.mxu0 0.0
    %6912 = vmatpush1.msra.mxu0 %v300
    %6913 = vmatprep.subr.mxu0 0.0
    %6914 = vmatpush1.msra.mxu0 %v299
    %6915 = vmatprep.subr.mxu0 0.0
    %6916 = vmatpush1.msra.mxu0 %v298
    %6917 = vmatprep.subr.mxu0 0.0
    %6918 = vmatpush1.msra.mxu0 %v297
    %6919 = vmatprep.subr.mxu0 0.0
    %6920 = vmatpush1.msra.mxu0 %v296
    %6921 = vmatprep.subr.mxu0 0.0
    %6922 = vmatpush1.msra.mxu0 %v295
    %6923 = vmatprep.subr.mxu0 0.0
    %6924 = vmatpush1.msra.mxu0 %v294
    %6925 = vmatprep.subr.mxu0 0.0
    %6926 = vmatpush1.msra.mxu0 %v293
    %6927 = vmatprep.subr.mxu0 0.0
    %6928 = vmatpush1.msra.mxu0 %v292
    %6929 = vmatprep.subr.mxu0 0.0
    %6930 = vmatpush1.msra.mxu0 %v291
    %6931 = vmatprep.subr.mxu0 0.0
    %6932 = vmatpush2.msra.mxu0 0.0
    %6933 = vmatprep.subr.mxu0 0.0
    %6934 = vmatpush2.msra.mxu0 0.0
    %6935 = vmatprep.subr.mxu0 0.0
    %6936 = vmatpush2.msra.mxu0 0.0
    %6937 = vmatprep.subr.mxu0 0.0
    %6938 = vmatpush2.msra.mxu0 0.0
    %6939 = vmatprep.subr.mxu0 0.0
    %6940 = vmatpush2.msra.mxu0 0.0
    %6941 = vmatprep.subr.mxu0 0.0
    %6942 = vmatpush2.msra.mxu0 0.0
    %6943 = vmatprep.subr.mxu0 0.0
    %6944 = vmatpush2.msra.mxu0 0.0
    %6945 = vmatprep.subr.mxu0 0.0
    %6946 = vmatpush2.msra.mxu0 0.0
    %6947 = vmatprep.subr.mxu0 0.0
    %6948 = vmatpush2.msra.mxu0 0.0
    %6949 = vmatprep.subr.mxu0 0.0
    %6950 = vmatpush2.msra.mxu0 0.0
    %6951 = vmatprep.subr.mxu0 0.0
    %6952 = vmatpush2.msra.mxu0 0.0
    %6953 = vmatprep.subr.mxu0 0.0
    %6954 = vmatpush2.msra.mxu0 0.0
    %6955 = vmatprep.subr.mxu0 0.0
    %6956 = vmatpush2.msra.mxu0 0.0
    %6957 = vmatprep.subr.mxu0 0.0
    %6958 = vmatpush2.msra.mxu0 0.0
    %6959 = vmatprep.subr.mxu0 0.0
    %6960 = vmatpush2.msra.mxu0 %v308
    %6961 = vmatprep.subr.mxu0 0.0
    %6962 = vmatpush2.msra.mxu0 %v307
    %6963 = vmatprep.mubr.f32.mxu0 %v6827
    %6964 = vmatmul.mubr.f32.gmra.mxu0 %v6824
    %v6965 = vpop.f32.mrf.mxu0
    %v6966 = vadd.f32 %v6896, %v6965
    %v6967 = vpop.f32.mrf.mxu0
    %6968 = vdwg.mxu0
    %6970 = vset.pattern.permute.xlu0 0
    %6971 = vperm.xlu0 %6970, %v6579
    %v6972 = vpop.permute.xlu0 %6971
    %v6974 = vsub.f32 %v337, %v6972
    %v6975 = vadd.f32 %v6974, %v6966
    %6976 = vmatprep.subr.mxu0 0.0
    %6977 = vmatpush1.msra.mxu0 0.0
    %6978 = vmatprep.subr.mxu0 0.0
    %6979 = vmatpush1.msra.mxu0 0.0
    %6980 = vmatprep.subr.mxu0 0.0
    %6981 = vmatpush1.msra.mxu0 0.0
    %6982 = vmatprep.subr.mxu0 0.0
    %6983 = vmatpush1.msra.mxu0 0.0
    %6984 = vmatprep.subr.mxu0 0.0
    %6985 = vmatpush1.msra.mxu0 0.0
    %6986 = vmatprep.subr.mxu0 0.0
    %6987 = vmatpush1.msra.mxu0 0.0
    %6988 = vmatprep.subr.mxu0 0.0
    %6989 = vmatpush1.msra.mxu0 0.0
    %6990 = vmatprep.subr.mxu0 0.0
    %6991 = vmatpush1.msra.mxu0 0.0
    %6992 = vmatprep.subr.mxu0 0.0
    %6993 = vmatpush1.msra.mxu0 0.0
    %6994 = vmatprep.subr.mxu0 0.0
    %6995 = vmatpush1.msra.mxu0 0.0
    %6996 = vmatprep.subr.mxu0 0.0
    %6997 = vmatpush1.msra.mxu0 0.0
    %6998 = vmatprep.subr.mxu0 0.0
    %6999 = vmatpush1.msra.mxu0 0.0
    %7000 = vmatprep.subr.mxu0 0.0
    %7001 = vmatpush1.msra.mxu0 %v6578
    %7002 = vmatprep.subr.mxu0 0.0
    %7003 = vmatpush1.msra.mxu0 %v6577
    %7004 = vmatprep.subr.mxu0 0.0
    %7005 = vmatpush1.msra.mxu0 %v6576
    %7006 = vmatprep.subr.mxu0 0.0
    %7007 = vmatpush1.msra.mxu0 %v6575
    %7008 = vmatprep.subr.mxu0 0.0
    %7009 = vmatpush2.msra.mxu0 0.0
    %7010 = vmatprep.subr.mxu0 0.0
    %7011 = vmatpush2.msra.mxu0 0.0
    %7012 = vmatprep.subr.mxu0 0.0
    %7013 = vmatpush2.msra.mxu0 0.0
    %7014 = vmatprep.subr.mxu0 0.0
    %7015 = vmatpush2.msra.mxu0 0.0
    %7016 = vmatprep.subr.mxu0 0.0
    %7017 = vmatpush2.msra.mxu0 0.0
    %7018 = vmatprep.subr.mxu0 0.0
    %7019 = vmatpush2.msra.mxu0 0.0
    %7020 = vmatprep.subr.mxu0 0.0
    %7021 = vmatpush2.msra.mxu0 0.0
    %7022 = vmatprep.subr.mxu0 0.0
    %7023 = vmatpush2.msra.mxu0 0.0
    %7024 = vmatprep.subr.mxu0 0.0
    %7025 = vmatpush2.msra.mxu0 0.0
    %7026 = vmatprep.subr.mxu0 0.0
    %7027 = vmatpush2.msra.mxu0 0.0
    %7028 = vmatprep.subr.mxu0 0.0
    %7029 = vmatpush2.msra.mxu0 0.0
    %7030 = vmatprep.subr.mxu0 0.0
    %7031 = vmatpush2.msra.mxu0 0.0
    %7032 = vmatprep.subr.mxu0 0.0
    %7033 = vmatpush2.msra.mxu0 0.0
    %7034 = vmatprep.subr.mxu0 0.0
    %7035 = vmatpush2.msra.mxu0 0.0
    %7036 = vmatprep.subr.mxu0 0.0
    %7037 = vmatpush2.msra.mxu0 0.0
    %7038 = vmatprep.subr.mxu0 0.0
    %7039 = vmatpush2.msra.mxu0 0.0
    %7040 = vmatprep.mubr.f32.mxu0 0.0
    %7041 = vmatmul.mubr.f32.gmra.mxu0 %v6587
    %v7042 = vpop.f32.mrf.mxu0
    %v7043 = vadd.f32 0.0, %v7042
    %v7044 = vpop.f32.mrf.mxu0
    %7045 = vdwg.mxu0
    %v7046 = vadd.f32 %v6975, %v7043
    %v7048 = vsel %vm4983, %v246, 0
    %7050 = vmatprep.subr.mxu0 0.0
    %7051 = vmatpush1.msra.mxu0 0.0
    %7052 = vmatprep.subr.mxu0 0.0
    %7053 = vmatpush1.msra.mxu0 0.0
    %7054 = vmatprep.subr.mxu0 0.0
    %7055 = vmatpush1.msra.mxu0 0.0
    %7056 = vmatprep.subr.mxu0 0.0
    %7057 = vmatpush1.msra.mxu0 0.0
    %7058 = vmatprep.subr.mxu0 0.0
    %7059 = vmatpush1.msra.mxu0 0.0
    %7060 = vmatprep.subr.mxu0 0.0
    %7061 = vmatpush1.msra.mxu0 0.0
    %7062 = vmatprep.subr.mxu0 0.0
    %7063 = vmatpush1.msra.mxu0 %v6258
    %7064 = vmatprep.subr.mxu0 0.0
    %7065 = vmatpush1.msra.mxu0 %v6257
    %7066 = vmatprep.subr.mxu0 0.0
    %7067 = vmatpush1.msra.mxu0 %v6256
    %7068 = vmatprep.subr.mxu0 0.0
    %7069 = vmatpush1.msra.mxu0 %v6255
    %7070 = vmatprep.subr.mxu0 0.0
    %7071 = vmatpush1.msra.mxu0 %v6254
    %7072 = vmatprep.subr.mxu0 0.0
    %7073 = vmatpush1.msra.mxu0 %v6253
    %7074 = vmatprep.subr.mxu0 0.0
    %7075 = vmatpush1.msra.mxu0 %v6252
    %7076 = vmatprep.subr.mxu0 0.0
    %7077 = vmatpush1.msra.mxu0 %v6251
    %7078 = vmatprep.subr.mxu0 0.0
    %7079 = vmatpush1.msra.mxu0 %v6250
    %7080 = vmatprep.subr.mxu0 0.0
    %7081 = vmatpush1.msra.mxu0 %v6249
    %7082 = vmatprep.subr.mxu0 0.0
    %7083 = vmatpush2.msra.mxu0 0.0
    %7084 = vmatprep.subr.mxu0 0.0
    %7085 = vmatpush2.msra.mxu0 0.0
    %7086 = vmatprep.subr.mxu0 0.0
    %7087 = vmatpush2.msra.mxu0 0.0
    %7088 = vmatprep.subr.mxu0 0.0
    %7089 = vmatpush2.msra.mxu0 0.0
    %7090 = vmatprep.subr.mxu0 0.0
    %7091 = vmatpush2.msra.mxu0 0.0
    %7092 = vmatprep.subr.mxu0 0.0
    %7093 = vmatpush2.msra.mxu0 0.0
    %7094 = vmatprep.subr.mxu0 0.0
    %7095 = vmatpush2.msra.mxu0 0.0
    %7096 = vmatprep.subr.mxu0 0.0
    %7097 = vmatpush2.msra.mxu0 0.0
    %7098 = vmatprep.subr.mxu0 0.0
    %7099 = vmatpush2.msra.mxu0 0.0
    %7100 = vmatprep.subr.mxu0 0.0
    %7101 = vmatpush2.msra.mxu0 0.0
    %7102 = vmatprep.subr.mxu0 0.0
    %7103 = vmatpush2.msra.mxu0 0.0
    %7104 = vmatprep.subr.mxu0 0.0
    %7105 = vmatpush2.msra.mxu0 0.0
    %7106 = vmatprep.subr.mxu0 0.0
    %7107 = vmatpush2.msra.mxu0 0.0
    %7108 = vmatprep.subr.mxu0 0.0
    %7109 = vmatpush2.msra.mxu0 0.0
    %7110 = vmatprep.subr.mxu0 0.0
    %7111 = vmatpush2.msra.mxu0 0.0
    %7112 = vmatprep.subr.mxu0 0.0
    %7113 = vmatpush2.msra.mxu0 0.0
    %7114 = vmatprep.mubr.f32.mxu0 0.0
    %7115 = vmatmul.mubr.f32.gmra.mxu0 %v7048
    %v7116 = vpop.f32.mrf.mxu0
    %v7117 = vadd.f32 0.0, %v7116
    %v7118 = vpop.f32.mrf.mxu0
    %7119 = vdwg.mxu0
    %v7120 = vmul.f32 %v7117, 0.0625
    %v7121 = vsub.f32 %v7046, %v7120
    %v7122 = vmul.f32 %v336, 0.05
    %v7123 = vmul.f32 %v1952, 0.05
    %v7124 = vadd.f32 %v7122, %v7123
    %v7125 = vmul.f32 %v7124, 0.125
    %v7126 = vadd.f32 %v336, %v7125
    %v7127 = vmul.f32 %v1952, 0.2
    %7129 = vset.pattern.permute.xlu0 0
    %7130 = vperm.xlu0 %7129, %v6548
    %v7131 = vpop.permute.xlu0 %7130
    %v7133 = vmul.f32 %v7127, %v7131
    %v7134 = vmul.f32 %v336, %v7133
    %v7135 = vadd.f32 %v7126, %v7134
    %7136 = vmatprep.subr.mxu0 0.0
    %7137 = vmatpush1.msra.mxu0 0.0
    %7138 = vmatprep.subr.mxu0 0.0
    %7139 = vmatpush1.msra.mxu0 0.0
    %7140 = vmatprep.subr.mxu0 0.0
    %7141 = vmatpush1.msra.mxu0 0.0
    %7142 = vmatprep.subr.mxu0 0.0
    %7143 = vmatpush1.msra.mxu0 0.0
    %7144 = vmatprep.subr.mxu0 0.0
    %7145 = vmatpush1.msra.mxu0 0.0
    %7146 = vmatprep.subr.mxu0 0.0
    %7147 = vmatpush1.msra.mxu0 0.0
    %7148 = vmatprep.subr.mxu0 0.0
    %7149 = vmatpush1.msra.mxu0 0.0
    %7150 = vmatprep.subr.mxu0 0.0
    %7151 = vmatpush1.msra.mxu0 0.0
    %7152 = vmatprep.subr.mxu0 0.0
    %7153 = vmatpush1.msra.mxu0 0.0
    %7154 = vmatprep.subr.mxu0 0.0
    %7155 = vmatpush1.msra.mxu0 0.0
    %7156 = vmatprep.subr.mxu0 0.0
    %7157 = vmatpush1.msra.mxu0 0.0
    %7158 = vmatprep.subr.mxu0 0.0
    %7159 = vmatpush1.msra.mxu0 0.0
    %7160 = vmatprep.subr.mxu0 0.0
    %7161 = vmatpush1.msra.mxu0 %v6574
    %7162 = vmatprep.subr.mxu0 0.0
    %7163 = vmatpush1.msra.mxu0 %v6573
    %7164 = vmatprep.subr.mxu0 0.0
    %7165 = vmatpush1.msra.mxu0 %v6572
    %7166 = vmatprep.subr.mxu0 0.0
    %7167 = vmatpush1.msra.mxu0 %v6571
    %7168 = vmatprep.subr.mxu0 0.0
    %7169 = vmatpush2.msra.mxu0 0.0
    %7170 = vmatprep.subr.mxu0 0.0
    %7171 = vmatpush2.msra.mxu0 0.0
    %7172 = vmatprep.subr.mxu0 0.0
    %7173 = vmatpush2.msra.mxu0 0.0
    %7174 = vmatprep.subr.mxu0 0.0
    %7175 = vmatpush2.msra.mxu0 0.0
    %7176 = vmatprep.subr.mxu0 0.0
    %7177 = vmatpush2.msra.mxu0 0.0
    %7178 = vmatprep.subr.mxu0 0.0
    %7179 = vmatpush2.msra.mxu0 0.0
    %7180 = vmatprep.subr.mxu0 0.0
    %7181 = vmatpush2.msra.mxu0 0.0
    %7182 = vmatprep.subr.mxu0 0.0
    %7183 = vmatpush2.msra.mxu0 0.0
    %7184 = vmatprep.subr.mxu0 0.0
    %7185 = vmatpush2.msra.mxu0 0.0
    %7186 = vmatprep.subr.mxu0 0.0
    %7187 = vmatpush2.msra.mxu0 0.0
    %7188 = vmatprep.subr.mxu0 0.0
    %7189 = vmatpush2.msra.mxu0 0.0
    %7190 = vmatprep.subr.mxu0 0.0
    %7191 = vmatpush2.msra.mxu0 0.0
    %7192 = vmatprep.subr.mxu0 0.0
    %7193 = vmatpush2.msra.mxu0 0.0
    %7194 = vmatprep.subr.mxu0 0.0
    %7195 = vmatpush2.msra.mxu0 0.0
    %7196 = vmatprep.subr.mxu0 0.0
    %7197 = vmatpush2.msra.mxu0 0.0
    %7198 = vmatprep.subr.mxu0 0.0
    %7199 = vmatpush2.msra.mxu0 0.0
    %7200 = vmatprep.mubr.f32.mxu0 0.0
    %7201 = vmatmul.mubr.f32.gmra.mxu0 %v6587
    %v7202 = vpop.f32.mrf.mxu0
    %v7203 = vadd.f32 0.0, %v7202
    %v7204 = vpop.f32.mrf.mxu0
    %7205 = vdwg.mxu0
    %v7206 = vmul.f32 %v1952, %v7203
    %v7207 = vadd.f32 %v7135, %v7206
    %v7208 = vmul.f32 %v1952, -0.0125
    %v7209 = vsub.f32 %v7207, %v7208
  $region222: #{whole_net_forward.1} parent=0 // loop_footer
    %s335 = sadd.s32 1, %s331
  $region223: #{whole_net_forward.1} parent=0 // loop_footer_branch
    %330 = sbr.rel target = $region219
  $region224: #{whole_net_forward.1} parent=0 // loop_exit
    _
  %vm7210 = vcmask 162816
  %7211 = vst.msk [vmem:[%s109] sm:$0xff] %vm7210, %v336
  %7212 = vst.msk [vmem:[%s111] sm:$0xff] %vm7210, %v337
  %7213 = vst.msk [vmem:[%s113] sm:$0xff] %vm7210, %v338
  // Predicated region
  $region225: #{whole_net_forward.1} parent=0 // pred_check
    _
  $region226: #{whole_net_forward.1} parent=0 // pred_check_branch
    %7215 = sbr.rel (0) target = $region228
  $region227: #{whole_net_forward.1} parent=0 // pred_region
    _
  $region228: #{whole_net_forward.1} parent=0 // pred_fallthru
    _
  // Predicated region
  $region229: #{whole_net_forward.1} parent=0 // pred_check
    _
  $region230: #{whole_net_forward.1} parent=0 // pred_check_branch
    %7217 = sbr.rel (0) target = $region232
  $region231: #{whole_net_forward.1} parent=0 // pred_region
    _
  $region232: #{whole_net_forward.1} parent=0 // pred_fallthru
    _
  // Predicated region
  $region233: #{whole_net_forward.1} parent=0 // pred_check
    _
  $region234: #{whole_net_forward.1} parent=0 // pred_check_branch
    %7219 = sbr.rel (0) target = $region236
  $region235: #{whole_net_forward.1} parent=0 // pred_region
    _
  $region236: #{whole_net_forward.1} parent=0 // pred_fallthru
    _
  // Predicated region
  $region237: #{whole_net_forward.1} parent=0 // pred_check
    _
  $region238: #{whole_net_forward.1} parent=0 // pred_check_branch
    %7221 = sbr.rel (0) target = $region240
  $region239: #{whole_net_forward.1} parent=0 // pred_region
    _
  $region240: #{whole_net_forward.1} parent=0 // pred_fallthru
    _
  // Predicated region
  $region241: #{whole_net_forward.1} parent=0 // pred_check
    _
  $region242: #{whole_net_forward.1} parent=0 // pred_check_branch
    %7223 = sbr.rel (0) target = $region244
  $region243: #{whole_net_forward.1} parent=0 // pred_region
    _
  $region244: #{whole_net_forward.1} parent=0 // pred_fallthru
    _
  // Predicated region
  $region245: #{whole_net_forward.1} parent=0 // pred_check
    _
  $region246: #{whole_net_forward.1} parent=0 // pred_check_branch
    %7225 = sbr.rel (0) target = $region248
  $region247: #{whole_net_forward.1} parent=0 // pred_region
    _
  $region248: #{whole_net_forward.1} parent=0 // pred_fallthru
    _

</llo_original>
